<compile_context>
chip_gen: v7x
topology: tpu7x:2x2x1
jax: 0.10.0
libtpu: 0.0.40
codegen_flags: <defaults>
</compile_context>

<pallas_src>
import functools
import math

import jax
import jax.numpy as jnp
from jax import lax
from jax.experimental import pallas as pl
from jax.experimental.pallas import tpu as pltpu

# ----------------------------- small config --------------------------------
HIDDEN = 32            # args.hidden_size
NUM_HEADS = 4          # args.num_attention_heads
HEAD_DIM = HIDDEN // NUM_HEADS
LABEL_LEN = 5          # args.label_len
VOCAB = 100
SEQ_LEN = 8            # text sequence length
BATCH = 2
V_DIM = 2048           # hard-coded in module: nn.Linear(2048, hidden_size)
N_PATCH = 49           # hard-coded in module: image_feat.view(-1, 2048, 49)


# ----------------------------- fused Pallas kernel ---------------------------
def _umt_fused_kernel(text_ref, img_ref, tags1h_ref,
                      mask_tt_ref, mask_tv_ref, mask_vt_ref, crf_mask_ref,
                      w_qkv_ref, v2t_w_ref, g_w_ref, f_w_ref, bias_ref, crf_ref,
                      loss_ref):
    """Whole post-encoder pipeline + CRF NLL for the packed batch, in one invocation.

    text:  (B*T, H) f32          img:   (B*49, 2048) bf16 (channels-last)
    masks: additive block-diagonal (queries x keys) f32
    crf_mask: (2B, T) f32  -- rows [0:B] token mask, rows [B:2B] "last token" indicator
    w_qkv: (H, 3H) bf16    v2t_w: (2048, H) bf16   g_w: (2H, H) bf16   f_w: (2H, L) bf16
    bias:  (4, 3H) f32  -- row0=[bq|bk|bv], row1[:H]=v2t_b, row2[:H]=gate_b, row3[:L]=fc_b
    crf:   (L+2, L) f32 -- row0=start, row1=end, rows2:=transitions
    out:   (1, 1) f32 scalar loss
    """
    H, T, B, L, NH, HD = HIDDEN, SEQ_LEN, BATCH, LABEL_LEN, NUM_HEADS, HEAD_DIM

    w_qkv = w_qkv_ref[...]                       # (H, 3H) bf16
    wq = w_qkv[:, :H]
    wkv = w_qkv[:, H:]                           # fused [K|V] projection
    bias = bias_ref[...]                         # (4, 3H) f32
    bq = bias[0:1, :H]
    bkv = bias[0:1, H:]
    v2t_b = bias[1:2, :H]
    gb = bias[2:3, :H]
    fb = bias[3:4, :L]
    g_w = g_w_ref[...]                           # (2H, H) bf16  rows: [t2i-half; fin-half]
    f_w = f_w_ref[...]                           # (2H, L) bf16  rows: [fin-half; gated-half]
    inv_scale = 1.0 / math.sqrt(HD)

    def mha(former, latter, add_mask):
        # former: (Nq, H) f32, latter: (Nk, H) f32, add_mask: (Nq, Nk) additive f32.
        fo = former.astype(jnp.bfloat16)
        la = latter.astype(jnp.bfloat16)
        q = jnp.dot(fo, wq, preferred_element_type=jnp.float32) + bq      # (Nq, H)
        kv = jnp.dot(la, wkv, preferred_element_type=jnp.float32) + bkv   # (Nk, 2H)
        heads = []
        for h in range(NH):                      # static unrolled head loop
            qh = q[:, h * HD:(h + 1) * HD].astype(jnp.bfloat16)
            kh = kv[:, h * HD:(h + 1) * HD].astype(jnp.bfloat16)
            vh = kv[:, H + h * HD:H + (h + 1) * HD].astype(jnp.bfloat16)
            # scores = Qh @ Kh^T (contract head_dim), bf16 operands, f32 accumulation
            scores = lax.dot_general(qh, kh, (((1,), (1,)), ((), ())),
                                     preferred_element_type=jnp.float32)
            scores = scores * inv_scale + add_mask
            scores = scores - jnp.max(scores, axis=-1, keepdims=True)
            p = jnp.exp(scores)
            p = p / jnp.sum(p, axis=-1, keepdims=True)
            # attention dropout: identity (eval semantics)
            heads.append(jnp.dot(p.astype(jnp.bfloat16), vh,
                                 preferred_element_type=jnp.float32))
        # permute(0,2,1,3).view(..., all_head_size) == concat heads along the last dim
        return jnp.concatenate(heads, axis=-1)   # (Nq, H) f32

    txt = text_ref[...]                          # (B*T, H)
    m_tt = mask_tt_ref[...]
    m_tv = mask_tv_ref[...]
    m_vt = mask_vt_ref[...]

    # v2t image projection: (B*49, 2048) bf16 @ (2048, H) bf16, f32 accumulation.
    vis = jnp.dot(img_ref[...], v2t_w_ref[...],
                  preferred_element_type=jnp.float32) + v2t_b              # (B*49, H)

    aug = mha(txt, txt, m_tt)                    # augmented_text          (B*T, H)
    t2i = mha(aug, vis, m_tv)                    # text2image_attention    (B*T, H)
    i2t = mha(vis, aug, m_vt)                    # image2text_attention    (B*49, H)
    fin = mha(aug, i2t, m_tv)                    # final_text              (B*T, H)

    # gate(cat(t2i, fin)): two half-dots (no lane concat)
    gate = jax.nn.sigmoid(
        jnp.dot(t2i.astype(jnp.bfloat16), g_w[:H, :], preferred_element_type=jnp.float32)
        + jnp.dot(fin.astype(jnp.bfloat16), g_w[H:, :], preferred_element_type=jnp.float32)
        + gb)
    gated = gate * t2i                           # (B*T, H) f32

    # fc(cat(fin, gated)): two half-dots
    logits = (jnp.dot(fin.astype(jnp.bfloat16), f_w[:H, :], preferred_element_type=jnp.float32)
              + jnp.dot(gated.astype(jnp.bfloat16), f_w[H:, :], preferred_element_type=jnp.float32)
              + fb)                              # (B*T, L) f32

    # ----------------- CRF negative log-likelihood (fused, torchcrf semantics) --------
    crf = crf_ref[...]
    start = crf[0:1, :]                          # (1, L)
    end = crf[1:2, :]                            # (1, L)
    trans = crf[2:, :]                           # (L, L)
    exp_trans = jnp.exp(trans)                   # for the log-space forward recursion
    cm = crf_mask_ref[...]                       # (2B, T)
    tags1h = tags1h_ref[...]                     # (B*T, L) one-hot gold tags

    llh = jnp.zeros((1, 1), jnp.float32)
    for b in range(B):                           # static unroll, B=2
        em = logits[b * T:(b + 1) * T, :]        # (T, L)
        oh = tags1h[b * T:(b + 1) * T, :]        # (T, L)
        mk = cm[b:b + 1, :]                      # (1, T)   (mask[0] == 1, torchcrf req.)
        is_last = cm[B + b:B + b + 1, :]         # (1, T)   indicator of seq_end position

        # numerator: score of the gold tag sequence
        emit_col = jnp.sum(em * oh, axis=-1, keepdims=True)                    # (T, 1)
        trans_rows = jnp.dot(oh, trans, preferred_element_type=jnp.float32)    # (T, L)
        trans_col = jnp.sum(trans_rows[:T - 1, :] * oh[1:, :],
                            axis=-1, keepdims=True)                            # (T-1, 1)
        last_oh = jnp.dot(is_last, oh, preferred_element_type=jnp.float32)     # (1, L)
        num = (jnp.sum(start * oh[0:1, :], axis=-1, keepdims=True)
               + jnp.dot(mk, emit_col, preferred_element_type=jnp.float32)
               + jnp.dot(mk[:, 1:], trans_col, preferred_element_type=jnp.float32)
               + jnp.sum(last_oh * end, axis=-1, keepdims=True))               # (1, 1)

        # denominator: log partition, alpha kept as a (1, L) lane row (no transposes)
        alpha = start + em[0:1, :]
        for t in range(1, T):                    # static unroll over T=8
            c = jnp.max(alpha, axis=-1, keepdims=True)
            nxt = (c + jnp.log(jnp.dot(jnp.exp(alpha - c), exp_trans,
                                       preferred_element_type=jnp.float32))
                   + em[t:t + 1, :])
            m_t = mk[:, t:t + 1]
            alpha = m_t * nxt + (1.0 - m_t) * alpha
        zrow = alpha + end
        zc = jnp.max(zrow, axis=-1, keepdims=True)
        log_z = zc + jnp.log(jnp.sum(jnp.exp(zrow - zc), axis=-1, keepdims=True))
        llh = llh + (num - log_z)

    loss_ref[...] = llh * (-1.0 / B)             # reduction='mean', negated


# ----------------------------- params ----------------------------------------
def init_params(key):
    ks = iter(jax.random.split(key, 24))

    def lin(din, dout):
        w = jax.random.normal(next(ks), (din, dout), jnp.float32) * 0.02
        b = jax.random.normal(next(ks), (dout,), jnp.float32) * 0.02
        return w, b

    p = {}
    # TODO(synk): BertModel.from_pretrained cannot be reproduced in-script; a deterministic
    # (word + position + segment) embedding sum is used as the text encoder stand-in.
    p["word_emb"] = jax.random.normal(next(ks), (VOCAB, HIDDEN), jnp.float32) * 0.02
    p["pos_emb"] = jax.random.normal(next(ks), (SEQ_LEN, HIDDEN), jnp.float32) * 0.02
    p["seg_emb"] = jax.random.normal(next(ks), (2, HIDDEN), jnp.float32) * 0.02
    p["wq"], p["bq"] = lin(HIDDEN, HIDDEN)
    p["wk"], p["bk"] = lin(HIDDEN, HIDDEN)
    p["wv"], p["bv"] = lin(HIDDEN, HIDDEN)
    p["v2t_w"], p["v2t_b"] = lin(V_DIM, HIDDEN)
    p["gate_w"], p["gate_b"] = lin(2 * HIDDEN, HIDDEN)
    p["fc_w"], p["fc_b"] = lin(2 * HIDDEN, LABEL_LEN)
    # CRF params (torchcrf init: uniform(-0.1, 0.1))
    p["crf_start"] = jax.random.uniform(next(ks), (LABEL_LEN,), jnp.float32, -0.1, 0.1)
    p["crf_end"] = jax.random.uniform(next(ks), (LABEL_LEN,), jnp.float32, -0.1, 0.1)
    p["crf_trans"] = jax.random.uniform(next(ks), (LABEL_LEN, LABEL_LEN), jnp.float32, -0.1, 0.1)
    return p


def prepare_params(p):
    """One-time repack of module params into the fused-kernel layout (few packed slabs)."""
    H, L = HIDDEN, LABEL_LEN
    bias = jnp.zeros((4, 3 * H), jnp.float32)
    bias = bias.at[0, :].set(jnp.concatenate([p["bq"], p["bk"], p["bv"]]))
    bias = bias.at[1, :H].set(p["v2t_b"])
    bias = bias.at[2, :H].set(p["gate_b"])
    bias = bias.at[3, :L].set(p["fc_b"])
    return {
        # text encoder stand-in + CRF
        "word_emb": p["word_emb"], "pos_emb": p["pos_emb"], "seg_emb": p["seg_emb"],
        # packed attention / projection weights (bf16 for the MXU, f32 accumulation)
        "w_qkv": jnp.concatenate([p["wq"], p["wk"], p["wv"]], axis=1).astype(jnp.bfloat16),
        "v2t_w": p["v2t_w"].astype(jnp.bfloat16),
        "g_w": p["gate_w"].astype(jnp.bfloat16),   # rows 0:H -> t2i half, H:2H -> fin half
        "f_w": p["fc_w"].astype(jnp.bfloat16),     # rows 0:H -> fin half, H:2H -> gated half
        "bias": bias,
        "crf": jnp.concatenate([p["crf_start"][None, :], p["crf_end"][None, :],
                                p["crf_trans"]], axis=0),
    }


# ----------------------------- model forward ---------------------------------
def umt_mner_forward(kp, input_ids, attention_mask, segment_ids, label_ids,
                     image_feat, image_mask, is_training=True):
    B, T = input_ids.shape
    H, L, NP = HIDDEN, LABEL_LEN, N_PATCH

    # Text encoder stand-in (see TODO in init_params).  nn.Dropout(0.1): identity (eval).
    # TODO(synk): training-mode dropout randomness not reproduced (identity used).
    text_output = (kp["word_emb"][input_ids]
                   + kp["pos_emb"][None, :T, :]
                   + kp["seg_emb"][segment_ids])                       # (B, T, H) f32
    # The first `logits = self.fc(text_output)` in the reference is dead code
    # (immediately overwritten); skipped.

    # Pack the batch along the sequence (sublane) axis.
    text_all = text_output.reshape(B * T, H)

    # Channels-last bf16 image features -> lane-dense kernel DMA + canonical matmul.
    # TODO(synk): ideally the upstream image encoder emits (B, 49, 2048) bf16 directly.
    img_all = (jnp.transpose(image_feat.reshape(B, V_DIM, NP), (0, 2, 1))
               .reshape(B * NP, V_DIM).astype(jnp.bfloat16))

    tmask = attention_mask.astype(jnp.float32)                         # (B, T)
    vmask = image_mask.astype(jnp.float32)                             # (B, NP)

    # Block-diagonal additive masks over the packed (batch*seq) axes: 0 for same-batch
    # unmasked keys, -10000 otherwise (matches the module's additive -10000 masking and
    # zeroes cross-batch attention exactly after softmax).
    tb = jnp.repeat(jnp.arange(B), T)
    vb = jnp.repeat(jnp.arange(B), NP)
    tvalid = tmask.reshape(B * T)
    vvalid = vmask.reshape(B * NP)

    def add_mask(q_b, k_b, k_valid):
        same = (q_b[:, None] == k_b[None, :]).astype(jnp.float32)
        return (1.0 - same * k_valid[None, :]) * -10000.0

    m_tt = add_mask(tb, tb, tvalid)                                    # (B*T, B*T)
    m_tv = add_mask(tb, vb, vvalid)                                    # (B*T, B*NP)
    m_vt = add_mask(vb, tb, tvalid)                                    # (B*NP, B*T)

    # CRF mask rows + "last valid position" indicator rows (torchcrf seq_ends semantics).
    seq_len = jnp.sum(tmask, axis=1, keepdims=True)                    # (B, 1)
    is_last = (jnp.arange(T, dtype=jnp.float32)[None, :]
               == (seq_len - 1.0)).astype(jnp.float32)                 # (B, T)
    crf_mask = jnp.concatenate([tmask, is_last], axis=0)               # (2B, T)

    tags1h = jax.nn.one_hot(label_ids, L, dtype=jnp.float32).reshape(B * T, L)

    # Single fused kernel invocation (no grid): everything stays in VMEM, scalar loss out.
    loss = pl.pallas_call(
        _umt_fused_kernel,
        out_shape=jax.ShapeDtypeStruct((1, 1), jnp.float32),
    )(text_all, img_all, tags1h, m_tt, m_tv, m_vt, crf_mask,
      kp["w_qkv"], kp["v2t_w"], kp["g_w"], kp["f_w"], kp["bias"], kp["crf"])

    if is_training:
        return loss[0, 0]
    else:
        # TODO(synk): CRF Viterbi decode (inference path) not implemented.
        raise NotImplementedError("crf.decode path not implemented")


# ----------------------------- main ------------------------------------------
if __name__ == "__main__":
    key = jax.random.PRNGKey(0)
    pkey, k1, k2, k3 = jax.random.split(key, 4)
    params = init_params(pkey)
    kparams = prepare_params(params)

    input_ids = jax.random.randint(k1, (BATCH, SEQ_LEN), 0, VOCAB, jnp.int32)
    attention_mask = jnp.array([[1] * SEQ_LEN,
                                [1] * (SEQ_LEN - 2) + [0] * 2], dtype=jnp.float32)
    segment_ids = jnp.zeros((BATCH, SEQ_LEN), jnp.int32)
    label_ids = jax.random.randint(k2, (BATCH, SEQ_LEN), 0, LABEL_LEN, jnp.int32)
    image_feat = jax.random.normal(k3, (BATCH, V_DIM, 7, 7), jnp.float32)   # NCHW conv feats
    image_mask = jnp.ones((BATCH, N_PATCH), jnp.float32)

    fwd = jax.jit(functools.partial(umt_mner_forward, is_training=True))
    loss = fwd(kparams, input_ids, attention_mask, segment_ids,
               label_ids, image_feat, image_mask)
    loss = jax.block_until_ready(loss)
    assert loss.shape == () and bool(jnp.isfinite(loss)), f"bad loss: {loss}"
    print("KERNEL_OK")
</pallas_src>

<mosaic_0001>
module attributes {stable_mosaic.version = 11 : i64} {
  func.func @_umt_fused_kernel(%arg0: memref<16x32xf32, #tpu.memory_space<vmem>>, %arg1: memref<98x2048xbf16, #tpu.memory_space<vmem>>, %arg2: memref<16x5xf32, #tpu.memory_space<vmem>>, %arg3: memref<16x16xf32, #tpu.memory_space<vmem>>, %arg4: memref<16x98xf32, #tpu.memory_space<vmem>>, %arg5: memref<98x16xf32, #tpu.memory_space<vmem>>, %arg6: memref<4x8xf32, #tpu.memory_space<vmem>>, %arg7: memref<32x96xbf16, #tpu.memory_space<vmem>>, %arg8: memref<2048x32xbf16, #tpu.memory_space<vmem>>, %arg9: memref<64x32xbf16, #tpu.memory_space<vmem>>, %arg10: memref<64x5xbf16, #tpu.memory_space<vmem>>, %arg11: memref<4x96xf32, #tpu.memory_space<vmem>>, %arg12: memref<7x5xf32, #tpu.memory_space<vmem>>, %arg13: memref<1x1xf32, #tpu.memory_space<vmem>>) attributes {dimension_semantics = [], scalar_prefetch = 0 : i64, scratch_operands = 0 : i64, tpu.core_type = #tpu.core_type<tc>} {
    %c0 = arith.constant 0 : index
    %c0_0 = arith.constant 0 : index
    %0 = vector.load %arg7[%c0, %c0_0] : memref<32x96xbf16, #tpu.memory_space<vmem>>, vector<32x96xbf16>
    %1 = vector.extract_strided_slice %0 {offsets = [0, 0], sizes = [32, 32], strides = [1, 1]} : vector<32x96xbf16> to vector<32x32xbf16>
    %2 = vector.extract_strided_slice %0 {offsets = [0, 32], sizes = [32, 64], strides = [1, 1]} : vector<32x96xbf16> to vector<32x64xbf16>
    %c0_1 = arith.constant 0 : index
    %c0_2 = arith.constant 0 : index
    %3 = vector.load %arg11[%c0_1, %c0_2] : memref<4x96xf32, #tpu.memory_space<vmem>>, vector<4x96xf32>
    %4 = vector.extract_strided_slice %3 {offsets = [0, 0], sizes = [1, 32], strides = [1, 1]} : vector<4x96xf32> to vector<1x32xf32>
    %5 = vector.extract_strided_slice %3 {offsets = [0, 32], sizes = [1, 64], strides = [1, 1]} : vector<4x96xf32> to vector<1x64xf32>
    %6 = vector.extract_strided_slice %3 {offsets = [1, 0], sizes = [1, 32], strides = [1, 1]} : vector<4x96xf32> to vector<1x32xf32>
    %7 = vector.extract_strided_slice %3 {offsets = [2, 0], sizes = [1, 32], strides = [1, 1]} : vector<4x96xf32> to vector<1x32xf32>
    %8 = vector.extract_strided_slice %3 {offsets = [3, 0], sizes = [1, 5], strides = [1, 1]} : vector<4x96xf32> to vector<1x5xf32>
    %c0_3 = arith.constant 0 : index
    %c0_4 = arith.constant 0 : index
    %9 = vector.load %arg9[%c0_3, %c0_4] : memref<64x32xbf16, #tpu.memory_space<vmem>>, vector<64x32xbf16>
    %c0_5 = arith.constant 0 : index
    %c0_6 = arith.constant 0 : index
    %10 = vector.load %arg10[%c0_5, %c0_6] : memref<64x5xbf16, #tpu.memory_space<vmem>>, vector<64x5xbf16>
    %c0_7 = arith.constant 0 : index
    %c0_8 = arith.constant 0 : index
    %11 = vector.load %arg0[%c0_7, %c0_8] : memref<16x32xf32, #tpu.memory_space<vmem>>, vector<16x32xf32>
    %c0_9 = arith.constant 0 : index
    %c0_10 = arith.constant 0 : index
    %12 = vector.load %arg3[%c0_9, %c0_10] : memref<16x16xf32, #tpu.memory_space<vmem>>, vector<16x16xf32>
    %c0_11 = arith.constant 0 : index
    %c0_12 = arith.constant 0 : index
    %13 = vector.load %arg4[%c0_11, %c0_12] : memref<16x98xf32, #tpu.memory_space<vmem>>, vector<16x98xf32>
    %c0_13 = arith.constant 0 : index
    %c0_14 = arith.constant 0 : index
    %14 = vector.load %arg5[%c0_13, %c0_14] : memref<98x16xf32, #tpu.memory_space<vmem>>, vector<98x16xf32>
    %c0_15 = arith.constant 0 : index
    %c0_16 = arith.constant 0 : index
    %15 = vector.load %arg1[%c0_15, %c0_16] : memref<98x2048xbf16, #tpu.memory_space<vmem>>, vector<98x2048xbf16>
    %c0_17 = arith.constant 0 : index
    %c0_18 = arith.constant 0 : index
    %16 = vector.load %arg8[%c0_17, %c0_18] : memref<2048x32xbf16, #tpu.memory_space<vmem>>, vector<2048x32xbf16>
    %cst = arith.constant dense<0.000000e+00> : vector<98x32xf32>
    %17 = tpu.matmul %15, %16, %cst {dimension_numbers = #tpu.dot_dimension_numbers<[1], [0], [0], [1], [0, 0, 1, 1], [], []>} : vector<98x2048xbf16>, vector<2048x32xbf16>, vector<98x32xf32> -> vector<98x32xf32>
    %18 = vector.broadcast %6 : vector<1x32xf32> to vector<98x32xf32>
    %19 = arith.addf %17, %18 : vector<98x32xf32>
    %20 = arith.truncf %11 : vector<16x32xf32> to vector<16x32xbf16>
    %21 = arith.truncf %11 : vector<16x32xf32> to vector<16x32xbf16>
    %cst_19 = arith.constant dense<0.000000e+00> : vector<16x32xf32>
    %22 = tpu.matmul %20, %1, %cst_19 {dimension_numbers = #tpu.dot_dimension_numbers<[1], [0], [0], [1], [0, 0, 1, 1], [], []>} : vector<16x32xbf16>, vector<32x32xbf16>, vector<16x32xf32> -> vector<16x32xf32>
    %23 = vector.broadcast %4 : vector<1x32xf32> to vector<16x32xf32>
    %24 = arith.addf %22, %23 : vector<16x32xf32>
    %cst_20 = arith.constant dense<0.000000e+00> : vector<16x64xf32>
    %25 = tpu.matmul %21, %2, %cst_20 {dimension_numbers = #tpu.dot_dimension_numbers<[1], [0], [0], [1], [0, 0, 1, 1], [], []>} : vector<16x32xbf16>, vector<32x64xbf16>, vector<16x64xf32> -> vector<16x64xf32>
    %26 = vector.broadcast %5 : vector<1x64xf32> to vector<16x64xf32>
    %27 = arith.addf %25, %26 : vector<16x64xf32>
    %28 = vector.extract_strided_slice %24 {offsets = [0, 0], sizes = [16, 8], strides = [1, 1]} : vector<16x32xf32> to vector<16x8xf32>
    %29 = arith.truncf %28 : vector<16x8xf32> to vector<16x8xbf16>
    %30 = vector.extract_strided_slice %27 {offsets = [0, 0], sizes = [16, 8], strides = [1, 1]} : vector<16x64xf32> to vector<16x8xf32>
    %31 = arith.truncf %30 : vector<16x8xf32> to vector<16x8xbf16>
    %32 = vector.extract_strided_slice %27 {offsets = [0, 32], sizes = [16, 8], strides = [1, 1]} : vector<16x64xf32> to vector<16x8xf32>
    %33 = arith.truncf %32 : vector<16x8xf32> to vector<16x8xbf16>
    %cst_21 = arith.constant dense<0.000000e+00> : vector<16x16xf32>
    %34 = tpu.matmul %29, %31, %cst_21 {dimension_numbers = #tpu.dot_dimension_numbers<[1], [1], [0], [0], [0, 0, 1, 0], [], []>} : vector<16x8xbf16>, vector<16x8xbf16>, vector<16x16xf32> -> vector<16x16xf32>
    %cst_22 = arith.constant 0.353553385 : f32
    %35 = vector.broadcast %cst_22 : f32 to vector<16x16xf32>
    %36 = arith.mulf %34, %35 : vector<16x16xf32>
    %37 = arith.addf %36, %12 : vector<16x16xf32>
    %cst_23 = arith.constant dense<0xFF800000> : vector<16xf32>
    %38 = vector.multi_reduction <maximumf>, %37, %cst_23 [1] : vector<16x16xf32> to vector<16xf32>
    %39 = vector.shape_cast %38 : vector<16xf32> to vector<16x1xf32>
    %40 = vector.broadcast %39 : vector<16x1xf32> to vector<16x16xf32>
    %41 = arith.subf %37, %40 : vector<16x16xf32>
    %42 = math.exp %41 : vector<16x16xf32>
    %cst_24 = arith.constant dense<0.000000e+00> : vector<16xf32>
    %43 = vector.multi_reduction <add>, %42, %cst_24 [1] : vector<16x16xf32> to vector<16xf32>
    %44 = vector.shape_cast %43 : vector<16xf32> to vector<16x1xf32>
    %45 = vector.broadcast %44 : vector<16x1xf32> to vector<16x16xf32>
    %46 = arith.divf %42, %45 : vector<16x16xf32>
    %47 = arith.truncf %46 : vector<16x16xf32> to vector<16x16xbf16>
    %cst_25 = arith.constant dense<0.000000e+00> : vector<16x8xf32>
    %48 = tpu.matmul %47, %33, %cst_25 {dimension_numbers = #tpu.dot_dimension_numbers<[1], [0], [0], [1], [0, 0, 1, 1], [], []>} : vector<16x16xbf16>, vector<16x8xbf16>, vector<16x8xf32> -> vector<16x8xf32>
    %49 = vector.extract_strided_slice %24 {offsets = [0, 8], sizes = [16, 8], strides = [1, 1]} : vector<16x32xf32> to vector<16x8xf32>
    %50 = arith.truncf %49 : vector<16x8xf32> to vector<16x8xbf16>
    %51 = vector.extract_strided_slice %27 {offsets = [0, 8], sizes = [16, 8], strides = [1, 1]} : vector<16x64xf32> to vector<16x8xf32>
    %52 = arith.truncf %51 : vector<16x8xf32> to vector<16x8xbf16>
    %53 = vector.extract_strided_slice %27 {offsets = [0, 40], sizes = [16, 8], strides = [1, 1]} : vector<16x64xf32> to vector<16x8xf32>
    %54 = arith.truncf %53 : vector<16x8xf32> to vector<16x8xbf16>
    %cst_26 = arith.constant dense<0.000000e+00> : vector<16x16xf32>
    %55 = tpu.matmul %50, %52, %cst_26 {dimension_numbers = #tpu.dot_dimension_numbers<[1], [1], [0], [0], [0, 0, 1, 0], [], []>} : vector<16x8xbf16>, vector<16x8xbf16>, vector<16x16xf32> -> vector<16x16xf32>
    %cst_27 = arith.constant 0.353553385 : f32
    %56 = vector.broadcast %cst_27 : f32 to vector<16x16xf32>
    %57 = arith.mulf %55, %56 : vector<16x16xf32>
    %58 = arith.addf %57, %12 : vector<16x16xf32>
    %cst_28 = arith.constant dense<0xFF800000> : vector<16xf32>
    %59 = vector.multi_reduction <maximumf>, %58, %cst_28 [1] : vector<16x16xf32> to vector<16xf32>
    %60 = vector.shape_cast %59 : vector<16xf32> to vector<16x1xf32>
    %61 = vector.broadcast %60 : vector<16x1xf32> to vector<16x16xf32>
    %62 = arith.subf %58, %61 : vector<16x16xf32>
    %63 = math.exp %62 : vector<16x16xf32>
    %cst_29 = arith.constant dense<0.000000e+00> : vector<16xf32>
    %64 = vector.multi_reduction <add>, %63, %cst_29 [1] : vector<16x16xf32> to vector<16xf32>
    %65 = vector.shape_cast %64 : vector<16xf32> to vector<16x1xf32>
    %66 = vector.broadcast %65 : vector<16x1xf32> to vector<16x16xf32>
    %67 = arith.divf %63, %66 : vector<16x16xf32>
    %68 = arith.truncf %67 : vector<16x16xf32> to vector<16x16xbf16>
    %cst_30 = arith.constant dense<0.000000e+00> : vector<16x8xf32>
    %69 = tpu.matmul %68, %54, %cst_30 {dimension_numbers = #tpu.dot_dimension_numbers<[1], [0], [0], [1], [0, 0, 1, 1], [], []>} : vector<16x16xbf16>, vector<16x8xbf16>, vector<16x8xf32> -> vector<16x8xf32>
    %70 = vector.extract_strided_slice %24 {offsets = [0, 16], sizes = [16, 8], strides = [1, 1]} : vector<16x32xf32> to vector<16x8xf32>
    %71 = arith.truncf %70 : vector<16x8xf32> to vector<16x8xbf16>
    %72 = vector.extract_strided_slice %27 {offsets = [0, 16], sizes = [16, 8], strides = [1, 1]} : vector<16x64xf32> to vector<16x8xf32>
    %73 = arith.truncf %72 : vector<16x8xf32> to vector<16x8xbf16>
    %74 = vector.extract_strided_slice %27 {offsets = [0, 48], sizes = [16, 8], strides = [1, 1]} : vector<16x64xf32> to vector<16x8xf32>
    %75 = arith.truncf %74 : vector<16x8xf32> to vector<16x8xbf16>
    %cst_31 = arith.constant dense<0.000000e+00> : vector<16x16xf32>
    %76 = tpu.matmul %71, %73, %cst_31 {dimension_numbers = #tpu.dot_dimension_numbers<[1], [1], [0], [0], [0, 0, 1, 0], [], []>} : vector<16x8xbf16>, vector<16x8xbf16>, vector<16x16xf32> -> vector<16x16xf32>
    %cst_32 = arith.constant 0.353553385 : f32
    %77 = vector.broadcast %cst_32 : f32 to vector<16x16xf32>
    %78 = arith.mulf %76, %77 : vector<16x16xf32>
    %79 = arith.addf %78, %12 : vector<16x16xf32>
    %cst_33 = arith.constant dense<0xFF800000> : vector<16xf32>
    %80 = vector.multi_reduction <maximumf>, %79, %cst_33 [1] : vector<16x16xf32> to vector<16xf32>
    %81 = vector.shape_cast %80 : vector<16xf32> to vector<16x1xf32>
    %82 = vector.broadcast %81 : vector<16x1xf32> to vector<16x16xf32>
    %83 = arith.subf %79, %82 : vector<16x16xf32>
    %84 = math.exp %83 : vector<16x16xf32>
    %cst_34 = arith.constant dense<0.000000e+00> : vector<16xf32>
    %85 = vector.multi_reduction <add>, %84, %cst_34 [1] : vector<16x16xf32> to vector<16xf32>
    %86 = vector.shape_cast %85 : vector<16xf32> to vector<16x1xf32>
    %87 = vector.broadcast %86 : vector<16x1xf32> to vector<16x16xf32>
    %88 = arith.divf %84, %87 : vector<16x16xf32>
    %89 = arith.truncf %88 : vector<16x16xf32> to vector<16x16xbf16>
    %cst_35 = arith.constant dense<0.000000e+00> : vector<16x8xf32>
    %90 = tpu.matmul %89, %75, %cst_35 {dimension_numbers = #tpu.dot_dimension_numbers<[1], [0], [0], [1], [0, 0, 1, 1], [], []>} : vector<16x16xbf16>, vector<16x8xbf16>, vector<16x8xf32> -> vector<16x8xf32>
    %91 = vector.extract_strided_slice %24 {offsets = [0, 24], sizes = [16, 8], strides = [1, 1]} : vector<16x32xf32> to vector<16x8xf32>
    %92 = arith.truncf %91 : vector<16x8xf32> to vector<16x8xbf16>
    %93 = vector.extract_strided_slice %27 {offsets = [0, 24], sizes = [16, 8], strides = [1, 1]} : vector<16x64xf32> to vector<16x8xf32>
    %94 = arith.truncf %93 : vector<16x8xf32> to vector<16x8xbf16>
    %95 = vector.extract_strided_slice %27 {offsets = [0, 56], sizes = [16, 8], strides = [1, 1]} : vector<16x64xf32> to vector<16x8xf32>
    %96 = arith.truncf %95 : vector<16x8xf32> to vector<16x8xbf16>
    %cst_36 = arith.constant dense<0.000000e+00> : vector<16x16xf32>
    %97 = tpu.matmul %92, %94, %cst_36 {dimension_numbers = #tpu.dot_dimension_numbers<[1], [1], [0], [0], [0, 0, 1, 0], [], []>} : vector<16x8xbf16>, vector<16x8xbf16>, vector<16x16xf32> -> vector<16x16xf32>
    %cst_37 = arith.constant 0.353553385 : f32
    %98 = vector.broadcast %cst_37 : f32 to vector<16x16xf32>
    %99 = arith.mulf %97, %98 : vector<16x16xf32>
    %100 = arith.addf %99, %12 : vector<16x16xf32>
    %cst_38 = arith.constant dense<0xFF800000> : vector<16xf32>
    %101 = vector.multi_reduction <maximumf>, %100, %cst_38 [1] : vector<16x16xf32> to vector<16xf32>
    %102 = vector.shape_cast %101 : vector<16xf32> to vector<16x1xf32>
    %103 = vector.broadcast %102 : vector<16x1xf32> to vector<16x16xf32>
    %104 = arith.subf %100, %103 : vector<16x16xf32>
    %105 = math.exp %104 : vector<16x16xf32>
    %cst_39 = arith.constant dense<0.000000e+00> : vector<16xf32>
    %106 = vector.multi_reduction <add>, %105, %cst_39 [1] : vector<16x16xf32> to vector<16xf32>
    %107 = vector.shape_cast %106 : vector<16xf32> to vector<16x1xf32>
    %108 = vector.broadcast %107 : vector<16x1xf32> to vector<16x16xf32>
    %109 = arith.divf %105, %108 : vector<16x16xf32>
    %110 = arith.truncf %109 : vector<16x16xf32> to vector<16x16xbf16>
    %cst_40 = arith.constant dense<0.000000e+00> : vector<16x8xf32>
    %111 = tpu.matmul %110, %96, %cst_40 {dimension_numbers = #tpu.dot_dimension_numbers<[1], [0], [0], [1], [0, 0, 1, 1], [], []>} : vector<16x16xbf16>, vector<16x8xbf16>, vector<16x8xf32> -> vector<16x8xf32>
    %112 = tpu.concatenate %48, %69, %90, %111 in 1 : vector<16x8xf32>, vector<16x8xf32>, vector<16x8xf32>, vector<16x8xf32> -> vector<16x32xf32>
    %113 = arith.truncf %112 : vector<16x32xf32> to vector<16x32xbf16>
    %114 = arith.truncf %19 : vector<98x32xf32> to vector<98x32xbf16>
    %cst_41 = arith.constant dense<0.000000e+00> : vector<16x32xf32>
    %115 = tpu.matmul %113, %1, %cst_41 {dimension_numbers = #tpu.dot_dimension_numbers<[1], [0], [0], [1], [0, 0, 1, 1], [], []>} : vector<16x32xbf16>, vector<32x32xbf16>, vector<16x32xf32> -> vector<16x32xf32>
    %116 = vector.broadcast %4 : vector<1x32xf32> to vector<16x32xf32>
    %117 = arith.addf %115, %116 : vector<16x32xf32>
    %cst_42 = arith.constant dense<0.000000e+00> : vector<98x64xf32>
    %118 = tpu.matmul %114, %2, %cst_42 {dimension_numbers = #tpu.dot_dimension_numbers<[1], [0], [0], [1], [0, 0, 1, 1], [], []>} : vector<98x32xbf16>, vector<32x64xbf16>, vector<98x64xf32> -> vector<98x64xf32>
    %119 = vector.broadcast %5 : vector<1x64xf32> to vector<98x64xf32>
    %120 = arith.addf %118, %119 : vector<98x64xf32>
    %121 = vector.extract_strided_slice %117 {offsets = [0, 0], sizes = [16, 8], strides = [1, 1]} : vector<16x32xf32> to vector<16x8xf32>
    %122 = arith.truncf %121 : vector<16x8xf32> to vector<16x8xbf16>
    %123 = vector.extract_strided_slice %120 {offsets = [0, 0], sizes = [98, 8], strides = [1, 1]} : vector<98x64xf32> to vector<98x8xf32>
    %124 = arith.truncf %123 : vector<98x8xf32> to vector<98x8xbf16>
    %125 = vector.extract_strided_slice %120 {offsets = [0, 32], sizes = [98, 8], strides = [1, 1]} : vector<98x64xf32> to vector<98x8xf32>
    %126 = arith.truncf %125 : vector<98x8xf32> to vector<98x8xbf16>
    %cst_43 = arith.constant dense<0.000000e+00> : vector<16x98xf32>
    %127 = tpu.matmul %122, %124, %cst_43 {dimension_numbers = #tpu.dot_dimension_numbers<[1], [1], [0], [0], [0, 0, 1, 0], [], []>} : vector<16x8xbf16>, vector<98x8xbf16>, vector<16x98xf32> -> vector<16x98xf32>
    %cst_44 = arith.constant 0.353553385 : f32
    %128 = vector.broadcast %cst_44 : f32 to vector<16x98xf32>
    %129 = arith.mulf %127, %128 : vector<16x98xf32>
    %130 = arith.addf %129, %13 : vector<16x98xf32>
    %cst_45 = arith.constant dense<0xFF800000> : vector<16xf32>
    %131 = vector.multi_reduction <maximumf>, %130, %cst_45 [1] : vector<16x98xf32> to vector<16xf32>
    %132 = vector.shape_cast %131 : vector<16xf32> to vector<16x1xf32>
    %133 = vector.broadcast %132 : vector<16x1xf32> to vector<16x98xf32>
    %134 = arith.subf %130, %133 : vector<16x98xf32>
    %135 = math.exp %134 : vector<16x98xf32>
    %cst_46 = arith.constant dense<0.000000e+00> : vector<16xf32>
    %136 = vector.multi_reduction <add>, %135, %cst_46 [1] : vector<16x98xf32> to vector<16xf32>
    %137 = vector.shape_cast %136 : vector<16xf32> to vector<16x1xf32>
    %138 = vector.broadcast %137 : vector<16x1xf32> to vector<16x98xf32>
    %139 = arith.divf %135, %138 : vector<16x98xf32>
    %140 = arith.truncf %139 : vector<16x98xf32> to vector<16x98xbf16>
    %cst_47 = arith.constant dense<0.000000e+00> : vector<16x8xf32>
    %141 = tpu.matmul %140, %126, %cst_47 {dimension_numbers = #tpu.dot_dimension_numbers<[1], [0], [0], [1], [0, 0, 1, 1], [], []>} : vector<16x98xbf16>, vector<98x8xbf16>, vector<16x8xf32> -> vector<16x8xf32>
    %142 = vector.extract_strided_slice %117 {offsets = [0, 8], sizes = [16, 8], strides = [1, 1]} : vector<16x32xf32> to vector<16x8xf32>
    %143 = arith.truncf %142 : vector<16x8xf32> to vector<16x8xbf16>
    %144 = vector.extract_strided_slice %120 {offsets = [0, 8], sizes = [98, 8], strides = [1, 1]} : vector<98x64xf32> to vector<98x8xf32>
    %145 = arith.truncf %144 : vector<98x8xf32> to vector<98x8xbf16>
    %146 = vector.extract_strided_slice %120 {offsets = [0, 40], sizes = [98, 8], strides = [1, 1]} : vector<98x64xf32> to vector<98x8xf32>
    %147 = arith.truncf %146 : vector<98x8xf32> to vector<98x8xbf16>
    %cst_48 = arith.constant dense<0.000000e+00> : vector<16x98xf32>
    %148 = tpu.matmul %143, %145, %cst_48 {dimension_numbers = #tpu.dot_dimension_numbers<[1], [1], [0], [0], [0, 0, 1, 0], [], []>} : vector<16x8xbf16>, vector<98x8xbf16>, vector<16x98xf32> -> vector<16x98xf32>
    %cst_49 = arith.constant 0.353553385 : f32
    %149 = vector.broadcast %cst_49 : f32 to vector<16x98xf32>
    %150 = arith.mulf %148, %149 : vector<16x98xf32>
    %151 = arith.addf %150, %13 : vector<16x98xf32>
    %cst_50 = arith.constant dense<0xFF800000> : vector<16xf32>
    %152 = vector.multi_reduction <maximumf>, %151, %cst_50 [1] : vector<16x98xf32> to vector<16xf32>
    %153 = vector.shape_cast %152 : vector<16xf32> to vector<16x1xf32>
    %154 = vector.broadcast %153 : vector<16x1xf32> to vector<16x98xf32>
    %155 = arith.subf %151, %154 : vector<16x98xf32>
    %156 = math.exp %155 : vector<16x98xf32>
    %cst_51 = arith.constant dense<0.000000e+00> : vector<16xf32>
    %157 = vector.multi_reduction <add>, %156, %cst_51 [1] : vector<16x98xf32> to vector<16xf32>
    %158 = vector.shape_cast %157 : vector<16xf32> to vector<16x1xf32>
    %159 = vector.broadcast %158 : vector<16x1xf32> to vector<16x98xf32>
    %160 = arith.divf %156, %159 : vector<16x98xf32>
    %161 = arith.truncf %160 : vector<16x98xf32> to vector<16x98xbf16>
    %cst_52 = arith.constant dense<0.000000e+00> : vector<16x8xf32>
    %162 = tpu.matmul %161, %147, %cst_52 {dimension_numbers = #tpu.dot_dimension_numbers<[1], [0], [0], [1], [0, 0, 1, 1], [], []>} : vector<16x98xbf16>, vector<98x8xbf16>, vector<16x8xf32> -> vector<16x8xf32>
    %163 = vector.extract_strided_slice %117 {offsets = [0, 16], sizes = [16, 8], strides = [1, 1]} : vector<16x32xf32> to vector<16x8xf32>
    %164 = arith.truncf %163 : vector<16x8xf32> to vector<16x8xbf16>
    %165 = vector.extract_strided_slice %120 {offsets = [0, 16], sizes = [98, 8], strides = [1, 1]} : vector<98x64xf32> to vector<98x8xf32>
    %166 = arith.truncf %165 : vector<98x8xf32> to vector<98x8xbf16>
    %167 = vector.extract_strided_slice %120 {offsets = [0, 48], sizes = [98, 8], strides = [1, 1]} : vector<98x64xf32> to vector<98x8xf32>
    %168 = arith.truncf %167 : vector<98x8xf32> to vector<98x8xbf16>
    %cst_53 = arith.constant dense<0.000000e+00> : vector<16x98xf32>
    %169 = tpu.matmul %164, %166, %cst_53 {dimension_numbers = #tpu.dot_dimension_numbers<[1], [1], [0], [0], [0, 0, 1, 0], [], []>} : vector<16x8xbf16>, vector<98x8xbf16>, vector<16x98xf32> -> vector<16x98xf32>
    %cst_54 = arith.constant 0.353553385 : f32
    %170 = vector.broadcast %cst_54 : f32 to vector<16x98xf32>
    %171 = arith.mulf %169, %170 : vector<16x98xf32>
    %172 = arith.addf %171, %13 : vector<16x98xf32>
    %cst_55 = arith.constant dense<0xFF800000> : vector<16xf32>
    %173 = vector.multi_reduction <maximumf>, %172, %cst_55 [1] : vector<16x98xf32> to vector<16xf32>
    %174 = vector.shape_cast %173 : vector<16xf32> to vector<16x1xf32>
    %175 = vector.broadcast %174 : vector<16x1xf32> to vector<16x98xf32>
    %176 = arith.subf %172, %175 : vector<16x98xf32>
    %177 = math.exp %176 : vector<16x98xf32>
    %cst_56 = arith.constant dense<0.000000e+00> : vector<16xf32>
    %178 = vector.multi_reduction <add>, %177, %cst_56 [1] : vector<16x98xf32> to vector<16xf32>
    %179 = vector.shape_cast %178 : vector<16xf32> to vector<16x1xf32>
    %180 = vector.broadcast %179 : vector<16x1xf32> to vector<16x98xf32>
    %181 = arith.divf %177, %180 : vector<16x98xf32>
    %182 = arith.truncf %181 : vector<16x98xf32> to vector<16x98xbf16>
    %cst_57 = arith.constant dense<0.000000e+00> : vector<16x8xf32>
    %183 = tpu.matmul %182, %168, %cst_57 {dimension_numbers = #tpu.dot_dimension_numbers<[1], [0], [0], [1], [0, 0, 1, 1], [], []>} : vector<16x98xbf16>, vector<98x8xbf16>, vector<16x8xf32> -> vector<16x8xf32>
    %184 = vector.extract_strided_slice %117 {offsets = [0, 24], sizes = [16, 8], strides = [1, 1]} : vector<16x32xf32> to vector<16x8xf32>
    %185 = arith.truncf %184 : vector<16x8xf32> to vector<16x8xbf16>
    %186 = vector.extract_strided_slice %120 {offsets = [0, 24], sizes = [98, 8], strides = [1, 1]} : vector<98x64xf32> to vector<98x8xf32>
    %187 = arith.truncf %186 : vector<98x8xf32> to vector<98x8xbf16>
    %188 = vector.extract_strided_slice %120 {offsets = [0, 56], sizes = [98, 8], strides = [1, 1]} : vector<98x64xf32> to vector<98x8xf32>
    %189 = arith.truncf %188 : vector<98x8xf32> to vector<98x8xbf16>
    %cst_58 = arith.constant dense<0.000000e+00> : vector<16x98xf32>
    %190 = tpu.matmul %185, %187, %cst_58 {dimension_numbers = #tpu.dot_dimension_numbers<[1], [1], [0], [0], [0, 0, 1, 0], [], []>} : vector<16x8xbf16>, vector<98x8xbf16>, vector<16x98xf32> -> vector<16x98xf32>
    %cst_59 = arith.constant 0.353553385 : f32
    %191 = vector.broadcast %cst_59 : f32 to vector<16x98xf32>
    %192 = arith.mulf %190, %191 : vector<16x98xf32>
    %193 = arith.addf %192, %13 : vector<16x98xf32>
    %cst_60 = arith.constant dense<0xFF800000> : vector<16xf32>
    %194 = vector.multi_reduction <maximumf>, %193, %cst_60 [1] : vector<16x98xf32> to vector<16xf32>
    %195 = vector.shape_cast %194 : vector<16xf32> to vector<16x1xf32>
    %196 = vector.broadcast %195 : vector<16x1xf32> to vector<16x98xf32>
    %197 = arith.subf %193, %196 : vector<16x98xf32>
    %198 = math.exp %197 : vector<16x98xf32>
    %cst_61 = arith.constant dense<0.000000e+00> : vector<16xf32>
    %199 = vector.multi_reduction <add>, %198, %cst_61 [1] : vector<16x98xf32> to vector<16xf32>
    %200 = vector.shape_cast %199 : vector<16xf32> to vector<16x1xf32>
    %201 = vector.broadcast %200 : vector<16x1xf32> to vector<16x98xf32>
    %202 = arith.divf %198, %201 : vector<16x98xf32>
    %203 = arith.truncf %202 : vector<16x98xf32> to vector<16x98xbf16>
    %cst_62 = arith.constant dense<0.000000e+00> : vector<16x8xf32>
    %204 = tpu.matmul %203, %189, %cst_62 {dimension_numbers = #tpu.dot_dimension_numbers<[1], [0], [0], [1], [0, 0, 1, 1], [], []>} : vector<16x98xbf16>, vector<98x8xbf16>, vector<16x8xf32> -> vector<16x8xf32>
    %205 = tpu.concatenate %141, %162, %183, %204 in 1 : vector<16x8xf32>, vector<16x8xf32>, vector<16x8xf32>, vector<16x8xf32> -> vector<16x32xf32>
    %206 = arith.truncf %19 : vector<98x32xf32> to vector<98x32xbf16>
    %207 = arith.truncf %112 : vector<16x32xf32> to vector<16x32xbf16>
    %cst_63 = arith.constant dense<0.000000e+00> : vector<98x32xf32>
    %208 = tpu.matmul %206, %1, %cst_63 {dimension_numbers = #tpu.dot_dimension_numbers<[1], [0], [0], [1], [0, 0, 1, 1], [], []>} : vector<98x32xbf16>, vector<32x32xbf16>, vector<98x32xf32> -> vector<98x32xf32>
    %209 = vector.broadcast %4 : vector<1x32xf32> to vector<98x32xf32>
    %210 = arith.addf %208, %209 : vector<98x32xf32>
    %cst_64 = arith.constant dense<0.000000e+00> : vector<16x64xf32>
    %211 = tpu.matmul %207, %2, %cst_64 {dimension_numbers = #tpu.dot_dimension_numbers<[1], [0], [0], [1], [0, 0, 1, 1], [], []>} : vector<16x32xbf16>, vector<32x64xbf16>, vector<16x64xf32> -> vector<16x64xf32>
    %212 = vector.broadcast %5 : vector<1x64xf32> to vector<16x64xf32>
    %213 = arith.addf %211, %212 : vector<16x64xf32>
    %214 = vector.extract_strided_slice %210 {offsets = [0, 0], sizes = [98, 8], strides = [1, 1]} : vector<98x32xf32> to vector<98x8xf32>
    %215 = arith.truncf %214 : vector<98x8xf32> to vector<98x8xbf16>
    %216 = vector.extract_strided_slice %213 {offsets = [0, 0], sizes = [16, 8], strides = [1, 1]} : vector<16x64xf32> to vector<16x8xf32>
    %217 = arith.truncf %216 : vector<16x8xf32> to vector<16x8xbf16>
    %218 = vector.extract_strided_slice %213 {offsets = [0, 32], sizes = [16, 8], strides = [1, 1]} : vector<16x64xf32> to vector<16x8xf32>
    %219 = arith.truncf %218 : vector<16x8xf32> to vector<16x8xbf16>
    %cst_65 = arith.constant dense<0.000000e+00> : vector<98x16xf32>
    %220 = tpu.matmul %215, %217, %cst_65 {dimension_numbers = #tpu.dot_dimension_numbers<[1], [1], [0], [0], [0, 0, 1, 0], [], []>} : vector<98x8xbf16>, vector<16x8xbf16>, vector<98x16xf32> -> vector<98x16xf32>
    %cst_66 = arith.constant 0.353553385 : f32
    %221 = vector.broadcast %cst_66 : f32 to vector<98x16xf32>
    %222 = arith.mulf %220, %221 : vector<98x16xf32>
    %223 = arith.addf %222, %14 : vector<98x16xf32>
    %cst_67 = arith.constant dense<0xFF800000> : vector<98xf32>
    %224 = vector.multi_reduction <maximumf>, %223, %cst_67 [1] : vector<98x16xf32> to vector<98xf32>
    %225 = vector.shape_cast %224 : vector<98xf32> to vector<98x1xf32>
    %226 = vector.broadcast %225 : vector<98x1xf32> to vector<98x16xf32>
    %227 = arith.subf %223, %226 : vector<98x16xf32>
    %228 = math.exp %227 : vector<98x16xf32>
    %cst_68 = arith.constant dense<0.000000e+00> : vector<98xf32>
    %229 = vector.multi_reduction <add>, %228, %cst_68 [1] : vector<98x16xf32> to vector<98xf32>
    %230 = vector.shape_cast %229 : vector<98xf32> to vector<98x1xf32>
    %231 = vector.broadcast %230 : vector<98x1xf32> to vector<98x16xf32>
    %232 = arith.divf %228, %231 : vector<98x16xf32>
    %233 = arith.truncf %232 : vector<98x16xf32> to vector<98x16xbf16>
    %cst_69 = arith.constant dense<0.000000e+00> : vector<98x8xf32>
    %234 = tpu.matmul %233, %219, %cst_69 {dimension_numbers = #tpu.dot_dimension_numbers<[1], [0], [0], [1], [0, 0, 1, 1], [], []>} : vector<98x16xbf16>, vector<16x8xbf16>, vector<98x8xf32> -> vector<98x8xf32>
    %235 = vector.extract_strided_slice %210 {offsets = [0, 8], sizes = [98, 8], strides = [1, 1]} : vector<98x32xf32> to vector<98x8xf32>
    %236 = arith.truncf %235 : vector<98x8xf32> to vector<98x8xbf16>
    %237 = vector.extract_strided_slice %213 {offsets = [0, 8], sizes = [16, 8], strides = [1, 1]} : vector<16x64xf32> to vector<16x8xf32>
    %238 = arith.truncf %237 : vector<16x8xf32> to vector<16x8xbf16>
    %239 = vector.extract_strided_slice %213 {offsets = [0, 40], sizes = [16, 8], strides = [1, 1]} : vector<16x64xf32> to vector<16x8xf32>
    %240 = arith.truncf %239 : vector<16x8xf32> to vector<16x8xbf16>
    %cst_70 = arith.constant dense<0.000000e+00> : vector<98x16xf32>
    %241 = tpu.matmul %236, %238, %cst_70 {dimension_numbers = #tpu.dot_dimension_numbers<[1], [1], [0], [0], [0, 0, 1, 0], [], []>} : vector<98x8xbf16>, vector<16x8xbf16>, vector<98x16xf32> -> vector<98x16xf32>
    %cst_71 = arith.constant 0.353553385 : f32
    %242 = vector.broadcast %cst_71 : f32 to vector<98x16xf32>
    %243 = arith.mulf %241, %242 : vector<98x16xf32>
    %244 = arith.addf %243, %14 : vector<98x16xf32>
    %cst_72 = arith.constant dense<0xFF800000> : vector<98xf32>
    %245 = vector.multi_reduction <maximumf>, %244, %cst_72 [1] : vector<98x16xf32> to vector<98xf32>
    %246 = vector.shape_cast %245 : vector<98xf32> to vector<98x1xf32>
    %247 = vector.broadcast %246 : vector<98x1xf32> to vector<98x16xf32>
    %248 = arith.subf %244, %247 : vector<98x16xf32>
    %249 = math.exp %248 : vector<98x16xf32>
    %cst_73 = arith.constant dense<0.000000e+00> : vector<98xf32>
    %250 = vector.multi_reduction <add>, %249, %cst_73 [1] : vector<98x16xf32> to vector<98xf32>
    %251 = vector.shape_cast %250 : vector<98xf32> to vector<98x1xf32>
    %252 = vector.broadcast %251 : vector<98x1xf32> to vector<98x16xf32>
    %253 = arith.divf %249, %252 : vector<98x16xf32>
    %254 = arith.truncf %253 : vector<98x16xf32> to vector<98x16xbf16>
    %cst_74 = arith.constant dense<0.000000e+00> : vector<98x8xf32>
    %255 = tpu.matmul %254, %240, %cst_74 {dimension_numbers = #tpu.dot_dimension_numbers<[1], [0], [0], [1], [0, 0, 1, 1], [], []>} : vector<98x16xbf16>, vector<16x8xbf16>, vector<98x8xf32> -> vector<98x8xf32>
    %256 = vector.extract_strided_slice %210 {offsets = [0, 16], sizes = [98, 8], strides = [1, 1]} : vector<98x32xf32> to vector<98x8xf32>
    %257 = arith.truncf %256 : vector<98x8xf32> to vector<98x8xbf16>
    %258 = vector.extract_strided_slice %213 {offsets = [0, 16], sizes = [16, 8], strides = [1, 1]} : vector<16x64xf32> to vector<16x8xf32>
    %259 = arith.truncf %258 : vector<16x8xf32> to vector<16x8xbf16>
    %260 = vector.extract_strided_slice %213 {offsets = [0, 48], sizes = [16, 8], strides = [1, 1]} : vector<16x64xf32> to vector<16x8xf32>
    %261 = arith.truncf %260 : vector<16x8xf32> to vector<16x8xbf16>
    %cst_75 = arith.constant dense<0.000000e+00> : vector<98x16xf32>
    %262 = tpu.matmul %257, %259, %cst_75 {dimension_numbers = #tpu.dot_dimension_numbers<[1], [1], [0], [0], [0, 0, 1, 0], [], []>} : vector<98x8xbf16>, vector<16x8xbf16>, vector<98x16xf32> -> vector<98x16xf32>
    %cst_76 = arith.constant 0.353553385 : f32
    %263 = vector.broadcast %cst_76 : f32 to vector<98x16xf32>
    %264 = arith.mulf %262, %263 : vector<98x16xf32>
    %265 = arith.addf %264, %14 : vector<98x16xf32>
    %cst_77 = arith.constant dense<0xFF800000> : vector<98xf32>
    %266 = vector.multi_reduction <maximumf>, %265, %cst_77 [1] : vector<98x16xf32> to vector<98xf32>
    %267 = vector.shape_cast %266 : vector<98xf32> to vector<98x1xf32>
    %268 = vector.broadcast %267 : vector<98x1xf32> to vector<98x16xf32>
    %269 = arith.subf %265, %268 : vector<98x16xf32>
    %270 = math.exp %269 : vector<98x16xf32>
    %cst_78 = arith.constant dense<0.000000e+00> : vector<98xf32>
    %271 = vector.multi_reduction <add>, %270, %cst_78 [1] : vector<98x16xf32> to vector<98xf32>
    %272 = vector.shape_cast %271 : vector<98xf32> to vector<98x1xf32>
    %273 = vector.broadcast %272 : vector<98x1xf32> to vector<98x16xf32>
    %274 = arith.divf %270, %273 : vector<98x16xf32>
    %275 = arith.truncf %274 : vector<98x16xf32> to vector<98x16xbf16>
    %cst_79 = arith.constant dense<0.000000e+00> : vector<98x8xf32>
    %276 = tpu.matmul %275, %261, %cst_79 {dimension_numbers = #tpu.dot_dimension_numbers<[1], [0], [0], [1], [0, 0, 1, 1], [], []>} : vector<98x16xbf16>, vector<16x8xbf16>, vector<98x8xf32> -> vector<98x8xf32>
    %277 = vector.extract_strided_slice %210 {offsets = [0, 24], sizes = [98, 8], strides = [1, 1]} : vector<98x32xf32> to vector<98x8xf32>
    %278 = arith.truncf %277 : vector<98x8xf32> to vector<98x8xbf16>
    %279 = vector.extract_strided_slice %213 {offsets = [0, 24], sizes = [16, 8], strides = [1, 1]} : vector<16x64xf32> to vector<16x8xf32>
    %280 = arith.truncf %279 : vector<16x8xf32> to vector<16x8xbf16>
    %281 = vector.extract_strided_slice %213 {offsets = [0, 56], sizes = [16, 8], strides = [1, 1]} : vector<16x64xf32> to vector<16x8xf32>
    %282 = arith.truncf %281 : vector<16x8xf32> to vector<16x8xbf16>
    %cst_80 = arith.constant dense<0.000000e+00> : vector<98x16xf32>
    %283 = tpu.matmul %278, %280, %cst_80 {dimension_numbers = #tpu.dot_dimension_numbers<[1], [1], [0], [0], [0, 0, 1, 0], [], []>} : vector<98x8xbf16>, vector<16x8xbf16>, vector<98x16xf32> -> vector<98x16xf32>
    %cst_81 = arith.constant 0.353553385 : f32
    %284 = vector.broadcast %cst_81 : f32 to vector<98x16xf32>
    %285 = arith.mulf %283, %284 : vector<98x16xf32>
    %286 = arith.addf %285, %14 : vector<98x16xf32>
    %cst_82 = arith.constant dense<0xFF800000> : vector<98xf32>
    %287 = vector.multi_reduction <maximumf>, %286, %cst_82 [1] : vector<98x16xf32> to vector<98xf32>
    %288 = vector.shape_cast %287 : vector<98xf32> to vector<98x1xf32>
    %289 = vector.broadcast %288 : vector<98x1xf32> to vector<98x16xf32>
    %290 = arith.subf %286, %289 : vector<98x16xf32>
    %291 = math.exp %290 : vector<98x16xf32>
    %cst_83 = arith.constant dense<0.000000e+00> : vector<98xf32>
    %292 = vector.multi_reduction <add>, %291, %cst_83 [1] : vector<98x16xf32> to vector<98xf32>
    %293 = vector.shape_cast %292 : vector<98xf32> to vector<98x1xf32>
    %294 = vector.broadcast %293 : vector<98x1xf32> to vector<98x16xf32>
    %295 = arith.divf %291, %294 : vector<98x16xf32>
    %296 = arith.truncf %295 : vector<98x16xf32> to vector<98x16xbf16>
    %cst_84 = arith.constant dense<0.000000e+00> : vector<98x8xf32>
    %297 = tpu.matmul %296, %282, %cst_84 {dimension_numbers = #tpu.dot_dimension_numbers<[1], [0], [0], [1], [0, 0, 1, 1], [], []>} : vector<98x16xbf16>, vector<16x8xbf16>, vector<98x8xf32> -> vector<98x8xf32>
    %298 = tpu.concatenate %234, %255, %276, %297 in 1 : vector<98x8xf32>, vector<98x8xf32>, vector<98x8xf32>, vector<98x8xf32> -> vector<98x32xf32>
    %299 = arith.truncf %112 : vector<16x32xf32> to vector<16x32xbf16>
    %300 = arith.truncf %298 : vector<98x32xf32> to vector<98x32xbf16>
    %cst_85 = arith.constant dense<0.000000e+00> : vector<16x32xf32>
    %301 = tpu.matmul %299, %1, %cst_85 {dimension_numbers = #tpu.dot_dimension_numbers<[1], [0], [0], [1], [0, 0, 1, 1], [], []>} : vector<16x32xbf16>, vector<32x32xbf16>, vector<16x32xf32> -> vector<16x32xf32>
    %302 = vector.broadcast %4 : vector<1x32xf32> to vector<16x32xf32>
    %303 = arith.addf %301, %302 : vector<16x32xf32>
    %cst_86 = arith.constant dense<0.000000e+00> : vector<98x64xf32>
    %304 = tpu.matmul %300, %2, %cst_86 {dimension_numbers = #tpu.dot_dimension_numbers<[1], [0], [0], [1], [0, 0, 1, 1], [], []>} : vector<98x32xbf16>, vector<32x64xbf16>, vector<98x64xf32> -> vector<98x64xf32>
    %305 = vector.broadcast %5 : vector<1x64xf32> to vector<98x64xf32>
    %306 = arith.addf %304, %305 : vector<98x64xf32>
    %307 = vector.extract_strided_slice %303 {offsets = [0, 0], sizes = [16, 8], strides = [1, 1]} : vector<16x32xf32> to vector<16x8xf32>
    %308 = arith.truncf %307 : vector<16x8xf32> to vector<16x8xbf16>
    %309 = vector.extract_strided_slice %306 {offsets = [0, 0], sizes = [98, 8], strides = [1, 1]} : vector<98x64xf32> to vector<98x8xf32>
    %310 = arith.truncf %309 : vector<98x8xf32> to vector<98x8xbf16>
    %311 = vector.extract_strided_slice %306 {offsets = [0, 32], sizes = [98, 8], strides = [1, 1]} : vector<98x64xf32> to vector<98x8xf32>
    %312 = arith.truncf %311 : vector<98x8xf32> to vector<98x8xbf16>
    %cst_87 = arith.constant dense<0.000000e+00> : vector<16x98xf32>
    %313 = tpu.matmul %308, %310, %cst_87 {dimension_numbers = #tpu.dot_dimension_numbers<[1], [1], [0], [0], [0, 0, 1, 0], [], []>} : vector<16x8xbf16>, vector<98x8xbf16>, vector<16x98xf32> -> vector<16x98xf32>
    %cst_88 = arith.constant 0.353553385 : f32
    %314 = vector.broadcast %cst_88 : f32 to vector<16x98xf32>
    %315 = arith.mulf %313, %314 : vector<16x98xf32>
    %316 = arith.addf %315, %13 : vector<16x98xf32>
    %cst_89 = arith.constant dense<0xFF800000> : vector<16xf32>
    %317 = vector.multi_reduction <maximumf>, %316, %cst_89 [1] : vector<16x98xf32> to vector<16xf32>
    %318 = vector.shape_cast %317 : vector<16xf32> to vector<16x1xf32>
    %319 = vector.broadcast %318 : vector<16x1xf32> to vector<16x98xf32>
    %320 = arith.subf %316, %319 : vector<16x98xf32>
    %321 = math.exp %320 : vector<16x98xf32>
    %cst_90 = arith.constant dense<0.000000e+00> : vector<16xf32>
    %322 = vector.multi_reduction <add>, %321, %cst_90 [1] : vector<16x98xf32> to vector<16xf32>
    %323 = vector.shape_cast %322 : vector<16xf32> to vector<16x1xf32>
    %324 = vector.broadcast %323 : vector<16x1xf32> to vector<16x98xf32>
    %325 = arith.divf %321, %324 : vector<16x98xf32>
    %326 = arith.truncf %325 : vector<16x98xf32> to vector<16x98xbf16>
    %cst_91 = arith.constant dense<0.000000e+00> : vector<16x8xf32>
    %327 = tpu.matmul %326, %312, %cst_91 {dimension_numbers = #tpu.dot_dimension_numbers<[1], [0], [0], [1], [0, 0, 1, 1], [], []>} : vector<16x98xbf16>, vector<98x8xbf16>, vector<16x8xf32> -> vector<16x8xf32>
    %328 = vector.extract_strided_slice %303 {offsets = [0, 8], sizes = [16, 8], strides = [1, 1]} : vector<16x32xf32> to vector<16x8xf32>
    %329 = arith.truncf %328 : vector<16x8xf32> to vector<16x8xbf16>
    %330 = vector.extract_strided_slice %306 {offsets = [0, 8], sizes = [98, 8], strides = [1, 1]} : vector<98x64xf32> to vector<98x8xf32>
    %331 = arith.truncf %330 : vector<98x8xf32> to vector<98x8xbf16>
    %332 = vector.extract_strided_slice %306 {offsets = [0, 40], sizes = [98, 8], strides = [1, 1]} : vector<98x64xf32> to vector<98x8xf32>
    %333 = arith.truncf %332 : vector<98x8xf32> to vector<98x8xbf16>
    %cst_92 = arith.constant dense<0.000000e+00> : vector<16x98xf32>
    %334 = tpu.matmul %329, %331, %cst_92 {dimension_numbers = #tpu.dot_dimension_numbers<[1], [1], [0], [0], [0, 0, 1, 0], [], []>} : vector<16x8xbf16>, vector<98x8xbf16>, vector<16x98xf32> -> vector<16x98xf32>
    %cst_93 = arith.constant 0.353553385 : f32
    %335 = vector.broadcast %cst_93 : f32 to vector<16x98xf32>
    %336 = arith.mulf %334, %335 : vector<16x98xf32>
    %337 = arith.addf %336, %13 : vector<16x98xf32>
    %cst_94 = arith.constant dense<0xFF800000> : vector<16xf32>
    %338 = vector.multi_reduction <maximumf>, %337, %cst_94 [1] : vector<16x98xf32> to vector<16xf32>
    %339 = vector.shape_cast %338 : vector<16xf32> to vector<16x1xf32>
    %340 = vector.broadcast %339 : vector<16x1xf32> to vector<16x98xf32>
    %341 = arith.subf %337, %340 : vector<16x98xf32>
    %342 = math.exp %341 : vector<16x98xf32>
    %cst_95 = arith.constant dense<0.000000e+00> : vector<16xf32>
    %343 = vector.multi_reduction <add>, %342, %cst_95 [1] : vector<16x98xf32> to vector<16xf32>
    %344 = vector.shape_cast %343 : vector<16xf32> to vector<16x1xf32>
    %345 = vector.broadcast %344 : vector<16x1xf32> to vector<16x98xf32>
    %346 = arith.divf %342, %345 : vector<16x98xf32>
    %347 = arith.truncf %346 : vector<16x98xf32> to vector<16x98xbf16>
    %cst_96 = arith.constant dense<0.000000e+00> : vector<16x8xf32>
    %348 = tpu.matmul %347, %333, %cst_96 {dimension_numbers = #tpu.dot_dimension_numbers<[1], [0], [0], [1], [0, 0, 1, 1], [], []>} : vector<16x98xbf16>, vector<98x8xbf16>, vector<16x8xf32> -> vector<16x8xf32>
    %349 = vector.extract_strided_slice %303 {offsets = [0, 16], sizes = [16, 8], strides = [1, 1]} : vector<16x32xf32> to vector<16x8xf32>
    %350 = arith.truncf %349 : vector<16x8xf32> to vector<16x8xbf16>
    %351 = vector.extract_strided_slice %306 {offsets = [0, 16], sizes = [98, 8], strides = [1, 1]} : vector<98x64xf32> to vector<98x8xf32>
    %352 = arith.truncf %351 : vector<98x8xf32> to vector<98x8xbf16>
    %353 = vector.extract_strided_slice %306 {offsets = [0, 48], sizes = [98, 8], strides = [1, 1]} : vector<98x64xf32> to vector<98x8xf32>
    %354 = arith.truncf %353 : vector<98x8xf32> to vector<98x8xbf16>
    %cst_97 = arith.constant dense<0.000000e+00> : vector<16x98xf32>
    %355 = tpu.matmul %350, %352, %cst_97 {dimension_numbers = #tpu.dot_dimension_numbers<[1], [1], [0], [0], [0, 0, 1, 0], [], []>} : vector<16x8xbf16>, vector<98x8xbf16>, vector<16x98xf32> -> vector<16x98xf32>
    %cst_98 = arith.constant 0.353553385 : f32
    %356 = vector.broadcast %cst_98 : f32 to vector<16x98xf32>
    %357 = arith.mulf %355, %356 : vector<16x98xf32>
    %358 = arith.addf %357, %13 : vector<16x98xf32>
    %cst_99 = arith.constant dense<0xFF800000> : vector<16xf32>
    %359 = vector.multi_reduction <maximumf>, %358, %cst_99 [1] : vector<16x98xf32> to vector<16xf32>
    %360 = vector.shape_cast %359 : vector<16xf32> to vector<16x1xf32>
    %361 = vector.broadcast %360 : vector<16x1xf32> to vector<16x98xf32>
    %362 = arith.subf %358, %361 : vector<16x98xf32>
    %363 = math.exp %362 : vector<16x98xf32>
    %cst_100 = arith.constant dense<0.000000e+00> : vector<16xf32>
    %364 = vector.multi_reduction <add>, %363, %cst_100 [1] : vector<16x98xf32> to vector<16xf32>
    %365 = vector.shape_cast %364 : vector<16xf32> to vector<16x1xf32>
    %366 = vector.broadcast %365 : vector<16x1xf32> to vector<16x98xf32>
    %367 = arith.divf %363, %366 : vector<16x98xf32>
    %368 = arith.truncf %367 : vector<16x98xf32> to vector<16x98xbf16>
    %cst_101 = arith.constant dense<0.000000e+00> : vector<16x8xf32>
    %369 = tpu.matmul %368, %354, %cst_101 {dimension_numbers = #tpu.dot_dimension_numbers<[1], [0], [0], [1], [0, 0, 1, 1], [], []>} : vector<16x98xbf16>, vector<98x8xbf16>, vector<16x8xf32> -> vector<16x8xf32>
    %370 = vector.extract_strided_slice %303 {offsets = [0, 24], sizes = [16, 8], strides = [1, 1]} : vector<16x32xf32> to vector<16x8xf32>
    %371 = arith.truncf %370 : vector<16x8xf32> to vector<16x8xbf16>
    %372 = vector.extract_strided_slice %306 {offsets = [0, 24], sizes = [98, 8], strides = [1, 1]} : vector<98x64xf32> to vector<98x8xf32>
    %373 = arith.truncf %372 : vector<98x8xf32> to vector<98x8xbf16>
    %374 = vector.extract_strided_slice %306 {offsets = [0, 56], sizes = [98, 8], strides = [1, 1]} : vector<98x64xf32> to vector<98x8xf32>
    %375 = arith.truncf %374 : vector<98x8xf32> to vector<98x8xbf16>
    %cst_102 = arith.constant dense<0.000000e+00> : vector<16x98xf32>
    %376 = tpu.matmul %371, %373, %cst_102 {dimension_numbers = #tpu.dot_dimension_numbers<[1], [1], [0], [0], [0, 0, 1, 0], [], []>} : vector<16x8xbf16>, vector<98x8xbf16>, vector<16x98xf32> -> vector<16x98xf32>
    %cst_103 = arith.constant 0.353553385 : f32
    %377 = vector.broadcast %cst_103 : f32 to vector<16x98xf32>
    %378 = arith.mulf %376, %377 : vector<16x98xf32>
    %379 = arith.addf %378, %13 : vector<16x98xf32>
    %cst_104 = arith.constant dense<0xFF800000> : vector<16xf32>
    %380 = vector.multi_reduction <maximumf>, %379, %cst_104 [1] : vector<16x98xf32> to vector<16xf32>
    %381 = vector.shape_cast %380 : vector<16xf32> to vector<16x1xf32>
    %382 = vector.broadcast %381 : vector<16x1xf32> to vector<16x98xf32>
    %383 = arith.subf %379, %382 : vector<16x98xf32>
    %384 = math.exp %383 : vector<16x98xf32>
    %cst_105 = arith.constant dense<0.000000e+00> : vector<16xf32>
    %385 = vector.multi_reduction <add>, %384, %cst_105 [1] : vector<16x98xf32> to vector<16xf32>
    %386 = vector.shape_cast %385 : vector<16xf32> to vector<16x1xf32>
    %387 = vector.broadcast %386 : vector<16x1xf32> to vector<16x98xf32>
    %388 = arith.divf %384, %387 : vector<16x98xf32>
    %389 = arith.truncf %388 : vector<16x98xf32> to vector<16x98xbf16>
    %cst_106 = arith.constant dense<0.000000e+00> : vector<16x8xf32>
    %390 = tpu.matmul %389, %375, %cst_106 {dimension_numbers = #tpu.dot_dimension_numbers<[1], [0], [0], [1], [0, 0, 1, 1], [], []>} : vector<16x98xbf16>, vector<98x8xbf16>, vector<16x8xf32> -> vector<16x8xf32>
    %391 = tpu.concatenate %327, %348, %369, %390 in 1 : vector<16x8xf32>, vector<16x8xf32>, vector<16x8xf32>, vector<16x8xf32> -> vector<16x32xf32>
    %392 = arith.truncf %205 : vector<16x32xf32> to vector<16x32xbf16>
    %393 = vector.extract_strided_slice %9 {offsets = [0, 0], sizes = [32, 32], strides = [1, 1]} : vector<64x32xbf16> to vector<32x32xbf16>
    %cst_107 = arith.constant dense<0.000000e+00> : vector<16x32xf32>
    %394 = tpu.matmul %392, %393, %cst_107 {dimension_numbers = #tpu.dot_dimension_numbers<[1], [0], [0], [1], [0, 0, 1, 1], [], []>} : vector<16x32xbf16>, vector<32x32xbf16>, vector<16x32xf32> -> vector<16x32xf32>
    %395 = arith.truncf %391 : vector<16x32xf32> to vector<16x32xbf16>
    %396 = vector.extract_strided_slice %9 {offsets = [32, 0], sizes = [32, 32], strides = [1, 1]} : vector<64x32xbf16> to vector<32x32xbf16>
    %cst_108 = arith.constant dense<0.000000e+00> : vector<16x32xf32>
    %397 = tpu.matmul %395, %396, %cst_108 {dimension_numbers = #tpu.dot_dimension_numbers<[1], [0], [0], [1], [0, 0, 1, 1], [], []>} : vector<16x32xbf16>, vector<32x32xbf16>, vector<16x32xf32> -> vector<16x32xf32>
    %398 = arith.addf %394, %397 : vector<16x32xf32>
    %399 = vector.broadcast %7 : vector<1x32xf32> to vector<16x32xf32>
    %400 = arith.addf %398, %399 : vector<16x32xf32>
    %401 = arith.negf %400 : vector<16x32xf32>
    %402 = math.exp %401 : vector<16x32xf32>
    %cst_109 = arith.constant 1.000000e+00 : f32
    %403 = vector.broadcast %cst_109 : f32 to vector<16x32xf32>
    %404 = arith.addf %403, %402 : vector<16x32xf32>
    %405 = arith.divf %403, %404 : vector<16x32xf32>
    %406 = arith.mulf %405, %205 : vector<16x32xf32>
    %407 = arith.truncf %391 : vector<16x32xf32> to vector<16x32xbf16>
    %408 = vector.extract_strided_slice %10 {offsets = [0, 0], sizes = [32, 5], strides = [1, 1]} : vector<64x5xbf16> to vector<32x5xbf16>
    %cst_110 = arith.constant dense<0.000000e+00> : vector<16x5xf32>
    %409 = tpu.matmul %407, %408, %cst_110 {dimension_numbers = #tpu.dot_dimension_numbers<[1], [0], [0], [1], [0, 0, 1, 1], [], []>} : vector<16x32xbf16>, vector<32x5xbf16>, vector<16x5xf32> -> vector<16x5xf32>
    %410 = arith.truncf %406 : vector<16x32xf32> to vector<16x32xbf16>
    %411 = vector.extract_strided_slice %10 {offsets = [32, 0], sizes = [32, 5], strides = [1, 1]} : vector<64x5xbf16> to vector<32x5xbf16>
    %cst_111 = arith.constant dense<0.000000e+00> : vector<16x5xf32>
    %412 = tpu.matmul %410, %411, %cst_111 {dimension_numbers = #tpu.dot_dimension_numbers<[1], [0], [0], [1], [0, 0, 1, 1], [], []>} : vector<16x32xbf16>, vector<32x5xbf16>, vector<16x5xf32> -> vector<16x5xf32>
    %413 = arith.addf %409, %412 : vector<16x5xf32>
    %414 = vector.broadcast %8 : vector<1x5xf32> to vector<16x5xf32>
    %415 = arith.addf %413, %414 : vector<16x5xf32>
    %c0_112 = arith.constant 0 : index
    %c0_113 = arith.constant 0 : index
    %416 = vector.load %arg12[%c0_112, %c0_113] : memref<7x5xf32, #tpu.memory_space<vmem>>, vector<7x5xf32>
    %417 = vector.extract_strided_slice %416 {offsets = [0, 0], sizes = [1, 5], strides = [1, 1]} : vector<7x5xf32> to vector<1x5xf32>
    %418 = vector.extract_strided_slice %416 {offsets = [1, 0], sizes = [1, 5], strides = [1, 1]} : vector<7x5xf32> to vector<1x5xf32>
    %419 = vector.extract_strided_slice %416 {offsets = [2, 0], sizes = [5, 5], strides = [1, 1]} : vector<7x5xf32> to vector<5x5xf32>
    %420 = math.exp %419 : vector<5x5xf32>
    %c0_114 = arith.constant 0 : index
    %c0_115 = arith.constant 0 : index
    %421 = vector.load %arg6[%c0_114, %c0_115] : memref<4x8xf32, #tpu.memory_space<vmem>>, vector<4x8xf32>
    %c0_116 = arith.constant 0 : index
    %c0_117 = arith.constant 0 : index
    %422 = vector.load %arg2[%c0_116, %c0_117] : memref<16x5xf32, #tpu.memory_space<vmem>>, vector<16x5xf32>
    %cst_118 = arith.constant 0.000000e+00 : f32
    %423 = vector.broadcast %cst_118 : f32 to vector<1x1xf32>
    %424 = vector.extract_strided_slice %415 {offsets = [0, 0], sizes = [8, 5], strides = [1, 1]} : vector<16x5xf32> to vector<8x5xf32>
    %425 = vector.extract_strided_slice %422 {offsets = [0, 0], sizes = [8, 5], strides = [1, 1]} : vector<16x5xf32> to vector<8x5xf32>
    %426 = vector.extract_strided_slice %421 {offsets = [0, 0], sizes = [1, 8], strides = [1, 1]} : vector<4x8xf32> to vector<1x8xf32>
    %427 = vector.extract_strided_slice %421 {offsets = [2, 0], sizes = [1, 8], strides = [1, 1]} : vector<4x8xf32> to vector<1x8xf32>
    %428 = arith.mulf %424, %425 : vector<8x5xf32>
    %cst_119 = arith.constant dense<0.000000e+00> : vector<8xf32>
    %429 = vector.multi_reduction <add>, %428, %cst_119 [1] : vector<8x5xf32> to vector<8xf32>
    %430 = vector.shape_cast %429 : vector<8xf32> to vector<8x1xf32>
    %cst_120 = arith.constant dense<0.000000e+00> : vector<8x5xf32>
    %431 = tpu.matmul %425, %419, %cst_120 {dimension_numbers = #tpu.dot_dimension_numbers<[1], [0], [0], [1], [0, 0, 1, 1], [], []>} : vector<8x5xf32>, vector<5x5xf32>, vector<8x5xf32> -> vector<8x5xf32>
    %432 = vector.extract_strided_slice %431 {offsets = [0, 0], sizes = [7, 5], strides = [1, 1]} : vector<8x5xf32> to vector<7x5xf32>
    %433 = vector.extract_strided_slice %425 {offsets = [1, 0], sizes = [7, 5], strides = [1, 1]} : vector<8x5xf32> to vector<7x5xf32>
    %434 = arith.mulf %432, %433 : vector<7x5xf32>
    %cst_121 = arith.constant dense<0.000000e+00> : vector<7xf32>
    %435 = vector.multi_reduction <add>, %434, %cst_121 [1] : vector<7x5xf32> to vector<7xf32>
    %436 = vector.shape_cast %435 : vector<7xf32> to vector<7x1xf32>
    %cst_122 = arith.constant dense<0.000000e+00> : vector<1x5xf32>
    %437 = tpu.matmul %427, %425, %cst_122 {dimension_numbers = #tpu.dot_dimension_numbers<[1], [0], [0], [1], [0, 0, 1, 1], [], []>} : vector<1x8xf32>, vector<8x5xf32>, vector<1x5xf32> -> vector<1x5xf32>
    %438 = vector.extract_strided_slice %425 {offsets = [0, 0], sizes = [1, 5], strides = [1, 1]} : vector<8x5xf32> to vector<1x5xf32>
    %439 = arith.mulf %417, %438 : vector<1x5xf32>
    %cst_123 = arith.constant dense<0.000000e+00> : vector<1xf32>
    %440 = vector.multi_reduction <add>, %439, %cst_123 [1] : vector<1x5xf32> to vector<1xf32>
    %441 = vector.shape_cast %440 : vector<1xf32> to vector<1x1xf32>
    %cst_124 = arith.constant dense<0.000000e+00> : vector<1x1xf32>
    %442 = tpu.matmul %426, %430, %cst_124 {dimension_numbers = #tpu.dot_dimension_numbers<[1], [0], [0], [1], [0, 0, 1, 1], [], []>} : vector<1x8xf32>, vector<8x1xf32>, vector<1x1xf32> -> vector<1x1xf32>
    %443 = arith.addf %441, %442 : vector<1x1xf32>
    %444 = vector.extract_strided_slice %426 {offsets = [0, 1], sizes = [1, 7], strides = [1, 1]} : vector<1x8xf32> to vector<1x7xf32>
    %cst_125 = arith.constant dense<0.000000e+00> : vector<1x1xf32>
    %445 = tpu.matmul %444, %436, %cst_125 {dimension_numbers = #tpu.dot_dimension_numbers<[1], [0], [0], [1], [0, 0, 1, 1], [], []>} : vector<1x7xf32>, vector<7x1xf32>, vector<1x1xf32> -> vector<1x1xf32>
    %446 = arith.addf %443, %445 : vector<1x1xf32>
    %447 = arith.mulf %437, %418 : vector<1x5xf32>
    %cst_126 = arith.constant dense<0.000000e+00> : vector<1xf32>
    %448 = vector.multi_reduction <add>, %447, %cst_126 [1] : vector<1x5xf32> to vector<1xf32>
    %449 = vector.shape_cast %448 : vector<1xf32> to vector<1x1xf32>
    %450 = arith.addf %446, %449 : vector<1x1xf32>
    %451 = vector.extract_strided_slice %424 {offsets = [0, 0], sizes = [1, 5], strides = [1, 1]} : vector<8x5xf32> to vector<1x5xf32>
    %452 = arith.addf %417, %451 : vector<1x5xf32>
    %cst_127 = arith.constant dense<0xFF800000> : vector<1xf32>
    %453 = vector.multi_reduction <maximumf>, %452, %cst_127 [1] : vector<1x5xf32> to vector<1xf32>
    %454 = vector.shape_cast %453 : vector<1xf32> to vector<1x1xf32>
    %455 = vector.broadcast %454 : vector<1x1xf32> to vector<1x5xf32>
    %456 = arith.subf %452, %455 : vector<1x5xf32>
    %457 = math.exp %456 : vector<1x5xf32>
    %cst_128 = arith.constant dense<0.000000e+00> : vector<1x5xf32>
    %458 = tpu.matmul %457, %420, %cst_128 {dimension_numbers = #tpu.dot_dimension_numbers<[1], [0], [0], [1], [0, 0, 1, 1], [], []>} : vector<1x5xf32>, vector<5x5xf32>, vector<1x5xf32> -> vector<1x5xf32>
    %459 = math.log %458 : vector<1x5xf32>
    %460 = vector.broadcast %454 : vector<1x1xf32> to vector<1x5xf32>
    %461 = arith.addf %460, %459 : vector<1x5xf32>
    %462 = vector.extract_strided_slice %424 {offsets = [1, 0], sizes = [1, 5], strides = [1, 1]} : vector<8x5xf32> to vector<1x5xf32>
    %463 = arith.addf %461, %462 : vector<1x5xf32>
    %464 = vector.extract_strided_slice %426 {offsets = [0, 1], sizes = [1, 1], strides = [1, 1]} : vector<1x8xf32> to vector<1x1xf32>
    %465 = vector.broadcast %464 : vector<1x1xf32> to vector<1x5xf32>
    %466 = arith.mulf %465, %463 : vector<1x5xf32>
    %cst_129 = arith.constant 1.000000e+00 : f32
    %467 = vector.broadcast %cst_129 : f32 to vector<1x1xf32>
    %468 = arith.subf %467, %464 : vector<1x1xf32>
    %469 = vector.broadcast %468 : vector<1x1xf32> to vector<1x5xf32>
    %470 = arith.mulf %469, %452 : vector<1x5xf32>
    %471 = arith.addf %466, %470 : vector<1x5xf32>
    %cst_130 = arith.constant dense<0xFF800000> : vector<1xf32>
    %472 = vector.multi_reduction <maximumf>, %471, %cst_130 [1] : vector<1x5xf32> to vector<1xf32>
    %473 = vector.shape_cast %472 : vector<1xf32> to vector<1x1xf32>
    %474 = vector.broadcast %473 : vector<1x1xf32> to vector<1x5xf32>
    %475 = arith.subf %471, %474 : vector<1x5xf32>
    %476 = math.exp %475 : vector<1x5xf32>
    %cst_131 = arith.constant dense<0.000000e+00> : vector<1x5xf32>
    %477 = tpu.matmul %476, %420, %cst_131 {dimension_numbers = #tpu.dot_dimension_numbers<[1], [0], [0], [1], [0, 0, 1, 1], [], []>} : vector<1x5xf32>, vector<5x5xf32>, vector<1x5xf32> -> vector<1x5xf32>
    %478 = math.log %477 : vector<1x5xf32>
    %479 = vector.broadcast %473 : vector<1x1xf32> to vector<1x5xf32>
    %480 = arith.addf %479, %478 : vector<1x5xf32>
    %481 = vector.extract_strided_slice %424 {offsets = [2, 0], sizes = [1, 5], strides = [1, 1]} : vector<8x5xf32> to vector<1x5xf32>
    %482 = arith.addf %480, %481 : vector<1x5xf32>
    %483 = vector.extract_strided_slice %426 {offsets = [0, 2], sizes = [1, 1], strides = [1, 1]} : vector<1x8xf32> to vector<1x1xf32>
    %484 = vector.broadcast %483 : vector<1x1xf32> to vector<1x5xf32>
    %485 = arith.mulf %484, %482 : vector<1x5xf32>
    %cst_132 = arith.constant 1.000000e+00 : f32
    %486 = vector.broadcast %cst_132 : f32 to vector<1x1xf32>
    %487 = arith.subf %486, %483 : vector<1x1xf32>
    %488 = vector.broadcast %487 : vector<1x1xf32> to vector<1x5xf32>
    %489 = arith.mulf %488, %471 : vector<1x5xf32>
    %490 = arith.addf %485, %489 : vector<1x5xf32>
    %cst_133 = arith.constant dense<0xFF800000> : vector<1xf32>
    %491 = vector.multi_reduction <maximumf>, %490, %cst_133 [1] : vector<1x5xf32> to vector<1xf32>
    %492 = vector.shape_cast %491 : vector<1xf32> to vector<1x1xf32>
    %493 = vector.broadcast %492 : vector<1x1xf32> to vector<1x5xf32>
    %494 = arith.subf %490, %493 : vector<1x5xf32>
    %495 = math.exp %494 : vector<1x5xf32>
    %cst_134 = arith.constant dense<0.000000e+00> : vector<1x5xf32>
    %496 = tpu.matmul %495, %420, %cst_134 {dimension_numbers = #tpu.dot_dimension_numbers<[1], [0], [0], [1], [0, 0, 1, 1], [], []>} : vector<1x5xf32>, vector<5x5xf32>, vector<1x5xf32> -> vector<1x5xf32>
    %497 = math.log %496 : vector<1x5xf32>
    %498 = vector.broadcast %492 : vector<1x1xf32> to vector<1x5xf32>
    %499 = arith.addf %498, %497 : vector<1x5xf32>
    %500 = vector.extract_strided_slice %424 {offsets = [3, 0], sizes = [1, 5], strides = [1, 1]} : vector<8x5xf32> to vector<1x5xf32>
    %501 = arith.addf %499, %500 : vector<1x5xf32>
    %502 = vector.extract_strided_slice %426 {offsets = [0, 3], sizes = [1, 1], strides = [1, 1]} : vector<1x8xf32> to vector<1x1xf32>
    %503 = vector.broadcast %502 : vector<1x1xf32> to vector<1x5xf32>
    %504 = arith.mulf %503, %501 : vector<1x5xf32>
    %cst_135 = arith.constant 1.000000e+00 : f32
    %505 = vector.broadcast %cst_135 : f32 to vector<1x1xf32>
    %506 = arith.subf %505, %502 : vector<1x1xf32>
    %507 = vector.broadcast %506 : vector<1x1xf32> to vector<1x5xf32>
    %508 = arith.mulf %507, %490 : vector<1x5xf32>
    %509 = arith.addf %504, %508 : vector<1x5xf32>
    %cst_136 = arith.constant dense<0xFF800000> : vector<1xf32>
    %510 = vector.multi_reduction <maximumf>, %509, %cst_136 [1] : vector<1x5xf32> to vector<1xf32>
    %511 = vector.shape_cast %510 : vector<1xf32> to vector<1x1xf32>
    %512 = vector.broadcast %511 : vector<1x1xf32> to vector<1x5xf32>
    %513 = arith.subf %509, %512 : vector<1x5xf32>
    %514 = math.exp %513 : vector<1x5xf32>
    %cst_137 = arith.constant dense<0.000000e+00> : vector<1x5xf32>
    %515 = tpu.matmul %514, %420, %cst_137 {dimension_numbers = #tpu.dot_dimension_numbers<[1], [0], [0], [1], [0, 0, 1, 1], [], []>} : vector<1x5xf32>, vector<5x5xf32>, vector<1x5xf32> -> vector<1x5xf32>
    %516 = math.log %515 : vector<1x5xf32>
    %517 = vector.broadcast %511 : vector<1x1xf32> to vector<1x5xf32>
    %518 = arith.addf %517, %516 : vector<1x5xf32>
    %519 = vector.extract_strided_slice %424 {offsets = [4, 0], sizes = [1, 5], strides = [1, 1]} : vector<8x5xf32> to vector<1x5xf32>
    %520 = arith.addf %518, %519 : vector<1x5xf32>
    %521 = vector.extract_strided_slice %426 {offsets = [0, 4], sizes = [1, 1], strides = [1, 1]} : vector<1x8xf32> to vector<1x1xf32>
    %522 = vector.broadcast %521 : vector<1x1xf32> to vector<1x5xf32>
    %523 = arith.mulf %522, %520 : vector<1x5xf32>
    %cst_138 = arith.constant 1.000000e+00 : f32
    %524 = vector.broadcast %cst_138 : f32 to vector<1x1xf32>
    %525 = arith.subf %524, %521 : vector<1x1xf32>
    %526 = vector.broadcast %525 : vector<1x1xf32> to vector<1x5xf32>
    %527 = arith.mulf %526, %509 : vector<1x5xf32>
    %528 = arith.addf %523, %527 : vector<1x5xf32>
    %cst_139 = arith.constant dense<0xFF800000> : vector<1xf32>
    %529 = vector.multi_reduction <maximumf>, %528, %cst_139 [1] : vector<1x5xf32> to vector<1xf32>
    %530 = vector.shape_cast %529 : vector<1xf32> to vector<1x1xf32>
    %531 = vector.broadcast %530 : vector<1x1xf32> to vector<1x5xf32>
    %532 = arith.subf %528, %531 : vector<1x5xf32>
    %533 = math.exp %532 : vector<1x5xf32>
    %cst_140 = arith.constant dense<0.000000e+00> : vector<1x5xf32>
    %534 = tpu.matmul %533, %420, %cst_140 {dimension_numbers = #tpu.dot_dimension_numbers<[1], [0], [0], [1], [0, 0, 1, 1], [], []>} : vector<1x5xf32>, vector<5x5xf32>, vector<1x5xf32> -> vector<1x5xf32>
    %535 = math.log %534 : vector<1x5xf32>
    %536 = vector.broadcast %530 : vector<1x1xf32> to vector<1x5xf32>
    %537 = arith.addf %536, %535 : vector<1x5xf32>
    %538 = vector.extract_strided_slice %424 {offsets = [5, 0], sizes = [1, 5], strides = [1, 1]} : vector<8x5xf32> to vector<1x5xf32>
    %539 = arith.addf %537, %538 : vector<1x5xf32>
    %540 = vector.extract_strided_slice %426 {offsets = [0, 5], sizes = [1, 1], strides = [1, 1]} : vector<1x8xf32> to vector<1x1xf32>
    %541 = vector.broadcast %540 : vector<1x1xf32> to vector<1x5xf32>
    %542 = arith.mulf %541, %539 : vector<1x5xf32>
    %cst_141 = arith.constant 1.000000e+00 : f32
    %543 = vector.broadcast %cst_141 : f32 to vector<1x1xf32>
    %544 = arith.subf %543, %540 : vector<1x1xf32>
    %545 = vector.broadcast %544 : vector<1x1xf32> to vector<1x5xf32>
    %546 = arith.mulf %545, %528 : vector<1x5xf32>
    %547 = arith.addf %542, %546 : vector<1x5xf32>
    %cst_142 = arith.constant dense<0xFF800000> : vector<1xf32>
    %548 = vector.multi_reduction <maximumf>, %547, %cst_142 [1] : vector<1x5xf32> to vector<1xf32>
    %549 = vector.shape_cast %548 : vector<1xf32> to vector<1x1xf32>
    %550 = vector.broadcast %549 : vector<1x1xf32> to vector<1x5xf32>
    %551 = arith.subf %547, %550 : vector<1x5xf32>
    %552 = math.exp %551 : vector<1x5xf32>
    %cst_143 = arith.constant dense<0.000000e+00> : vector<1x5xf32>
    %553 = tpu.matmul %552, %420, %cst_143 {dimension_numbers = #tpu.dot_dimension_numbers<[1], [0], [0], [1], [0, 0, 1, 1], [], []>} : vector<1x5xf32>, vector<5x5xf32>, vector<1x5xf32> -> vector<1x5xf32>
    %554 = math.log %553 : vector<1x5xf32>
    %555 = vector.broadcast %549 : vector<1x1xf32> to vector<1x5xf32>
    %556 = arith.addf %555, %554 : vector<1x5xf32>
    %557 = vector.extract_strided_slice %424 {offsets = [6, 0], sizes = [1, 5], strides = [1, 1]} : vector<8x5xf32> to vector<1x5xf32>
    %558 = arith.addf %556, %557 : vector<1x5xf32>
    %559 = vector.extract_strided_slice %426 {offsets = [0, 6], sizes = [1, 1], strides = [1, 1]} : vector<1x8xf32> to vector<1x1xf32>
    %560 = vector.broadcast %559 : vector<1x1xf32> to vector<1x5xf32>
    %561 = arith.mulf %560, %558 : vector<1x5xf32>
    %cst_144 = arith.constant 1.000000e+00 : f32
    %562 = vector.broadcast %cst_144 : f32 to vector<1x1xf32>
    %563 = arith.subf %562, %559 : vector<1x1xf32>
    %564 = vector.broadcast %563 : vector<1x1xf32> to vector<1x5xf32>
    %565 = arith.mulf %564, %547 : vector<1x5xf32>
    %566 = arith.addf %561, %565 : vector<1x5xf32>
    %cst_145 = arith.constant dense<0xFF800000> : vector<1xf32>
    %567 = vector.multi_reduction <maximumf>, %566, %cst_145 [1] : vector<1x5xf32> to vector<1xf32>
    %568 = vector.shape_cast %567 : vector<1xf32> to vector<1x1xf32>
    %569 = vector.broadcast %568 : vector<1x1xf32> to vector<1x5xf32>
    %570 = arith.subf %566, %569 : vector<1x5xf32>
    %571 = math.exp %570 : vector<1x5xf32>
    %cst_146 = arith.constant dense<0.000000e+00> : vector<1x5xf32>
    %572 = tpu.matmul %571, %420, %cst_146 {dimension_numbers = #tpu.dot_dimension_numbers<[1], [0], [0], [1], [0, 0, 1, 1], [], []>} : vector<1x5xf32>, vector<5x5xf32>, vector<1x5xf32> -> vector<1x5xf32>
    %573 = math.log %572 : vector<1x5xf32>
    %574 = vector.broadcast %568 : vector<1x1xf32> to vector<1x5xf32>
    %575 = arith.addf %574, %573 : vector<1x5xf32>
    %576 = vector.extract_strided_slice %424 {offsets = [7, 0], sizes = [1, 5], strides = [1, 1]} : vector<8x5xf32> to vector<1x5xf32>
    %577 = arith.addf %575, %576 : vector<1x5xf32>
    %578 = vector.extract_strided_slice %426 {offsets = [0, 7], sizes = [1, 1], strides = [1, 1]} : vector<1x8xf32> to vector<1x1xf32>
    %579 = vector.broadcast %578 : vector<1x1xf32> to vector<1x5xf32>
    %580 = arith.mulf %579, %577 : vector<1x5xf32>
    %cst_147 = arith.constant 1.000000e+00 : f32
    %581 = vector.broadcast %cst_147 : f32 to vector<1x1xf32>
    %582 = arith.subf %581, %578 : vector<1x1xf32>
    %583 = vector.broadcast %582 : vector<1x1xf32> to vector<1x5xf32>
    %584 = arith.mulf %583, %566 : vector<1x5xf32>
    %585 = arith.addf %580, %584 : vector<1x5xf32>
    %586 = arith.addf %585, %418 : vector<1x5xf32>
    %cst_148 = arith.constant dense<0xFF800000> : vector<1xf32>
    %587 = vector.multi_reduction <maximumf>, %586, %cst_148 [1] : vector<1x5xf32> to vector<1xf32>
    %588 = vector.shape_cast %587 : vector<1xf32> to vector<1x1xf32>
    %589 = vector.broadcast %588 : vector<1x1xf32> to vector<1x5xf32>
    %590 = arith.subf %586, %589 : vector<1x5xf32>
    %591 = math.exp %590 : vector<1x5xf32>
    %cst_149 = arith.constant dense<0.000000e+00> : vector<1xf32>
    %592 = vector.multi_reduction <add>, %591, %cst_149 [1] : vector<1x5xf32> to vector<1xf32>
    %593 = vector.shape_cast %592 : vector<1xf32> to vector<1x1xf32>
    %594 = math.log %593 : vector<1x1xf32>
    %595 = arith.addf %588, %594 : vector<1x1xf32>
    %596 = arith.subf %450, %595 : vector<1x1xf32>
    %597 = arith.addf %423, %596 : vector<1x1xf32>
    %598 = vector.extract_strided_slice %415 {offsets = [8, 0], sizes = [8, 5], strides = [1, 1]} : vector<16x5xf32> to vector<8x5xf32>
    %599 = vector.extract_strided_slice %422 {offsets = [8, 0], sizes = [8, 5], strides = [1, 1]} : vector<16x5xf32> to vector<8x5xf32>
    %600 = vector.extract_strided_slice %421 {offsets = [1, 0], sizes = [1, 8], strides = [1, 1]} : vector<4x8xf32> to vector<1x8xf32>
    %601 = vector.extract_strided_slice %421 {offsets = [3, 0], sizes = [1, 8], strides = [1, 1]} : vector<4x8xf32> to vector<1x8xf32>
    %602 = arith.mulf %598, %599 : vector<8x5xf32>
    %cst_150 = arith.constant dense<0.000000e+00> : vector<8xf32>
    %603 = vector.multi_reduction <add>, %602, %cst_150 [1] : vector<8x5xf32> to vector<8xf32>
    %604 = vector.shape_cast %603 : vector<8xf32> to vector<8x1xf32>
    %cst_151 = arith.constant dense<0.000000e+00> : vector<8x5xf32>
    %605 = tpu.matmul %599, %419, %cst_151 {dimension_numbers = #tpu.dot_dimension_numbers<[1], [0], [0], [1], [0, 0, 1, 1], [], []>} : vector<8x5xf32>, vector<5x5xf32>, vector<8x5xf32> -> vector<8x5xf32>
    %606 = vector.extract_strided_slice %605 {offsets = [0, 0], sizes = [7, 5], strides = [1, 1]} : vector<8x5xf32> to vector<7x5xf32>
    %607 = vector.extract_strided_slice %599 {offsets = [1, 0], sizes = [7, 5], strides = [1, 1]} : vector<8x5xf32> to vector<7x5xf32>
    %608 = arith.mulf %606, %607 : vector<7x5xf32>
    %cst_152 = arith.constant dense<0.000000e+00> : vector<7xf32>
    %609 = vector.multi_reduction <add>, %608, %cst_152 [1] : vector<7x5xf32> to vector<7xf32>
    %610 = vector.shape_cast %609 : vector<7xf32> to vector<7x1xf32>
    %cst_153 = arith.constant dense<0.000000e+00> : vector<1x5xf32>
    %611 = tpu.matmul %601, %599, %cst_153 {dimension_numbers = #tpu.dot_dimension_numbers<[1], [0], [0], [1], [0, 0, 1, 1], [], []>} : vector<1x8xf32>, vector<8x5xf32>, vector<1x5xf32> -> vector<1x5xf32>
    %612 = vector.extract_strided_slice %599 {offsets = [0, 0], sizes = [1, 5], strides = [1, 1]} : vector<8x5xf32> to vector<1x5xf32>
    %613 = arith.mulf %417, %612 : vector<1x5xf32>
    %cst_154 = arith.constant dense<0.000000e+00> : vector<1xf32>
    %614 = vector.multi_reduction <add>, %613, %cst_154 [1] : vector<1x5xf32> to vector<1xf32>
    %615 = vector.shape_cast %614 : vector<1xf32> to vector<1x1xf32>
    %cst_155 = arith.constant dense<0.000000e+00> : vector<1x1xf32>
    %616 = tpu.matmul %600, %604, %cst_155 {dimension_numbers = #tpu.dot_dimension_numbers<[1], [0], [0], [1], [0, 0, 1, 1], [], []>} : vector<1x8xf32>, vector<8x1xf32>, vector<1x1xf32> -> vector<1x1xf32>
    %617 = arith.addf %615, %616 : vector<1x1xf32>
    %618 = vector.extract_strided_slice %600 {offsets = [0, 1], sizes = [1, 7], strides = [1, 1]} : vector<1x8xf32> to vector<1x7xf32>
    %cst_156 = arith.constant dense<0.000000e+00> : vector<1x1xf32>
    %619 = tpu.matmul %618, %610, %cst_156 {dimension_numbers = #tpu.dot_dimension_numbers<[1], [0], [0], [1], [0, 0, 1, 1], [], []>} : vector<1x7xf32>, vector<7x1xf32>, vector<1x1xf32> -> vector<1x1xf32>
    %620 = arith.addf %617, %619 : vector<1x1xf32>
    %621 = arith.mulf %611, %418 : vector<1x5xf32>
    %cst_157 = arith.constant dense<0.000000e+00> : vector<1xf32>
    %622 = vector.multi_reduction <add>, %621, %cst_157 [1] : vector<1x5xf32> to vector<1xf32>
    %623 = vector.shape_cast %622 : vector<1xf32> to vector<1x1xf32>
    %624 = arith.addf %620, %623 : vector<1x1xf32>
    %625 = vector.extract_strided_slice %598 {offsets = [0, 0], sizes = [1, 5], strides = [1, 1]} : vector<8x5xf32> to vector<1x5xf32>
    %626 = arith.addf %417, %625 : vector<1x5xf32>
    %cst_158 = arith.constant dense<0xFF800000> : vector<1xf32>
    %627 = vector.multi_reduction <maximumf>, %626, %cst_158 [1] : vector<1x5xf32> to vector<1xf32>
    %628 = vector.shape_cast %627 : vector<1xf32> to vector<1x1xf32>
    %629 = vector.broadcast %628 : vector<1x1xf32> to vector<1x5xf32>
    %630 = arith.subf %626, %629 : vector<1x5xf32>
    %631 = math.exp %630 : vector<1x5xf32>
    %cst_159 = arith.constant dense<0.000000e+00> : vector<1x5xf32>
    %632 = tpu.matmul %631, %420, %cst_159 {dimension_numbers = #tpu.dot_dimension_numbers<[1], [0], [0], [1], [0, 0, 1, 1], [], []>} : vector<1x5xf32>, vector<5x5xf32>, vector<1x5xf32> -> vector<1x5xf32>
    %633 = math.log %632 : vector<1x5xf32>
    %634 = vector.broadcast %628 : vector<1x1xf32> to vector<1x5xf32>
    %635 = arith.addf %634, %633 : vector<1x5xf32>
    %636 = vector.extract_strided_slice %598 {offsets = [1, 0], sizes = [1, 5], strides = [1, 1]} : vector<8x5xf32> to vector<1x5xf32>
    %637 = arith.addf %635, %636 : vector<1x5xf32>
    %638 = vector.extract_strided_slice %600 {offsets = [0, 1], sizes = [1, 1], strides = [1, 1]} : vector<1x8xf32> to vector<1x1xf32>
    %639 = vector.broadcast %638 : vector<1x1xf32> to vector<1x5xf32>
    %640 = arith.mulf %639, %637 : vector<1x5xf32>
    %cst_160 = arith.constant 1.000000e+00 : f32
    %641 = vector.broadcast %cst_160 : f32 to vector<1x1xf32>
    %642 = arith.subf %641, %638 : vector<1x1xf32>
    %643 = vector.broadcast %642 : vector<1x1xf32> to vector<1x5xf32>
    %644 = arith.mulf %643, %626 : vector<1x5xf32>
    %645 = arith.addf %640, %644 : vector<1x5xf32>
    %cst_161 = arith.constant dense<0xFF800000> : vector<1xf32>
    %646 = vector.multi_reduction <maximumf>, %645, %cst_161 [1] : vector<1x5xf32> to vector<1xf32>
    %647 = vector.shape_cast %646 : vector<1xf32> to vector<1x1xf32>
    %648 = vector.broadcast %647 : vector<1x1xf32> to vector<1x5xf32>
    %649 = arith.subf %645, %648 : vector<1x5xf32>
    %650 = math.exp %649 : vector<1x5xf32>
    %cst_162 = arith.constant dense<0.000000e+00> : vector<1x5xf32>
    %651 = tpu.matmul %650, %420, %cst_162 {dimension_numbers = #tpu.dot_dimension_numbers<[1], [0], [0], [1], [0, 0, 1, 1], [], []>} : vector<1x5xf32>, vector<5x5xf32>, vector<1x5xf32> -> vector<1x5xf32>
    %652 = math.log %651 : vector<1x5xf32>
    %653 = vector.broadcast %647 : vector<1x1xf32> to vector<1x5xf32>
    %654 = arith.addf %653, %652 : vector<1x5xf32>
    %655 = vector.extract_strided_slice %598 {offsets = [2, 0], sizes = [1, 5], strides = [1, 1]} : vector<8x5xf32> to vector<1x5xf32>
    %656 = arith.addf %654, %655 : vector<1x5xf32>
    %657 = vector.extract_strided_slice %600 {offsets = [0, 2], sizes = [1, 1], strides = [1, 1]} : vector<1x8xf32> to vector<1x1xf32>
    %658 = vector.broadcast %657 : vector<1x1xf32> to vector<1x5xf32>
    %659 = arith.mulf %658, %656 : vector<1x5xf32>
    %cst_163 = arith.constant 1.000000e+00 : f32
    %660 = vector.broadcast %cst_163 : f32 to vector<1x1xf32>
    %661 = arith.subf %660, %657 : vector<1x1xf32>
    %662 = vector.broadcast %661 : vector<1x1xf32> to vector<1x5xf32>
    %663 = arith.mulf %662, %645 : vector<1x5xf32>
    %664 = arith.addf %659, %663 : vector<1x5xf32>
    %cst_164 = arith.constant dense<0xFF800000> : vector<1xf32>
    %665 = vector.multi_reduction <maximumf>, %664, %cst_164 [1] : vector<1x5xf32> to vector<1xf32>
    %666 = vector.shape_cast %665 : vector<1xf32> to vector<1x1xf32>
    %667 = vector.broadcast %666 : vector<1x1xf32> to vector<1x5xf32>
    %668 = arith.subf %664, %667 : vector<1x5xf32>
    %669 = math.exp %668 : vector<1x5xf32>
    %cst_165 = arith.constant dense<0.000000e+00> : vector<1x5xf32>
    %670 = tpu.matmul %669, %420, %cst_165 {dimension_numbers = #tpu.dot_dimension_numbers<[1], [0], [0], [1], [0, 0, 1, 1], [], []>} : vector<1x5xf32>, vector<5x5xf32>, vector<1x5xf32> -> vector<1x5xf32>
    %671 = math.log %670 : vector<1x5xf32>
    %672 = vector.broadcast %666 : vector<1x1xf32> to vector<1x5xf32>
    %673 = arith.addf %672, %671 : vector<1x5xf32>
    %674 = vector.extract_strided_slice %598 {offsets = [3, 0], sizes = [1, 5], strides = [1, 1]} : vector<8x5xf32> to vector<1x5xf32>
    %675 = arith.addf %673, %674 : vector<1x5xf32>
    %676 = vector.extract_strided_slice %600 {offsets = [0, 3], sizes = [1, 1], strides = [1, 1]} : vector<1x8xf32> to vector<1x1xf32>
    %677 = vector.broadcast %676 : vector<1x1xf32> to vector<1x5xf32>
    %678 = arith.mulf %677, %675 : vector<1x5xf32>
    %cst_166 = arith.constant 1.000000e+00 : f32
    %679 = vector.broadcast %cst_166 : f32 to vector<1x1xf32>
    %680 = arith.subf %679, %676 : vector<1x1xf32>
    %681 = vector.broadcast %680 : vector<1x1xf32> to vector<1x5xf32>
    %682 = arith.mulf %681, %664 : vector<1x5xf32>
    %683 = arith.addf %678, %682 : vector<1x5xf32>
    %cst_167 = arith.constant dense<0xFF800000> : vector<1xf32>
    %684 = vector.multi_reduction <maximumf>, %683, %cst_167 [1] : vector<1x5xf32> to vector<1xf32>
    %685 = vector.shape_cast %684 : vector<1xf32> to vector<1x1xf32>
    %686 = vector.broadcast %685 : vector<1x1xf32> to vector<1x5xf32>
    %687 = arith.subf %683, %686 : vector<1x5xf32>
    %688 = math.exp %687 : vector<1x5xf32>
    %cst_168 = arith.constant dense<0.000000e+00> : vector<1x5xf32>
    %689 = tpu.matmul %688, %420, %cst_168 {dimension_numbers = #tpu.dot_dimension_numbers<[1], [0], [0], [1], [0, 0, 1, 1], [], []>} : vector<1x5xf32>, vector<5x5xf32>, vector<1x5xf32> -> vector<1x5xf32>
    %690 = math.log %689 : vector<1x5xf32>
    %691 = vector.broadcast %685 : vector<1x1xf32> to vector<1x5xf32>
    %692 = arith.addf %691, %690 : vector<1x5xf32>
    %693 = vector.extract_strided_slice %598 {offsets = [4, 0], sizes = [1, 5], strides = [1, 1]} : vector<8x5xf32> to vector<1x5xf32>
    %694 = arith.addf %692, %693 : vector<1x5xf32>
    %695 = vector.extract_strided_slice %600 {offsets = [0, 4], sizes = [1, 1], strides = [1, 1]} : vector<1x8xf32> to vector<1x1xf32>
    %696 = vector.broadcast %695 : vector<1x1xf32> to vector<1x5xf32>
    %697 = arith.mulf %696, %694 : vector<1x5xf32>
    %cst_169 = arith.constant 1.000000e+00 : f32
    %698 = vector.broadcast %cst_169 : f32 to vector<1x1xf32>
    %699 = arith.subf %698, %695 : vector<1x1xf32>
    %700 = vector.broadcast %699 : vector<1x1xf32> to vector<1x5xf32>
    %701 = arith.mulf %700, %683 : vector<1x5xf32>
    %702 = arith.addf %697, %701 : vector<1x5xf32>
    %cst_170 = arith.constant dense<0xFF800000> : vector<1xf32>
    %703 = vector.multi_reduction <maximumf>, %702, %cst_170 [1] : vector<1x5xf32> to vector<1xf32>
    %704 = vector.shape_cast %703 : vector<1xf32> to vector<1x1xf32>
    %705 = vector.broadcast %704 : vector<1x1xf32> to vector<1x5xf32>
    %706 = arith.subf %702, %705 : vector<1x5xf32>
    %707 = math.exp %706 : vector<1x5xf32>
    %cst_171 = arith.constant dense<0.000000e+00> : vector<1x5xf32>
    %708 = tpu.matmul %707, %420, %cst_171 {dimension_numbers = #tpu.dot_dimension_numbers<[1], [0], [0], [1], [0, 0, 1, 1], [], []>} : vector<1x5xf32>, vector<5x5xf32>, vector<1x5xf32> -> vector<1x5xf32>
    %709 = math.log %708 : vector<1x5xf32>
    %710 = vector.broadcast %704 : vector<1x1xf32> to vector<1x5xf32>
    %711 = arith.addf %710, %709 : vector<1x5xf32>
    %712 = vector.extract_strided_slice %598 {offsets = [5, 0], sizes = [1, 5], strides = [1, 1]} : vector<8x5xf32> to vector<1x5xf32>
    %713 = arith.addf %711, %712 : vector<1x5xf32>
    %714 = vector.extract_strided_slice %600 {offsets = [0, 5], sizes = [1, 1], strides = [1, 1]} : vector<1x8xf32> to vector<1x1xf32>
    %715 = vector.broadcast %714 : vector<1x1xf32> to vector<1x5xf32>
    %716 = arith.mulf %715, %713 : vector<1x5xf32>
    %cst_172 = arith.constant 1.000000e+00 : f32
    %717 = vector.broadcast %cst_172 : f32 to vector<1x1xf32>
    %718 = arith.subf %717, %714 : vector<1x1xf32>
    %719 = vector.broadcast %718 : vector<1x1xf32> to vector<1x5xf32>
    %720 = arith.mulf %719, %702 : vector<1x5xf32>
    %721 = arith.addf %716, %720 : vector<1x5xf32>
    %cst_173 = arith.constant dense<0xFF800000> : vector<1xf32>
    %722 = vector.multi_reduction <maximumf>, %721, %cst_173 [1] : vector<1x5xf32> to vector<1xf32>
    %723 = vector.shape_cast %722 : vector<1xf32> to vector<1x1xf32>
    %724 = vector.broadcast %723 : vector<1x1xf32> to vector<1x5xf32>
    %725 = arith.subf %721, %724 : vector<1x5xf32>
    %726 = math.exp %725 : vector<1x5xf32>
    %cst_174 = arith.constant dense<0.000000e+00> : vector<1x5xf32>
    %727 = tpu.matmul %726, %420, %cst_174 {dimension_numbers = #tpu.dot_dimension_numbers<[1], [0], [0], [1], [0, 0, 1, 1], [], []>} : vector<1x5xf32>, vector<5x5xf32>, vector<1x5xf32> -> vector<1x5xf32>
    %728 = math.log %727 : vector<1x5xf32>
    %729 = vector.broadcast %723 : vector<1x1xf32> to vector<1x5xf32>
    %730 = arith.addf %729, %728 : vector<1x5xf32>
    %731 = vector.extract_strided_slice %598 {offsets = [6, 0], sizes = [1, 5], strides = [1, 1]} : vector<8x5xf32> to vector<1x5xf32>
    %732 = arith.addf %730, %731 : vector<1x5xf32>
    %733 = vector.extract_strided_slice %600 {offsets = [0, 6], sizes = [1, 1], strides = [1, 1]} : vector<1x8xf32> to vector<1x1xf32>
    %734 = vector.broadcast %733 : vector<1x1xf32> to vector<1x5xf32>
    %735 = arith.mulf %734, %732 : vector<1x5xf32>
    %cst_175 = arith.constant 1.000000e+00 : f32
    %736 = vector.broadcast %cst_175 : f32 to vector<1x1xf32>
    %737 = arith.subf %736, %733 : vector<1x1xf32>
    %738 = vector.broadcast %737 : vector<1x1xf32> to vector<1x5xf32>
    %739 = arith.mulf %738, %721 : vector<1x5xf32>
    %740 = arith.addf %735, %739 : vector<1x5xf32>
    %cst_176 = arith.constant dense<0xFF800000> : vector<1xf32>
    %741 = vector.multi_reduction <maximumf>, %740, %cst_176 [1] : vector<1x5xf32> to vector<1xf32>
    %742 = vector.shape_cast %741 : vector<1xf32> to vector<1x1xf32>
    %743 = vector.broadcast %742 : vector<1x1xf32> to vector<1x5xf32>
    %744 = arith.subf %740, %743 : vector<1x5xf32>
    %745 = math.exp %744 : vector<1x5xf32>
    %cst_177 = arith.constant dense<0.000000e+00> : vector<1x5xf32>
    %746 = tpu.matmul %745, %420, %cst_177 {dimension_numbers = #tpu.dot_dimension_numbers<[1], [0], [0], [1], [0, 0, 1, 1], [], []>} : vector<1x5xf32>, vector<5x5xf32>, vector<1x5xf32> -> vector<1x5xf32>
    %747 = math.log %746 : vector<1x5xf32>
    %748 = vector.broadcast %742 : vector<1x1xf32> to vector<1x5xf32>
    %749 = arith.addf %748, %747 : vector<1x5xf32>
    %750 = vector.extract_strided_slice %598 {offsets = [7, 0], sizes = [1, 5], strides = [1, 1]} : vector<8x5xf32> to vector<1x5xf32>
    %751 = arith.addf %749, %750 : vector<1x5xf32>
    %752 = vector.extract_strided_slice %600 {offsets = [0, 7], sizes = [1, 1], strides = [1, 1]} : vector<1x8xf32> to vector<1x1xf32>
    %753 = vector.broadcast %752 : vector<1x1xf32> to vector<1x5xf32>
    %754 = arith.mulf %753, %751 : vector<1x5xf32>
    %cst_178 = arith.constant 1.000000e+00 : f32
    %755 = vector.broadcast %cst_178 : f32 to vector<1x1xf32>
    %756 = arith.subf %755, %752 : vector<1x1xf32>
    %757 = vector.broadcast %756 : vector<1x1xf32> to vector<1x5xf32>
    %758 = arith.mulf %757, %740 : vector<1x5xf32>
    %759 = arith.addf %754, %758 : vector<1x5xf32>
    %760 = arith.addf %759, %418 : vector<1x5xf32>
    %cst_179 = arith.constant dense<0xFF800000> : vector<1xf32>
    %761 = vector.multi_reduction <maximumf>, %760, %cst_179 [1] : vector<1x5xf32> to vector<1xf32>
    %762 = vector.shape_cast %761 : vector<1xf32> to vector<1x1xf32>
    %763 = vector.broadcast %762 : vector<1x1xf32> to vector<1x5xf32>
    %764 = arith.subf %760, %763 : vector<1x5xf32>
    %765 = math.exp %764 : vector<1x5xf32>
    %cst_180 = arith.constant dense<0.000000e+00> : vector<1xf32>
    %766 = vector.multi_reduction <add>, %765, %cst_180 [1] : vector<1x5xf32> to vector<1xf32>
    %767 = vector.shape_cast %766 : vector<1xf32> to vector<1x1xf32>
    %768 = math.log %767 : vector<1x1xf32>
    %769 = arith.addf %762, %768 : vector<1x1xf32>
    %770 = arith.subf %624, %769 : vector<1x1xf32>
    %771 = arith.addf %597, %770 : vector<1x1xf32>
    %cst_181 = arith.constant -5.000000e-01 : f32
    %772 = vector.broadcast %cst_181 : f32 to vector<1x1xf32>
    %773 = arith.mulf %771, %772 : vector<1x1xf32>
    %c0_182 = arith.constant 0 : index
    %c0_183 = arith.constant 0 : index
    %774 = vector.load %arg13[%c0_182, %c0_183] : memref<1x1xf32, #tpu.memory_space<vmem>>, vector<1x1xf32>
    tpu.vector_store %arg13[%c0_182, %c0_183], %773 {strides = array<i32>} : memref<1x1xf32, #tpu.memory_space<vmem>>, vector<1x1xf32>,
    return
  }
}

</mosaic_0001>

<llo_original>
// kernel: mul.27
$region0: #{mul.27}
  %s0 = inlined_call_operand.vmem [shape: f32[2,49], index: 0, kind: input, shape index: {}]
  %s1 = inlined_call_operand.vmem [shape: f32[98], index: 1, kind: output, shape index: {}]
  $region1: #{mul.27} parent=0
    #allocation0 [shape = 'u8[4096]{0}', space=vmem, size = 0x1000, scoped, tag = 'scoped mem for output reshape']
    #allocation1 [shape = 'u8[4096]{0}', space=vmem, size = 0x1000, scoped, tag = 'scoped mem for input reshape']
    %s3 = sshllo.u32 0, 2
    %v4 = vld [vmem:[%s0] sm:%s3]
    %5 = vst [vmem:[#allocation1] sm:%s3] %v4
    %v6 = vld [vmem:[#allocation1] sm:$0x1]
    %vm7 = vcmask 400384
    %8 = vst.msk [vmem:[#allocation0] sm:$0x1] %vm7, %v6
    %s9 = scalar_lea.vmem [#allocation1], 1
    %v10 = vld [vmem:[%s9] sm:$0x1]
    %11 = vrot.lane.b32.xlu0 %v10, 49
    %v12 = vpop.permute.xlu0 %11
    %vm13 = vcmask 802184
    %14 = vst.msk [vmem:[#allocation0] sm:$0x1] %vm13, %v12
    %s16 = sshllo.u32 0, 1
    %v18 = vld [vmem:[#allocation0] sm:%s16]
    %s19 = sshllo.u32 0, 1
    %20 = vst [vmem:[%s1] sm:%s19] %v18

// kernel: mul.22
$region0: #{mul.22}
  %s0 = inlined_call_operand.vmem [shape: f32[2,8], index: 0, kind: input, shape index: {}]
  %s1 = inlined_call_operand.vmem [shape: f32[16], index: 1, kind: output, shape index: {}]
  $region1: #{mul.22} parent=0
    #allocation0 [shape = 'u8[4096]{0}', space=vmem, size = 0x1000, scoped, tag = 'scoped mem for output reshape']
    #allocation1 [shape = 'u8[4096]{0}', space=vmem, size = 0x1000, scoped, tag = 'scoped mem for input reshape']
    %s3 = sshllo.u32 0, 2
    %v4 = vld [vmem:[%s0] sm:%s3]
    %5 = vst [vmem:[#allocation1] sm:%s3] %v4
    %v6 = vld [vmem:[#allocation1] sm:$0x1]
    %vm7 = vcmask 64512
    %8 = vst.msk [vmem:[#allocation0] sm:$0x1] %vm7, %v6
    %s9 = scalar_lea.vmem [#allocation1], 1
    %v10 = vld [vmem:[%s9] sm:$0x1]
    %11 = vrot.lane.b32.xlu0 %v10, 8
    %v12 = vpop.permute.xlu0 %11
    %vm13 = vcmask 130112
    %14 = vst.msk [vmem:[#allocation0] sm:$0x1] %vm13, %v12
    %s16 = sshllo.u32 0, 1
    %v18 = vld [vmem:[#allocation0] sm:%s16]
    %s19 = sshllo.u32 0, 1
    %20 = vst [vmem:[%s1] sm:%s19] %v18

// kernel: eq.53
$region0: #{eq.53}
  %s0 = inlined_call_operand.vmem [shape: s32[2,49], index: 0, kind: input, shape index: {}]
  %s1 = inlined_call_operand.vmem [shape: s32[98], index: 1, kind: output, shape index: {}]
  $region1: #{eq.53} parent=0
    #allocation0 [shape = 'u8[4096]{0}', space=vmem, size = 0x1000, scoped, tag = 'scoped mem for output reshape']
    #allocation1 [shape = 'u8[4096]{0}', space=vmem, size = 0x1000, scoped, tag = 'scoped mem for input reshape']
    %s3 = sshllo.u32 0, 2
    %v4 = vld [vmem:[%s0] sm:%s3]
    %5 = vst [vmem:[#allocation1] sm:%s3] %v4
    %v6 = vld [vmem:[#allocation1] sm:$0x1]
    %vm7 = vcmask 400384
    %8 = vst.msk [vmem:[#allocation0] sm:$0x1] %vm7, %v6
    %s9 = scalar_lea.vmem [#allocation1], 1
    %v10 = vld [vmem:[%s9] sm:$0x1]
    %11 = vrot.lane.b32.xlu0 %v10, 49
    %v12 = vpop.permute.xlu0 %11
    %vm13 = vcmask 802184
    %14 = vst.msk [vmem:[#allocation0] sm:$0x1] %vm13, %v12
    %s16 = sshllo.u32 0, 1
    %v18 = vld [vmem:[#allocation0] sm:%s16]
    %s19 = sshllo.u32 0, 1
    %20 = vst [vmem:[%s1] sm:%s19] %v18

// kernel: umt_mner_forward.1
$region0: #{umt_mner_forward.1}
  #allocation0 [shape = 'u32[]', space=smem, size = 0x4, offset = 0x4, fixed_abs, tag = 'smem constant byte address 0x4 - core index']
  #allocation1 [shape = 'u32[144,128]{1,0:T(1,128)}', space=vmem, size = 0x12000, scoped, tag = 'internal scratch']
  %s0 = inlined_call_operand.vmem [shape: f32[16,32], index: 0, kind: input, shape index: {}]
  %s1 = inlined_call_operand.vmem [shape: bf16[98,2048], index: 1, kind: input, shape index: {}]
  %s2 = inlined_call_operand.vmem [shape: f32[16,5], index: 2, kind: input, shape index: {}]
  %s3 = inlined_call_operand.vmem [shape: f32[16,16], index: 3, kind: input, shape index: {}]
  %s4 = inlined_call_operand.vmem [shape: f32[16,98], index: 4, kind: input, shape index: {}]
  %s5 = inlined_call_operand.vmem [shape: f32[98,16], index: 5, kind: input, shape index: {}]
  %s6 = inlined_call_operand.vmem [shape: f32[4,8], index: 6, kind: input, shape index: {}]
  %s7 = inlined_call_operand.vmem [shape: bf16[32,96], index: 7, kind: input, shape index: {}]
  %s8 = inlined_call_operand.vmem [shape: bf16[2048,32], index: 8, kind: input, shape index: {}]
  %s9 = inlined_call_operand.vmem [shape: bf16[64,32], index: 9, kind: input, shape index: {}]
  %s10 = inlined_call_operand.vmem [shape: bf16[64,5], index: 10, kind: input, shape index: {}]
  %s11 = inlined_call_operand.vmem [shape: f32[4,96], index: 11, kind: input, shape index: {}]
  %s12 = inlined_call_operand.vmem [shape: f32[7,5], index: 12, kind: input, shape index: {}]
  %s13 = inlined_call_operand.hbm [shape: f32[1,1], index: 13, kind: output, shape index: {}]
  %s14 = sld [smem:[#allocation0]]
  $region62: #{umt_mner_forward.1} parent=0
    _
  %s16 = ssub.s32 1, %s14
  %s17 = scalar_select 0, %s16, %s14
  $region1: #{umt_mner_forward.1} parent=0
    #allocation2 [shape = 'u8[512]{0}', space=vmem, size = 0x400, scoped, tag = 'output window, operand 0, single buffered']
    #allocation3 [shape = 's32[1]{0}', space=sflag, size = 0x4, scoped, tag = 'scoped memory for umt_mner_forward.1']
    %18 = vsyncpa [#allocation3], 0
    // Predicated region
    $region2: #{umt_mner_forward.1} parent=1 // pred_check
      _
    $region3: #{umt_mner_forward.1} parent=1 // pred_check_branch
      %20 = sbr.rel (0) target = $region5
    $region4: #{umt_mner_forward.1} parent=1 // pred_region
      _
    $region5: #{umt_mner_forward.1} parent=1 // pred_fallthru
      _
    // Predicated region
    $region6: #{umt_mner_forward.1} parent=1 // pred_check
      _
    $region7: #{umt_mner_forward.1} parent=1 // pred_check_branch
      %22 = sbr.rel (0) target = $region9
    $region8: #{umt_mner_forward.1} parent=1 // pred_region
      _
    $region9: #{umt_mner_forward.1} parent=1 // pred_fallthru
      _
    // Predicated region
    $region10: #{umt_mner_forward.1} parent=1 // pred_check
      _
    $region11: #{umt_mner_forward.1} parent=1 // pred_check_branch
      %24 = sbr.rel (0) target = $region13
    $region12: #{umt_mner_forward.1} parent=1 // pred_region
      _
    $region13: #{umt_mner_forward.1} parent=1 // pred_fallthru
      _
    // Predicated region
    $region14: #{umt_mner_forward.1} parent=1 // pred_check
      _
    $region15: #{umt_mner_forward.1} parent=1 // pred_check_branch
      %26 = sbr.rel (0) target = $region17
    $region16: #{umt_mner_forward.1} parent=1 // pred_region
      _
    $region17: #{umt_mner_forward.1} parent=1 // pred_fallthru
      _
    // Predicated region
    $region18: #{umt_mner_forward.1} parent=1 // pred_check
      _
    $region19: #{umt_mner_forward.1} parent=1 // pred_check_branch
      %28 = sbr.rel (0) target = $region21
    $region20: #{umt_mner_forward.1} parent=1 // pred_region
      _
    $region21: #{umt_mner_forward.1} parent=1 // pred_fallthru
      _
    // Predicated region
    $region22: #{umt_mner_forward.1} parent=1 // pred_check
      _
    $region23: #{umt_mner_forward.1} parent=1 // pred_check_branch
      %30 = sbr.rel (0) target = $region25
    $region24: #{umt_mner_forward.1} parent=1 // pred_region
      _
    $region25: #{umt_mner_forward.1} parent=1 // pred_fallthru
      _
    // Predicated region
    $region26: #{umt_mner_forward.1} parent=1 // pred_check
      _
    $region27: #{umt_mner_forward.1} parent=1 // pred_check_branch
      %32 = sbr.rel (0) target = $region29
    $region28: #{umt_mner_forward.1} parent=1 // pred_region
      _
    $region29: #{umt_mner_forward.1} parent=1 // pred_fallthru
      _
    // Predicated region
    $region30: #{umt_mner_forward.1} parent=1 // pred_check
      _
    $region31: #{umt_mner_forward.1} parent=1 // pred_check_branch
      %34 = sbr.rel (0) target = $region33
    $region32: #{umt_mner_forward.1} parent=1 // pred_region
      _
    $region33: #{umt_mner_forward.1} parent=1 // pred_fallthru
      _
    // Predicated region
    $region34: #{umt_mner_forward.1} parent=1 // pred_check
      _
    $region35: #{umt_mner_forward.1} parent=1 // pred_check_branch
      %36 = sbr.rel (0) target = $region37
    $region36: #{umt_mner_forward.1} parent=1 // pred_region
      _
    $region37: #{umt_mner_forward.1} parent=1 // pred_fallthru
      _
    // Predicated region
    $region38: #{umt_mner_forward.1} parent=1 // pred_check
      _
    $region39: #{umt_mner_forward.1} parent=1 // pred_check_branch
      %38 = sbr.rel (0) target = $region41
    $region40: #{umt_mner_forward.1} parent=1 // pred_region
      _
    $region41: #{umt_mner_forward.1} parent=1 // pred_fallthru
      _
    // Predicated region
    $region42: #{umt_mner_forward.1} parent=1 // pred_check
      _
    $region43: #{umt_mner_forward.1} parent=1 // pred_check_branch
      %40 = sbr.rel (0) target = $region45
    $region44: #{umt_mner_forward.1} parent=1 // pred_region
      _
    $region45: #{umt_mner_forward.1} parent=1 // pred_fallthru
      _
    // Predicated region
    $region46: #{umt_mner_forward.1} parent=1 // pred_check
      _
    $region47: #{umt_mner_forward.1} parent=1 // pred_check_branch
      %42 = sbr.rel (0) target = $region49
    $region48: #{umt_mner_forward.1} parent=1 // pred_region
      _
    $region49: #{umt_mner_forward.1} parent=1 // pred_fallthru
      _
    // Predicated region
    $region50: #{umt_mner_forward.1} parent=1 // pred_check
      _
    $region51: #{umt_mner_forward.1} parent=1 // pred_check_branch
      %44 = sbr.rel (0) target = $region53
    $region52: #{umt_mner_forward.1} parent=1 // pred_region
      _
    $region53: #{umt_mner_forward.1} parent=1 // pred_fallthru
      _
    %v46 = vld [vmem:[%s7] sm:$0xf]
    %v47 = vld [vmem:[%s7 + $0x4] sm:$0xf]
    %v48 = vld [vmem:[%s7 + $0x8] sm:$0xf]
    %v49 = vld [vmem:[%s7 + $0xc] sm:$0xf]
    %v50 = vld [vmem:[%s11] sm:$0xf]
    %v51 = vld [vmem:[%s9] sm:$0xf]
    %v52 = vld [vmem:[%s9 + $0x4] sm:$0xf]
    %v53 = vld [vmem:[%s9 + $0x8] sm:$0xf]
    %v54 = vld [vmem:[%s9 + $0xc] sm:$0xf]
    %v55 = vld [vmem:[%s9 + $0x10] sm:$0xf]
    %v56 = vld [vmem:[%s9 + $0x14] sm:$0xf]
    %v57 = vld [vmem:[%s9 + $0x18] sm:$0xf]
    %v58 = vld [vmem:[%s9 + $0x1c] sm:$0xf]
    %v59 = vld [vmem:[%s10] sm:$0xf]
    %v60 = vld [vmem:[%s10 + $0x4] sm:$0xf]
    %v61 = vld [vmem:[%s10 + $0x8] sm:$0xf]
    %v62 = vld [vmem:[%s10 + $0xc] sm:$0xf]
    %v63 = vld [vmem:[%s10 + $0x10] sm:$0xf]
    %v64 = vld [vmem:[%s10 + $0x14] sm:$0xf]
    %v65 = vld [vmem:[%s10 + $0x18] sm:$0xf]
    %v66 = vld [vmem:[%s10 + $0x1c] sm:$0xf]
    %v67 = vld [vmem:[%s0] sm:$0xff]
    %v68 = vld [vmem:[%s0 + $0x8] sm:$0xff]
    %v69 = vld [vmem:[%s3] sm:$0xff]
    %v70 = vld [vmem:[%s3 + $0x8] sm:$0xff]
    %v71 = vld [vmem:[%s4] sm:$0xff]
    %v72 = vld [vmem:[%s4 + $0x8] sm:$0xff]
    %v73 = vld [vmem:[%s5] sm:$0xff]
    %v74 = vld [vmem:[%s5 + $0x8] sm:$0xff]
    %v75 = vld [vmem:[%s5 + $0x10] sm:$0xff]
    %v76 = vld [vmem:[%s5 + $0x18] sm:$0xff]
    %v77 = vld [vmem:[%s5 + $0x20] sm:$0xff]
    %v78 = vld [vmem:[%s5 + $0x28] sm:$0xff]
    %v79 = vld [vmem:[%s5 + $0x30] sm:$0xff]
    %v80 = vld [vmem:[%s5 + $0x38] sm:$0xff]
    %v81 = vld [vmem:[%s5 + $0x40] sm:$0xff]
    %v82 = vld [vmem:[%s5 + $0x48] sm:$0xff]
    %v83 = vld [vmem:[%s5 + $0x50] sm:$0xff]
    %v84 = vld [vmem:[%s5 + $0x58] sm:$0xff]
    %v85 = vld [vmem:[%s5 + $0x60] sm:$0x3]
    %v86 = vld [vmem:[%s1] sm:$0xff]
    %v87 = vld [vmem:[%s1 + $0x8] sm:$0xff]
    %v88 = vld [vmem:[%s1 + $0x10] sm:$0xff]
    %v89 = vld [vmem:[%s1 + $0x18] sm:$0xff]
    %v90 = vld [vmem:[%s1 + $0x20] sm:$0xff]
    %v91 = vld [vmem:[%s1 + $0x28] sm:$0xff]
    %v92 = vld [vmem:[%s1 + $0x30] sm:$0xff]
    %v93 = vld [vmem:[%s1 + $0x38] sm:$0xff]
    %v94 = vld [vmem:[%s1 + $0x40] sm:$0xff]
    %v95 = vld [vmem:[%s1 + $0x48] sm:$0xff]
    %v96 = vld [vmem:[%s1 + $0x50] sm:$0xff]
    %v97 = vld [vmem:[%s1 + $0x58] sm:$0xff]
    %v98 = vld [vmem:[%s1 + $0x60] sm:$0xff]
    %v99 = vld [vmem:[%s1 + $0x68] sm:$0xff]
    %v100 = vld [vmem:[%s1 + $0x70] sm:$0xff]
    %v101 = vld [vmem:[%s1 + $0x78] sm:$0xff]
    %v102 = vld [vmem:[%s1 + $0x80] sm:$0xff]
    %v103 = vld [vmem:[%s1 + $0x88] sm:$0xff]
    %v104 = vld [vmem:[%s1 + $0x90] sm:$0xff]
    %v105 = vld [vmem:[%s1 + $0x98] sm:$0xff]
    %v106 = vld [vmem:[%s1 + $0xa0] sm:$0xff]
    %v107 = vld [vmem:[%s1 + $0xa8] sm:$0xff]
    %v108 = vld [vmem:[%s1 + $0xb0] sm:$0xff]
    %v109 = vld [vmem:[%s1 + $0xb8] sm:$0xff]
    %v110 = vld [vmem:[%s1 + $0xc0] sm:$0xff]
    %v111 = vld [vmem:[%s1 + $0xc8] sm:$0xff]
    %v112 = vld [vmem:[%s1 + $0xd0] sm:$0xff]
    %v113 = vld [vmem:[%s1 + $0xd8] sm:$0xff]
    %v114 = vld [vmem:[%s1 + $0xe0] sm:$0xff]
    %v115 = vld [vmem:[%s1 + $0xe8] sm:$0xff]
    %v116 = vld [vmem:[%s1 + $0xf0] sm:$0xff]
    %v117 = vld [vmem:[%s1 + $0xf8] sm:$0xff]
    %v118 = vld [vmem:[%s1 + $0x100] sm:$0xff]
    %v119 = vld [vmem:[%s1 + $0x108] sm:$0xff]
    %v120 = vld [vmem:[%s1 + $0x110] sm:$0xff]
    %v121 = vld [vmem:[%s1 + $0x118] sm:$0xff]
    %v122 = vld [vmem:[%s1 + $0x120] sm:$0xff]
    %v123 = vld [vmem:[%s1 + $0x128] sm:$0xff]
    %v124 = vld [vmem:[%s1 + $0x130] sm:$0xff]
    %v125 = vld [vmem:[%s1 + $0x138] sm:$0xff]
    %v126 = vld [vmem:[%s1 + $0x140] sm:$0xff]
    %v127 = vld [vmem:[%s1 + $0x148] sm:$0xff]
    %v128 = vld [vmem:[%s1 + $0x150] sm:$0xff]
    %v129 = vld [vmem:[%s1 + $0x158] sm:$0xff]
    %v130 = vld [vmem:[%s1 + $0x160] sm:$0xff]
    %v131 = vld [vmem:[%s1 + $0x168] sm:$0xff]
    %v132 = vld [vmem:[%s1 + $0x170] sm:$0xff]
    %v133 = vld [vmem:[%s1 + $0x178] sm:$0xff]
    %v134 = vld [vmem:[%s1 + $0x180] sm:$0xff]
    %v135 = vld [vmem:[%s1 + $0x188] sm:$0xff]
    %v136 = vld [vmem:[%s1 + $0x190] sm:$0xff]
    %v137 = vld [vmem:[%s1 + $0x198] sm:$0xff]
    %v138 = vld [vmem:[%s1 + $0x1a0] sm:$0xff]
    %v139 = vld [vmem:[%s1 + $0x1a8] sm:$0xff]
    %v140 = vld [vmem:[%s1 + $0x1b0] sm:$0xff]
    %v141 = vld [vmem:[%s1 + $0x1b8] sm:$0xff]
    %v142 = vld [vmem:[%s1 + $0x1c0] sm:$0xff]
    %v143 = vld [vmem:[%s1 + $0x1c8] sm:$0xff]
    %v144 = vld [vmem:[%s1 + $0x1d0] sm:$0xff]
    %v145 = vld [vmem:[%s1 + $0x1d8] sm:$0xff]
    %v146 = vld [vmem:[%s1 + $0x1e0] sm:$0xff]
    %v147 = vld [vmem:[%s1 + $0x1e8] sm:$0xff]
    %v148 = vld [vmem:[%s1 + $0x1f0] sm:$0xff]
    %v149 = vld [vmem:[%s1 + $0x1f8] sm:$0xff]
    %v150 = vld [vmem:[%s1 + $0x200] sm:$0xff]
    %v151 = vld [vmem:[%s1 + $0x208] sm:$0xff]
    %v152 = vld [vmem:[%s1 + $0x210] sm:$0xff]
    %v153 = vld [vmem:[%s1 + $0x218] sm:$0xff]
    %v154 = vld [vmem:[%s1 + $0x220] sm:$0xff]
    %v155 = vld [vmem:[%s1 + $0x228] sm:$0xff]
    %v156 = vld [vmem:[%s1 + $0x230] sm:$0xff]
    %v157 = vld [vmem:[%s1 + $0x238] sm:$0xff]
    %v158 = vld [vmem:[%s1 + $0x240] sm:$0xff]
    %v159 = vld [vmem:[%s1 + $0x248] sm:$0xff]
    %v160 = vld [vmem:[%s1 + $0x250] sm:$0xff]
    %v161 = vld [vmem:[%s1 + $0x258] sm:$0xff]
    %v162 = vld [vmem:[%s1 + $0x260] sm:$0xff]
    %v163 = vld [vmem:[%s1 + $0x268] sm:$0xff]
    %v164 = vld [vmem:[%s1 + $0x270] sm:$0xff]
    %v165 = vld [vmem:[%s1 + $0x278] sm:$0xff]
    %v166 = vld [vmem:[%s1 + $0x280] sm:$0xff]
    %v167 = vld [vmem:[%s1 + $0x288] sm:$0xff]
    %v168 = vld [vmem:[%s1 + $0x290] sm:$0xff]
    %v169 = vld [vmem:[%s1 + $0x298] sm:$0xff]
    %v170 = vld [vmem:[%s1 + $0x2a0] sm:$0xff]
    %v171 = vld [vmem:[%s1 + $0x2a8] sm:$0xff]
    %v172 = vld [vmem:[%s1 + $0x2b0] sm:$0xff]
    %v173 = vld [vmem:[%s1 + $0x2b8] sm:$0xff]
    %v174 = vld [vmem:[%s1 + $0x2c0] sm:$0xff]
    %v175 = vld [vmem:[%s1 + $0x2c8] sm:$0xff]
    %v176 = vld [vmem:[%s1 + $0x2d0] sm:$0xff]
    %v177 = vld [vmem:[%s1 + $0x2d8] sm:$0xff]
    %v178 = vld [vmem:[%s1 + $0x2e0] sm:$0xff]
    %v179 = vld [vmem:[%s1 + $0x2e8] sm:$0xff]
    %v180 = vld [vmem:[%s1 + $0x2f0] sm:$0xff]
    %v181 = vld [vmem:[%s1 + $0x2f8] sm:$0xff]
    %v182 = vld [vmem:[%s1 + $0x300] sm:$0x11]
    %v183 = vld [vmem:[%s1 + $0x308] sm:$0x11]
    %v184 = vld [vmem:[%s1 + $0x310] sm:$0x11]
    %v185 = vld [vmem:[%s1 + $0x318] sm:$0x11]
    %v186 = vld [vmem:[%s1 + $0x320] sm:$0x11]
    %v187 = vld [vmem:[%s1 + $0x328] sm:$0x11]
    %v188 = vld [vmem:[%s1 + $0x330] sm:$0x11]
    %v189 = vld [vmem:[%s1 + $0x338] sm:$0x11]
    %v190 = vld [vmem:[%s8] sm:$0xf]
    %v191 = vld [vmem:[%s8 + $0x4] sm:$0xf]
    %v192 = vld [vmem:[%s8 + $0x8] sm:$0xf]
    %v193 = vld [vmem:[%s8 + $0xc] sm:$0xf]
    %v194 = vld [vmem:[%s8 + $0x10] sm:$0xf]
    %v195 = vld [vmem:[%s8 + $0x14] sm:$0xf]
    %v196 = vld [vmem:[%s8 + $0x18] sm:$0xf]
    %v197 = vld [vmem:[%s8 + $0x1c] sm:$0xf]
    %v198 = vld [vmem:[%s8 + $0x20] sm:$0xf]
    %v199 = vld [vmem:[%s8 + $0x24] sm:$0xf]
    %v200 = vld [vmem:[%s8 + $0x28] sm:$0xf]
    %v201 = vld [vmem:[%s8 + $0x2c] sm:$0xf]
    %v202 = vld [vmem:[%s8 + $0x30] sm:$0xf]
    %v203 = vld [vmem:[%s8 + $0x34] sm:$0xf]
    %v204 = vld [vmem:[%s8 + $0x38] sm:$0xf]
    %v205 = vld [vmem:[%s8 + $0x3c] sm:$0xf]
    %v206 = vld [vmem:[%s8 + $0x40] sm:$0xf]
    %v207 = vld [vmem:[%s8 + $0x44] sm:$0xf]
    %v208 = vld [vmem:[%s8 + $0x48] sm:$0xf]
    %v209 = vld [vmem:[%s8 + $0x4c] sm:$0xf]
    %v210 = vld [vmem:[%s8 + $0x50] sm:$0xf]
    %v211 = vld [vmem:[%s8 + $0x54] sm:$0xf]
    %v212 = vld [vmem:[%s8 + $0x58] sm:$0xf]
    %v213 = vld [vmem:[%s8 + $0x5c] sm:$0xf]
    %v214 = vld [vmem:[%s8 + $0x60] sm:$0xf]
    %v215 = vld [vmem:[%s8 + $0x64] sm:$0xf]
    %v216 = vld [vmem:[%s8 + $0x68] sm:$0xf]
    %v217 = vld [vmem:[%s8 + $0x6c] sm:$0xf]
    %v218 = vld [vmem:[%s8 + $0x70] sm:$0xf]
    %v219 = vld [vmem:[%s8 + $0x74] sm:$0xf]
    %v220 = vld [vmem:[%s8 + $0x78] sm:$0xf]
    %v221 = vld [vmem:[%s8 + $0x7c] sm:$0xf]
    %v222 = vld [vmem:[%s8 + $0x80] sm:$0xf]
    %v223 = vld [vmem:[%s8 + $0x84] sm:$0xf]
    %v224 = vld [vmem:[%s8 + $0x88] sm:$0xf]
    %v225 = vld [vmem:[%s8 + $0x8c] sm:$0xf]
    %v226 = vld [vmem:[%s8 + $0x90] sm:$0xf]
    %v227 = vld [vmem:[%s8 + $0x94] sm:$0xf]
    %v228 = vld [vmem:[%s8 + $0x98] sm:$0xf]
    %v229 = vld [vmem:[%s8 + $0x9c] sm:$0xf]
    %v230 = vld [vmem:[%s8 + $0xa0] sm:$0xf]
    %v231 = vld [vmem:[%s8 + $0xa4] sm:$0xf]
    %v232 = vld [vmem:[%s8 + $0xa8] sm:$0xf]
    %v233 = vld [vmem:[%s8 + $0xac] sm:$0xf]
    %v234 = vld [vmem:[%s8 + $0xb0] sm:$0xf]
    %v235 = vld [vmem:[%s8 + $0xb4] sm:$0xf]
    %v236 = vld [vmem:[%s8 + $0xb8] sm:$0xf]
    %v237 = vld [vmem:[%s8 + $0xbc] sm:$0xf]
    %v238 = vld [vmem:[%s8 + $0xc0] sm:$0xf]
    %v239 = vld [vmem:[%s8 + $0xc4] sm:$0xf]
    %v240 = vld [vmem:[%s8 + $0xc8] sm:$0xf]
    %v241 = vld [vmem:[%s8 + $0xcc] sm:$0xf]
    %v242 = vld [vmem:[%s8 + $0xd0] sm:$0xf]
    %v243 = vld [vmem:[%s8 + $0xd4] sm:$0xf]
    %v244 = vld [vmem:[%s8 + $0xd8] sm:$0xf]
    %v245 = vld [vmem:[%s8 + $0xdc] sm:$0xf]
    %v246 = vld [vmem:[%s8 + $0xe0] sm:$0xf]
    %v247 = vld [vmem:[%s8 + $0xe4] sm:$0xf]
    %v248 = vld [vmem:[%s8 + $0xe8] sm:$0xf]
    %v249 = vld [vmem:[%s8 + $0xec] sm:$0xf]
    %v250 = vld [vmem:[%s8 + $0xf0] sm:$0xf]
    %v251 = vld [vmem:[%s8 + $0xf4] sm:$0xf]
    %v252 = vld [vmem:[%s8 + $0xf8] sm:$0xf]
    %v253 = vld [vmem:[%s8 + $0xfc] sm:$0xf]
    %v254 = vld [vmem:[%s8 + $0x100] sm:$0xf]
    %v255 = vld [vmem:[%s8 + $0x104] sm:$0xf]
    %v256 = vld [vmem:[%s8 + $0x108] sm:$0xf]
    %v257 = vld [vmem:[%s8 + $0x10c] sm:$0xf]
    %v258 = vld [vmem:[%s8 + $0x110] sm:$0xf]
    %v259 = vld [vmem:[%s8 + $0x114] sm:$0xf]
    %v260 = vld [vmem:[%s8 + $0x118] sm:$0xf]
    %v261 = vld [vmem:[%s8 + $0x11c] sm:$0xf]
    %v262 = vld [vmem:[%s8 + $0x120] sm:$0xf]
    %v263 = vld [vmem:[%s8 + $0x124] sm:$0xf]
    %v264 = vld [vmem:[%s8 + $0x128] sm:$0xf]
    %v265 = vld [vmem:[%s8 + $0x12c] sm:$0xf]
    %v266 = vld [vmem:[%s8 + $0x130] sm:$0xf]
    %v267 = vld [vmem:[%s8 + $0x134] sm:$0xf]
    %v268 = vld [vmem:[%s8 + $0x138] sm:$0xf]
    %v269 = vld [vmem:[%s8 + $0x13c] sm:$0xf]
    %v270 = vld [vmem:[%s8 + $0x140] sm:$0xf]
    %v271 = vld [vmem:[%s8 + $0x144] sm:$0xf]
    %v272 = vld [vmem:[%s8 + $0x148] sm:$0xf]
    %v273 = vld [vmem:[%s8 + $0x14c] sm:$0xf]
    %v274 = vld [vmem:[%s8 + $0x150] sm:$0xf]
    %v275 = vld [vmem:[%s8 + $0x154] sm:$0xf]
    %v276 = vld [vmem:[%s8 + $0x158] sm:$0xf]
    %v277 = vld [vmem:[%s8 + $0x15c] sm:$0xf]
    %v278 = vld [vmem:[%s8 + $0x160] sm:$0xf]
    %v279 = vld [vmem:[%s8 + $0x164] sm:$0xf]
    %v280 = vld [vmem:[%s8 + $0x168] sm:$0xf]
    %v281 = vld [vmem:[%s8 + $0x16c] sm:$0xf]
    %v282 = vld [vmem:[%s8 + $0x170] sm:$0xf]
    %v283 = vld [vmem:[%s8 + $0x174] sm:$0xf]
    %v284 = vld [vmem:[%s8 + $0x178] sm:$0xf]
    %v285 = vld [vmem:[%s8 + $0x17c] sm:$0xf]
    %v286 = vld [vmem:[%s8 + $0x180] sm:$0xf]
    %v287 = vld [vmem:[%s8 + $0x184] sm:$0xf]
    %v288 = vld [vmem:[%s8 + $0x188] sm:$0xf]
    %v289 = vld [vmem:[%s8 + $0x18c] sm:$0xf]
    %v290 = vld [vmem:[%s8 + $0x190] sm:$0xf]
    %v291 = vld [vmem:[%s8 + $0x194] sm:$0xf]
    %v292 = vld [vmem:[%s8 + $0x198] sm:$0xf]
    %v293 = vld [vmem:[%s8 + $0x19c] sm:$0xf]
    %v294 = vld [vmem:[%s8 + $0x1a0] sm:$0xf]
    %v295 = vld [vmem:[%s8 + $0x1a4] sm:$0xf]
    %v296 = vld [vmem:[%s8 + $0x1a8] sm:$0xf]
    %v297 = vld [vmem:[%s8 + $0x1ac] sm:$0xf]
    %v298 = vld [vmem:[%s8 + $0x1b0] sm:$0xf]
    %v299 = vld [vmem:[%s8 + $0x1b4] sm:$0xf]
    %v300 = vld [vmem:[%s8 + $0x1b8] sm:$0xf]
    %v301 = vld [vmem:[%s8 + $0x1bc] sm:$0xf]
    %v302 = vld [vmem:[%s8 + $0x1c0] sm:$0xf]
    %v303 = vld [vmem:[%s8 + $0x1c4] sm:$0xf]
    %v304 = vld [vmem:[%s8 + $0x1c8] sm:$0xf]
    %v305 = vld [vmem:[%s8 + $0x1cc] sm:$0xf]
    %v306 = vld [vmem:[%s8 + $0x1d0] sm:$0xf]
    %v307 = vld [vmem:[%s8 + $0x1d4] sm:$0xf]
    %v308 = vld [vmem:[%s8 + $0x1d8] sm:$0xf]
    %v309 = vld [vmem:[%s8 + $0x1dc] sm:$0xf]
    %v310 = vld [vmem:[%s8 + $0x1e0] sm:$0xf]
    %v311 = vld [vmem:[%s8 + $0x1e4] sm:$0xf]
    %v312 = vld [vmem:[%s8 + $0x1e8] sm:$0xf]
    %v313 = vld [vmem:[%s8 + $0x1ec] sm:$0xf]
    %v314 = vld [vmem:[%s8 + $0x1f0] sm:$0xf]
    %v315 = vld [vmem:[%s8 + $0x1f4] sm:$0xf]
    %v316 = vld [vmem:[%s8 + $0x1f8] sm:$0xf]
    %v317 = vld [vmem:[%s8 + $0x1fc] sm:$0xf]
    %v318 = vld [vmem:[%s8 + $0x200] sm:$0xf]
    %v319 = vld [vmem:[%s8 + $0x204] sm:$0xf]
    %v320 = vld [vmem:[%s8 + $0x208] sm:$0xf]
    %v321 = vld [vmem:[%s8 + $0x20c] sm:$0xf]
    %v322 = vld [vmem:[%s8 + $0x210] sm:$0xf]
    %v323 = vld [vmem:[%s8 + $0x214] sm:$0xf]
    %v324 = vld [vmem:[%s8 + $0x218] sm:$0xf]
    %v325 = vld [vmem:[%s8 + $0x21c] sm:$0xf]
    %v326 = vld [vmem:[%s8 + $0x220] sm:$0xf]
    %v327 = vld [vmem:[%s8 + $0x224] sm:$0xf]
    %v328 = vld [vmem:[%s8 + $0x228] sm:$0xf]
    %v329 = vld [vmem:[%s8 + $0x22c] sm:$0xf]
    %v330 = vld [vmem:[%s8 + $0x230] sm:$0xf]
    %v331 = vld [vmem:[%s8 + $0x234] sm:$0xf]
    %v332 = vld [vmem:[%s8 + $0x238] sm:$0xf]
    %v333 = vld [vmem:[%s8 + $0x23c] sm:$0xf]
    %v334 = vld [vmem:[%s8 + $0x240] sm:$0xf]
    %v335 = vld [vmem:[%s8 + $0x244] sm:$0xf]
    %v336 = vld [vmem:[%s8 + $0x248] sm:$0xf]
    %v337 = vld [vmem:[%s8 + $0x24c] sm:$0xf]
    %v338 = vld [vmem:[%s8 + $0x250] sm:$0xf]
    %v339 = vld [vmem:[%s8 + $0x254] sm:$0xf]
    %v340 = vld [vmem:[%s8 + $0x258] sm:$0xf]
    %v341 = vld [vmem:[%s8 + $0x25c] sm:$0xf]
    %v342 = vld [vmem:[%s8 + $0x260] sm:$0xf]
    %v343 = vld [vmem:[%s8 + $0x264] sm:$0xf]
    %v344 = vld [vmem:[%s8 + $0x268] sm:$0xf]
    %v345 = vld [vmem:[%s8 + $0x26c] sm:$0xf]
    %v346 = vld [vmem:[%s8 + $0x270] sm:$0xf]
    %v347 = vld [vmem:[%s8 + $0x274] sm:$0xf]
    %v348 = vld [vmem:[%s8 + $0x278] sm:$0xf]
    %v349 = vld [vmem:[%s8 + $0x27c] sm:$0xf]
    %v350 = vld [vmem:[%s8 + $0x280] sm:$0xf]
    %v351 = vld [vmem:[%s8 + $0x284] sm:$0xf]
    %v352 = vld [vmem:[%s8 + $0x288] sm:$0xf]
    %v353 = vld [vmem:[%s8 + $0x28c] sm:$0xf]
    %v354 = vld [vmem:[%s8 + $0x290] sm:$0xf]
    %v355 = vld [vmem:[%s8 + $0x294] sm:$0xf]
    %v356 = vld [vmem:[%s8 + $0x298] sm:$0xf]
    %v357 = vld [vmem:[%s8 + $0x29c] sm:$0xf]
    %v358 = vld [vmem:[%s8 + $0x2a0] sm:$0xf]
    %v359 = vld [vmem:[%s8 + $0x2a4] sm:$0xf]
    %v360 = vld [vmem:[%s8 + $0x2a8] sm:$0xf]
    %v361 = vld [vmem:[%s8 + $0x2ac] sm:$0xf]
    %v362 = vld [vmem:[%s8 + $0x2b0] sm:$0xf]
    %v363 = vld [vmem:[%s8 + $0x2b4] sm:$0xf]
    %v364 = vld [vmem:[%s8 + $0x2b8] sm:$0xf]
    %v365 = vld [vmem:[%s8 + $0x2bc] sm:$0xf]
    %v366 = vld [vmem:[%s8 + $0x2c0] sm:$0xf]
    %v367 = vld [vmem:[%s8 + $0x2c4] sm:$0xf]
    %v368 = vld [vmem:[%s8 + $0x2c8] sm:$0xf]
    %v369 = vld [vmem:[%s8 + $0x2cc] sm:$0xf]
    %v370 = vld [vmem:[%s8 + $0x2d0] sm:$0xf]
    %v371 = vld [vmem:[%s8 + $0x2d4] sm:$0xf]
    %v372 = vld [vmem:[%s8 + $0x2d8] sm:$0xf]
    %v373 = vld [vmem:[%s8 + $0x2dc] sm:$0xf]
    %v374 = vld [vmem:[%s8 + $0x2e0] sm:$0xf]
    %v375 = vld [vmem:[%s8 + $0x2e4] sm:$0xf]
    %v376 = vld [vmem:[%s8 + $0x2e8] sm:$0xf]
    %v377 = vld [vmem:[%s8 + $0x2ec] sm:$0xf]
    %v378 = vld [vmem:[%s8 + $0x2f0] sm:$0xf]
    %v379 = vld [vmem:[%s8 + $0x2f4] sm:$0xf]
    %v380 = vld [vmem:[%s8 + $0x2f8] sm:$0xf]
    %v381 = vld [vmem:[%s8 + $0x2fc] sm:$0xf]
    %v382 = vld [vmem:[%s8 + $0x300] sm:$0xf]
    %v383 = vld [vmem:[%s8 + $0x304] sm:$0xf]
    %v384 = vld [vmem:[%s8 + $0x308] sm:$0xf]
    %v385 = vld [vmem:[%s8 + $0x30c] sm:$0xf]
    %v386 = vld [vmem:[%s8 + $0x310] sm:$0xf]
    %v387 = vld [vmem:[%s8 + $0x314] sm:$0xf]
    %v388 = vld [vmem:[%s8 + $0x318] sm:$0xf]
    %v389 = vld [vmem:[%s8 + $0x31c] sm:$0xf]
    %v390 = vld [vmem:[%s8 + $0x320] sm:$0xf]
    %v391 = vld [vmem:[%s8 + $0x324] sm:$0xf]
    %v392 = vld [vmem:[%s8 + $0x328] sm:$0xf]
    %v393 = vld [vmem:[%s8 + $0x32c] sm:$0xf]
    %v394 = vld [vmem:[%s8 + $0x330] sm:$0xf]
    %v395 = vld [vmem:[%s8 + $0x334] sm:$0xf]
    %v396 = vld [vmem:[%s8 + $0x338] sm:$0xf]
    %v397 = vld [vmem:[%s8 + $0x33c] sm:$0xf]
    %v398 = vld [vmem:[%s8 + $0x340] sm:$0xf]
    %v399 = vld [vmem:[%s8 + $0x344] sm:$0xf]
    %v400 = vld [vmem:[%s8 + $0x348] sm:$0xf]
    %v401 = vld [vmem:[%s8 + $0x34c] sm:$0xf]
    %v402 = vld [vmem:[%s8 + $0x350] sm:$0xf]
    %v403 = vld [vmem:[%s8 + $0x354] sm:$0xf]
    %v404 = vld [vmem:[%s8 + $0x358] sm:$0xf]
    %v405 = vld [vmem:[%s8 + $0x35c] sm:$0xf]
    %v406 = vld [vmem:[%s8 + $0x360] sm:$0xf]
    %v407 = vld [vmem:[%s8 + $0x364] sm:$0xf]
    %v408 = vld [vmem:[%s8 + $0x368] sm:$0xf]
    %v409 = vld [vmem:[%s8 + $0x36c] sm:$0xf]
    %v410 = vld [vmem:[%s8 + $0x370] sm:$0xf]
    %v411 = vld [vmem:[%s8 + $0x374] sm:$0xf]
    %v412 = vld [vmem:[%s8 + $0x378] sm:$0xf]
    %v413 = vld [vmem:[%s8 + $0x37c] sm:$0xf]
    %v414 = vld [vmem:[%s8 + $0x380] sm:$0xf]
    %v415 = vld [vmem:[%s8 + $0x384] sm:$0xf]
    %v416 = vld [vmem:[%s8 + $0x388] sm:$0xf]
    %v417 = vld [vmem:[%s8 + $0x38c] sm:$0xf]
    %v418 = vld [vmem:[%s8 + $0x390] sm:$0xf]
    %v419 = vld [vmem:[%s8 + $0x394] sm:$0xf]
    %v420 = vld [vmem:[%s8 + $0x398] sm:$0xf]
    %v421 = vld [vmem:[%s8 + $0x39c] sm:$0xf]
    %v422 = vld [vmem:[%s8 + $0x3a0] sm:$0xf]
    %v423 = vld [vmem:[%s8 + $0x3a4] sm:$0xf]
    %v424 = vld [vmem:[%s8 + $0x3a8] sm:$0xf]
    %v425 = vld [vmem:[%s8 + $0x3ac] sm:$0xf]
    %v426 = vld [vmem:[%s8 + $0x3b0] sm:$0xf]
    %v427 = vld [vmem:[%s8 + $0x3b4] sm:$0xf]
    %v428 = vld [vmem:[%s8 + $0x3b8] sm:$0xf]
    %v429 = vld [vmem:[%s8 + $0x3bc] sm:$0xf]
    %v430 = vld [vmem:[%s8 + $0x3c0] sm:$0xf]
    %v431 = vld [vmem:[%s8 + $0x3c4] sm:$0xf]
    %v432 = vld [vmem:[%s8 + $0x3c8] sm:$0xf]
    %v433 = vld [vmem:[%s8 + $0x3cc] sm:$0xf]
    %v434 = vld [vmem:[%s8 + $0x3d0] sm:$0xf]
    %v435 = vld [vmem:[%s8 + $0x3d4] sm:$0xf]
    %v436 = vld [vmem:[%s8 + $0x3d8] sm:$0xf]
    %v437 = vld [vmem:[%s8 + $0x3dc] sm:$0xf]
    %v438 = vld [vmem:[%s8 + $0x3e0] sm:$0xf]
    %v439 = vld [vmem:[%s8 + $0x3e4] sm:$0xf]
    %v440 = vld [vmem:[%s8 + $0x3e8] sm:$0xf]
    %v441 = vld [vmem:[%s8 + $0x3ec] sm:$0xf]
    %v442 = vld [vmem:[%s8 + $0x3f0] sm:$0xf]
    %v443 = vld [vmem:[%s8 + $0x3f4] sm:$0xf]
    %v444 = vld [vmem:[%s8 + $0x3f8] sm:$0xf]
    %v445 = vld [vmem:[%s8 + $0x3fc] sm:$0xf]
    %v446 = vlaneseq
    %v447 = vshrl.u32 %v446, 7
    %v448 = vsub.s32 1, %v447
    %v449 = vrot.slane %v50, %v448
    %v554 = vunpack.c.l.b16 %v86
    %v555 = vunpack.c.h.b16 %v86
    %v556 = vunpack.c.l.b16 %v87
    %v557 = vunpack.c.h.b16 %v87
    %v558 = vunpack.c.l.b16 %v88
    %v559 = vunpack.c.h.b16 %v88
    %v560 = vunpack.c.l.b16 %v89
    %v561 = vunpack.c.h.b16 %v89
    %v562 = vunpack.c.l.b16 %v90
    %v563 = vunpack.c.h.b16 %v90
    %v564 = vunpack.c.l.b16 %v91
    %v565 = vunpack.c.h.b16 %v91
    %v566 = vunpack.c.l.b16 %v92
    %v567 = vunpack.c.h.b16 %v92
    %v568 = vunpack.c.l.b16 %v93
    %v569 = vunpack.c.h.b16 %v93
    %v570 = vunpack.c.l.b16 %v94
    %v571 = vunpack.c.h.b16 %v94
    %v572 = vunpack.c.l.b16 %v95
    %v573 = vunpack.c.h.b16 %v95
    %v574 = vunpack.c.l.b16 %v96
    %v575 = vunpack.c.h.b16 %v96
    %v576 = vunpack.c.l.b16 %v97
    %v577 = vunpack.c.h.b16 %v97
    %v578 = vunpack.c.l.b16 %v98
    %v579 = vunpack.c.h.b16 %v98
    %v580 = vunpack.c.l.b16 %v99
    %v581 = vunpack.c.h.b16 %v99
    %v582 = vunpack.c.l.b16 %v100
    %v583 = vunpack.c.h.b16 %v100
    %v584 = vunpack.c.l.b16 %v101
    %v585 = vunpack.c.h.b16 %v101
    %v586 = vunpack.c.l.b16 %v102
    %v587 = vunpack.c.h.b16 %v102
    %v588 = vunpack.c.l.b16 %v103
    %v589 = vunpack.c.h.b16 %v103
    %v590 = vunpack.c.l.b16 %v104
    %v591 = vunpack.c.h.b16 %v104
    %v592 = vunpack.c.l.b16 %v105
    %v593 = vunpack.c.h.b16 %v105
    %v594 = vunpack.c.l.b16 %v106
    %v595 = vunpack.c.h.b16 %v106
    %v596 = vunpack.c.l.b16 %v107
    %v597 = vunpack.c.h.b16 %v107
    %v598 = vunpack.c.l.b16 %v108
    %v599 = vunpack.c.h.b16 %v108
    %v600 = vunpack.c.l.b16 %v109
    %v601 = vunpack.c.h.b16 %v109
    %v602 = vunpack.c.l.b16 %v110
    %v603 = vunpack.c.h.b16 %v110
    %v604 = vunpack.c.l.b16 %v111
    %v605 = vunpack.c.h.b16 %v111
    %v606 = vunpack.c.l.b16 %v112
    %v607 = vunpack.c.h.b16 %v112
    %v608 = vunpack.c.l.b16 %v113
    %v609 = vunpack.c.h.b16 %v113
    %v610 = vunpack.c.l.b16 %v114
    %v611 = vunpack.c.h.b16 %v114
    %v612 = vunpack.c.l.b16 %v115
    %v613 = vunpack.c.h.b16 %v115
    %v614 = vunpack.c.l.b16 %v116
    %v615 = vunpack.c.h.b16 %v116
    %v616 = vunpack.c.l.b16 %v117
    %v617 = vunpack.c.h.b16 %v117
    %v618 = vunpack.c.l.b16 %v118
    %v619 = vunpack.c.h.b16 %v118
    %v620 = vunpack.c.l.b16 %v119
    %v621 = vunpack.c.h.b16 %v119
    %v622 = vunpack.c.l.b16 %v120
    %v623 = vunpack.c.h.b16 %v120
    %v624 = vunpack.c.l.b16 %v121
    %v625 = vunpack.c.h.b16 %v121
    %v626 = vunpack.c.l.b16 %v122
    %v627 = vunpack.c.h.b16 %v122
    %v628 = vunpack.c.l.b16 %v123
    %v629 = vunpack.c.h.b16 %v123
    %v630 = vunpack.c.l.b16 %v124
    %v631 = vunpack.c.h.b16 %v124
    %v632 = vunpack.c.l.b16 %v125
    %v633 = vunpack.c.h.b16 %v125
    %v634 = vunpack.c.l.b16 %v126
    %v635 = vunpack.c.h.b16 %v126
    %v636 = vunpack.c.l.b16 %v127
    %v637 = vunpack.c.h.b16 %v127
    %v638 = vunpack.c.l.b16 %v128
    %v639 = vunpack.c.h.b16 %v128
    %v640 = vunpack.c.l.b16 %v129
    %v641 = vunpack.c.h.b16 %v129
    %v642 = vunpack.c.l.b16 %v130
    %v643 = vunpack.c.h.b16 %v130
    %v644 = vunpack.c.l.b16 %v131
    %v645 = vunpack.c.h.b16 %v131
    %v646 = vunpack.c.l.b16 %v132
    %v647 = vunpack.c.h.b16 %v132
    %v648 = vunpack.c.l.b16 %v133
    %v649 = vunpack.c.h.b16 %v133
    %v650 = vunpack.c.l.b16 %v134
    %v651 = vunpack.c.h.b16 %v134
    %v652 = vunpack.c.l.b16 %v135
    %v653 = vunpack.c.h.b16 %v135
    %v654 = vunpack.c.l.b16 %v136
    %v655 = vunpack.c.h.b16 %v136
    %v656 = vunpack.c.l.b16 %v137
    %v657 = vunpack.c.h.b16 %v137
    %v658 = vunpack.c.l.b16 %v138
    %v659 = vunpack.c.h.b16 %v138
    %v660 = vunpack.c.l.b16 %v139
    %v661 = vunpack.c.h.b16 %v139
    %v662 = vunpack.c.l.b16 %v140
    %v663 = vunpack.c.h.b16 %v140
    %v664 = vunpack.c.l.b16 %v141
    %v665 = vunpack.c.h.b16 %v141
    %v666 = vunpack.c.l.b16 %v142
    %v667 = vunpack.c.h.b16 %v142
    %v668 = vunpack.c.l.b16 %v143
    %v669 = vunpack.c.h.b16 %v143
    %v670 = vunpack.c.l.b16 %v144
    %v671 = vunpack.c.h.b16 %v144
    %v672 = vunpack.c.l.b16 %v145
    %v673 = vunpack.c.h.b16 %v145
    %v674 = vunpack.c.l.b16 %v146
    %v675 = vunpack.c.h.b16 %v146
    %v676 = vunpack.c.l.b16 %v147
    %v677 = vunpack.c.h.b16 %v147
    %v678 = vunpack.c.l.b16 %v148
    %v679 = vunpack.c.h.b16 %v148
    %v680 = vunpack.c.l.b16 %v149
    %v681 = vunpack.c.h.b16 %v149
    %v682 = vunpack.c.l.b16 %v150
    %v683 = vunpack.c.h.b16 %v150
    %v684 = vunpack.c.l.b16 %v151
    %v685 = vunpack.c.h.b16 %v151
    %v686 = vunpack.c.l.b16 %v152
    %v687 = vunpack.c.h.b16 %v152
    %v688 = vunpack.c.l.b16 %v153
    %v689 = vunpack.c.h.b16 %v153
    %v690 = vunpack.c.l.b16 %v154
    %v691 = vunpack.c.h.b16 %v154
    %v692 = vunpack.c.l.b16 %v155
    %v693 = vunpack.c.h.b16 %v155
    %v694 = vunpack.c.l.b16 %v156
    %v695 = vunpack.c.h.b16 %v156
    %v696 = vunpack.c.l.b16 %v157
    %v697 = vunpack.c.h.b16 %v157
    %v698 = vunpack.c.l.b16 %v158
    %v699 = vunpack.c.h.b16 %v158
    %v700 = vunpack.c.l.b16 %v159
    %v701 = vunpack.c.h.b16 %v159
    %v702 = vunpack.c.l.b16 %v160
    %v703 = vunpack.c.h.b16 %v160
    %v704 = vunpack.c.l.b16 %v161
    %v705 = vunpack.c.h.b16 %v161
    %v706 = vunpack.c.l.b16 %v162
    %v707 = vunpack.c.h.b16 %v162
    %v708 = vunpack.c.l.b16 %v163
    %v709 = vunpack.c.h.b16 %v163
    %v710 = vunpack.c.l.b16 %v164
    %v711 = vunpack.c.h.b16 %v164
    %v712 = vunpack.c.l.b16 %v165
    %v713 = vunpack.c.h.b16 %v165
    %v714 = vunpack.c.l.b16 %v166
    %v715 = vunpack.c.h.b16 %v166
    %v716 = vunpack.c.l.b16 %v167
    %v717 = vunpack.c.h.b16 %v167
    %v718 = vunpack.c.l.b16 %v168
    %v719 = vunpack.c.h.b16 %v168
    %v720 = vunpack.c.l.b16 %v169
    %v721 = vunpack.c.h.b16 %v169
    %v722 = vunpack.c.l.b16 %v170
    %v723 = vunpack.c.h.b16 %v170
    %v724 = vunpack.c.l.b16 %v171
    %v725 = vunpack.c.h.b16 %v171
    %v726 = vunpack.c.l.b16 %v172
    %v727 = vunpack.c.h.b16 %v172
    %v728 = vunpack.c.l.b16 %v173
    %v729 = vunpack.c.h.b16 %v173
    %v730 = vunpack.c.l.b16 %v174
    %v731 = vunpack.c.h.b16 %v174
    %v732 = vunpack.c.l.b16 %v175
    %v733 = vunpack.c.h.b16 %v175
    %v734 = vunpack.c.l.b16 %v176
    %v735 = vunpack.c.h.b16 %v176
    %v736 = vunpack.c.l.b16 %v177
    %v737 = vunpack.c.h.b16 %v177
    %v738 = vunpack.c.l.b16 %v178
    %v739 = vunpack.c.h.b16 %v178
    %v740 = vunpack.c.l.b16 %v179
    %v741 = vunpack.c.h.b16 %v179
    %v742 = vunpack.c.l.b16 %v180
    %v743 = vunpack.c.h.b16 %v180
    %v744 = vunpack.c.l.b16 %v181
    %v745 = vunpack.c.h.b16 %v181
    %v746 = vunpack.c.l.b16 %v182
    %v747 = vunpack.c.h.b16 %v182
    %v748 = vunpack.c.l.b16 %v183
    %v749 = vunpack.c.h.b16 %v183
    %v750 = vunpack.c.l.b16 %v184
    %v751 = vunpack.c.h.b16 %v184
    %v752 = vunpack.c.l.b16 %v185
    %v753 = vunpack.c.h.b16 %v185
    %v754 = vunpack.c.l.b16 %v186
    %v755 = vunpack.c.h.b16 %v186
    %v756 = vunpack.c.l.b16 %v187
    %v757 = vunpack.c.h.b16 %v187
    %v758 = vunpack.c.l.b16 %v188
    %v759 = vunpack.c.h.b16 %v188
    %v760 = vunpack.c.l.b16 %v189
    %v761 = vunpack.c.h.b16 %v189
    %v762 = vpack.c.b16 %v570, %v554
    %v763 = vpack.c.b16 %v571, %v555
    %v764 = vpack.c.b16 %v572, %v556
    %v765 = vpack.c.b16 %v573, %v557
    %v766 = vpack.c.b16 %v574, %v558
    %v767 = vpack.c.b16 %v575, %v559
    %v768 = vpack.c.b16 %v576, %v560
    %v769 = vpack.c.b16 %v577, %v561
    %v770 = vpack.c.b16 %v578, %v562
    %v771 = vpack.c.b16 %v579, %v563
    %v772 = vpack.c.b16 %v580, %v564
    %v773 = vpack.c.b16 %v581, %v565
    %v774 = vpack.c.b16 %v582, %v566
    %v775 = vpack.c.b16 %v583, %v567
    %v776 = vpack.c.b16 %v584, %v568
    %v777 = vpack.c.b16 %v585, %v569
    %v778 = vpack.c.b16 %v602, %v586
    %v779 = vpack.c.b16 %v603, %v587
    %v780 = vpack.c.b16 %v604, %v588
    %v781 = vpack.c.b16 %v605, %v589
    %v782 = vpack.c.b16 %v606, %v590
    %v783 = vpack.c.b16 %v607, %v591
    %v784 = vpack.c.b16 %v608, %v592
    %v785 = vpack.c.b16 %v609, %v593
    %v786 = vpack.c.b16 %v610, %v594
    %v787 = vpack.c.b16 %v611, %v595
    %v788 = vpack.c.b16 %v612, %v596
    %v789 = vpack.c.b16 %v613, %v597
    %v790 = vpack.c.b16 %v614, %v598
    %v791 = vpack.c.b16 %v615, %v599
    %v792 = vpack.c.b16 %v616, %v600
    %v793 = vpack.c.b16 %v617, %v601
    %v794 = vpack.c.b16 %v634, %v618
    %v795 = vpack.c.b16 %v635, %v619
    %v796 = vpack.c.b16 %v636, %v620
    %v797 = vpack.c.b16 %v637, %v621
    %v798 = vpack.c.b16 %v638, %v622
    %v799 = vpack.c.b16 %v639, %v623
    %v800 = vpack.c.b16 %v640, %v624
    %v801 = vpack.c.b16 %v641, %v625
    %v802 = vpack.c.b16 %v642, %v626
    %v803 = vpack.c.b16 %v643, %v627
    %v804 = vpack.c.b16 %v644, %v628
    %v805 = vpack.c.b16 %v645, %v629
    %v806 = vpack.c.b16 %v646, %v630
    %v807 = vpack.c.b16 %v647, %v631
    %v808 = vpack.c.b16 %v648, %v632
    %v809 = vpack.c.b16 %v649, %v633
    %v810 = vpack.c.b16 %v666, %v650
    %v811 = vpack.c.b16 %v667, %v651
    %v812 = vpack.c.b16 %v668, %v652
    %v813 = vpack.c.b16 %v669, %v653
    %v814 = vpack.c.b16 %v670, %v654
    %v815 = vpack.c.b16 %v671, %v655
    %v816 = vpack.c.b16 %v672, %v656
    %v817 = vpack.c.b16 %v673, %v657
    %v818 = vpack.c.b16 %v674, %v658
    %v819 = vpack.c.b16 %v675, %v659
    %v820 = vpack.c.b16 %v676, %v660
    %v821 = vpack.c.b16 %v677, %v661
    %v822 = vpack.c.b16 %v678, %v662
    %v823 = vpack.c.b16 %v679, %v663
    %v824 = vpack.c.b16 %v680, %v664
    %v825 = vpack.c.b16 %v681, %v665
    %v826 = vpack.c.b16 %v698, %v682
    %v827 = vpack.c.b16 %v699, %v683
    %v828 = vpack.c.b16 %v700, %v684
    %v829 = vpack.c.b16 %v701, %v685
    %v830 = vpack.c.b16 %v702, %v686
    %v831 = vpack.c.b16 %v703, %v687
    %v832 = vpack.c.b16 %v704, %v688
    %v833 = vpack.c.b16 %v705, %v689
    %v834 = vpack.c.b16 %v706, %v690
    %v835 = vpack.c.b16 %v707, %v691
    %v836 = vpack.c.b16 %v708, %v692
    %v837 = vpack.c.b16 %v709, %v693
    %v838 = vpack.c.b16 %v710, %v694
    %v839 = vpack.c.b16 %v711, %v695
    %v840 = vpack.c.b16 %v712, %v696
    %v841 = vpack.c.b16 %v713, %v697
    %v842 = vpack.c.b16 %v730, %v714
    %v843 = vpack.c.b16 %v731, %v715
    %v844 = vpack.c.b16 %v732, %v716
    %v845 = vpack.c.b16 %v733, %v717
    %v846 = vpack.c.b16 %v734, %v718
    %v847 = vpack.c.b16 %v735, %v719
    %v848 = vpack.c.b16 %v736, %v720
    %v849 = vpack.c.b16 %v737, %v721
    %v850 = vpack.c.b16 %v738, %v722
    %v851 = vpack.c.b16 %v739, %v723
    %v852 = vpack.c.b16 %v740, %v724
    %v853 = vpack.c.b16 %v741, %v725
    %v854 = vpack.c.b16 %v742, %v726
    %v855 = vpack.c.b16 %v743, %v727
    %v856 = vpack.c.b16 %v744, %v728
    %v857 = vpack.c.b16 %v745, %v729
    %v858 = vpack.c.b16 %v746, %v746
    %v859 = vpack.c.b16 %v747, %v747
    %v860 = vpack.c.b16 %v748, %v748
    %v861 = vpack.c.b16 %v749, %v749
    %v862 = vpack.c.b16 %v750, %v750
    %v863 = vpack.c.b16 %v751, %v751
    %v864 = vpack.c.b16 %v752, %v752
    %v865 = vpack.c.b16 %v753, %v753
    %v866 = vpack.c.b16 %v754, %v754
    %v867 = vpack.c.b16 %v755, %v755
    %v868 = vpack.c.b16 %v756, %v756
    %v869 = vpack.c.b16 %v757, %v757
    %v870 = vpack.c.b16 %v758, %v758
    %v871 = vpack.c.b16 %v759, %v759
    %v872 = vpack.c.b16 %v760, %v760
    %v873 = vpack.c.b16 %v761, %v761
    %v1242 = vunpack.c.l.b16 %v190
    %v1243 = vunpack.c.l.b16 %v191
    %v1244 = vunpack.c.l.b16 %v192
    %v1245 = vunpack.c.l.b16 %v193
    %v1246 = vunpack.c.l.b16 %v194
    %v1247 = vunpack.c.l.b16 %v195
    %v1248 = vunpack.c.l.b16 %v196
    %v1249 = vunpack.c.l.b16 %v197
    %v1250 = vunpack.c.l.b16 %v198
    %v1251 = vunpack.c.l.b16 %v199
    %v1252 = vunpack.c.l.b16 %v200
    %v1253 = vunpack.c.l.b16 %v201
    %v1254 = vunpack.c.l.b16 %v202
    %v1255 = vunpack.c.l.b16 %v203
    %v1256 = vunpack.c.l.b16 %v204
    %v1257 = vunpack.c.l.b16 %v205
    %v1258 = vunpack.c.l.b16 %v206
    %v1259 = vunpack.c.l.b16 %v207
    %v1260 = vunpack.c.l.b16 %v208
    %v1261 = vunpack.c.l.b16 %v209
    %v1262 = vunpack.c.l.b16 %v210
    %v1263 = vunpack.c.l.b16 %v211
    %v1264 = vunpack.c.l.b16 %v212
    %v1265 = vunpack.c.l.b16 %v213
    %v1266 = vunpack.c.l.b16 %v214
    %v1267 = vunpack.c.l.b16 %v215
    %v1268 = vunpack.c.l.b16 %v216
    %v1269 = vunpack.c.l.b16 %v217
    %v1270 = vunpack.c.l.b16 %v218
    %v1271 = vunpack.c.l.b16 %v219
    %v1272 = vunpack.c.l.b16 %v220
    %v1273 = vunpack.c.l.b16 %v221
    %v1274 = vunpack.c.l.b16 %v222
    %v1275 = vunpack.c.l.b16 %v223
    %v1276 = vunpack.c.l.b16 %v224
    %v1277 = vunpack.c.l.b16 %v225
    %v1278 = vunpack.c.l.b16 %v226
    %v1279 = vunpack.c.l.b16 %v227
    %v1280 = vunpack.c.l.b16 %v228
    %v1281 = vunpack.c.l.b16 %v229
    %v1282 = vunpack.c.l.b16 %v230
    %v1283 = vunpack.c.l.b16 %v231
    %v1284 = vunpack.c.l.b16 %v232
    %v1285 = vunpack.c.l.b16 %v233
    %v1286 = vunpack.c.l.b16 %v234
    %v1287 = vunpack.c.l.b16 %v235
    %v1288 = vunpack.c.l.b16 %v236
    %v1289 = vunpack.c.l.b16 %v237
    %v1290 = vunpack.c.l.b16 %v238
    %v1291 = vunpack.c.l.b16 %v239
    %v1292 = vunpack.c.l.b16 %v240
    %v1293 = vunpack.c.l.b16 %v241
    %v1294 = vunpack.c.l.b16 %v242
    %v1295 = vunpack.c.l.b16 %v243
    %v1296 = vunpack.c.l.b16 %v244
    %v1297 = vunpack.c.l.b16 %v245
    %v1298 = vunpack.c.l.b16 %v246
    %v1299 = vunpack.c.l.b16 %v247
    %v1300 = vunpack.c.l.b16 %v248
    %v1301 = vunpack.c.l.b16 %v249
    %v1302 = vunpack.c.l.b16 %v250
    %v1303 = vunpack.c.l.b16 %v251
    %v1304 = vunpack.c.l.b16 %v252
    %v1305 = vunpack.c.l.b16 %v253
    %v1306 = vunpack.c.l.b16 %v254
    %v1307 = vunpack.c.l.b16 %v255
    %v1308 = vunpack.c.l.b16 %v256
    %v1309 = vunpack.c.l.b16 %v257
    %v1310 = vunpack.c.l.b16 %v258
    %v1311 = vunpack.c.l.b16 %v259
    %v1312 = vunpack.c.l.b16 %v260
    %v1313 = vunpack.c.l.b16 %v261
    %v1314 = vunpack.c.l.b16 %v262
    %v1315 = vunpack.c.l.b16 %v263
    %v1316 = vunpack.c.l.b16 %v264
    %v1317 = vunpack.c.l.b16 %v265
    %v1318 = vunpack.c.l.b16 %v266
    %v1319 = vunpack.c.l.b16 %v267
    %v1320 = vunpack.c.l.b16 %v268
    %v1321 = vunpack.c.l.b16 %v269
    %v1322 = vunpack.c.l.b16 %v270
    %v1323 = vunpack.c.l.b16 %v271
    %v1324 = vunpack.c.l.b16 %v272
    %v1325 = vunpack.c.l.b16 %v273
    %v1326 = vunpack.c.l.b16 %v274
    %v1327 = vunpack.c.l.b16 %v275
    %v1328 = vunpack.c.l.b16 %v276
    %v1329 = vunpack.c.l.b16 %v277
    %v1330 = vunpack.c.l.b16 %v278
    %v1331 = vunpack.c.l.b16 %v279
    %v1332 = vunpack.c.l.b16 %v280
    %v1333 = vunpack.c.l.b16 %v281
    %v1334 = vunpack.c.l.b16 %v282
    %v1335 = vunpack.c.l.b16 %v283
    %v1336 = vunpack.c.l.b16 %v284
    %v1337 = vunpack.c.l.b16 %v285
    %v1338 = vunpack.c.l.b16 %v286
    %v1339 = vunpack.c.l.b16 %v287
    %v1340 = vunpack.c.l.b16 %v288
    %v1341 = vunpack.c.l.b16 %v289
    %v1342 = vunpack.c.l.b16 %v290
    %v1343 = vunpack.c.l.b16 %v291
    %v1344 = vunpack.c.l.b16 %v292
    %v1345 = vunpack.c.l.b16 %v293
    %v1346 = vunpack.c.l.b16 %v294
    %v1347 = vunpack.c.l.b16 %v295
    %v1348 = vunpack.c.l.b16 %v296
    %v1349 = vunpack.c.l.b16 %v297
    %v1350 = vunpack.c.l.b16 %v298
    %v1351 = vunpack.c.l.b16 %v299
    %v1352 = vunpack.c.l.b16 %v300
    %v1353 = vunpack.c.l.b16 %v301
    %v1354 = vunpack.c.l.b16 %v302
    %v1355 = vunpack.c.l.b16 %v303
    %v1356 = vunpack.c.l.b16 %v304
    %v1357 = vunpack.c.l.b16 %v305
    %v1358 = vunpack.c.l.b16 %v306
    %v1359 = vunpack.c.l.b16 %v307
    %v1360 = vunpack.c.l.b16 %v308
    %v1361 = vunpack.c.l.b16 %v309
    %v1362 = vunpack.c.l.b16 %v310
    %v1363 = vunpack.c.l.b16 %v311
    %v1364 = vunpack.c.l.b16 %v312
    %v1365 = vunpack.c.l.b16 %v313
    %v1366 = vunpack.c.l.b16 %v314
    %v1367 = vunpack.c.l.b16 %v315
    %v1368 = vunpack.c.l.b16 %v316
    %v1369 = vunpack.c.l.b16 %v317
    %v1370 = vunpack.c.l.b16 %v318
    %v1371 = vunpack.c.l.b16 %v319
    %v1372 = vunpack.c.l.b16 %v320
    %v1373 = vunpack.c.l.b16 %v321
    %v1374 = vunpack.c.l.b16 %v322
    %v1375 = vunpack.c.l.b16 %v323
    %v1376 = vunpack.c.l.b16 %v324
    %v1377 = vunpack.c.l.b16 %v325
    %v1378 = vunpack.c.l.b16 %v326
    %v1379 = vunpack.c.l.b16 %v327
    %v1380 = vunpack.c.l.b16 %v328
    %v1381 = vunpack.c.l.b16 %v329
    %v1382 = vunpack.c.l.b16 %v330
    %v1383 = vunpack.c.l.b16 %v331
    %v1384 = vunpack.c.l.b16 %v332
    %v1385 = vunpack.c.l.b16 %v333
    %v1386 = vunpack.c.l.b16 %v334
    %v1387 = vunpack.c.l.b16 %v335
    %v1388 = vunpack.c.l.b16 %v336
    %v1389 = vunpack.c.l.b16 %v337
    %v1390 = vunpack.c.l.b16 %v338
    %v1391 = vunpack.c.l.b16 %v339
    %v1392 = vunpack.c.l.b16 %v340
    %v1393 = vunpack.c.l.b16 %v341
    %v1394 = vunpack.c.l.b16 %v342
    %v1395 = vunpack.c.l.b16 %v343
    %v1396 = vunpack.c.l.b16 %v344
    %v1397 = vunpack.c.l.b16 %v345
    %v1398 = vunpack.c.l.b16 %v346
    %v1399 = vunpack.c.l.b16 %v347
    %v1400 = vunpack.c.l.b16 %v348
    %v1401 = vunpack.c.l.b16 %v349
    %v1402 = vunpack.c.l.b16 %v350
    %v1403 = vunpack.c.l.b16 %v351
    %v1404 = vunpack.c.l.b16 %v352
    %v1405 = vunpack.c.l.b16 %v353
    %v1406 = vunpack.c.l.b16 %v354
    %v1407 = vunpack.c.l.b16 %v355
    %v1408 = vunpack.c.l.b16 %v356
    %v1409 = vunpack.c.l.b16 %v357
    %v1410 = vunpack.c.l.b16 %v358
    %v1411 = vunpack.c.l.b16 %v359
    %v1412 = vunpack.c.l.b16 %v360
    %v1413 = vunpack.c.l.b16 %v361
    %v1414 = vunpack.c.l.b16 %v362
    %v1415 = vunpack.c.l.b16 %v363
    %v1416 = vunpack.c.l.b16 %v364
    %v1417 = vunpack.c.l.b16 %v365
    %v1418 = vunpack.c.l.b16 %v366
    %v1419 = vunpack.c.l.b16 %v367
    %v1420 = vunpack.c.l.b16 %v368
    %v1421 = vunpack.c.l.b16 %v369
    %v1422 = vunpack.c.l.b16 %v370
    %v1423 = vunpack.c.l.b16 %v371
    %v1424 = vunpack.c.l.b16 %v372
    %v1425 = vunpack.c.l.b16 %v373
    %v1426 = vunpack.c.l.b16 %v374
    %v1427 = vunpack.c.l.b16 %v375
    %v1428 = vunpack.c.l.b16 %v376
    %v1429 = vunpack.c.l.b16 %v377
    %v1430 = vunpack.c.l.b16 %v378
    %v1431 = vunpack.c.l.b16 %v379
    %v1432 = vunpack.c.l.b16 %v380
    %v1433 = vunpack.c.l.b16 %v381
    %v1434 = vunpack.c.l.b16 %v382
    %v1435 = vunpack.c.l.b16 %v383
    %v1436 = vunpack.c.l.b16 %v384
    %v1437 = vunpack.c.l.b16 %v385
    %v1438 = vunpack.c.l.b16 %v386
    %v1439 = vunpack.c.l.b16 %v387
    %v1440 = vunpack.c.l.b16 %v388
    %v1441 = vunpack.c.l.b16 %v389
    %v1442 = vunpack.c.l.b16 %v390
    %v1443 = vunpack.c.l.b16 %v391
    %v1444 = vunpack.c.l.b16 %v392
    %v1445 = vunpack.c.l.b16 %v393
    %v1446 = vunpack.c.l.b16 %v394
    %v1447 = vunpack.c.l.b16 %v395
    %v1448 = vunpack.c.l.b16 %v396
    %v1449 = vunpack.c.l.b16 %v397
    %v1450 = vunpack.c.l.b16 %v398
    %v1451 = vunpack.c.l.b16 %v399
    %v1452 = vunpack.c.l.b16 %v400
    %v1453 = vunpack.c.l.b16 %v401
    %v1454 = vunpack.c.l.b16 %v402
    %v1455 = vunpack.c.l.b16 %v403
    %v1456 = vunpack.c.l.b16 %v404
    %v1457 = vunpack.c.l.b16 %v405
    %v1458 = vunpack.c.l.b16 %v406
    %v1459 = vunpack.c.l.b16 %v407
    %v1460 = vunpack.c.l.b16 %v408
    %v1461 = vunpack.c.l.b16 %v409
    %v1462 = vunpack.c.l.b16 %v410
    %v1463 = vunpack.c.l.b16 %v411
    %v1464 = vunpack.c.l.b16 %v412
    %v1465 = vunpack.c.l.b16 %v413
    %v1466 = vunpack.c.l.b16 %v414
    %v1467 = vunpack.c.l.b16 %v415
    %v1468 = vunpack.c.l.b16 %v416
    %v1469 = vunpack.c.l.b16 %v417
    %v1470 = vunpack.c.l.b16 %v418
    %v1471 = vunpack.c.l.b16 %v419
    %v1472 = vunpack.c.l.b16 %v420
    %v1473 = vunpack.c.l.b16 %v421
    %v1474 = vunpack.c.l.b16 %v422
    %v1475 = vunpack.c.l.b16 %v423
    %v1476 = vunpack.c.l.b16 %v424
    %v1477 = vunpack.c.l.b16 %v425
    %v1478 = vunpack.c.l.b16 %v426
    %v1479 = vunpack.c.l.b16 %v427
    %v1480 = vunpack.c.l.b16 %v428
    %v1481 = vunpack.c.l.b16 %v429
    %v1482 = vunpack.c.l.b16 %v430
    %v1483 = vunpack.c.l.b16 %v431
    %v1484 = vunpack.c.l.b16 %v432
    %v1485 = vunpack.c.l.b16 %v433
    %v1486 = vunpack.c.l.b16 %v434
    %v1487 = vunpack.c.l.b16 %v435
    %v1488 = vunpack.c.l.b16 %v436
    %v1489 = vunpack.c.l.b16 %v437
    %v1490 = vunpack.c.l.b16 %v438
    %v1491 = vunpack.c.l.b16 %v439
    %v1492 = vunpack.c.l.b16 %v440
    %v1493 = vunpack.c.l.b16 %v441
    %v1494 = vunpack.c.l.b16 %v442
    %v1495 = vunpack.c.l.b16 %v443
    %v1496 = vunpack.c.l.b16 %v444
    %v1497 = vunpack.c.l.b16 %v445
    %v1498 = vpack.c.b16 %v1243, %v1242
    %v1499 = vpack.c.b16 %v1245, %v1244
    %v1500 = vpack.c.b16 %v1247, %v1246
    %v1501 = vpack.c.b16 %v1249, %v1248
    %v1502 = vpack.c.b16 %v1251, %v1250
    %v1503 = vpack.c.b16 %v1253, %v1252
    %v1504 = vpack.c.b16 %v1255, %v1254
    %v1505 = vpack.c.b16 %v1257, %v1256
    %v1506 = vpack.c.b16 %v1259, %v1258
    %v1507 = vpack.c.b16 %v1261, %v1260
    %v1508 = vpack.c.b16 %v1263, %v1262
    %v1509 = vpack.c.b16 %v1265, %v1264
    %v1510 = vpack.c.b16 %v1267, %v1266
    %v1511 = vpack.c.b16 %v1269, %v1268
    %v1512 = vpack.c.b16 %v1271, %v1270
    %v1513 = vpack.c.b16 %v1273, %v1272
    %v1514 = vpack.c.b16 %v1275, %v1274
    %v1515 = vpack.c.b16 %v1277, %v1276
    %v1516 = vpack.c.b16 %v1279, %v1278
    %v1517 = vpack.c.b16 %v1281, %v1280
    %v1518 = vpack.c.b16 %v1283, %v1282
    %v1519 = vpack.c.b16 %v1285, %v1284
    %v1520 = vpack.c.b16 %v1287, %v1286
    %v1521 = vpack.c.b16 %v1289, %v1288
    %v1522 = vpack.c.b16 %v1291, %v1290
    %v1523 = vpack.c.b16 %v1293, %v1292
    %v1524 = vpack.c.b16 %v1295, %v1294
    %v1525 = vpack.c.b16 %v1297, %v1296
    %v1526 = vpack.c.b16 %v1299, %v1298
    %v1527 = vpack.c.b16 %v1301, %v1300
    %v1528 = vpack.c.b16 %v1303, %v1302
    %v1529 = vpack.c.b16 %v1305, %v1304
    %v1530 = vpack.c.b16 %v1307, %v1306
    %v1531 = vpack.c.b16 %v1309, %v1308
    %v1532 = vpack.c.b16 %v1311, %v1310
    %v1533 = vpack.c.b16 %v1313, %v1312
    %v1534 = vpack.c.b16 %v1315, %v1314
    %v1535 = vpack.c.b16 %v1317, %v1316
    %v1536 = vpack.c.b16 %v1319, %v1318
    %v1537 = vpack.c.b16 %v1321, %v1320
    %v1538 = vpack.c.b16 %v1323, %v1322
    %v1539 = vpack.c.b16 %v1325, %v1324
    %v1540 = vpack.c.b16 %v1327, %v1326
    %v1541 = vpack.c.b16 %v1329, %v1328
    %v1542 = vpack.c.b16 %v1331, %v1330
    %v1543 = vpack.c.b16 %v1333, %v1332
    %v1544 = vpack.c.b16 %v1335, %v1334
    %v1545 = vpack.c.b16 %v1337, %v1336
    %v1546 = vpack.c.b16 %v1339, %v1338
    %v1547 = vpack.c.b16 %v1341, %v1340
    %v1548 = vpack.c.b16 %v1343, %v1342
    %v1549 = vpack.c.b16 %v1345, %v1344
    %v1550 = vpack.c.b16 %v1347, %v1346
    %v1551 = vpack.c.b16 %v1349, %v1348
    %v1552 = vpack.c.b16 %v1351, %v1350
    %v1553 = vpack.c.b16 %v1353, %v1352
    %v1554 = vpack.c.b16 %v1355, %v1354
    %v1555 = vpack.c.b16 %v1357, %v1356
    %v1556 = vpack.c.b16 %v1359, %v1358
    %v1557 = vpack.c.b16 %v1361, %v1360
    %v1558 = vpack.c.b16 %v1363, %v1362
    %v1559 = vpack.c.b16 %v1365, %v1364
    %v1560 = vpack.c.b16 %v1367, %v1366
    %v1561 = vpack.c.b16 %v1369, %v1368
    %v1562 = vpack.c.b16 %v1371, %v1370
    %v1563 = vpack.c.b16 %v1373, %v1372
    %v1564 = vpack.c.b16 %v1375, %v1374
    %v1565 = vpack.c.b16 %v1377, %v1376
    %v1566 = vpack.c.b16 %v1379, %v1378
    %v1567 = vpack.c.b16 %v1381, %v1380
    %v1568 = vpack.c.b16 %v1383, %v1382
    %v1569 = vpack.c.b16 %v1385, %v1384
    %v1570 = vpack.c.b16 %v1387, %v1386
    %v1571 = vpack.c.b16 %v1389, %v1388
    %v1572 = vpack.c.b16 %v1391, %v1390
    %v1573 = vpack.c.b16 %v1393, %v1392
    %v1574 = vpack.c.b16 %v1395, %v1394
    %v1575 = vpack.c.b16 %v1397, %v1396
    %v1576 = vpack.c.b16 %v1399, %v1398
    %v1577 = vpack.c.b16 %v1401, %v1400
    %v1578 = vpack.c.b16 %v1403, %v1402
    %v1579 = vpack.c.b16 %v1405, %v1404
    %v1580 = vpack.c.b16 %v1407, %v1406
    %v1581 = vpack.c.b16 %v1409, %v1408
    %v1582 = vpack.c.b16 %v1411, %v1410
    %v1583 = vpack.c.b16 %v1413, %v1412
    %v1584 = vpack.c.b16 %v1415, %v1414
    %v1585 = vpack.c.b16 %v1417, %v1416
    %v1586 = vpack.c.b16 %v1419, %v1418
    %v1587 = vpack.c.b16 %v1421, %v1420
    %v1588 = vpack.c.b16 %v1423, %v1422
    %v1589 = vpack.c.b16 %v1425, %v1424
    %v1590 = vpack.c.b16 %v1427, %v1426
    %v1591 = vpack.c.b16 %v1429, %v1428
    %v1592 = vpack.c.b16 %v1431, %v1430
    %v1593 = vpack.c.b16 %v1433, %v1432
    %v1594 = vpack.c.b16 %v1435, %v1434
    %v1595 = vpack.c.b16 %v1437, %v1436
    %v1596 = vpack.c.b16 %v1439, %v1438
    %v1597 = vpack.c.b16 %v1441, %v1440
    %v1598 = vpack.c.b16 %v1443, %v1442
    %v1599 = vpack.c.b16 %v1445, %v1444
    %v1600 = vpack.c.b16 %v1447, %v1446
    %v1601 = vpack.c.b16 %v1449, %v1448
    %v1602 = vpack.c.b16 %v1451, %v1450
    %v1603 = vpack.c.b16 %v1453, %v1452
    %v1604 = vpack.c.b16 %v1455, %v1454
    %v1605 = vpack.c.b16 %v1457, %v1456
    %v1606 = vpack.c.b16 %v1459, %v1458
    %v1607 = vpack.c.b16 %v1461, %v1460
    %v1608 = vpack.c.b16 %v1463, %v1462
    %v1609 = vpack.c.b16 %v1465, %v1464
    %v1610 = vpack.c.b16 %v1467, %v1466
    %v1611 = vpack.c.b16 %v1469, %v1468
    %v1612 = vpack.c.b16 %v1471, %v1470
    %v1613 = vpack.c.b16 %v1473, %v1472
    %v1614 = vpack.c.b16 %v1475, %v1474
    %v1615 = vpack.c.b16 %v1477, %v1476
    %v1616 = vpack.c.b16 %v1479, %v1478
    %v1617 = vpack.c.b16 %v1481, %v1480
    %v1618 = vpack.c.b16 %v1483, %v1482
    %v1619 = vpack.c.b16 %v1485, %v1484
    %v1620 = vpack.c.b16 %v1487, %v1486
    %v1621 = vpack.c.b16 %v1489, %v1488
    %v1622 = vpack.c.b16 %v1491, %v1490
    %v1623 = vpack.c.b16 %v1493, %v1492
    %v1624 = vpack.c.b16 %v1495, %v1494
    %v1625 = vpack.c.b16 %v1497, %v1496
    %1754 = vmatprep.subr.bf16.mxu0 0
    %1755 = vmatpush1.bf16.msra.mxu0 %v1498
    %1756 = vmatprep.subr.bf16.mxu0 0
    %1757 = vmatpush1.bf16.msra.mxu0 %v1499
    %1758 = vmatprep.subr.bf16.mxu0 0
    %1759 = vmatpush1.bf16.msra.mxu0 %v1500
    %1760 = vmatprep.subr.bf16.mxu0 0
    %1761 = vmatpush1.bf16.msra.mxu0 %v1501
    %1762 = vmatprep.subr.bf16.mxu0 0
    %1763 = vmatpush1.bf16.msra.mxu0 %v1502
    %1764 = vmatprep.subr.bf16.mxu0 0
    %1765 = vmatpush1.bf16.msra.mxu0 %v1503
    %1766 = vmatprep.subr.bf16.mxu0 0
    %1767 = vmatpush1.bf16.msra.mxu0 %v1504
    %1768 = vmatprep.subr.bf16.mxu0 0
    %1769 = vmatpush1.bf16.msra.mxu0 %v1505
    %1770 = vmatprep.subr.bf16.mxu0 0
    %1771 = vmatpush1.bf16.msra.mxu0 %v1506
    %1772 = vmatprep.subr.bf16.mxu0 0
    %1773 = vmatpush1.bf16.msra.mxu0 %v1507
    %1774 = vmatprep.subr.bf16.mxu0 0
    %1775 = vmatpush1.bf16.msra.mxu0 %v1508
    %1776 = vmatprep.subr.bf16.mxu0 0
    %1777 = vmatpush1.bf16.msra.mxu0 %v1509
    %1778 = vmatprep.subr.bf16.mxu0 0
    %1779 = vmatpush1.bf16.msra.mxu0 %v1510
    %1780 = vmatprep.subr.bf16.mxu0 0
    %1781 = vmatpush1.bf16.msra.mxu0 %v1511
    %1782 = vmatprep.subr.bf16.mxu0 0
    %1783 = vmatpush1.bf16.msra.mxu0 %v1512
    %1784 = vmatprep.subr.bf16.mxu0 0
    %1785 = vmatpush1.bf16.msra.mxu0 %v1513
    %1786 = vmatprep.mubr.bf16.mxu0 %v763
    %1787 = vmatmul.mubr.bf16.gmra.mrb[0].mxu0 %v762
    %v1788 = vpop.f32.mrb[0].mxu0
    %v1789 = vadd.f32 %v449, %v1788
    %v1790 = vpop.f32.mrb[0].mxu0
    %v1791 = vpop.f32.mrb[0].mxu0
    %v1792 = vadd.f32 %v449, %v1791
    %v1793 = vpop.f32.mrb[0].mxu0
    %1794 = vmatprep.mubr.bf16.mxu0 %v779
    %1795 = vmatmul.mubr.bf16.gmra.mrb[0].mxu0 %v778
    %v1796 = vpop.f32.mrb[0].mxu0
    %v1797 = vadd.f32 %v449, %v1796
    %v1798 = vpop.f32.mrb[0].mxu0
    %v1799 = vpop.f32.mrb[0].mxu0
    %v1800 = vadd.f32 %v449, %v1799
    %v1801 = vpop.f32.mrb[0].mxu0
    %1802 = vmatprep.mubr.bf16.mxu0 %v795
    %1803 = vmatmul.mubr.bf16.gmra.mrb[0].mxu0 %v794
    %v1804 = vpop.f32.mrb[0].mxu0
    %v1805 = vadd.f32 %v449, %v1804
    %v1806 = vpop.f32.mrb[0].mxu0
    %v1807 = vpop.f32.mrb[0].mxu0
    %v1808 = vadd.f32 %v449, %v1807
    %v1809 = vpop.f32.mrb[0].mxu0
    %1810 = vmatprep.mubr.bf16.mxu0 %v811
    %1811 = vmatmul.mubr.bf16.gmra.mrb[0].mxu0 %v810
    %v1812 = vpop.f32.mrb[0].mxu0
    %v1813 = vadd.f32 %v449, %v1812
    %v1814 = vpop.f32.mrb[0].mxu0
    %v1815 = vpop.f32.mrb[0].mxu0
    %v1816 = vadd.f32 %v449, %v1815
    %v1817 = vpop.f32.mrb[0].mxu0
    %1818 = vmatprep.mubr.bf16.mxu0 %v827
    %1819 = vmatmul.mubr.bf16.gmra.mrb[0].mxu0 %v826
    %v1820 = vpop.f32.mrb[0].mxu0
    %v1821 = vadd.f32 %v449, %v1820
    %v1822 = vpop.f32.mrb[0].mxu0
    %v1823 = vpop.f32.mrb[0].mxu0
    %v1824 = vadd.f32 %v449, %v1823
    %v1825 = vpop.f32.mrb[0].mxu0
    %1826 = vmatprep.mubr.bf16.mxu0 %v843
    %1827 = vmatmul.mubr.bf16.gmra.mrb[0].mxu0 %v842
    %v1828 = vpop.f32.mrb[0].mxu0
    %v1829 = vadd.f32 %v449, %v1828
    %v1830 = vpop.f32.mrb[0].mxu0
    %v1831 = vpop.f32.mrb[0].mxu0
    %v1832 = vadd.f32 %v449, %v1831
    %v1833 = vpop.f32.mrb[0].mxu0
    %1834 = vmatprep.mubr.bf16.mxu0 %v859
    %1835 = vmatmul.mubr.bf16.gmra.mrb[0].mxu0 %v858
    %v1836 = vpop.f32.mrb[0].mxu0
    %v1837 = vadd.f32 %v449, %v1836
    %v1838 = vpop.f32.mrb[0].mxu0
    %v1839 = vpop.f32.mrb[0].mxu0
    %v1840 = vpop.f32.mrb[0].mxu0
    %1841 = vdwg.mxu0
    %1842 = vmatprep.subr.bf16.mxu0 0
    %1843 = vmatpush1.bf16.msra.mxu0 %v1514
    %1844 = vmatprep.subr.bf16.mxu0 0
    %1845 = vmatpush1.bf16.msra.mxu0 %v1515
    %1846 = vmatprep.subr.bf16.mxu0 0
    %1847 = vmatpush1.bf16.msra.mxu0 %v1516
    %1848 = vmatprep.subr.bf16.mxu0 0
    %1849 = vmatpush1.bf16.msra.mxu0 %v1517
    %1850 = vmatprep.subr.bf16.mxu0 0
    %1851 = vmatpush1.bf16.msra.mxu0 %v1518
    %1852 = vmatprep.subr.bf16.mxu0 0
    %1853 = vmatpush1.bf16.msra.mxu0 %v1519
    %1854 = vmatprep.subr.bf16.mxu0 0
    %1855 = vmatpush1.bf16.msra.mxu0 %v1520
    %1856 = vmatprep.subr.bf16.mxu0 0
    %1857 = vmatpush1.bf16.msra.mxu0 %v1521
    %1858 = vmatprep.subr.bf16.mxu0 0
    %1859 = vmatpush1.bf16.msra.mxu0 %v1522
    %1860 = vmatprep.subr.bf16.mxu0 0
    %1861 = vmatpush1.bf16.msra.mxu0 %v1523
    %1862 = vmatprep.subr.bf16.mxu0 0
    %1863 = vmatpush1.bf16.msra.mxu0 %v1524
    %1864 = vmatprep.subr.bf16.mxu0 0
    %1865 = vmatpush1.bf16.msra.mxu0 %v1525
    %1866 = vmatprep.subr.bf16.mxu0 0
    %1867 = vmatpush1.bf16.msra.mxu0 %v1526
    %1868 = vmatprep.subr.bf16.mxu0 0
    %1869 = vmatpush1.bf16.msra.mxu0 %v1527
    %1870 = vmatprep.subr.bf16.mxu0 0
    %1871 = vmatpush1.bf16.msra.mxu0 %v1528
    %1872 = vmatprep.subr.bf16.mxu0 0
    %1873 = vmatpush1.bf16.msra.mxu0 %v1529
    %1874 = vmatprep.mubr.bf16.mxu0 %v765
    %1875 = vmatmul.mubr.bf16.gmra.mrb[0].mxu0 %v764
    %v1876 = vpop.f32.mrb[0].mxu0
    %v1877 = vadd.f32 %v1789, %v1876
    %v1878 = vpop.f32.mrb[0].mxu0
    %v1879 = vpop.f32.mrb[0].mxu0
    %v1880 = vadd.f32 %v1792, %v1879
    %v1881 = vpop.f32.mrb[0].mxu0
    %1882 = vmatprep.mubr.bf16.mxu0 %v781
    %1883 = vmatmul.mubr.bf16.gmra.mrb[0].mxu0 %v780
    %v1884 = vpop.f32.mrb[0].mxu0
    %v1885 = vadd.f32 %v1797, %v1884
    %v1886 = vpop.f32.mrb[0].mxu0
    %v1887 = vpop.f32.mrb[0].mxu0
    %v1888 = vadd.f32 %v1800, %v1887
    %v1889 = vpop.f32.mrb[0].mxu0
    %1890 = vmatprep.mubr.bf16.mxu0 %v797
    %1891 = vmatmul.mubr.bf16.gmra.mrb[0].mxu0 %v796
    %v1892 = vpop.f32.mrb[0].mxu0
    %v1893 = vadd.f32 %v1805, %v1892
    %v1894 = vpop.f32.mrb[0].mxu0
    %v1895 = vpop.f32.mrb[0].mxu0
    %v1896 = vadd.f32 %v1808, %v1895
    %v1897 = vpop.f32.mrb[0].mxu0
    %1898 = vmatprep.mubr.bf16.mxu0 %v813
    %1899 = vmatmul.mubr.bf16.gmra.mrb[0].mxu0 %v812
    %v1900 = vpop.f32.mrb[0].mxu0
    %v1901 = vadd.f32 %v1813, %v1900
    %v1902 = vpop.f32.mrb[0].mxu0
    %v1903 = vpop.f32.mrb[0].mxu0
    %v1904 = vadd.f32 %v1816, %v1903
    %v1905 = vpop.f32.mrb[0].mxu0
    %1906 = vmatprep.mubr.bf16.mxu0 %v829
    %1907 = vmatmul.mubr.bf16.gmra.mrb[0].mxu0 %v828
    %v1908 = vpop.f32.mrb[0].mxu0
    %v1909 = vadd.f32 %v1821, %v1908
    %v1910 = vpop.f32.mrb[0].mxu0
    %v1911 = vpop.f32.mrb[0].mxu0
    %v1912 = vadd.f32 %v1824, %v1911
    %v1913 = vpop.f32.mrb[0].mxu0
    %1914 = vmatprep.mubr.bf16.mxu0 %v845
    %1915 = vmatmul.mubr.bf16.gmra.mrb[0].mxu0 %v844
    %v1916 = vpop.f32.mrb[0].mxu0
    %v1917 = vadd.f32 %v1829, %v1916
    %v1918 = vpop.f32.mrb[0].mxu0
    %v1919 = vpop.f32.mrb[0].mxu0
    %v1920 = vadd.f32 %v1832, %v1919
    %v1921 = vpop.f32.mrb[0].mxu0
    %1922 = vmatprep.mubr.bf16.mxu0 %v861
    %1923 = vmatmul.mubr.bf16.gmra.mrb[0].mxu0 %v860
    %v1924 = vpop.f32.mrb[0].mxu0
    %v1925 = vadd.f32 %v1837, %v1924
    %v1926 = vpop.f32.mrb[0].mxu0
    %v1927 = vpop.f32.mrb[0].mxu0
    %v1928 = vpop.f32.mrb[0].mxu0
    %1929 = vdwg.mxu0
    %1930 = vmatprep.subr.bf16.mxu0 0
    %1931 = vmatpush1.bf16.msra.mxu0 %v1530
    %1932 = vmatprep.subr.bf16.mxu0 0
    %1933 = vmatpush1.bf16.msra.mxu0 %v1531
    %1934 = vmatprep.subr.bf16.mxu0 0
    %1935 = vmatpush1.bf16.msra.mxu0 %v1532
    %1936 = vmatprep.subr.bf16.mxu0 0
    %1937 = vmatpush1.bf16.msra.mxu0 %v1533
    %1938 = vmatprep.subr.bf16.mxu0 0
    %1939 = vmatpush1.bf16.msra.mxu0 %v1534
    %1940 = vmatprep.subr.bf16.mxu0 0
    %1941 = vmatpush1.bf16.msra.mxu0 %v1535
    %1942 = vmatprep.subr.bf16.mxu0 0
    %1943 = vmatpush1.bf16.msra.mxu0 %v1536
    %1944 = vmatprep.subr.bf16.mxu0 0
    %1945 = vmatpush1.bf16.msra.mxu0 %v1537
    %1946 = vmatprep.subr.bf16.mxu0 0
    %1947 = vmatpush1.bf16.msra.mxu0 %v1538
    %1948 = vmatprep.subr.bf16.mxu0 0
    %1949 = vmatpush1.bf16.msra.mxu0 %v1539
    %1950 = vmatprep.subr.bf16.mxu0 0
    %1951 = vmatpush1.bf16.msra.mxu0 %v1540
    %1952 = vmatprep.subr.bf16.mxu0 0
    %1953 = vmatpush1.bf16.msra.mxu0 %v1541
    %1954 = vmatprep.subr.bf16.mxu0 0
    %1955 = vmatpush1.bf16.msra.mxu0 %v1542
    %1956 = vmatprep.subr.bf16.mxu0 0
    %1957 = vmatpush1.bf16.msra.mxu0 %v1543
    %1958 = vmatprep.subr.bf16.mxu0 0
    %1959 = vmatpush1.bf16.msra.mxu0 %v1544
    %1960 = vmatprep.subr.bf16.mxu0 0
    %1961 = vmatpush1.bf16.msra.mxu0 %v1545
    %1962 = vmatprep.mubr.bf16.mxu0 %v767
    %1963 = vmatmul.mubr.bf16.gmra.mrb[0].mxu0 %v766
    %v1964 = vpop.f32.mrb[0].mxu0
    %v1965 = vadd.f32 %v1877, %v1964
    %v1966 = vpop.f32.mrb[0].mxu0
    %v1967 = vpop.f32.mrb[0].mxu0
    %v1968 = vadd.f32 %v1880, %v1967
    %v1969 = vpop.f32.mrb[0].mxu0
    %1970 = vmatprep.mubr.bf16.mxu0 %v783
    %1971 = vmatmul.mubr.bf16.gmra.mrb[0].mxu0 %v782
    %v1972 = vpop.f32.mrb[0].mxu0
    %v1973 = vadd.f32 %v1885, %v1972
    %v1974 = vpop.f32.mrb[0].mxu0
    %v1975 = vpop.f32.mrb[0].mxu0
    %v1976 = vadd.f32 %v1888, %v1975
    %v1977 = vpop.f32.mrb[0].mxu0
    %1978 = vmatprep.mubr.bf16.mxu0 %v799
    %1979 = vmatmul.mubr.bf16.gmra.mrb[0].mxu0 %v798
    %v1980 = vpop.f32.mrb[0].mxu0
    %v1981 = vadd.f32 %v1893, %v1980
    %v1982 = vpop.f32.mrb[0].mxu0
    %v1983 = vpop.f32.mrb[0].mxu0
    %v1984 = vadd.f32 %v1896, %v1983
    %v1985 = vpop.f32.mrb[0].mxu0
    %1986 = vmatprep.mubr.bf16.mxu0 %v815
    %1987 = vmatmul.mubr.bf16.gmra.mrb[0].mxu0 %v814
    %v1988 = vpop.f32.mrb[0].mxu0
    %v1989 = vadd.f32 %v1901, %v1988
    %v1990 = vpop.f32.mrb[0].mxu0
    %v1991 = vpop.f32.mrb[0].mxu0
    %v1992 = vadd.f32 %v1904, %v1991
    %v1993 = vpop.f32.mrb[0].mxu0
    %1994 = vmatprep.mubr.bf16.mxu0 %v831
    %1995 = vmatmul.mubr.bf16.gmra.mrb[0].mxu0 %v830
    %v1996 = vpop.f32.mrb[0].mxu0
    %v1997 = vadd.f32 %v1909, %v1996
    %v1998 = vpop.f32.mrb[0].mxu0
    %v1999 = vpop.f32.mrb[0].mxu0
    %v2000 = vadd.f32 %v1912, %v1999
    %v2001 = vpop.f32.mrb[0].mxu0
    %2002 = vmatprep.mubr.bf16.mxu0 %v847
    %2003 = vmatmul.mubr.bf16.gmra.mrb[0].mxu0 %v846
    %v2004 = vpop.f32.mrb[0].mxu0
    %v2005 = vadd.f32 %v1917, %v2004
    %v2006 = vpop.f32.mrb[0].mxu0
    %v2007 = vpop.f32.mrb[0].mxu0
    %v2008 = vadd.f32 %v1920, %v2007
    %v2009 = vpop.f32.mrb[0].mxu0
    %2010 = vmatprep.mubr.bf16.mxu0 %v863
    %2011 = vmatmul.mubr.bf16.gmra.mrb[0].mxu0 %v862
    %v2012 = vpop.f32.mrb[0].mxu0
    %v2013 = vadd.f32 %v1925, %v2012
    %v2014 = vpop.f32.mrb[0].mxu0
    %v2015 = vpop.f32.mrb[0].mxu0
    %v2016 = vpop.f32.mrb[0].mxu0
    %2017 = vdwg.mxu0
    %2018 = vmatprep.subr.bf16.mxu0 0
    %2019 = vmatpush1.bf16.msra.mxu0 %v1546
    %2020 = vmatprep.subr.bf16.mxu0 0
    %2021 = vmatpush1.bf16.msra.mxu0 %v1547
    %2022 = vmatprep.subr.bf16.mxu0 0
    %2023 = vmatpush1.bf16.msra.mxu0 %v1548
    %2024 = vmatprep.subr.bf16.mxu0 0
    %2025 = vmatpush1.bf16.msra.mxu0 %v1549
    %2026 = vmatprep.subr.bf16.mxu0 0
    %2027 = vmatpush1.bf16.msra.mxu0 %v1550
    %2028 = vmatprep.subr.bf16.mxu0 0
    %2029 = vmatpush1.bf16.msra.mxu0 %v1551
    %2030 = vmatprep.subr.bf16.mxu0 0
    %2031 = vmatpush1.bf16.msra.mxu0 %v1552
    %2032 = vmatprep.subr.bf16.mxu0 0
    %2033 = vmatpush1.bf16.msra.mxu0 %v1553
    %2034 = vmatprep.subr.bf16.mxu0 0
    %2035 = vmatpush1.bf16.msra.mxu0 %v1554
    %2036 = vmatprep.subr.bf16.mxu0 0
    %2037 = vmatpush1.bf16.msra.mxu0 %v1555
    %2038 = vmatprep.subr.bf16.mxu0 0
    %2039 = vmatpush1.bf16.msra.mxu0 %v1556
    %2040 = vmatprep.subr.bf16.mxu0 0
    %2041 = vmatpush1.bf16.msra.mxu0 %v1557
    %2042 = vmatprep.subr.bf16.mxu0 0
    %2043 = vmatpush1.bf16.msra.mxu0 %v1558
    %2044 = vmatprep.subr.bf16.mxu0 0
    %2045 = vmatpush1.bf16.msra.mxu0 %v1559
    %2046 = vmatprep.subr.bf16.mxu0 0
    %2047 = vmatpush1.bf16.msra.mxu0 %v1560
    %2048 = vmatprep.subr.bf16.mxu0 0
    %2049 = vmatpush1.bf16.msra.mxu0 %v1561
    %2050 = vmatprep.mubr.bf16.mxu0 %v769
    %2051 = vmatmul.mubr.bf16.gmra.mrb[0].mxu0 %v768
    %v2052 = vpop.f32.mrb[0].mxu0
    %v2053 = vadd.f32 %v1965, %v2052
    %v2054 = vpop.f32.mrb[0].mxu0
    %v2055 = vpop.f32.mrb[0].mxu0
    %v2056 = vadd.f32 %v1968, %v2055
    %v2057 = vpop.f32.mrb[0].mxu0
    %2058 = vmatprep.mubr.bf16.mxu0 %v785
    %2059 = vmatmul.mubr.bf16.gmra.mrb[0].mxu0 %v784
    %v2060 = vpop.f32.mrb[0].mxu0
    %v2061 = vadd.f32 %v1973, %v2060
    %v2062 = vpop.f32.mrb[0].mxu0
    %v2063 = vpop.f32.mrb[0].mxu0
    %v2064 = vadd.f32 %v1976, %v2063
    %v2065 = vpop.f32.mrb[0].mxu0
    %2066 = vmatprep.mubr.bf16.mxu0 %v801
    %2067 = vmatmul.mubr.bf16.gmra.mrb[0].mxu0 %v800
    %v2068 = vpop.f32.mrb[0].mxu0
    %v2069 = vadd.f32 %v1981, %v2068
    %v2070 = vpop.f32.mrb[0].mxu0
    %v2071 = vpop.f32.mrb[0].mxu0
    %v2072 = vadd.f32 %v1984, %v2071
    %v2073 = vpop.f32.mrb[0].mxu0
    %2074 = vmatprep.mubr.bf16.mxu0 %v817
    %2075 = vmatmul.mubr.bf16.gmra.mrb[0].mxu0 %v816
    %v2076 = vpop.f32.mrb[0].mxu0
    %v2077 = vadd.f32 %v1989, %v2076
    %v2078 = vpop.f32.mrb[0].mxu0
    %v2079 = vpop.f32.mrb[0].mxu0
    %v2080 = vadd.f32 %v1992, %v2079
    %v2081 = vpop.f32.mrb[0].mxu0
    %2082 = vmatprep.mubr.bf16.mxu0 %v833
    %2083 = vmatmul.mubr.bf16.gmra.mrb[0].mxu0 %v832
    %v2084 = vpop.f32.mrb[0].mxu0
    %v2085 = vadd.f32 %v1997, %v2084
    %v2086 = vpop.f32.mrb[0].mxu0
    %v2087 = vpop.f32.mrb[0].mxu0
    %v2088 = vadd.f32 %v2000, %v2087
    %v2089 = vpop.f32.mrb[0].mxu0
    %2090 = vmatprep.mubr.bf16.mxu0 %v849
    %2091 = vmatmul.mubr.bf16.gmra.mrb[0].mxu0 %v848
    %v2092 = vpop.f32.mrb[0].mxu0
    %v2093 = vadd.f32 %v2005, %v2092
    %v2094 = vpop.f32.mrb[0].mxu0
    %v2095 = vpop.f32.mrb[0].mxu0
    %v2096 = vadd.f32 %v2008, %v2095
    %v2097 = vpop.f32.mrb[0].mxu0
    %2098 = vmatprep.mubr.bf16.mxu0 %v865
    %2099 = vmatmul.mubr.bf16.gmra.mrb[0].mxu0 %v864
    %v2100 = vpop.f32.mrb[0].mxu0
    %v2101 = vadd.f32 %v2013, %v2100
    %v2102 = vpop.f32.mrb[0].mxu0
    %v2103 = vpop.f32.mrb[0].mxu0
    %v2104 = vpop.f32.mrb[0].mxu0
    %2105 = vdwg.mxu0
    %2106 = vmatprep.subr.bf16.mxu0 0
    %2107 = vmatpush1.bf16.msra.mxu0 %v1562
    %2108 = vmatprep.subr.bf16.mxu0 0
    %2109 = vmatpush1.bf16.msra.mxu0 %v1563
    %2110 = vmatprep.subr.bf16.mxu0 0
    %2111 = vmatpush1.bf16.msra.mxu0 %v1564
    %2112 = vmatprep.subr.bf16.mxu0 0
    %2113 = vmatpush1.bf16.msra.mxu0 %v1565
    %2114 = vmatprep.subr.bf16.mxu0 0
    %2115 = vmatpush1.bf16.msra.mxu0 %v1566
    %2116 = vmatprep.subr.bf16.mxu0 0
    %2117 = vmatpush1.bf16.msra.mxu0 %v1567
    %2118 = vmatprep.subr.bf16.mxu0 0
    %2119 = vmatpush1.bf16.msra.mxu0 %v1568
    %2120 = vmatprep.subr.bf16.mxu0 0
    %2121 = vmatpush1.bf16.msra.mxu0 %v1569
    %2122 = vmatprep.subr.bf16.mxu0 0
    %2123 = vmatpush1.bf16.msra.mxu0 %v1570
    %2124 = vmatprep.subr.bf16.mxu0 0
    %2125 = vmatpush1.bf16.msra.mxu0 %v1571
    %2126 = vmatprep.subr.bf16.mxu0 0
    %2127 = vmatpush1.bf16.msra.mxu0 %v1572
    %2128 = vmatprep.subr.bf16.mxu0 0
    %2129 = vmatpush1.bf16.msra.mxu0 %v1573
    %2130 = vmatprep.subr.bf16.mxu0 0
    %2131 = vmatpush1.bf16.msra.mxu0 %v1574
    %2132 = vmatprep.subr.bf16.mxu0 0
    %2133 = vmatpush1.bf16.msra.mxu0 %v1575
    %2134 = vmatprep.subr.bf16.mxu0 0
    %2135 = vmatpush1.bf16.msra.mxu0 %v1576
    %2136 = vmatprep.subr.bf16.mxu0 0
    %2137 = vmatpush1.bf16.msra.mxu0 %v1577
    %2138 = vmatprep.mubr.bf16.mxu0 %v771
    %2139 = vmatmul.mubr.bf16.gmra.mrb[0].mxu0 %v770
    %v2140 = vpop.f32.mrb[0].mxu0
    %v2141 = vadd.f32 %v2053, %v2140
    %v2142 = vpop.f32.mrb[0].mxu0
    %v2143 = vpop.f32.mrb[0].mxu0
    %v2144 = vadd.f32 %v2056, %v2143
    %v2145 = vpop.f32.mrb[0].mxu0
    %2146 = vmatprep.mubr.bf16.mxu0 %v787
    %2147 = vmatmul.mubr.bf16.gmra.mrb[0].mxu0 %v786
    %v2148 = vpop.f32.mrb[0].mxu0
    %v2149 = vadd.f32 %v2061, %v2148
    %v2150 = vpop.f32.mrb[0].mxu0
    %v2151 = vpop.f32.mrb[0].mxu0
    %v2152 = vadd.f32 %v2064, %v2151
    %v2153 = vpop.f32.mrb[0].mxu0
    %2154 = vmatprep.mubr.bf16.mxu0 %v803
    %2155 = vmatmul.mubr.bf16.gmra.mrb[0].mxu0 %v802
    %v2156 = vpop.f32.mrb[0].mxu0
    %v2157 = vadd.f32 %v2069, %v2156
    %v2158 = vpop.f32.mrb[0].mxu0
    %v2159 = vpop.f32.mrb[0].mxu0
    %v2160 = vadd.f32 %v2072, %v2159
    %v2161 = vpop.f32.mrb[0].mxu0
    %2162 = vmatprep.mubr.bf16.mxu0 %v819
    %2163 = vmatmul.mubr.bf16.gmra.mrb[0].mxu0 %v818
    %v2164 = vpop.f32.mrb[0].mxu0
    %v2165 = vadd.f32 %v2077, %v2164
    %v2166 = vpop.f32.mrb[0].mxu0
    %v2167 = vpop.f32.mrb[0].mxu0
    %v2168 = vadd.f32 %v2080, %v2167
    %v2169 = vpop.f32.mrb[0].mxu0
    %2170 = vmatprep.mubr.bf16.mxu0 %v835
    %2171 = vmatmul.mubr.bf16.gmra.mrb[0].mxu0 %v834
    %v2172 = vpop.f32.mrb[0].mxu0
    %v2173 = vadd.f32 %v2085, %v2172
    %v2174 = vpop.f32.mrb[0].mxu0
    %v2175 = vpop.f32.mrb[0].mxu0
    %v2176 = vadd.f32 %v2088, %v2175
    %v2177 = vpop.f32.mrb[0].mxu0
    %2178 = vmatprep.mubr.bf16.mxu0 %v851
    %2179 = vmatmul.mubr.bf16.gmra.mrb[0].mxu0 %v850
    %v2180 = vpop.f32.mrb[0].mxu0
    %v2181 = vadd.f32 %v2093, %v2180
    %v2182 = vpop.f32.mrb[0].mxu0
    %v2183 = vpop.f32.mrb[0].mxu0
    %v2184 = vadd.f32 %v2096, %v2183
    %v2185 = vpop.f32.mrb[0].mxu0
    %2186 = vmatprep.mubr.bf16.mxu0 %v867
    %2187 = vmatmul.mubr.bf16.gmra.mrb[0].mxu0 %v866
    %v2188 = vpop.f32.mrb[0].mxu0
    %v2189 = vadd.f32 %v2101, %v2188
    %v2190 = vpop.f32.mrb[0].mxu0
    %v2191 = vpop.f32.mrb[0].mxu0
    %v2192 = vpop.f32.mrb[0].mxu0
    %2193 = vdwg.mxu0
    %2194 = vmatprep.subr.bf16.mxu0 0
    %2195 = vmatpush1.bf16.msra.mxu0 %v1578
    %2196 = vmatprep.subr.bf16.mxu0 0
    %2197 = vmatpush1.bf16.msra.mxu0 %v1579
    %2198 = vmatprep.subr.bf16.mxu0 0
    %2199 = vmatpush1.bf16.msra.mxu0 %v1580
    %2200 = vmatprep.subr.bf16.mxu0 0
    %2201 = vmatpush1.bf16.msra.mxu0 %v1581
    %2202 = vmatprep.subr.bf16.mxu0 0
    %2203 = vmatpush1.bf16.msra.mxu0 %v1582
    %2204 = vmatprep.subr.bf16.mxu0 0
    %2205 = vmatpush1.bf16.msra.mxu0 %v1583
    %2206 = vmatprep.subr.bf16.mxu0 0
    %2207 = vmatpush1.bf16.msra.mxu0 %v1584
    %2208 = vmatprep.subr.bf16.mxu0 0
    %2209 = vmatpush1.bf16.msra.mxu0 %v1585
    %2210 = vmatprep.subr.bf16.mxu0 0
    %2211 = vmatpush1.bf16.msra.mxu0 %v1586
    %2212 = vmatprep.subr.bf16.mxu0 0
    %2213 = vmatpush1.bf16.msra.mxu0 %v1587
    %2214 = vmatprep.subr.bf16.mxu0 0
    %2215 = vmatpush1.bf16.msra.mxu0 %v1588
    %2216 = vmatprep.subr.bf16.mxu0 0
    %2217 = vmatpush1.bf16.msra.mxu0 %v1589
    %2218 = vmatprep.subr.bf16.mxu0 0
    %2219 = vmatpush1.bf16.msra.mxu0 %v1590
    %2220 = vmatprep.subr.bf16.mxu0 0
    %2221 = vmatpush1.bf16.msra.mxu0 %v1591
    %2222 = vmatprep.subr.bf16.mxu0 0
    %2223 = vmatpush1.bf16.msra.mxu0 %v1592
    %2224 = vmatprep.subr.bf16.mxu0 0
    %2225 = vmatpush1.bf16.msra.mxu0 %v1593
    %2226 = vmatprep.mubr.bf16.mxu0 %v773
    %2227 = vmatmul.mubr.bf16.gmra.mrb[0].mxu0 %v772
    %v2228 = vpop.f32.mrb[0].mxu0
    %v2229 = vadd.f32 %v2141, %v2228
    %v2230 = vpop.f32.mrb[0].mxu0
    %v2231 = vpop.f32.mrb[0].mxu0
    %v2232 = vadd.f32 %v2144, %v2231
    %v2233 = vpop.f32.mrb[0].mxu0
    %2234 = vmatprep.mubr.bf16.mxu0 %v789
    %2235 = vmatmul.mubr.bf16.gmra.mrb[0].mxu0 %v788
    %v2236 = vpop.f32.mrb[0].mxu0
    %v2237 = vadd.f32 %v2149, %v2236
    %v2238 = vpop.f32.mrb[0].mxu0
    %v2239 = vpop.f32.mrb[0].mxu0
    %v2240 = vadd.f32 %v2152, %v2239
    %v2241 = vpop.f32.mrb[0].mxu0
    %2242 = vmatprep.mubr.bf16.mxu0 %v805
    %2243 = vmatmul.mubr.bf16.gmra.mrb[0].mxu0 %v804
    %v2244 = vpop.f32.mrb[0].mxu0
    %v2245 = vadd.f32 %v2157, %v2244
    %v2246 = vpop.f32.mrb[0].mxu0
    %v2247 = vpop.f32.mrb[0].mxu0
    %v2248 = vadd.f32 %v2160, %v2247
    %v2249 = vpop.f32.mrb[0].mxu0
    %2250 = vmatprep.mubr.bf16.mxu0 %v821
    %2251 = vmatmul.mubr.bf16.gmra.mrb[0].mxu0 %v820
    %v2252 = vpop.f32.mrb[0].mxu0
    %v2253 = vadd.f32 %v2165, %v2252
    %v2254 = vpop.f32.mrb[0].mxu0
    %v2255 = vpop.f32.mrb[0].mxu0
    %v2256 = vadd.f32 %v2168, %v2255
    %v2257 = vpop.f32.mrb[0].mxu0
    %2258 = vmatprep.mubr.bf16.mxu0 %v837
    %2259 = vmatmul.mubr.bf16.gmra.mrb[0].mxu0 %v836
    %v2260 = vpop.f32.mrb[0].mxu0
    %v2261 = vadd.f32 %v2173, %v2260
    %v2262 = vpop.f32.mrb[0].mxu0
    %v2263 = vpop.f32.mrb[0].mxu0
    %v2264 = vadd.f32 %v2176, %v2263
    %v2265 = vpop.f32.mrb[0].mxu0
    %2266 = vmatprep.mubr.bf16.mxu0 %v853
    %2267 = vmatmul.mubr.bf16.gmra.mrb[0].mxu0 %v852
    %v2268 = vpop.f32.mrb[0].mxu0
    %v2269 = vadd.f32 %v2181, %v2268
    %v2270 = vpop.f32.mrb[0].mxu0
    %v2271 = vpop.f32.mrb[0].mxu0
    %v2272 = vadd.f32 %v2184, %v2271
    %v2273 = vpop.f32.mrb[0].mxu0
    %2274 = vmatprep.mubr.bf16.mxu0 %v869
    %2275 = vmatmul.mubr.bf16.gmra.mrb[0].mxu0 %v868
    %v2276 = vpop.f32.mrb[0].mxu0
    %v2277 = vadd.f32 %v2189, %v2276
    %v2278 = vpop.f32.mrb[0].mxu0
    %v2279 = vpop.f32.mrb[0].mxu0
    %v2280 = vpop.f32.mrb[0].mxu0
    %2281 = vdwg.mxu0
    %2282 = vmatprep.subr.bf16.mxu0 0
    %2283 = vmatpush1.bf16.msra.mxu0 %v1594
    %2284 = vmatprep.subr.bf16.mxu0 0
    %2285 = vmatpush1.bf16.msra.mxu0 %v1595
    %2286 = vmatprep.subr.bf16.mxu0 0
    %2287 = vmatpush1.bf16.msra.mxu0 %v1596
    %2288 = vmatprep.subr.bf16.mxu0 0
    %2289 = vmatpush1.bf16.msra.mxu0 %v1597
    %2290 = vmatprep.subr.bf16.mxu0 0
    %2291 = vmatpush1.bf16.msra.mxu0 %v1598
    %2292 = vmatprep.subr.bf16.mxu0 0
    %2293 = vmatpush1.bf16.msra.mxu0 %v1599
    %2294 = vmatprep.subr.bf16.mxu0 0
    %2295 = vmatpush1.bf16.msra.mxu0 %v1600
    %2296 = vmatprep.subr.bf16.mxu0 0
    %2297 = vmatpush1.bf16.msra.mxu0 %v1601
    %2298 = vmatprep.subr.bf16.mxu0 0
    %2299 = vmatpush1.bf16.msra.mxu0 %v1602
    %2300 = vmatprep.subr.bf16.mxu0 0
    %2301 = vmatpush1.bf16.msra.mxu0 %v1603
    %2302 = vmatprep.subr.bf16.mxu0 0
    %2303 = vmatpush1.bf16.msra.mxu0 %v1604
    %2304 = vmatprep.subr.bf16.mxu0 0
    %2305 = vmatpush1.bf16.msra.mxu0 %v1605
    %2306 = vmatprep.subr.bf16.mxu0 0
    %2307 = vmatpush1.bf16.msra.mxu0 %v1606
    %2308 = vmatprep.subr.bf16.mxu0 0
    %2309 = vmatpush1.bf16.msra.mxu0 %v1607
    %2310 = vmatprep.subr.bf16.mxu0 0
    %2311 = vmatpush1.bf16.msra.mxu0 %v1608
    %2312 = vmatprep.subr.bf16.mxu0 0
    %2313 = vmatpush1.bf16.msra.mxu0 %v1609
    %2314 = vmatprep.mubr.bf16.mxu0 %v775
    %2315 = vmatmul.mubr.bf16.gmra.mrb[0].mxu0 %v774
    %v2316 = vpop.f32.mrb[0].mxu0
    %v2317 = vadd.f32 %v2229, %v2316
    %v2318 = vpop.f32.mrb[0].mxu0
    %v2319 = vpop.f32.mrb[0].mxu0
    %v2320 = vadd.f32 %v2232, %v2319
    %v2321 = vpop.f32.mrb[0].mxu0
    %2322 = vmatprep.mubr.bf16.mxu0 %v791
    %2323 = vmatmul.mubr.bf16.gmra.mrb[0].mxu0 %v790
    %v2324 = vpop.f32.mrb[0].mxu0
    %v2325 = vadd.f32 %v2237, %v2324
    %v2326 = vpop.f32.mrb[0].mxu0
    %v2327 = vpop.f32.mrb[0].mxu0
    %v2328 = vadd.f32 %v2240, %v2327
    %v2329 = vpop.f32.mrb[0].mxu0
    %2330 = vmatprep.mubr.bf16.mxu0 %v807
    %2331 = vmatmul.mubr.bf16.gmra.mrb[0].mxu0 %v806
    %v2332 = vpop.f32.mrb[0].mxu0
    %v2333 = vadd.f32 %v2245, %v2332
    %v2334 = vpop.f32.mrb[0].mxu0
    %v2335 = vpop.f32.mrb[0].mxu0
    %v2336 = vadd.f32 %v2248, %v2335
    %v2337 = vpop.f32.mrb[0].mxu0
    %2338 = vmatprep.mubr.bf16.mxu0 %v823
    %2339 = vmatmul.mubr.bf16.gmra.mrb[0].mxu0 %v822
    %v2340 = vpop.f32.mrb[0].mxu0
    %v2341 = vadd.f32 %v2253, %v2340
    %v2342 = vpop.f32.mrb[0].mxu0
    %v2343 = vpop.f32.mrb[0].mxu0
    %v2344 = vadd.f32 %v2256, %v2343
    %v2345 = vpop.f32.mrb[0].mxu0
    %2346 = vmatprep.mubr.bf16.mxu0 %v839
    %2347 = vmatmul.mubr.bf16.gmra.mrb[0].mxu0 %v838
    %v2348 = vpop.f32.mrb[0].mxu0
    %v2349 = vadd.f32 %v2261, %v2348
    %v2350 = vpop.f32.mrb[0].mxu0
    %v2351 = vpop.f32.mrb[0].mxu0
    %v2352 = vadd.f32 %v2264, %v2351
    %v2353 = vpop.f32.mrb[0].mxu0
    %2354 = vmatprep.mubr.bf16.mxu0 %v855
    %2355 = vmatmul.mubr.bf16.gmra.mrb[0].mxu0 %v854
    %v2356 = vpop.f32.mrb[0].mxu0
    %v2357 = vadd.f32 %v2269, %v2356
    %v2358 = vpop.f32.mrb[0].mxu0
    %v2359 = vpop.f32.mrb[0].mxu0
    %v2360 = vadd.f32 %v2272, %v2359
    %v2361 = vpop.f32.mrb[0].mxu0
    %2362 = vmatprep.mubr.bf16.mxu0 %v871
    %2363 = vmatmul.mubr.bf16.gmra.mrb[0].mxu0 %v870
    %v2364 = vpop.f32.mrb[0].mxu0
    %v2365 = vadd.f32 %v2277, %v2364
    %v2366 = vpop.f32.mrb[0].mxu0
    %v2367 = vpop.f32.mrb[0].mxu0
    %v2368 = vpop.f32.mrb[0].mxu0
    %2369 = vdwg.mxu0
    %2370 = vmatprep.subr.bf16.mxu0 0
    %2371 = vmatpush1.bf16.msra.mxu0 %v1610
    %2372 = vmatprep.subr.bf16.mxu0 0
    %2373 = vmatpush1.bf16.msra.mxu0 %v1611
    %2374 = vmatprep.subr.bf16.mxu0 0
    %2375 = vmatpush1.bf16.msra.mxu0 %v1612
    %2376 = vmatprep.subr.bf16.mxu0 0
    %2377 = vmatpush1.bf16.msra.mxu0 %v1613
    %2378 = vmatprep.subr.bf16.mxu0 0
    %2379 = vmatpush1.bf16.msra.mxu0 %v1614
    %2380 = vmatprep.subr.bf16.mxu0 0
    %2381 = vmatpush1.bf16.msra.mxu0 %v1615
    %2382 = vmatprep.subr.bf16.mxu0 0
    %2383 = vmatpush1.bf16.msra.mxu0 %v1616
    %2384 = vmatprep.subr.bf16.mxu0 0
    %2385 = vmatpush1.bf16.msra.mxu0 %v1617
    %2386 = vmatprep.subr.bf16.mxu0 0
    %2387 = vmatpush1.bf16.msra.mxu0 %v1618
    %2388 = vmatprep.subr.bf16.mxu0 0
    %2389 = vmatpush1.bf16.msra.mxu0 %v1619
    %2390 = vmatprep.subr.bf16.mxu0 0
    %2391 = vmatpush1.bf16.msra.mxu0 %v1620
    %2392 = vmatprep.subr.bf16.mxu0 0
    %2393 = vmatpush1.bf16.msra.mxu0 %v1621
    %2394 = vmatprep.subr.bf16.mxu0 0
    %2395 = vmatpush1.bf16.msra.mxu0 %v1622
    %2396 = vmatprep.subr.bf16.mxu0 0
    %2397 = vmatpush1.bf16.msra.mxu0 %v1623
    %2398 = vmatprep.subr.bf16.mxu0 0
    %2399 = vmatpush1.bf16.msra.mxu0 %v1624
    %2400 = vmatprep.subr.bf16.mxu0 0
    %2401 = vmatpush1.bf16.msra.mxu0 %v1625
    %2402 = vmatprep.mubr.bf16.mxu0 %v777
    %2403 = vmatmul.mubr.bf16.gmra.mrb[0].mxu0 %v776
    %v2404 = vpop.f32.mrb[0].mxu0
    %v2405 = vadd.f32 %v2317, %v2404
    %v2406 = vpop.f32.mrb[0].mxu0
    %v2407 = vpop.f32.mrb[0].mxu0
    %v2408 = vadd.f32 %v2320, %v2407
    %v2409 = vpop.f32.mrb[0].mxu0
    %2410 = vmatprep.mubr.bf16.mxu0 %v793
    %2411 = vmatmul.mubr.bf16.gmra.mrb[0].mxu0 %v792
    %v2412 = vpop.f32.mrb[0].mxu0
    %v2413 = vadd.f32 %v2325, %v2412
    %v2414 = vpop.f32.mrb[0].mxu0
    %v2415 = vpop.f32.mrb[0].mxu0
    %v2416 = vadd.f32 %v2328, %v2415
    %v2417 = vpop.f32.mrb[0].mxu0
    %2418 = vmatprep.mubr.bf16.mxu0 %v809
    %2419 = vmatmul.mubr.bf16.gmra.mrb[0].mxu0 %v808
    %v2420 = vpop.f32.mrb[0].mxu0
    %v2421 = vadd.f32 %v2333, %v2420
    %v2422 = vpop.f32.mrb[0].mxu0
    %v2423 = vpop.f32.mrb[0].mxu0
    %v2424 = vadd.f32 %v2336, %v2423
    %v2425 = vpop.f32.mrb[0].mxu0
    %2426 = vmatprep.mubr.bf16.mxu0 %v825
    %2427 = vmatmul.mubr.bf16.gmra.mrb[0].mxu0 %v824
    %v2428 = vpop.f32.mrb[0].mxu0
    %v2429 = vadd.f32 %v2341, %v2428
    %v2430 = vpop.f32.mrb[0].mxu0
    %v2431 = vpop.f32.mrb[0].mxu0
    %v2432 = vadd.f32 %v2344, %v2431
    %v2433 = vpop.f32.mrb[0].mxu0
    %2434 = vmatprep.mubr.bf16.mxu0 %v841
    %2435 = vmatmul.mubr.bf16.gmra.mrb[0].mxu0 %v840
    %v2436 = vpop.f32.mrb[0].mxu0
    %v2437 = vadd.f32 %v2349, %v2436
    %v2438 = vpop.f32.mrb[0].mxu0
    %v2439 = vpop.f32.mrb[0].mxu0
    %v2440 = vadd.f32 %v2352, %v2439
    %v2441 = vpop.f32.mrb[0].mxu0
    %2442 = vmatprep.mubr.bf16.mxu0 %v857
    %2443 = vmatmul.mubr.bf16.gmra.mrb[0].mxu0 %v856
    %v2444 = vpop.f32.mrb[0].mxu0
    %v2445 = vadd.f32 %v2357, %v2444
    %v2446 = vpop.f32.mrb[0].mxu0
    %v2447 = vpop.f32.mrb[0].mxu0
    %v2448 = vadd.f32 %v2360, %v2447
    %v2449 = vpop.f32.mrb[0].mxu0
    %2450 = vmatprep.mubr.bf16.mxu0 %v873
    %2451 = vmatmul.mubr.bf16.gmra.mrb[0].mxu0 %v872
    %v2452 = vpop.f32.mrb[0].mxu0
    %v2453 = vadd.f32 %v2365, %v2452
    %v2454 = vpop.f32.mrb[0].mxu0
    %v2455 = vpop.f32.mrb[0].mxu0
    %v2456 = vpop.f32.mrb[0].mxu0
    %2457 = vdwg.mxu0
    %v2458 = vpack.c.bf16 %v68, %v67
    %v2459 = vlaneseq
    %v2460 = vshrl.u32 %v2459, 7
    %v2461 = vsub.s32 0, %v2460
    %v2462 = vrot.slane %v50, %v2461
    %v2467 = vunpack.c.l.b16 %v46
    %v2468 = vunpack.c.l.b16 %v47
    %v2469 = vunpack.c.l.b16 %v48
    %v2470 = vunpack.c.l.b16 %v49
    %v2471 = vpack.c.b16 %v2468, %v2467
    %v2472 = vpack.c.b16 %v2470, %v2469
    %vm2475 = vcmask 261120
    %v2477 = vsel %vm2475, %v2458, 0
    %2479 = vmatprep.subr.bf16.mxu0 0
    %2480 = vmatpush1.bf16.msra.mxu0 %v2471
    %2481 = vmatprep.subr.bf16.mxu0 0
    %2482 = vmatpush1.bf16.msra.mxu0 %v2472
    %2483 = vmatprep.subr.bf16.mxu0 0
    %2484 = vmatpush1.bf16.msra.mxu0 0
    %2485 = vmatprep.subr.bf16.mxu0 0
    %2486 = vmatpush1.bf16.msra.mxu0 0
    %2487 = vmatprep.subr.bf16.mxu0 0
    %2488 = vmatpush1.bf16.msra.mxu0 0
    %2489 = vmatprep.subr.bf16.mxu0 0
    %2490 = vmatpush1.bf16.msra.mxu0 0
    %2491 = vmatprep.subr.bf16.mxu0 0
    %2492 = vmatpush1.bf16.msra.mxu0 0
    %2493 = vmatprep.subr.bf16.mxu0 0
    %2494 = vmatpush1.bf16.msra.mxu0 0
    %2495 = vmatprep.subr.bf16.mxu0 0
    %2496 = vmatpush1.bf16.msra.mxu0 0
    %2497 = vmatprep.subr.bf16.mxu0 0
    %2498 = vmatpush1.bf16.msra.mxu0 0
    %2499 = vmatprep.subr.bf16.mxu0 0
    %2500 = vmatpush1.bf16.msra.mxu0 0
    %2501 = vmatprep.subr.bf16.mxu0 0
    %2502 = vmatpush1.bf16.msra.mxu0 0
    %2503 = vmatprep.subr.bf16.mxu0 0
    %2504 = vmatpush1.bf16.msra.mxu0 0
    %2505 = vmatprep.subr.bf16.mxu0 0
    %2506 = vmatpush1.bf16.msra.mxu0 0
    %2507 = vmatprep.subr.bf16.mxu0 0
    %2508 = vmatpush1.bf16.msra.mxu0 0
    %2509 = vmatprep.subr.bf16.mxu0 0
    %2510 = vmatpush1.bf16.msra.mxu0 0
    %2511 = vmatprep.mubr.bf16.mxu0 0
    %2512 = vmatmul.mubr.bf16.gmra.mrb[0].mxu0 %v2477
    %v2513 = vpop.f32.mrb[0].mxu0
    %v2514 = vadd.f32 %v2462, %v2513
    %v2515 = vpop.f32.mrb[0].mxu0
    %v2516 = vpop.f32.mrb[0].mxu0
    %v2517 = vadd.f32 %v2462, %v2516
    %v2518 = vpop.f32.mrb[0].mxu0
    %2519 = vdwg.mxu0
    %2520 = vrot.lane.b32.xlu0 %v2471, 96
    %v2521 = vpop.permute.xlu0 %2520
    %2522 = vrot.lane.b32.xlu0 %v2472, 96
    %v2523 = vpop.permute.xlu0 %2522
    %2527 = vrot.lane.b32.xlu0 %v2462, 96
    %v2528 = vpop.permute.xlu0 %2527
    %2530 = vmatprep.subr.bf16.mxu0 0
    %2531 = vmatpush1.bf16.msra.mxu0 %v2521
    %2532 = vmatprep.subr.bf16.mxu0 0
    %2533 = vmatpush1.bf16.msra.mxu0 %v2523
    %2534 = vmatprep.subr.bf16.mxu0 0
    %2535 = vmatpush1.bf16.msra.mxu0 0
    %2536 = vmatprep.subr.bf16.mxu0 0
    %2537 = vmatpush1.bf16.msra.mxu0 0
    %2538 = vmatprep.subr.bf16.mxu0 0
    %2539 = vmatpush1.bf16.msra.mxu0 0
    %2540 = vmatprep.subr.bf16.mxu0 0
    %2541 = vmatpush1.bf16.msra.mxu0 0
    %2542 = vmatprep.subr.bf16.mxu0 0
    %2543 = vmatpush1.bf16.msra.mxu0 0
    %2544 = vmatprep.subr.bf16.mxu0 0
    %2545 = vmatpush1.bf16.msra.mxu0 0
    %2546 = vmatprep.subr.bf16.mxu0 0
    %2547 = vmatpush1.bf16.msra.mxu0 0
    %2548 = vmatprep.subr.bf16.mxu0 0
    %2549 = vmatpush1.bf16.msra.mxu0 0
    %2550 = vmatprep.subr.bf16.mxu0 0
    %2551 = vmatpush1.bf16.msra.mxu0 0
    %2552 = vmatprep.subr.bf16.mxu0 0
    %2553 = vmatpush1.bf16.msra.mxu0 0
    %2554 = vmatprep.subr.bf16.mxu0 0
    %2555 = vmatpush1.bf16.msra.mxu0 0
    %2556 = vmatprep.subr.bf16.mxu0 0
    %2557 = vmatpush1.bf16.msra.mxu0 0
    %2558 = vmatprep.subr.bf16.mxu0 0
    %2559 = vmatpush1.bf16.msra.mxu0 0
    %2560 = vmatprep.subr.bf16.mxu0 0
    %2561 = vmatpush1.bf16.msra.mxu0 0
    %2562 = vmatprep.mubr.bf16.mxu0 0
    %2563 = vmatmul.mubr.bf16.gmra.mrb[0].mxu0 %v2477
    %v2564 = vpop.f32.mrb[0].mxu0
    %v2565 = vadd.f32 %v2528, %v2564
    %v2566 = vpop.f32.mrb[0].mxu0
    %v2567 = vpop.f32.mrb[0].mxu0
    %v2568 = vadd.f32 %v2528, %v2567
    %v2569 = vpop.f32.mrb[0].mxu0
    %2570 = vdwg.mxu0
    %v2571 = vpack.c.bf16 %v2517, %v2514
    %v2572 = vpack.c.bf16 %v2568, %v2565
    %vm2573 = vcmask 64512
    %v2575 = vsel %vm2573, %v2571, 0
    %v2578 = vsel %vm2573, %v2572, 0
    %2580 = vmatprep.subr.bf16.mxu0 0
    %2581 = vmatpush1.bf16.xpose.msra.mxu0 %v2578
    %2582 = vmatprep.subr.bf16.mxu0 0
    %2583 = vmatpush1.bf16.xpose.msra.mxu0 0
    %2584 = vmatprep.subr.bf16.mxu0 0
    %2585 = vmatpush1.bf16.xpose.msra.mxu0 0
    %2586 = vmatprep.subr.bf16.mxu0 0
    %2587 = vmatpush1.bf16.xpose.msra.mxu0 0
    %2588 = vmatprep.subr.bf16.mxu0 0
    %2589 = vmatpush1.bf16.xpose.msra.mxu0 0
    %2590 = vmatprep.subr.bf16.mxu0 0
    %2591 = vmatpush1.bf16.xpose.msra.mxu0 0
    %2592 = vmatprep.subr.bf16.mxu0 0
    %2593 = vmatpush1.bf16.xpose.msra.mxu0 0
    %2594 = vmatprep.subr.bf16.mxu0 0
    %2595 = vmatpush1.bf16.xpose.msra.mxu0 0
    %2596 = vmatprep.subr.bf16.mxu0 0
    %2597 = vmatpush1.bf16.xpose.msra.mxu0 0
    %2598 = vmatprep.subr.bf16.mxu0 0
    %2599 = vmatpush1.bf16.xpose.msra.mxu0 0
    %2600 = vmatprep.subr.bf16.mxu0 0
    %2601 = vmatpush1.bf16.xpose.msra.mxu0 0
    %2602 = vmatprep.subr.bf16.mxu0 0
    %2603 = vmatpush1.bf16.xpose.msra.mxu0 0
    %2604 = vmatprep.subr.bf16.mxu0 0
    %2605 = vmatpush1.bf16.xpose.msra.mxu0 0
    %2606 = vmatprep.subr.bf16.mxu0 0
    %2607 = vmatpush1.bf16.xpose.msra.mxu0 0
    %2608 = vmatprep.subr.bf16.mxu0 0
    %2609 = vmatpush1.bf16.xpose.msra.mxu0 0
    %2610 = vmatprep.subr.bf16.mxu0 0
    %2611 = vmatpush1.bf16.xpose.msra.mxu0 0
    %2612 = vmatprep.mubr.bf16.mxu0 0
    %2613 = vmatmul.mubr.bf16.gmra.mrb[0].mxu0 %v2575
    %v2614 = vpop.f32.mrb[0].mxu0
    %v2615 = vadd.f32 0.0, %v2614
    %v2616 = vpop.f32.mrb[0].mxu0
    %v2617 = vpop.f32.mrb[0].mxu0
    %v2618 = vadd.f32 0.0, %v2617
    %v2619 = vpop.f32.mrb[0].mxu0
    %2620 = vdwg.mxu0
    %v2621 = vmul.f32 %v2615, 0.35355338
    %v2622 = vmul.f32 %v2618, 0.35355338
    %v2623 = vadd.f32 %v2621, %v69
    %v2624 = vadd.f32 %v2622, %v70
    %vm2625 = vcmask 130048
    %v2626 = vsel %vm2625, %v2623, -inf
    %2627 = vmax.xlane.f32.xlu0 %v2626
    %v2628 = vpop.xlane.xlu0 %2627
    %v2629 = vsel %vm2625, %v2624, -inf
    %2630 = vmax.xlane.f32.xlu0 %v2629
    %v2631 = vpop.xlane.xlu0 %2630
    %v2632 = vsub.f32 %v2623, %v2628
    %v2633 = vsub.f32 %v2624, %v2631
    %v2634 = vmul.f32 %v2632, 1.442695
    %v2635 = vpow.pop %v2634
    %v2636 = vmul.f32 %v2633, 1.442695
    %v2637 = vpow.pop %v2636
    %v2638 = vsel %vm2625, %v2635, 0.0
    %2639 = vadd.xlane.f32.xlu0 %v2638
    %v2640 = vpop.xlane.xlu0 %2639
    %v2641 = vsel %vm2625, %v2637, 0.0
    %2642 = vadd.xlane.f32.xlu0 %v2641
    %v2643 = vpop.xlane.xlu0 %2642
    %v2644 = vrcp.pop %v2640
    %v2645 = vmul.f32 %v2635, %v2644
    %v2646 = vrcp.pop %v2643
    %v2647 = vmul.f32 %v2637, %v2646
    %v2648 = vpack.c.bf16 %v2647, %v2645
    %2650 = vrot.lane.b32.xlu0 %v2572, 96
    %v2651 = vpop.permute.xlu0 %2650
    %v2654 = vsel %vm2625, %v2648, 0
    %2656 = vmatprep.subr.bf16.mxu0 0
    %2657 = vmatpush1.bf16.msra.mxu0 %v2651
    %2658 = vmatprep.subr.bf16.mxu0 0
    %2659 = vmatpush1.bf16.msra.mxu0 0
    %2660 = vmatprep.subr.bf16.mxu0 0
    %2661 = vmatpush1.bf16.msra.mxu0 0
    %2662 = vmatprep.subr.bf16.mxu0 0
    %2663 = vmatpush1.bf16.msra.mxu0 0
    %2664 = vmatprep.subr.bf16.mxu0 0
    %2665 = vmatpush1.bf16.msra.mxu0 0
    %2666 = vmatprep.subr.bf16.mxu0 0
    %2667 = vmatpush1.bf16.msra.mxu0 0
    %2668 = vmatprep.subr.bf16.mxu0 0
    %2669 = vmatpush1.bf16.msra.mxu0 0
    %2670 = vmatprep.subr.bf16.mxu0 0
    %2671 = vmatpush1.bf16.msra.mxu0 0
    %2672 = vmatprep.subr.bf16.mxu0 0
    %2673 = vmatpush1.bf16.msra.mxu0 0
    %2674 = vmatprep.subr.bf16.mxu0 0
    %2675 = vmatpush1.bf16.msra.mxu0 0
    %2676 = vmatprep.subr.bf16.mxu0 0
    %2677 = vmatpush1.bf16.msra.mxu0 0
    %2678 = vmatprep.subr.bf16.mxu0 0
    %2679 = vmatpush1.bf16.msra.mxu0 0
    %2680 = vmatprep.subr.bf16.mxu0 0
    %2681 = vmatpush1.bf16.msra.mxu0 0
    %2682 = vmatprep.subr.bf16.mxu0 0
    %2683 = vmatpush1.bf16.msra.mxu0 0
    %2684 = vmatprep.subr.bf16.mxu0 0
    %2685 = vmatpush1.bf16.msra.mxu0 0
    %2686 = vmatprep.subr.bf16.mxu0 0
    %2687 = vmatpush1.bf16.msra.mxu0 0
    %2688 = vmatprep.mubr.bf16.mxu0 0
    %2689 = vmatmul.mubr.bf16.gmra.mrb[0].mxu0 %v2654
    %v2690 = vpop.f32.mrb[0].mxu0
    %v2691 = vadd.f32 0.0, %v2690
    %v2692 = vpop.f32.mrb[0].mxu0
    %v2693 = vpop.f32.mrb[0].mxu0
    %v2694 = vadd.f32 0.0, %v2693
    %v2695 = vpop.f32.mrb[0].mxu0
    %2696 = vdwg.mxu0
    %2698 = vrot.lane.b32.xlu0 %v2571, 120
    %v2699 = vpop.permute.xlu0 %2698
    %2700 = vrot.lane.b32.xlu0 %v2572, 120
    %v2701 = vpop.permute.xlu0 %2700
    %v2703 = vsel %vm2573, %v2699, 0
    %v2706 = vsel %vm2573, %v2701, 0
    %2708 = vmatprep.subr.bf16.mxu0 0
    %2709 = vmatpush1.bf16.xpose.msra.mxu0 %v2706
    %2710 = vmatprep.subr.bf16.mxu0 0
    %2711 = vmatpush1.bf16.xpose.msra.mxu0 0
    %2712 = vmatprep.subr.bf16.mxu0 0
    %2713 = vmatpush1.bf16.xpose.msra.mxu0 0
    %2714 = vmatprep.subr.bf16.mxu0 0
    %2715 = vmatpush1.bf16.xpose.msra.mxu0 0
    %2716 = vmatprep.subr.bf16.mxu0 0
    %2717 = vmatpush1.bf16.xpose.msra.mxu0 0
    %2718 = vmatprep.subr.bf16.mxu0 0
    %2719 = vmatpush1.bf16.xpose.msra.mxu0 0
    %2720 = vmatprep.subr.bf16.mxu0 0
    %2721 = vmatpush1.bf16.xpose.msra.mxu0 0
    %2722 = vmatprep.subr.bf16.mxu0 0
    %2723 = vmatpush1.bf16.xpose.msra.mxu0 0
    %2724 = vmatprep.subr.bf16.mxu0 0
    %2725 = vmatpush1.bf16.xpose.msra.mxu0 0
    %2726 = vmatprep.subr.bf16.mxu0 0
    %2727 = vmatpush1.bf16.xpose.msra.mxu0 0
    %2728 = vmatprep.subr.bf16.mxu0 0
    %2729 = vmatpush1.bf16.xpose.msra.mxu0 0
    %2730 = vmatprep.subr.bf16.mxu0 0
    %2731 = vmatpush1.bf16.xpose.msra.mxu0 0
    %2732 = vmatprep.subr.bf16.mxu0 0
    %2733 = vmatpush1.bf16.xpose.msra.mxu0 0
    %2734 = vmatprep.subr.bf16.mxu0 0
    %2735 = vmatpush1.bf16.xpose.msra.mxu0 0
    %2736 = vmatprep.subr.bf16.mxu0 0
    %2737 = vmatpush1.bf16.xpose.msra.mxu0 0
    %2738 = vmatprep.subr.bf16.mxu0 0
    %2739 = vmatpush1.bf16.xpose.msra.mxu0 0
    %2740 = vmatprep.mubr.bf16.mxu0 0
    %2741 = vmatmul.mubr.bf16.gmra.mrb[0].mxu0 %v2703
    %v2742 = vpop.f32.mrb[0].mxu0
    %v2743 = vadd.f32 0.0, %v2742
    %v2744 = vpop.f32.mrb[0].mxu0
    %v2745 = vpop.f32.mrb[0].mxu0
    %v2746 = vadd.f32 0.0, %v2745
    %v2747 = vpop.f32.mrb[0].mxu0
    %2748 = vdwg.mxu0
    %v2749 = vmul.f32 %v2743, 0.35355338
    %v2750 = vmul.f32 %v2746, 0.35355338
    %v2751 = vadd.f32 %v2749, %v69
    %v2752 = vadd.f32 %v2750, %v70
    %v2753 = vsel %vm2625, %v2751, -inf
    %2754 = vmax.xlane.f32.xlu0 %v2753
    %v2755 = vpop.xlane.xlu0 %2754
    %v2756 = vsel %vm2625, %v2752, -inf
    %2757 = vmax.xlane.f32.xlu0 %v2756
    %v2758 = vpop.xlane.xlu0 %2757
    %v2759 = vsub.f32 %v2751, %v2755
    %v2760 = vsub.f32 %v2752, %v2758
    %v2761 = vmul.f32 %v2759, 1.442695
    %v2762 = vpow.pop %v2761
    %v2763 = vmul.f32 %v2760, 1.442695
    %v2764 = vpow.pop %v2763
    %v2765 = vsel %vm2625, %v2762, 0.0
    %2766 = vadd.xlane.f32.xlu0 %v2765
    %v2767 = vpop.xlane.xlu0 %2766
    %v2768 = vsel %vm2625, %v2764, 0.0
    %2769 = vadd.xlane.f32.xlu0 %v2768
    %v2770 = vpop.xlane.xlu0 %2769
    %v2771 = vrcp.pop %v2767
    %v2772 = vmul.f32 %v2762, %v2771
    %v2773 = vrcp.pop %v2770
    %v2774 = vmul.f32 %v2764, %v2773
    %v2775 = vpack.c.bf16 %v2774, %v2772
    %2776 = vrot.lane.b32.xlu0 %v2572, 88
    %v2777 = vpop.permute.xlu0 %2776
    %v2780 = vsel %vm2625, %v2775, 0
    %2782 = vmatprep.subr.bf16.mxu0 0
    %2783 = vmatpush1.bf16.msra.mxu0 %v2777
    %2784 = vmatprep.subr.bf16.mxu0 0
    %2785 = vmatpush1.bf16.msra.mxu0 0
    %2786 = vmatprep.subr.bf16.mxu0 0
    %2787 = vmatpush1.bf16.msra.mxu0 0
    %2788 = vmatprep.subr.bf16.mxu0 0
    %2789 = vmatpush1.bf16.msra.mxu0 0
    %2790 = vmatprep.subr.bf16.mxu0 0
    %2791 = vmatpush1.bf16.msra.mxu0 0
    %2792 = vmatprep.subr.bf16.mxu0 0
    %2793 = vmatpush1.bf16.msra.mxu0 0
    %2794 = vmatprep.subr.bf16.mxu0 0
    %2795 = vmatpush1.bf16.msra.mxu0 0
    %2796 = vmatprep.subr.bf16.mxu0 0
    %2797 = vmatpush1.bf16.msra.mxu0 0
    %2798 = vmatprep.subr.bf16.mxu0 0
    %2799 = vmatpush1.bf16.msra.mxu0 0
    %2800 = vmatprep.subr.bf16.mxu0 0
    %2801 = vmatpush1.bf16.msra.mxu0 0
    %2802 = vmatprep.subr.bf16.mxu0 0
    %2803 = vmatpush1.bf16.msra.mxu0 0
    %2804 = vmatprep.subr.bf16.mxu0 0
    %2805 = vmatpush1.bf16.msra.mxu0 0
    %2806 = vmatprep.subr.bf16.mxu0 0
    %2807 = vmatpush1.bf16.msra.mxu0 0
    %2808 = vmatprep.subr.bf16.mxu0 0
    %2809 = vmatpush1.bf16.msra.mxu0 0
    %2810 = vmatprep.subr.bf16.mxu0 0
    %2811 = vmatpush1.bf16.msra.mxu0 0
    %2812 = vmatprep.subr.bf16.mxu0 0
    %2813 = vmatpush1.bf16.msra.mxu0 0
    %2814 = vmatprep.mubr.bf16.mxu0 0
    %2815 = vmatmul.mubr.bf16.gmra.mrb[0].mxu0 %v2780
    %v2816 = vpop.f32.mrb[0].mxu0
    %v2817 = vadd.f32 0.0, %v2816
    %v2818 = vpop.f32.mrb[0].mxu0
    %v2819 = vpop.f32.mrb[0].mxu0
    %v2820 = vadd.f32 0.0, %v2819
    %v2821 = vpop.f32.mrb[0].mxu0
    %2822 = vdwg.mxu0
    %2823 = vrot.lane.b32.xlu0 %v2571, 112
    %v2824 = vpop.permute.xlu0 %2823
    %2825 = vrot.lane.b32.xlu0 %v2572, 112
    %v2826 = vpop.permute.xlu0 %2825
    %v2828 = vsel %vm2573, %v2824, 0
    %v2831 = vsel %vm2573, %v2826, 0
    %2833 = vmatprep.subr.bf16.mxu0 0
    %2834 = vmatpush1.bf16.xpose.msra.mxu0 %v2831
    %2835 = vmatprep.subr.bf16.mxu0 0
    %2836 = vmatpush1.bf16.xpose.msra.mxu0 0
    %2837 = vmatprep.subr.bf16.mxu0 0
    %2838 = vmatpush1.bf16.xpose.msra.mxu0 0
    %2839 = vmatprep.subr.bf16.mxu0 0
    %2840 = vmatpush1.bf16.xpose.msra.mxu0 0
    %2841 = vmatprep.subr.bf16.mxu0 0
    %2842 = vmatpush1.bf16.xpose.msra.mxu0 0
    %2843 = vmatprep.subr.bf16.mxu0 0
    %2844 = vmatpush1.bf16.xpose.msra.mxu0 0
    %2845 = vmatprep.subr.bf16.mxu0 0
    %2846 = vmatpush1.bf16.xpose.msra.mxu0 0
    %2847 = vmatprep.subr.bf16.mxu0 0
    %2848 = vmatpush1.bf16.xpose.msra.mxu0 0
    %2849 = vmatprep.subr.bf16.mxu0 0
    %2850 = vmatpush1.bf16.xpose.msra.mxu0 0
    %2851 = vmatprep.subr.bf16.mxu0 0
    %2852 = vmatpush1.bf16.xpose.msra.mxu0 0
    %2853 = vmatprep.subr.bf16.mxu0 0
    %2854 = vmatpush1.bf16.xpose.msra.mxu0 0
    %2855 = vmatprep.subr.bf16.mxu0 0
    %2856 = vmatpush1.bf16.xpose.msra.mxu0 0
    %2857 = vmatprep.subr.bf16.mxu0 0
    %2858 = vmatpush1.bf16.xpose.msra.mxu0 0
    %2859 = vmatprep.subr.bf16.mxu0 0
    %2860 = vmatpush1.bf16.xpose.msra.mxu0 0
    %2861 = vmatprep.subr.bf16.mxu0 0
    %2862 = vmatpush1.bf16.xpose.msra.mxu0 0
    %2863 = vmatprep.subr.bf16.mxu0 0
    %2864 = vmatpush1.bf16.xpose.msra.mxu0 0
    %2865 = vmatprep.mubr.bf16.mxu0 0
    %2866 = vmatmul.mubr.bf16.gmra.mrb[0].mxu0 %v2828
    %v2867 = vpop.f32.mrb[0].mxu0
    %v2868 = vadd.f32 0.0, %v2867
    %v2869 = vpop.f32.mrb[0].mxu0
    %v2870 = vpop.f32.mrb[0].mxu0
    %v2871 = vadd.f32 0.0, %v2870
    %v2872 = vpop.f32.mrb[0].mxu0
    %2873 = vdwg.mxu0
    %v2874 = vmul.f32 %v2868, 0.35355338
    %v2875 = vmul.f32 %v2871, 0.35355338
    %v2876 = vadd.f32 %v2874, %v69
    %v2877 = vadd.f32 %v2875, %v70
    %v2878 = vsel %vm2625, %v2876, -inf
    %2879 = vmax.xlane.f32.xlu0 %v2878
    %v2880 = vpop.xlane.xlu0 %2879
    %v2881 = vsel %vm2625, %v2877, -inf
    %2882 = vmax.xlane.f32.xlu0 %v2881
    %v2883 = vpop.xlane.xlu0 %2882
    %v2884 = vsub.f32 %v2876, %v2880
    %v2885 = vsub.f32 %v2877, %v2883
    %v2886 = vmul.f32 %v2884, 1.442695
    %v2887 = vpow.pop %v2886
    %v2888 = vmul.f32 %v2885, 1.442695
    %v2889 = vpow.pop %v2888
    %v2890 = vsel %vm2625, %v2887, 0.0
    %2891 = vadd.xlane.f32.xlu0 %v2890
    %v2892 = vpop.xlane.xlu0 %2891
    %v2893 = vsel %vm2625, %v2889, 0.0
    %2894 = vadd.xlane.f32.xlu0 %v2893
    %v2895 = vpop.xlane.xlu0 %2894
    %v2896 = vrcp.pop %v2892
    %v2897 = vmul.f32 %v2887, %v2896
    %v2898 = vrcp.pop %v2895
    %v2899 = vmul.f32 %v2889, %v2898
    %v2900 = vpack.c.bf16 %v2899, %v2897
    %2901 = vrot.lane.b32.xlu0 %v2572, 80
    %v2902 = vpop.permute.xlu0 %2901
    %v2905 = vsel %vm2625, %v2900, 0
    %2907 = vmatprep.subr.bf16.mxu0 0
    %2908 = vmatpush1.bf16.msra.mxu0 %v2902
    %2909 = vmatprep.subr.bf16.mxu0 0
    %2910 = vmatpush1.bf16.msra.mxu0 0
    %2911 = vmatprep.subr.bf16.mxu0 0
    %2912 = vmatpush1.bf16.msra.mxu0 0
    %2913 = vmatprep.subr.bf16.mxu0 0
    %2914 = vmatpush1.bf16.msra.mxu0 0
    %2915 = vmatprep.subr.bf16.mxu0 0
    %2916 = vmatpush1.bf16.msra.mxu0 0
    %2917 = vmatprep.subr.bf16.mxu0 0
    %2918 = vmatpush1.bf16.msra.mxu0 0
    %2919 = vmatprep.subr.bf16.mxu0 0
    %2920 = vmatpush1.bf16.msra.mxu0 0
    %2921 = vmatprep.subr.bf16.mxu0 0
    %2922 = vmatpush1.bf16.msra.mxu0 0
    %2923 = vmatprep.subr.bf16.mxu0 0
    %2924 = vmatpush1.bf16.msra.mxu0 0
    %2925 = vmatprep.subr.bf16.mxu0 0
    %2926 = vmatpush1.bf16.msra.mxu0 0
    %2927 = vmatprep.subr.bf16.mxu0 0
    %2928 = vmatpush1.bf16.msra.mxu0 0
    %2929 = vmatprep.subr.bf16.mxu0 0
    %2930 = vmatpush1.bf16.msra.mxu0 0
    %2931 = vmatprep.subr.bf16.mxu0 0
    %2932 = vmatpush1.bf16.msra.mxu0 0
    %2933 = vmatprep.subr.bf16.mxu0 0
    %2934 = vmatpush1.bf16.msra.mxu0 0
    %2935 = vmatprep.subr.bf16.mxu0 0
    %2936 = vmatpush1.bf16.msra.mxu0 0
    %2937 = vmatprep.subr.bf16.mxu0 0
    %2938 = vmatpush1.bf16.msra.mxu0 0
    %2939 = vmatprep.mubr.bf16.mxu0 0
    %2940 = vmatmul.mubr.bf16.gmra.mrb[0].mxu0 %v2905
    %v2941 = vpop.f32.mrb[0].mxu0
    %v2942 = vadd.f32 0.0, %v2941
    %v2943 = vpop.f32.mrb[0].mxu0
    %v2944 = vpop.f32.mrb[0].mxu0
    %v2945 = vadd.f32 0.0, %v2944
    %v2946 = vpop.f32.mrb[0].mxu0
    %2947 = vdwg.mxu0
    %2948 = vrot.lane.b32.xlu0 %v2571, 104
    %v2949 = vpop.permute.xlu0 %2948
    %2950 = vrot.lane.b32.xlu0 %v2572, 104
    %v2951 = vpop.permute.xlu0 %2950
    %v2953 = vsel %vm2573, %v2949, 0
    %v2956 = vsel %vm2573, %v2951, 0
    %2958 = vmatprep.subr.bf16.mxu0 0
    %2959 = vmatpush1.bf16.xpose.msra.mxu0 %v2956
    %2960 = vmatprep.subr.bf16.mxu0 0
    %2961 = vmatpush1.bf16.xpose.msra.mxu0 0
    %2962 = vmatprep.subr.bf16.mxu0 0
    %2963 = vmatpush1.bf16.xpose.msra.mxu0 0
    %2964 = vmatprep.subr.bf16.mxu0 0
    %2965 = vmatpush1.bf16.xpose.msra.mxu0 0
    %2966 = vmatprep.subr.bf16.mxu0 0
    %2967 = vmatpush1.bf16.xpose.msra.mxu0 0
    %2968 = vmatprep.subr.bf16.mxu0 0
    %2969 = vmatpush1.bf16.xpose.msra.mxu0 0
    %2970 = vmatprep.subr.bf16.mxu0 0
    %2971 = vmatpush1.bf16.xpose.msra.mxu0 0
    %2972 = vmatprep.subr.bf16.mxu0 0
    %2973 = vmatpush1.bf16.xpose.msra.mxu0 0
    %2974 = vmatprep.subr.bf16.mxu0 0
    %2975 = vmatpush1.bf16.xpose.msra.mxu0 0
    %2976 = vmatprep.subr.bf16.mxu0 0
    %2977 = vmatpush1.bf16.xpose.msra.mxu0 0
    %2978 = vmatprep.subr.bf16.mxu0 0
    %2979 = vmatpush1.bf16.xpose.msra.mxu0 0
    %2980 = vmatprep.subr.bf16.mxu0 0
    %2981 = vmatpush1.bf16.xpose.msra.mxu0 0
    %2982 = vmatprep.subr.bf16.mxu0 0
    %2983 = vmatpush1.bf16.xpose.msra.mxu0 0
    %2984 = vmatprep.subr.bf16.mxu0 0
    %2985 = vmatpush1.bf16.xpose.msra.mxu0 0
    %2986 = vmatprep.subr.bf16.mxu0 0
    %2987 = vmatpush1.bf16.xpose.msra.mxu0 0
    %2988 = vmatprep.subr.bf16.mxu0 0
    %2989 = vmatpush1.bf16.xpose.msra.mxu0 0
    %2990 = vmatprep.mubr.bf16.mxu0 0
    %2991 = vmatmul.mubr.bf16.gmra.mrb[0].mxu0 %v2953
    %v2992 = vpop.f32.mrb[0].mxu0
    %v2993 = vadd.f32 0.0, %v2992
    %v2994 = vpop.f32.mrb[0].mxu0
    %v2995 = vpop.f32.mrb[0].mxu0
    %v2996 = vadd.f32 0.0, %v2995
    %v2997 = vpop.f32.mrb[0].mxu0
    %2998 = vdwg.mxu0
    %v2999 = vmul.f32 %v2993, 0.35355338
    %v3000 = vmul.f32 %v2996, 0.35355338
    %v3001 = vadd.f32 %v2999, %v69
    %v3002 = vadd.f32 %v3000, %v70
    %v3003 = vsel %vm2625, %v3001, -inf
    %3004 = vmax.xlane.f32.xlu0 %v3003
    %v3005 = vpop.xlane.xlu0 %3004
    %v3006 = vsel %vm2625, %v3002, -inf
    %3007 = vmax.xlane.f32.xlu0 %v3006
    %v3008 = vpop.xlane.xlu0 %3007
    %v3009 = vsub.f32 %v3001, %v3005
    %v3010 = vsub.f32 %v3002, %v3008
    %v3011 = vmul.f32 %v3009, 1.442695
    %v3012 = vpow.pop %v3011
    %v3013 = vmul.f32 %v3010, 1.442695
    %v3014 = vpow.pop %v3013
    %v3015 = vsel %vm2625, %v3012, 0.0
    %3016 = vadd.xlane.f32.xlu0 %v3015
    %v3017 = vpop.xlane.xlu0 %3016
    %v3018 = vsel %vm2625, %v3014, 0.0
    %3019 = vadd.xlane.f32.xlu0 %v3018
    %v3020 = vpop.xlane.xlu0 %3019
    %v3021 = vrcp.pop %v3017
    %v3022 = vmul.f32 %v3012, %v3021
    %v3023 = vrcp.pop %v3020
    %v3024 = vmul.f32 %v3014, %v3023
    %v3025 = vpack.c.bf16 %v3024, %v3022
    %3026 = vrot.lane.b32.xlu0 %v2572, 72
    %v3027 = vpop.permute.xlu0 %3026
    %v3030 = vsel %vm2625, %v3025, 0
    %3032 = vmatprep.subr.bf16.mxu0 0
    %3033 = vmatpush1.bf16.msra.mxu0 %v3027
    %3034 = vmatprep.subr.bf16.mxu0 0
    %3035 = vmatpush1.bf16.msra.mxu0 0
    %3036 = vmatprep.subr.bf16.mxu0 0
    %3037 = vmatpush1.bf16.msra.mxu0 0
    %3038 = vmatprep.subr.bf16.mxu0 0
    %3039 = vmatpush1.bf16.msra.mxu0 0
    %3040 = vmatprep.subr.bf16.mxu0 0
    %3041 = vmatpush1.bf16.msra.mxu0 0
    %3042 = vmatprep.subr.bf16.mxu0 0
    %3043 = vmatpush1.bf16.msra.mxu0 0
    %3044 = vmatprep.subr.bf16.mxu0 0
    %3045 = vmatpush1.bf16.msra.mxu0 0
    %3046 = vmatprep.subr.bf16.mxu0 0
    %3047 = vmatpush1.bf16.msra.mxu0 0
    %3048 = vmatprep.subr.bf16.mxu0 0
    %3049 = vmatpush1.bf16.msra.mxu0 0
    %3050 = vmatprep.subr.bf16.mxu0 0
    %3051 = vmatpush1.bf16.msra.mxu0 0
    %3052 = vmatprep.subr.bf16.mxu0 0
    %3053 = vmatpush1.bf16.msra.mxu0 0
    %3054 = vmatprep.subr.bf16.mxu0 0
    %3055 = vmatpush1.bf16.msra.mxu0 0
    %3056 = vmatprep.subr.bf16.mxu0 0
    %3057 = vmatpush1.bf16.msra.mxu0 0
    %3058 = vmatprep.subr.bf16.mxu0 0
    %3059 = vmatpush1.bf16.msra.mxu0 0
    %3060 = vmatprep.subr.bf16.mxu0 0
    %3061 = vmatpush1.bf16.msra.mxu0 0
    %3062 = vmatprep.subr.bf16.mxu0 0
    %3063 = vmatpush1.bf16.msra.mxu0 0
    %3064 = vmatprep.mubr.bf16.mxu0 0
    %3065 = vmatmul.mubr.bf16.gmra.mrb[0].mxu0 %v3030
    %v3066 = vpop.f32.mrb[0].mxu0
    %v3067 = vadd.f32 0.0, %v3066
    %v3068 = vpop.f32.mrb[0].mxu0
    %v3069 = vpop.f32.mrb[0].mxu0
    %v3070 = vadd.f32 0.0, %v3069
    %v3071 = vpop.f32.mrb[0].mxu0
    %3072 = vdwg.mxu0
    %3075 = vrot.lane.b32.xlu0 %v2817, 8
    %v3076 = vpop.permute.xlu0 %3075
    %3077 = vrot.lane.b32.xlu0 %v2820, 8
    %v3078 = vpop.permute.xlu0 %3077
    %3083 = vrot.lane.b32.xlu0 %v2942, 16
    %v3084 = vpop.permute.xlu0 %3083
    %3085 = vrot.lane.b32.xlu0 %v2945, 16
    %v3086 = vpop.permute.xlu0 %3085
    %3091 = vrot.lane.b32.xlu0 %v3067, 24
    %v3092 = vpop.permute.xlu0 %3091
    %3093 = vrot.lane.b32.xlu0 %v3070, 24
    %v3094 = vpop.permute.xlu0 %3093
    %v3097 = vsel %vm2573, %v2691, %v3076
    %v3098 = vsel %vm2573, %v2694, %v3078
    %v3099 = vsel %vm2625, %v3097, %v3084
    %v3100 = vsel %vm2625, %v3098, %v3086
    %vm3101 = vcmask 195584
    %v3102 = vsel %vm3101, %v3099, %v3092
    %v3103 = vsel %vm3101, %v3100, %v3094
    %v3104 = vpack.c.bf16 %v3103, %v3102
    %v3105 = vpack.c.bf16 %v2408, %v2405
    %v3106 = vpack.c.bf16 %v2416, %v2413
    %v3107 = vpack.c.bf16 %v2424, %v2421
    %v3108 = vpack.c.bf16 %v2432, %v2429
    %v3109 = vpack.c.bf16 %v2440, %v2437
    %v3110 = vpack.c.bf16 %v2448, %v2445
    %v3111 = vpack.c.bf16 %v2453, %v2453
    %v3113 = vsel %vm2475, %v3104, 0
    %3115 = vmatprep.subr.bf16.mxu0 0
    %3116 = vmatpush1.bf16.msra.mxu0 %v2471
    %3117 = vmatprep.subr.bf16.mxu0 0
    %3118 = vmatpush1.bf16.msra.mxu0 %v2472
    %3119 = vmatprep.subr.bf16.mxu0 0
    %3120 = vmatpush1.bf16.msra.mxu0 0
    %3121 = vmatprep.subr.bf16.mxu0 0
    %3122 = vmatpush1.bf16.msra.mxu0 0
    %3123 = vmatprep.subr.bf16.mxu0 0
    %3124 = vmatpush1.bf16.msra.mxu0 0
    %3125 = vmatprep.subr.bf16.mxu0 0
    %3126 = vmatpush1.bf16.msra.mxu0 0
    %3127 = vmatprep.subr.bf16.mxu0 0
    %3128 = vmatpush1.bf16.msra.mxu0 0
    %3129 = vmatprep.subr.bf16.mxu0 0
    %3130 = vmatpush1.bf16.msra.mxu0 0
    %3131 = vmatprep.subr.bf16.mxu0 0
    %3132 = vmatpush1.bf16.msra.mxu0 0
    %3133 = vmatprep.subr.bf16.mxu0 0
    %3134 = vmatpush1.bf16.msra.mxu0 0
    %3135 = vmatprep.subr.bf16.mxu0 0
    %3136 = vmatpush1.bf16.msra.mxu0 0
    %3137 = vmatprep.subr.bf16.mxu0 0
    %3138 = vmatpush1.bf16.msra.mxu0 0
    %3139 = vmatprep.subr.bf16.mxu0 0
    %3140 = vmatpush1.bf16.msra.mxu0 0
    %3141 = vmatprep.subr.bf16.mxu0 0
    %3142 = vmatpush1.bf16.msra.mxu0 0
    %3143 = vmatprep.subr.bf16.mxu0 0
    %3144 = vmatpush1.bf16.msra.mxu0 0
    %3145 = vmatprep.subr.bf16.mxu0 0
    %3146 = vmatpush1.bf16.msra.mxu0 0
    %3147 = vmatprep.mubr.bf16.mxu0 0
    %3148 = vmatmul.mubr.bf16.gmra.mrb[0].mxu0 %v3113
    %v3149 = vpop.f32.mrb[0].mxu0
    %v3150 = vadd.f32 %v2462, %v3149
    %v3151 = vpop.f32.mrb[0].mxu0
    %v3152 = vpop.f32.mrb[0].mxu0
    %v3153 = vadd.f32 %v2462, %v3152
    %v3154 = vpop.f32.mrb[0].mxu0
    %3155 = vdwg.mxu0
    %v3157 = vsel %vm2475, %v3105, 0
    %v3160 = vsel %vm2475, %v3106, 0
    %v3163 = vsel %vm2475, %v3107, 0
    %v3166 = vsel %vm2475, %v3108, 0
    %v3169 = vsel %vm2475, %v3109, 0
    %v3172 = vsel %vm2475, %v3110, 0
    %v3175 = vsel %vm2475, %v3111, 0
    %3177 = vmatprep.subr.bf16.mxu0 0
    %3178 = vmatpush1.bf16.msra.mxu0 %v2521
    %3179 = vmatprep.subr.bf16.mxu0 0
    %3180 = vmatpush1.bf16.msra.mxu0 %v2523
    %3181 = vmatprep.subr.bf16.mxu0 0
    %3182 = vmatpush1.bf16.msra.mxu0 0
    %3183 = vmatprep.subr.bf16.mxu0 0
    %3184 = vmatpush1.bf16.msra.mxu0 0
    %3185 = vmatprep.subr.bf16.mxu0 0
    %3186 = vmatpush1.bf16.msra.mxu0 0
    %3187 = vmatprep.subr.bf16.mxu0 0
    %3188 = vmatpush1.bf16.msra.mxu0 0
    %3189 = vmatprep.subr.bf16.mxu0 0
    %3190 = vmatpush1.bf16.msra.mxu0 0
    %3191 = vmatprep.subr.bf16.mxu0 0
    %3192 = vmatpush1.bf16.msra.mxu0 0
    %3193 = vmatprep.subr.bf16.mxu0 0
    %3194 = vmatpush1.bf16.msra.mxu0 0
    %3195 = vmatprep.subr.bf16.mxu0 0
    %3196 = vmatpush1.bf16.msra.mxu0 0
    %3197 = vmatprep.subr.bf16.mxu0 0
    %3198 = vmatpush1.bf16.msra.mxu0 0
    %3199 = vmatprep.subr.bf16.mxu0 0
    %3200 = vmatpush1.bf16.msra.mxu0 0
    %3201 = vmatprep.subr.bf16.mxu0 0
    %3202 = vmatpush1.bf16.msra.mxu0 0
    %3203 = vmatprep.subr.bf16.mxu0 0
    %3204 = vmatpush1.bf16.msra.mxu0 0
    %3205 = vmatprep.subr.bf16.mxu0 0
    %3206 = vmatpush1.bf16.msra.mxu0 0
    %3207 = vmatprep.subr.bf16.mxu0 0
    %3208 = vmatpush1.bf16.msra.mxu0 0
    %3209 = vmatprep.mubr.bf16.mxu0 0
    %3210 = vmatmul.mubr.bf16.gmra.mrb[0].mxu0 %v3157
    %v3211 = vpop.f32.mrb[0].mxu0
    %v3212 = vadd.f32 %v2528, %v3211
    %v3213 = vpop.f32.mrb[0].mxu0
    %v3214 = vpop.f32.mrb[0].mxu0
    %v3215 = vadd.f32 %v2528, %v3214
    %v3216 = vpop.f32.mrb[0].mxu0
    %3217 = vmatprep.mubr.bf16.mxu0 0
    %3218 = vmatmul.mubr.bf16.gmra.mrb[0].mxu0 %v3160
    %v3219 = vpop.f32.mrb[0].mxu0
    %v3220 = vadd.f32 %v2528, %v3219
    %v3221 = vpop.f32.mrb[0].mxu0
    %v3222 = vpop.f32.mrb[0].mxu0
    %v3223 = vadd.f32 %v2528, %v3222
    %v3224 = vpop.f32.mrb[0].mxu0
    %3225 = vmatprep.mubr.bf16.mxu0 0
    %3226 = vmatmul.mubr.bf16.gmra.mrb[0].mxu0 %v3163
    %v3227 = vpop.f32.mrb[0].mxu0
    %v3228 = vadd.f32 %v2528, %v3227
    %v3229 = vpop.f32.mrb[0].mxu0
    %v3230 = vpop.f32.mrb[0].mxu0
    %v3231 = vadd.f32 %v2528, %v3230
    %v3232 = vpop.f32.mrb[0].mxu0
    %3233 = vmatprep.mubr.bf16.mxu0 0
    %3234 = vmatmul.mubr.bf16.gmra.mrb[0].mxu0 %v3166
    %v3235 = vpop.f32.mrb[0].mxu0
    %v3236 = vadd.f32 %v2528, %v3235
    %v3237 = vpop.f32.mrb[0].mxu0
    %v3238 = vpop.f32.mrb[0].mxu0
    %v3239 = vadd.f32 %v2528, %v3238
    %v3240 = vpop.f32.mrb[0].mxu0
    %3241 = vmatprep.mubr.bf16.mxu0 0
    %3242 = vmatmul.mubr.bf16.gmra.mrb[0].mxu0 %v3169
    %v3243 = vpop.f32.mrb[0].mxu0
    %v3244 = vadd.f32 %v2528, %v3243
    %v3245 = vpop.f32.mrb[0].mxu0
    %v3246 = vpop.f32.mrb[0].mxu0
    %v3247 = vadd.f32 %v2528, %v3246
    %v3248 = vpop.f32.mrb[0].mxu0
    %3249 = vmatprep.mubr.bf16.mxu0 0
    %3250 = vmatmul.mubr.bf16.gmra.mrb[0].mxu0 %v3172
    %v3251 = vpop.f32.mrb[0].mxu0
    %v3252 = vadd.f32 %v2528, %v3251
    %v3253 = vpop.f32.mrb[0].mxu0
    %v3254 = vpop.f32.mrb[0].mxu0
    %v3255 = vadd.f32 %v2528, %v3254
    %v3256 = vpop.f32.mrb[0].mxu0
    %3257 = vmatprep.mubr.bf16.mxu0 0
    %3258 = vmatmul.mubr.bf16.gmra.mrb[0].mxu0 %v3175
    %v3259 = vpop.f32.mrb[0].mxu0
    %v3260 = vadd.f32 %v2528, %v3259
    %v3261 = vpop.f32.mrb[0].mxu0
    %v3262 = vpop.f32.mrb[0].mxu0
    %v3263 = vpop.f32.mrb[0].mxu0
    %3264 = vdwg.mxu0
    %v3265 = vpack.c.bf16 %v3153, %v3150
    %v3266 = vpack.c.bf16 %v3215, %v3212
    %v3267 = vpack.c.bf16 %v3223, %v3220
    %v3268 = vpack.c.bf16 %v3231, %v3228
    %v3269 = vpack.c.bf16 %v3239, %v3236
    %v3270 = vpack.c.bf16 %v3247, %v3244
    %v3271 = vpack.c.bf16 %v3255, %v3252
    %v3272 = vpack.c.bf16 %v3260, %v3260
    %v3274 = vsel %vm2573, %v3265, 0
    %v3277 = vsel %vm2573, %v3266, 0
    %v3280 = vsel %vm2573, %v3267, 0
    %v3283 = vsel %vm2573, %v3268, 0
    %v3286 = vsel %vm2573, %v3269, 0
    %v3289 = vsel %vm2573, %v3270, 0
    %v3292 = vsel %vm2573, %v3271, 0
    %v3295 = vsel %vm2573, %v3272, 0
    %3297 = vmatprep.subr.bf16.mxu0 0
    %3298 = vmatpush1.bf16.xpose.msra.mxu0 %v3277
    %3299 = vmatprep.subr.bf16.mxu0 0
    %3300 = vmatpush1.bf16.xpose.msra.mxu0 %v3280
    %3301 = vmatprep.subr.bf16.mxu0 0
    %3302 = vmatpush1.bf16.xpose.msra.mxu0 %v3283
    %3303 = vmatprep.subr.bf16.mxu0 0
    %3304 = vmatpush1.bf16.xpose.msra.mxu0 %v3286
    %3305 = vmatprep.subr.bf16.mxu0 0
    %3306 = vmatpush1.bf16.xpose.msra.mxu0 %v3289
    %3307 = vmatprep.subr.bf16.mxu0 0
    %3308 = vmatpush1.bf16.xpose.msra.mxu0 %v3292
    %3309 = vmatprep.subr.bf16.mxu0 0
    %3310 = vmatpush1.bf16.xpose.msra.mxu0 %v3295
    %3311 = vmatprep.subr.bf16.mxu0 0
    %3312 = vmatpush1.bf16.xpose.msra.mxu0 0
    %3313 = vmatprep.subr.bf16.mxu0 0
    %3314 = vmatpush1.bf16.xpose.msra.mxu0 0
    %3315 = vmatprep.subr.bf16.mxu0 0
    %3316 = vmatpush1.bf16.xpose.msra.mxu0 0
    %3317 = vmatprep.subr.bf16.mxu0 0
    %3318 = vmatpush1.bf16.xpose.msra.mxu0 0
    %3319 = vmatprep.subr.bf16.mxu0 0
    %3320 = vmatpush1.bf16.xpose.msra.mxu0 0
    %3321 = vmatprep.subr.bf16.mxu0 0
    %3322 = vmatpush1.bf16.xpose.msra.mxu0 0
    %3323 = vmatprep.subr.bf16.mxu0 0
    %3324 = vmatpush1.bf16.xpose.msra.mxu0 0
    %3325 = vmatprep.subr.bf16.mxu0 0
    %3326 = vmatpush1.bf16.xpose.msra.mxu0 0
    %3327 = vmatprep.subr.bf16.mxu0 0
    %3328 = vmatpush1.bf16.xpose.msra.mxu0 0
    %3329 = vmatprep.mubr.bf16.mxu0 0
    %3330 = vmatmul.mubr.bf16.gmra.mrb[0].mxu0 %v3274
    %v3331 = vpop.f32.mrb[0].mxu0
    %v3332 = vadd.f32 0.0, %v3331
    %v3333 = vpop.f32.mrb[0].mxu0
    %v3334 = vpop.f32.mrb[0].mxu0
    %v3335 = vadd.f32 0.0, %v3334
    %v3336 = vpop.f32.mrb[0].mxu0
    %3337 = vdwg.mxu0
    %v3338 = vmul.f32 %v3332, 0.35355338
    %v3339 = vmul.f32 %v3335, 0.35355338
    %v3340 = vadd.f32 %v3338, %v71
    %v3341 = vadd.f32 %v3339, %v72
    %vm3342 = vcmask 801792
    %v3343 = vsel %vm3342, %v3340, -inf
    %3344 = vmax.xlane.f32.xlu0 %v3343
    %v3345 = vpop.xlane.xlu0 %3344
    %v3346 = vsel %vm3342, %v3341, -inf
    %3347 = vmax.xlane.f32.xlu0 %v3346
    %v3348 = vpop.xlane.xlu0 %3347
    %v3349 = vsub.f32 %v3340, %v3345
    %v3350 = vsub.f32 %v3341, %v3348
    %v3351 = vmul.f32 %v3349, 1.442695
    %v3352 = vpow.pop %v3351
    %v3353 = vmul.f32 %v3350, 1.442695
    %v3354 = vpow.pop %v3353
    %v3355 = vsel %vm3342, %v3352, 0.0
    %3356 = vadd.xlane.f32.xlu0 %v3355
    %v3357 = vpop.xlane.xlu0 %3356
    %v3358 = vsel %vm3342, %v3354, 0.0
    %3359 = vadd.xlane.f32.xlu0 %v3358
    %v3360 = vpop.xlane.xlu0 %3359
    %v3361 = vrcp.pop %v3357
    %v3362 = vmul.f32 %v3352, %v3361
    %v3363 = vrcp.pop %v3360
    %v3364 = vmul.f32 %v3354, %v3363
    %v3365 = vpack.c.bf16 %v3364, %v3362
    %3373 = vrot.lane.b32.xlu0 %v3266, 96
    %v3374 = vpop.permute.xlu0 %3373
    %3375 = vrot.lane.b32.xlu0 %v3267, 96
    %v3376 = vpop.permute.xlu0 %3375
    %3377 = vrot.lane.b32.xlu0 %v3268, 96
    %v3378 = vpop.permute.xlu0 %3377
    %3379 = vrot.lane.b32.xlu0 %v3269, 96
    %v3380 = vpop.permute.xlu0 %3379
    %3381 = vrot.lane.b32.xlu0 %v3270, 96
    %v3382 = vpop.permute.xlu0 %3381
    %3383 = vrot.lane.b32.xlu0 %v3271, 96
    %v3384 = vpop.permute.xlu0 %3383
    %3385 = vrot.lane.b32.xlu0 %v3272, 96
    %v3386 = vpop.permute.xlu0 %3385
    %v3394 = vsel %vm3342, %v3365, 0
    %vm3396 = vcmask 1040384
    %v3398 = vsel %vm3396, %v3386, 0
    %3400 = vmatprep.subr.bf16.mxu0 0
    %3401 = vmatpush1.bf16.msra.mxu0 %v3374
    %3402 = vmatprep.subr.bf16.mxu0 0
    %3403 = vmatpush1.bf16.msra.mxu0 %v3376
    %3404 = vmatprep.subr.bf16.mxu0 0
    %3405 = vmatpush1.bf16.msra.mxu0 %v3378
    %3406 = vmatprep.subr.bf16.mxu0 0
    %3407 = vmatpush1.bf16.msra.mxu0 %v3380
    %3408 = vmatprep.subr.bf16.mxu0 0
    %3409 = vmatpush1.bf16.msra.mxu0 %v3382
    %3410 = vmatprep.subr.bf16.mxu0 0
    %3411 = vmatpush1.bf16.msra.mxu0 %v3384
    %3412 = vmatprep.subr.bf16.mxu0 0
    %3413 = vmatpush1.bf16.msra.mxu0 %v3398
    %3414 = vmatprep.subr.bf16.mxu0 0
    %3415 = vmatpush1.bf16.msra.mxu0 0
    %3416 = vmatprep.subr.bf16.mxu0 0
    %3417 = vmatpush1.bf16.msra.mxu0 0
    %3418 = vmatprep.subr.bf16.mxu0 0
    %3419 = vmatpush1.bf16.msra.mxu0 0
    %3420 = vmatprep.subr.bf16.mxu0 0
    %3421 = vmatpush1.bf16.msra.mxu0 0
    %3422 = vmatprep.subr.bf16.mxu0 0
    %3423 = vmatpush1.bf16.msra.mxu0 0
    %3424 = vmatprep.subr.bf16.mxu0 0
    %3425 = vmatpush1.bf16.msra.mxu0 0
    %3426 = vmatprep.subr.bf16.mxu0 0
    %3427 = vmatpush1.bf16.msra.mxu0 0
    %3428 = vmatprep.subr.bf16.mxu0 0
    %3429 = vmatpush1.bf16.msra.mxu0 0
    %3430 = vmatprep.subr.bf16.mxu0 0
    %3431 = vmatpush1.bf16.msra.mxu0 0
    %3432 = vmatprep.mubr.bf16.mxu0 0
    %3433 = vmatmul.mubr.bf16.gmra.mrb[0].mxu0 %v3394
    %v3434 = vpop.f32.mrb[0].mxu0
    %v3435 = vadd.f32 0.0, %v3434
    %v3436 = vpop.f32.mrb[0].mxu0
    %v3437 = vpop.f32.mrb[0].mxu0
    %v3438 = vadd.f32 0.0, %v3437
    %v3439 = vpop.f32.mrb[0].mxu0
    %3440 = vdwg.mxu0
    %3442 = vrot.lane.b32.xlu0 %v3265, 120
    %v3443 = vpop.permute.xlu0 %3442
    %3444 = vrot.lane.b32.xlu0 %v3266, 120
    %v3445 = vpop.permute.xlu0 %3444
    %3446 = vrot.lane.b32.xlu0 %v3267, 120
    %v3447 = vpop.permute.xlu0 %3446
    %3448 = vrot.lane.b32.xlu0 %v3268, 120
    %v3449 = vpop.permute.xlu0 %3448
    %3450 = vrot.lane.b32.xlu0 %v3269, 120
    %v3451 = vpop.permute.xlu0 %3450
    %3452 = vrot.lane.b32.xlu0 %v3270, 120
    %v3453 = vpop.permute.xlu0 %3452
    %3454 = vrot.lane.b32.xlu0 %v3271, 120
    %v3455 = vpop.permute.xlu0 %3454
    %3456 = vrot.lane.b32.xlu0 %v3272, 120
    %v3457 = vpop.permute.xlu0 %3456
    %v3459 = vsel %vm2573, %v3443, 0
    %v3462 = vsel %vm2573, %v3445, 0
    %v3465 = vsel %vm2573, %v3447, 0
    %v3468 = vsel %vm2573, %v3449, 0
    %v3471 = vsel %vm2573, %v3451, 0
    %v3474 = vsel %vm2573, %v3453, 0
    %v3477 = vsel %vm2573, %v3455, 0
    %v3480 = vsel %vm2573, %v3457, 0
    %3482 = vmatprep.subr.bf16.mxu0 0
    %3483 = vmatpush1.bf16.xpose.msra.mxu0 %v3462
    %3484 = vmatprep.subr.bf16.mxu0 0
    %3485 = vmatpush1.bf16.xpose.msra.mxu0 %v3465
    %3486 = vmatprep.subr.bf16.mxu0 0
    %3487 = vmatpush1.bf16.xpose.msra.mxu0 %v3468
    %3488 = vmatprep.subr.bf16.mxu0 0
    %3489 = vmatpush1.bf16.xpose.msra.mxu0 %v3471
    %3490 = vmatprep.subr.bf16.mxu0 0
    %3491 = vmatpush1.bf16.xpose.msra.mxu0 %v3474
    %3492 = vmatprep.subr.bf16.mxu0 0
    %3493 = vmatpush1.bf16.xpose.msra.mxu0 %v3477
    %3494 = vmatprep.subr.bf16.mxu0 0
    %3495 = vmatpush1.bf16.xpose.msra.mxu0 %v3480
    %3496 = vmatprep.subr.bf16.mxu0 0
    %3497 = vmatpush1.bf16.xpose.msra.mxu0 0
    %3498 = vmatprep.subr.bf16.mxu0 0
    %3499 = vmatpush1.bf16.xpose.msra.mxu0 0
    %3500 = vmatprep.subr.bf16.mxu0 0
    %3501 = vmatpush1.bf16.xpose.msra.mxu0 0
    %3502 = vmatprep.subr.bf16.mxu0 0
    %3503 = vmatpush1.bf16.xpose.msra.mxu0 0
    %3504 = vmatprep.subr.bf16.mxu0 0
    %3505 = vmatpush1.bf16.xpose.msra.mxu0 0
    %3506 = vmatprep.subr.bf16.mxu0 0
    %3507 = vmatpush1.bf16.xpose.msra.mxu0 0
    %3508 = vmatprep.subr.bf16.mxu0 0
    %3509 = vmatpush1.bf16.xpose.msra.mxu0 0
    %3510 = vmatprep.subr.bf16.mxu0 0
    %3511 = vmatpush1.bf16.xpose.msra.mxu0 0
    %3512 = vmatprep.subr.bf16.mxu0 0
    %3513 = vmatpush1.bf16.xpose.msra.mxu0 0
    %3514 = vmatprep.mubr.bf16.mxu0 0
    %3515 = vmatmul.mubr.bf16.gmra.mrb[0].mxu0 %v3459
    %v3516 = vpop.f32.mrb[0].mxu0
    %v3517 = vadd.f32 0.0, %v3516
    %v3518 = vpop.f32.mrb[0].mxu0
    %v3519 = vpop.f32.mrb[0].mxu0
    %v3520 = vadd.f32 0.0, %v3519
    %v3521 = vpop.f32.mrb[0].mxu0
    %3522 = vdwg.mxu0
    %v3523 = vmul.f32 %v3517, 0.35355338
    %v3524 = vmul.f32 %v3520, 0.35355338
    %v3525 = vadd.f32 %v3523, %v71
    %v3526 = vadd.f32 %v3524, %v72
    %v3527 = vsel %vm3342, %v3525, -inf
    %3528 = vmax.xlane.f32.xlu0 %v3527
    %v3529 = vpop.xlane.xlu0 %3528
    %v3530 = vsel %vm3342, %v3526, -inf
    %3531 = vmax.xlane.f32.xlu0 %v3530
    %v3532 = vpop.xlane.xlu0 %3531
    %v3533 = vsub.f32 %v3525, %v3529
    %v3534 = vsub.f32 %v3526, %v3532
    %v3535 = vmul.f32 %v3533, 1.442695
    %v3536 = vpow.pop %v3535
    %v3537 = vmul.f32 %v3534, 1.442695
    %v3538 = vpow.pop %v3537
    %v3539 = vsel %vm3342, %v3536, 0.0
    %3540 = vadd.xlane.f32.xlu0 %v3539
    %v3541 = vpop.xlane.xlu0 %3540
    %v3542 = vsel %vm3342, %v3538, 0.0
    %3543 = vadd.xlane.f32.xlu0 %v3542
    %v3544 = vpop.xlane.xlu0 %3543
    %v3545 = vrcp.pop %v3541
    %v3546 = vmul.f32 %v3536, %v3545
    %v3547 = vrcp.pop %v3544
    %v3548 = vmul.f32 %v3538, %v3547
    %v3549 = vpack.c.bf16 %v3548, %v3546
    %3550 = vrot.lane.b32.xlu0 %v3266, 88
    %v3551 = vpop.permute.xlu0 %3550
    %3552 = vrot.lane.b32.xlu0 %v3267, 88
    %v3553 = vpop.permute.xlu0 %3552
    %3554 = vrot.lane.b32.xlu0 %v3268, 88
    %v3555 = vpop.permute.xlu0 %3554
    %3556 = vrot.lane.b32.xlu0 %v3269, 88
    %v3557 = vpop.permute.xlu0 %3556
    %3558 = vrot.lane.b32.xlu0 %v3270, 88
    %v3559 = vpop.permute.xlu0 %3558
    %3560 = vrot.lane.b32.xlu0 %v3271, 88
    %v3561 = vpop.permute.xlu0 %3560
    %3562 = vrot.lane.b32.xlu0 %v3272, 88
    %v3563 = vpop.permute.xlu0 %3562
    %v3571 = vsel %vm3342, %v3549, 0
    %v3574 = vsel %vm3396, %v3563, 0
    %3576 = vmatprep.subr.bf16.mxu0 0
    %3577 = vmatpush1.bf16.msra.mxu0 %v3551
    %3578 = vmatprep.subr.bf16.mxu0 0
    %3579 = vmatpush1.bf16.msra.mxu0 %v3553
    %3580 = vmatprep.subr.bf16.mxu0 0
    %3581 = vmatpush1.bf16.msra.mxu0 %v3555
    %3582 = vmatprep.subr.bf16.mxu0 0
    %3583 = vmatpush1.bf16.msra.mxu0 %v3557
    %3584 = vmatprep.subr.bf16.mxu0 0
    %3585 = vmatpush1.bf16.msra.mxu0 %v3559
    %3586 = vmatprep.subr.bf16.mxu0 0
    %3587 = vmatpush1.bf16.msra.mxu0 %v3561
    %3588 = vmatprep.subr.bf16.mxu0 0
    %3589 = vmatpush1.bf16.msra.mxu0 %v3574
    %3590 = vmatprep.subr.bf16.mxu0 0
    %3591 = vmatpush1.bf16.msra.mxu0 0
    %3592 = vmatprep.subr.bf16.mxu0 0
    %3593 = vmatpush1.bf16.msra.mxu0 0
    %3594 = vmatprep.subr.bf16.mxu0 0
    %3595 = vmatpush1.bf16.msra.mxu0 0
    %3596 = vmatprep.subr.bf16.mxu0 0
    %3597 = vmatpush1.bf16.msra.mxu0 0
    %3598 = vmatprep.subr.bf16.mxu0 0
    %3599 = vmatpush1.bf16.msra.mxu0 0
    %3600 = vmatprep.subr.bf16.mxu0 0
    %3601 = vmatpush1.bf16.msra.mxu0 0
    %3602 = vmatprep.subr.bf16.mxu0 0
    %3603 = vmatpush1.bf16.msra.mxu0 0
    %3604 = vmatprep.subr.bf16.mxu0 0
    %3605 = vmatpush1.bf16.msra.mxu0 0
    %3606 = vmatprep.subr.bf16.mxu0 0
    %3607 = vmatpush1.bf16.msra.mxu0 0
    %3608 = vmatprep.mubr.bf16.mxu0 0
    %3609 = vmatmul.mubr.bf16.gmra.mrb[0].mxu0 %v3571
    %v3610 = vpop.f32.mrb[0].mxu0
    %v3611 = vadd.f32 0.0, %v3610
    %v3612 = vpop.f32.mrb[0].mxu0
    %v3613 = vpop.f32.mrb[0].mxu0
    %v3614 = vadd.f32 0.0, %v3613
    %v3615 = vpop.f32.mrb[0].mxu0
    %3616 = vdwg.mxu0
    %3617 = vrot.lane.b32.xlu0 %v3265, 112
    %v3618 = vpop.permute.xlu0 %3617
    %3619 = vrot.lane.b32.xlu0 %v3266, 112
    %v3620 = vpop.permute.xlu0 %3619
    %3621 = vrot.lane.b32.xlu0 %v3267, 112
    %v3622 = vpop.permute.xlu0 %3621
    %3623 = vrot.lane.b32.xlu0 %v3268, 112
    %v3624 = vpop.permute.xlu0 %3623
    %3625 = vrot.lane.b32.xlu0 %v3269, 112
    %v3626 = vpop.permute.xlu0 %3625
    %3627 = vrot.lane.b32.xlu0 %v3270, 112
    %v3628 = vpop.permute.xlu0 %3627
    %3629 = vrot.lane.b32.xlu0 %v3271, 112
    %v3630 = vpop.permute.xlu0 %3629
    %3631 = vrot.lane.b32.xlu0 %v3272, 112
    %v3632 = vpop.permute.xlu0 %3631
    %v3634 = vsel %vm2573, %v3618, 0
    %v3637 = vsel %vm2573, %v3620, 0
    %v3640 = vsel %vm2573, %v3622, 0
    %v3643 = vsel %vm2573, %v3624, 0
    %v3646 = vsel %vm2573, %v3626, 0
    %v3649 = vsel %vm2573, %v3628, 0
    %v3652 = vsel %vm2573, %v3630, 0
    %v3655 = vsel %vm2573, %v3632, 0
    %3657 = vmatprep.subr.bf16.mxu0 0
    %3658 = vmatpush1.bf16.xpose.msra.mxu0 %v3637
    %3659 = vmatprep.subr.bf16.mxu0 0
    %3660 = vmatpush1.bf16.xpose.msra.mxu0 %v3640
    %3661 = vmatprep.subr.bf16.mxu0 0
    %3662 = vmatpush1.bf16.xpose.msra.mxu0 %v3643
    %3663 = vmatprep.subr.bf16.mxu0 0
    %3664 = vmatpush1.bf16.xpose.msra.mxu0 %v3646
    %3665 = vmatprep.subr.bf16.mxu0 0
    %3666 = vmatpush1.bf16.xpose.msra.mxu0 %v3649
    %3667 = vmatprep.subr.bf16.mxu0 0
    %3668 = vmatpush1.bf16.xpose.msra.mxu0 %v3652
    %3669 = vmatprep.subr.bf16.mxu0 0
    %3670 = vmatpush1.bf16.xpose.msra.mxu0 %v3655
    %3671 = vmatprep.subr.bf16.mxu0 0
    %3672 = vmatpush1.bf16.xpose.msra.mxu0 0
    %3673 = vmatprep.subr.bf16.mxu0 0
    %3674 = vmatpush1.bf16.xpose.msra.mxu0 0
    %3675 = vmatprep.subr.bf16.mxu0 0
    %3676 = vmatpush1.bf16.xpose.msra.mxu0 0
    %3677 = vmatprep.subr.bf16.mxu0 0
    %3678 = vmatpush1.bf16.xpose.msra.mxu0 0
    %3679 = vmatprep.subr.bf16.mxu0 0
    %3680 = vmatpush1.bf16.xpose.msra.mxu0 0
    %3681 = vmatprep.subr.bf16.mxu0 0
    %3682 = vmatpush1.bf16.xpose.msra.mxu0 0
    %3683 = vmatprep.subr.bf16.mxu0 0
    %3684 = vmatpush1.bf16.xpose.msra.mxu0 0
    %3685 = vmatprep.subr.bf16.mxu0 0
    %3686 = vmatpush1.bf16.xpose.msra.mxu0 0
    %3687 = vmatprep.subr.bf16.mxu0 0
    %3688 = vmatpush1.bf16.xpose.msra.mxu0 0
    %3689 = vmatprep.mubr.bf16.mxu0 0
    %3690 = vmatmul.mubr.bf16.gmra.mrb[0].mxu0 %v3634
    %v3691 = vpop.f32.mrb[0].mxu0
    %v3692 = vadd.f32 0.0, %v3691
    %v3693 = vpop.f32.mrb[0].mxu0
    %v3694 = vpop.f32.mrb[0].mxu0
    %v3695 = vadd.f32 0.0, %v3694
    %v3696 = vpop.f32.mrb[0].mxu0
    %3697 = vdwg.mxu0
    %v3698 = vmul.f32 %v3692, 0.35355338
    %v3699 = vmul.f32 %v3695, 0.35355338
    %v3700 = vadd.f32 %v3698, %v71
    %v3701 = vadd.f32 %v3699, %v72
    %v3702 = vsel %vm3342, %v3700, -inf
    %3703 = vmax.xlane.f32.xlu0 %v3702
    %v3704 = vpop.xlane.xlu0 %3703
    %v3705 = vsel %vm3342, %v3701, -inf
    %3706 = vmax.xlane.f32.xlu0 %v3705
    %v3707 = vpop.xlane.xlu0 %3706
    %v3708 = vsub.f32 %v3700, %v3704
    %v3709 = vsub.f32 %v3701, %v3707
    %v3710 = vmul.f32 %v3708, 1.442695
    %v3711 = vpow.pop %v3710
    %v3712 = vmul.f32 %v3709, 1.442695
    %v3713 = vpow.pop %v3712
    %v3714 = vsel %vm3342, %v3711, 0.0
    %3715 = vadd.xlane.f32.xlu0 %v3714
    %v3716 = vpop.xlane.xlu0 %3715
    %v3717 = vsel %vm3342, %v3713, 0.0
    %3718 = vadd.xlane.f32.xlu0 %v3717
    %v3719 = vpop.xlane.xlu0 %3718
    %v3720 = vrcp.pop %v3716
    %v3721 = vmul.f32 %v3711, %v3720
    %v3722 = vrcp.pop %v3719
    %v3723 = vmul.f32 %v3713, %v3722
    %v3724 = vpack.c.bf16 %v3723, %v3721
    %3725 = vrot.lane.b32.xlu0 %v3266, 80
    %v3726 = vpop.permute.xlu0 %3725
    %3727 = vrot.lane.b32.xlu0 %v3267, 80
    %v3728 = vpop.permute.xlu0 %3727
    %3729 = vrot.lane.b32.xlu0 %v3268, 80
    %v3730 = vpop.permute.xlu0 %3729
    %3731 = vrot.lane.b32.xlu0 %v3269, 80
    %v3732 = vpop.permute.xlu0 %3731
    %3733 = vrot.lane.b32.xlu0 %v3270, 80
    %v3734 = vpop.permute.xlu0 %3733
    %3735 = vrot.lane.b32.xlu0 %v3271, 80
    %v3736 = vpop.permute.xlu0 %3735
    %3737 = vrot.lane.b32.xlu0 %v3272, 80
    %v3738 = vpop.permute.xlu0 %3737
    %v3746 = vsel %vm3342, %v3724, 0
    %v3749 = vsel %vm3396, %v3738, 0
    %3751 = vmatprep.subr.bf16.mxu0 0
    %3752 = vmatpush1.bf16.msra.mxu0 %v3726
    %3753 = vmatprep.subr.bf16.mxu0 0
    %3754 = vmatpush1.bf16.msra.mxu0 %v3728
    %3755 = vmatprep.subr.bf16.mxu0 0
    %3756 = vmatpush1.bf16.msra.mxu0 %v3730
    %3757 = vmatprep.subr.bf16.mxu0 0
    %3758 = vmatpush1.bf16.msra.mxu0 %v3732
    %3759 = vmatprep.subr.bf16.mxu0 0
    %3760 = vmatpush1.bf16.msra.mxu0 %v3734
    %3761 = vmatprep.subr.bf16.mxu0 0
    %3762 = vmatpush1.bf16.msra.mxu0 %v3736
    %3763 = vmatprep.subr.bf16.mxu0 0
    %3764 = vmatpush1.bf16.msra.mxu0 %v3749
    %3765 = vmatprep.subr.bf16.mxu0 0
    %3766 = vmatpush1.bf16.msra.mxu0 0
    %3767 = vmatprep.subr.bf16.mxu0 0
    %3768 = vmatpush1.bf16.msra.mxu0 0
    %3769 = vmatprep.subr.bf16.mxu0 0
    %3770 = vmatpush1.bf16.msra.mxu0 0
    %3771 = vmatprep.subr.bf16.mxu0 0
    %3772 = vmatpush1.bf16.msra.mxu0 0
    %3773 = vmatprep.subr.bf16.mxu0 0
    %3774 = vmatpush1.bf16.msra.mxu0 0
    %3775 = vmatprep.subr.bf16.mxu0 0
    %3776 = vmatpush1.bf16.msra.mxu0 0
    %3777 = vmatprep.subr.bf16.mxu0 0
    %3778 = vmatpush1.bf16.msra.mxu0 0
    %3779 = vmatprep.subr.bf16.mxu0 0
    %3780 = vmatpush1.bf16.msra.mxu0 0
    %3781 = vmatprep.subr.bf16.mxu0 0
    %3782 = vmatpush1.bf16.msra.mxu0 0
    %3783 = vmatprep.mubr.bf16.mxu0 0
    %3784 = vmatmul.mubr.bf16.gmra.mrb[0].mxu0 %v3746
    %v3785 = vpop.f32.mrb[0].mxu0
    %v3786 = vadd.f32 0.0, %v3785
    %v3787 = vpop.f32.mrb[0].mxu0
    %v3788 = vpop.f32.mrb[0].mxu0
    %v3789 = vadd.f32 0.0, %v3788
    %v3790 = vpop.f32.mrb[0].mxu0
    %3791 = vdwg.mxu0
    %3792 = vrot.lane.b32.xlu0 %v3265, 104
    %v3793 = vpop.permute.xlu0 %3792
    %3794 = vrot.lane.b32.xlu0 %v3266, 104
    %v3795 = vpop.permute.xlu0 %3794
    %3796 = vrot.lane.b32.xlu0 %v3267, 104
    %v3797 = vpop.permute.xlu0 %3796
    %3798 = vrot.lane.b32.xlu0 %v3268, 104
    %v3799 = vpop.permute.xlu0 %3798
    %3800 = vrot.lane.b32.xlu0 %v3269, 104
    %v3801 = vpop.permute.xlu0 %3800
    %3802 = vrot.lane.b32.xlu0 %v3270, 104
    %v3803 = vpop.permute.xlu0 %3802
    %3804 = vrot.lane.b32.xlu0 %v3271, 104
    %v3805 = vpop.permute.xlu0 %3804
    %3806 = vrot.lane.b32.xlu0 %v3272, 104
    %v3807 = vpop.permute.xlu0 %3806
    %v3809 = vsel %vm2573, %v3793, 0
    %v3812 = vsel %vm2573, %v3795, 0
    %v3815 = vsel %vm2573, %v3797, 0
    %v3818 = vsel %vm2573, %v3799, 0
    %v3821 = vsel %vm2573, %v3801, 0
    %v3824 = vsel %vm2573, %v3803, 0
    %v3827 = vsel %vm2573, %v3805, 0
    %v3830 = vsel %vm2573, %v3807, 0
    %3832 = vmatprep.subr.bf16.mxu0 0
    %3833 = vmatpush1.bf16.xpose.msra.mxu0 %v3812
    %3834 = vmatprep.subr.bf16.mxu0 0
    %3835 = vmatpush1.bf16.xpose.msra.mxu0 %v3815
    %3836 = vmatprep.subr.bf16.mxu0 0
    %3837 = vmatpush1.bf16.xpose.msra.mxu0 %v3818
    %3838 = vmatprep.subr.bf16.mxu0 0
    %3839 = vmatpush1.bf16.xpose.msra.mxu0 %v3821
    %3840 = vmatprep.subr.bf16.mxu0 0
    %3841 = vmatpush1.bf16.xpose.msra.mxu0 %v3824
    %3842 = vmatprep.subr.bf16.mxu0 0
    %3843 = vmatpush1.bf16.xpose.msra.mxu0 %v3827
    %3844 = vmatprep.subr.bf16.mxu0 0
    %3845 = vmatpush1.bf16.xpose.msra.mxu0 %v3830
    %3846 = vmatprep.subr.bf16.mxu0 0
    %3847 = vmatpush1.bf16.xpose.msra.mxu0 0
    %3848 = vmatprep.subr.bf16.mxu0 0
    %3849 = vmatpush1.bf16.xpose.msra.mxu0 0
    %3850 = vmatprep.subr.bf16.mxu0 0
    %3851 = vmatpush1.bf16.xpose.msra.mxu0 0
    %3852 = vmatprep.subr.bf16.mxu0 0
    %3853 = vmatpush1.bf16.xpose.msra.mxu0 0
    %3854 = vmatprep.subr.bf16.mxu0 0
    %3855 = vmatpush1.bf16.xpose.msra.mxu0 0
    %3856 = vmatprep.subr.bf16.mxu0 0
    %3857 = vmatpush1.bf16.xpose.msra.mxu0 0
    %3858 = vmatprep.subr.bf16.mxu0 0
    %3859 = vmatpush1.bf16.xpose.msra.mxu0 0
    %3860 = vmatprep.subr.bf16.mxu0 0
    %3861 = vmatpush1.bf16.xpose.msra.mxu0 0
    %3862 = vmatprep.subr.bf16.mxu0 0
    %3863 = vmatpush1.bf16.xpose.msra.mxu0 0
    %3864 = vmatprep.mubr.bf16.mxu0 0
    %3865 = vmatmul.mubr.bf16.gmra.mrb[0].mxu0 %v3809
    %v3866 = vpop.f32.mrb[0].mxu0
    %v3867 = vadd.f32 0.0, %v3866
    %v3868 = vpop.f32.mrb[0].mxu0
    %v3869 = vpop.f32.mrb[0].mxu0
    %v3870 = vadd.f32 0.0, %v3869
    %v3871 = vpop.f32.mrb[0].mxu0
    %3872 = vdwg.mxu0
    %v3873 = vmul.f32 %v3867, 0.35355338
    %v3874 = vmul.f32 %v3870, 0.35355338
    %v3875 = vadd.f32 %v3873, %v71
    %v3876 = vadd.f32 %v3874, %v72
    %v3877 = vsel %vm3342, %v3875, -inf
    %3878 = vmax.xlane.f32.xlu0 %v3877
    %v3879 = vpop.xlane.xlu0 %3878
    %v3880 = vsel %vm3342, %v3876, -inf
    %3881 = vmax.xlane.f32.xlu0 %v3880
    %v3882 = vpop.xlane.xlu0 %3881
    %v3883 = vsub.f32 %v3875, %v3879
    %v3884 = vsub.f32 %v3876, %v3882
    %v3885 = vmul.f32 %v3883, 1.442695
    %v3886 = vpow.pop %v3885
    %v3887 = vmul.f32 %v3884, 1.442695
    %v3888 = vpow.pop %v3887
    %v3889 = vsel %vm3342, %v3886, 0.0
    %3890 = vadd.xlane.f32.xlu0 %v3889
    %v3891 = vpop.xlane.xlu0 %3890
    %v3892 = vsel %vm3342, %v3888, 0.0
    %3893 = vadd.xlane.f32.xlu0 %v3892
    %v3894 = vpop.xlane.xlu0 %3893
    %v3895 = vrcp.pop %v3891
    %v3896 = vmul.f32 %v3886, %v3895
    %v3897 = vrcp.pop %v3894
    %v3898 = vmul.f32 %v3888, %v3897
    %v3899 = vpack.c.bf16 %v3898, %v3896
    %3900 = vrot.lane.b32.xlu0 %v3266, 72
    %v3901 = vpop.permute.xlu0 %3900
    %3902 = vrot.lane.b32.xlu0 %v3267, 72
    %v3903 = vpop.permute.xlu0 %3902
    %3904 = vrot.lane.b32.xlu0 %v3268, 72
    %v3905 = vpop.permute.xlu0 %3904
    %3906 = vrot.lane.b32.xlu0 %v3269, 72
    %v3907 = vpop.permute.xlu0 %3906
    %3908 = vrot.lane.b32.xlu0 %v3270, 72
    %v3909 = vpop.permute.xlu0 %3908
    %3910 = vrot.lane.b32.xlu0 %v3271, 72
    %v3911 = vpop.permute.xlu0 %3910
    %3912 = vrot.lane.b32.xlu0 %v3272, 72
    %v3913 = vpop.permute.xlu0 %3912
    %v3921 = vsel %vm3342, %v3899, 0
    %v3924 = vsel %vm3396, %v3913, 0
    %3926 = vmatprep.subr.bf16.mxu0 0
    %3927 = vmatpush1.bf16.msra.mxu0 %v3901
    %3928 = vmatprep.subr.bf16.mxu0 0
    %3929 = vmatpush1.bf16.msra.mxu0 %v3903
    %3930 = vmatprep.subr.bf16.mxu0 0
    %3931 = vmatpush1.bf16.msra.mxu0 %v3905
    %3932 = vmatprep.subr.bf16.mxu0 0
    %3933 = vmatpush1.bf16.msra.mxu0 %v3907
    %3934 = vmatprep.subr.bf16.mxu0 0
    %3935 = vmatpush1.bf16.msra.mxu0 %v3909
    %3936 = vmatprep.subr.bf16.mxu0 0
    %3937 = vmatpush1.bf16.msra.mxu0 %v3911
    %3938 = vmatprep.subr.bf16.mxu0 0
    %3939 = vmatpush1.bf16.msra.mxu0 %v3924
    %3940 = vmatprep.subr.bf16.mxu0 0
    %3941 = vmatpush1.bf16.msra.mxu0 0
    %3942 = vmatprep.subr.bf16.mxu0 0
    %3943 = vmatpush1.bf16.msra.mxu0 0
    %3944 = vmatprep.subr.bf16.mxu0 0
    %3945 = vmatpush1.bf16.msra.mxu0 0
    %3946 = vmatprep.subr.bf16.mxu0 0
    %3947 = vmatpush1.bf16.msra.mxu0 0
    %3948 = vmatprep.subr.bf16.mxu0 0
    %3949 = vmatpush1.bf16.msra.mxu0 0
    %3950 = vmatprep.subr.bf16.mxu0 0
    %3951 = vmatpush1.bf16.msra.mxu0 0
    %3952 = vmatprep.subr.bf16.mxu0 0
    %3953 = vmatpush1.bf16.msra.mxu0 0
    %3954 = vmatprep.subr.bf16.mxu0 0
    %3955 = vmatpush1.bf16.msra.mxu0 0
    %3956 = vmatprep.subr.bf16.mxu0 0
    %3957 = vmatpush1.bf16.msra.mxu0 0
    %3958 = vmatprep.mubr.bf16.mxu0 0
    %3959 = vmatmul.mubr.bf16.gmra.mrb[0].mxu0 %v3921
    %v3960 = vpop.f32.mrb[0].mxu0
    %v3961 = vadd.f32 0.0, %v3960
    %v3962 = vpop.f32.mrb[0].mxu0
    %v3963 = vpop.f32.mrb[0].mxu0
    %v3964 = vadd.f32 0.0, %v3963
    %v3965 = vpop.f32.mrb[0].mxu0
    %3966 = vdwg.mxu0
    %3969 = vrot.lane.b32.xlu0 %v3611, 8
    %v3970 = vpop.permute.xlu0 %3969
    %3971 = vrot.lane.b32.xlu0 %v3614, 8
    %v3972 = vpop.permute.xlu0 %3971
    %3977 = vrot.lane.b32.xlu0 %v3786, 16
    %v3978 = vpop.permute.xlu0 %3977
    %3979 = vrot.lane.b32.xlu0 %v3789, 16
    %v3980 = vpop.permute.xlu0 %3979
    %3985 = vrot.lane.b32.xlu0 %v3961, 24
    %v3986 = vpop.permute.xlu0 %3985
    %3987 = vrot.lane.b32.xlu0 %v3964, 24
    %v3988 = vpop.permute.xlu0 %3987
    %v3991 = vsel %vm2573, %v3435, %v3970
    %v3992 = vsel %vm2573, %v3438, %v3972
    %v3993 = vsel %vm2625, %v3991, %v3978
    %v3994 = vsel %vm2625, %v3992, %v3980
    %v3995 = vsel %vm3101, %v3993, %v3986
    %v3996 = vsel %vm3101, %v3994, %v3988
    %3997 = vmatprep.subr.bf16.mxu0 0
    %3998 = vmatpush1.bf16.msra.mxu0 %v2471
    %3999 = vmatprep.subr.bf16.mxu0 0
    %4000 = vmatpush1.bf16.msra.mxu0 %v2472
    %4001 = vmatprep.subr.bf16.mxu0 0
    %4002 = vmatpush1.bf16.msra.mxu0 0
    %4003 = vmatprep.subr.bf16.mxu0 0
    %4004 = vmatpush1.bf16.msra.mxu0 0
    %4005 = vmatprep.subr.bf16.mxu0 0
    %4006 = vmatpush1.bf16.msra.mxu0 0
    %4007 = vmatprep.subr.bf16.mxu0 0
    %4008 = vmatpush1.bf16.msra.mxu0 0
    %4009 = vmatprep.subr.bf16.mxu0 0
    %4010 = vmatpush1.bf16.msra.mxu0 0
    %4011 = vmatprep.subr.bf16.mxu0 0
    %4012 = vmatpush1.bf16.msra.mxu0 0
    %4013 = vmatprep.subr.bf16.mxu0 0
    %4014 = vmatpush1.bf16.msra.mxu0 0
    %4015 = vmatprep.subr.bf16.mxu0 0
    %4016 = vmatpush1.bf16.msra.mxu0 0
    %4017 = vmatprep.subr.bf16.mxu0 0
    %4018 = vmatpush1.bf16.msra.mxu0 0
    %4019 = vmatprep.subr.bf16.mxu0 0
    %4020 = vmatpush1.bf16.msra.mxu0 0
    %4021 = vmatprep.subr.bf16.mxu0 0
    %4022 = vmatpush1.bf16.msra.mxu0 0
    %4023 = vmatprep.subr.bf16.mxu0 0
    %4024 = vmatpush1.bf16.msra.mxu0 0
    %4025 = vmatprep.subr.bf16.mxu0 0
    %4026 = vmatpush1.bf16.msra.mxu0 0
    %4027 = vmatprep.subr.bf16.mxu0 0
    %4028 = vmatpush1.bf16.msra.mxu0 0
    %4029 = vmatprep.mubr.bf16.mxu0 0
    %4030 = vmatmul.mubr.bf16.gmra.mrb[0].mxu0 %v3157
    %v4031 = vpop.f32.mrb[0].mxu0
    %v4032 = vadd.f32 %v2462, %v4031
    %v4033 = vpop.f32.mrb[0].mxu0
    %v4034 = vpop.f32.mrb[0].mxu0
    %v4035 = vadd.f32 %v2462, %v4034
    %v4036 = vpop.f32.mrb[0].mxu0
    %4037 = vmatprep.mubr.bf16.mxu0 0
    %4038 = vmatmul.mubr.bf16.gmra.mrb[0].mxu0 %v3160
    %v4039 = vpop.f32.mrb[0].mxu0
    %v4040 = vadd.f32 %v2462, %v4039
    %v4041 = vpop.f32.mrb[0].mxu0
    %v4042 = vpop.f32.mrb[0].mxu0
    %v4043 = vadd.f32 %v2462, %v4042
    %v4044 = vpop.f32.mrb[0].mxu0
    %4045 = vmatprep.mubr.bf16.mxu0 0
    %4046 = vmatmul.mubr.bf16.gmra.mrb[0].mxu0 %v3163
    %v4047 = vpop.f32.mrb[0].mxu0
    %v4048 = vadd.f32 %v2462, %v4047
    %v4049 = vpop.f32.mrb[0].mxu0
    %v4050 = vpop.f32.mrb[0].mxu0
    %v4051 = vadd.f32 %v2462, %v4050
    %v4052 = vpop.f32.mrb[0].mxu0
    %4053 = vmatprep.mubr.bf16.mxu0 0
    %4054 = vmatmul.mubr.bf16.gmra.mrb[0].mxu0 %v3166
    %v4055 = vpop.f32.mrb[0].mxu0
    %v4056 = vadd.f32 %v2462, %v4055
    %v4057 = vpop.f32.mrb[0].mxu0
    %v4058 = vpop.f32.mrb[0].mxu0
    %v4059 = vadd.f32 %v2462, %v4058
    %v4060 = vpop.f32.mrb[0].mxu0
    %4061 = vmatprep.mubr.bf16.mxu0 0
    %4062 = vmatmul.mubr.bf16.gmra.mrb[0].mxu0 %v3169
    %v4063 = vpop.f32.mrb[0].mxu0
    %v4064 = vadd.f32 %v2462, %v4063
    %v4065 = vpop.f32.mrb[0].mxu0
    %v4066 = vpop.f32.mrb[0].mxu0
    %v4067 = vadd.f32 %v2462, %v4066
    %v4068 = vpop.f32.mrb[0].mxu0
    %4069 = vmatprep.mubr.bf16.mxu0 0
    %4070 = vmatmul.mubr.bf16.gmra.mrb[0].mxu0 %v3172
    %v4071 = vpop.f32.mrb[0].mxu0
    %v4072 = vadd.f32 %v2462, %v4071
    %v4073 = vpop.f32.mrb[0].mxu0
    %v4074 = vpop.f32.mrb[0].mxu0
    %v4075 = vadd.f32 %v2462, %v4074
    %v4076 = vpop.f32.mrb[0].mxu0
    %4077 = vmatprep.mubr.bf16.mxu0 0
    %4078 = vmatmul.mubr.bf16.gmra.mrb[0].mxu0 %v3175
    %v4079 = vpop.f32.mrb[0].mxu0
    %v4080 = vadd.f32 %v2462, %v4079
    %v4081 = vpop.f32.mrb[0].mxu0
    %v4082 = vpop.f32.mrb[0].mxu0
    %v4083 = vpop.f32.mrb[0].mxu0
    %4084 = vdwg.mxu0
    %4085 = vmatprep.subr.bf16.mxu0 0
    %4086 = vmatpush1.bf16.msra.mxu0 %v2521
    %4087 = vmatprep.subr.bf16.mxu0 0
    %4088 = vmatpush1.bf16.msra.mxu0 %v2523
    %4089 = vmatprep.subr.bf16.mxu0 0
    %4090 = vmatpush1.bf16.msra.mxu0 0
    %4091 = vmatprep.subr.bf16.mxu0 0
    %4092 = vmatpush1.bf16.msra.mxu0 0
    %4093 = vmatprep.subr.bf16.mxu0 0
    %4094 = vmatpush1.bf16.msra.mxu0 0
    %4095 = vmatprep.subr.bf16.mxu0 0
    %4096 = vmatpush1.bf16.msra.mxu0 0
    %4097 = vmatprep.subr.bf16.mxu0 0
    %4098 = vmatpush1.bf16.msra.mxu0 0
    %4099 = vmatprep.subr.bf16.mxu0 0
    %4100 = vmatpush1.bf16.msra.mxu0 0
    %4101 = vmatprep.subr.bf16.mxu0 0
    %4102 = vmatpush1.bf16.msra.mxu0 0
    %4103 = vmatprep.subr.bf16.mxu0 0
    %4104 = vmatpush1.bf16.msra.mxu0 0
    %4105 = vmatprep.subr.bf16.mxu0 0
    %4106 = vmatpush1.bf16.msra.mxu0 0
    %4107 = vmatprep.subr.bf16.mxu0 0
    %4108 = vmatpush1.bf16.msra.mxu0 0
    %4109 = vmatprep.subr.bf16.mxu0 0
    %4110 = vmatpush1.bf16.msra.mxu0 0
    %4111 = vmatprep.subr.bf16.mxu0 0
    %4112 = vmatpush1.bf16.msra.mxu0 0
    %4113 = vmatprep.subr.bf16.mxu0 0
    %4114 = vmatpush1.bf16.msra.mxu0 0
    %4115 = vmatprep.subr.bf16.mxu0 0
    %4116 = vmatpush1.bf16.msra.mxu0 0
    %4117 = vmatprep.mubr.bf16.mxu0 0
    %4118 = vmatmul.mubr.bf16.gmra.mrb[0].mxu0 %v3113
    %v4119 = vpop.f32.mrb[0].mxu0
    %v4120 = vadd.f32 %v2528, %v4119
    %v4121 = vpop.f32.mrb[0].mxu0
    %v4122 = vpop.f32.mrb[0].mxu0
    %v4123 = vadd.f32 %v2528, %v4122
    %v4124 = vpop.f32.mrb[0].mxu0
    %4125 = vdwg.mxu0
    %v4126 = vpack.c.bf16 %v4035, %v4032
    %v4127 = vpack.c.bf16 %v4043, %v4040
    %v4128 = vpack.c.bf16 %v4051, %v4048
    %v4129 = vpack.c.bf16 %v4059, %v4056
    %v4130 = vpack.c.bf16 %v4067, %v4064
    %v4131 = vpack.c.bf16 %v4075, %v4072
    %v4132 = vpack.c.bf16 %v4080, %v4080
    %v4133 = vpack.c.bf16 %v4123, %v4120
    %v4135 = vsel %vm2573, %v4126, 0
    %v4138 = vsel %vm2573, %v4127, 0
    %v4141 = vsel %vm2573, %v4128, 0
    %v4144 = vsel %vm2573, %v4129, 0
    %v4147 = vsel %vm2573, %v4130, 0
    %v4150 = vsel %vm2573, %v4131, 0
    %v4153 = vsel %vm2573, %v4132, 0
    %v4156 = vsel %vm2573, %v4133, 0
    %4158 = vmatprep.subr.bf16.mxu0 0
    %4159 = vmatpush1.bf16.xpose.msra.mxu0 %v4156
    %4160 = vmatprep.subr.bf16.mxu0 0
    %4161 = vmatpush1.bf16.xpose.msra.mxu0 0
    %4162 = vmatprep.subr.bf16.mxu0 0
    %4163 = vmatpush1.bf16.xpose.msra.mxu0 0
    %4164 = vmatprep.subr.bf16.mxu0 0
    %4165 = vmatpush1.bf16.xpose.msra.mxu0 0
    %4166 = vmatprep.subr.bf16.mxu0 0
    %4167 = vmatpush1.bf16.xpose.msra.mxu0 0
    %4168 = vmatprep.subr.bf16.mxu0 0
    %4169 = vmatpush1.bf16.xpose.msra.mxu0 0
    %4170 = vmatprep.subr.bf16.mxu0 0
    %4171 = vmatpush1.bf16.xpose.msra.mxu0 0
    %4172 = vmatprep.subr.bf16.mxu0 0
    %4173 = vmatpush1.bf16.xpose.msra.mxu0 0
    %4174 = vmatprep.subr.bf16.mxu0 0
    %4175 = vmatpush1.bf16.xpose.msra.mxu0 0
    %4176 = vmatprep.subr.bf16.mxu0 0
    %4177 = vmatpush1.bf16.xpose.msra.mxu0 0
    %4178 = vmatprep.subr.bf16.mxu0 0
    %4179 = vmatpush1.bf16.xpose.msra.mxu0 0
    %4180 = vmatprep.subr.bf16.mxu0 0
    %4181 = vmatpush1.bf16.xpose.msra.mxu0 0
    %4182 = vmatprep.subr.bf16.mxu0 0
    %4183 = vmatpush1.bf16.xpose.msra.mxu0 0
    %4184 = vmatprep.subr.bf16.mxu0 0
    %4185 = vmatpush1.bf16.xpose.msra.mxu0 0
    %4186 = vmatprep.subr.bf16.mxu0 0
    %4187 = vmatpush1.bf16.xpose.msra.mxu0 0
    %4188 = vmatprep.subr.bf16.mxu0 0
    %4189 = vmatpush1.bf16.xpose.msra.mxu0 0
    %4190 = vmatprep.mubr.bf16.mxu0 0
    %4191 = vmatmul.mubr.bf16.gmra.mrb[0].mxu0 %v4135
    %v4192 = vpop.f32.mrb[0].mxu0
    %v4193 = vadd.f32 0.0, %v4192
    %v4194 = vpop.f32.mrb[0].mxu0
    %v4195 = vpop.f32.mrb[0].mxu0
    %v4196 = vadd.f32 0.0, %v4195
    %v4197 = vpop.f32.mrb[0].mxu0
    %4198 = vmatprep.mubr.bf16.mxu0 0
    %4199 = vmatmul.mubr.bf16.gmra.mrb[0].mxu0 %v4138
    %v4200 = vpop.f32.mrb[0].mxu0
    %v4201 = vadd.f32 0.0, %v4200
    %v4202 = vpop.f32.mrb[0].mxu0
    %v4203 = vpop.f32.mrb[0].mxu0
    %v4204 = vadd.f32 0.0, %v4203
    %v4205 = vpop.f32.mrb[0].mxu0
    %4206 = vmatprep.mubr.bf16.mxu0 0
    %4207 = vmatmul.mubr.bf16.gmra.mrb[0].mxu0 %v4141
    %v4208 = vpop.f32.mrb[0].mxu0
    %v4209 = vadd.f32 0.0, %v4208
    %v4210 = vpop.f32.mrb[0].mxu0
    %v4211 = vpop.f32.mrb[0].mxu0
    %v4212 = vadd.f32 0.0, %v4211
    %v4213 = vpop.f32.mrb[0].mxu0
    %4214 = vmatprep.mubr.bf16.mxu0 0
    %4215 = vmatmul.mubr.bf16.gmra.mrb[0].mxu0 %v4144
    %v4216 = vpop.f32.mrb[0].mxu0
    %v4217 = vadd.f32 0.0, %v4216
    %v4218 = vpop.f32.mrb[0].mxu0
    %v4219 = vpop.f32.mrb[0].mxu0
    %v4220 = vadd.f32 0.0, %v4219
    %v4221 = vpop.f32.mrb[0].mxu0
    %4222 = vmatprep.mubr.bf16.mxu0 0
    %4223 = vmatmul.mubr.bf16.gmra.mrb[0].mxu0 %v4147
    %v4224 = vpop.f32.mrb[0].mxu0
    %v4225 = vadd.f32 0.0, %v4224
    %v4226 = vpop.f32.mrb[0].mxu0
    %v4227 = vpop.f32.mrb[0].mxu0
    %v4228 = vadd.f32 0.0, %v4227
    %v4229 = vpop.f32.mrb[0].mxu0
    %4230 = vmatprep.mubr.bf16.mxu0 0
    %4231 = vmatmul.mubr.bf16.gmra.mrb[0].mxu0 %v4150
    %v4232 = vpop.f32.mrb[0].mxu0
    %v4233 = vadd.f32 0.0, %v4232
    %v4234 = vpop.f32.mrb[0].mxu0
    %v4235 = vpop.f32.mrb[0].mxu0
    %v4236 = vadd.f32 0.0, %v4235
    %v4237 = vpop.f32.mrb[0].mxu0
    %4238 = vmatprep.mubr.bf16.mxu0 0
    %4239 = vmatmul.mubr.bf16.gmra.mrb[0].mxu0 %v4153
    %v4240 = vpop.f32.mrb[0].mxu0
    %v4241 = vadd.f32 0.0, %v4240
    %v4242 = vpop.f32.mrb[0].mxu0
    %v4243 = vpop.f32.mrb[0].mxu0
    %v4244 = vpop.f32.mrb[0].mxu0
    %4245 = vdwg.mxu0
    %v4246 = vmul.f32 %v4193, 0.35355338
    %v4247 = vmul.f32 %v4196, 0.35355338
    %v4248 = vmul.f32 %v4201, 0.35355338
    %v4249 = vmul.f32 %v4204, 0.35355338
    %v4250 = vmul.f32 %v4209, 0.35355338
    %v4251 = vmul.f32 %v4212, 0.35355338
    %v4252 = vmul.f32 %v4217, 0.35355338
    %v4253 = vmul.f32 %v4220, 0.35355338
    %v4254 = vmul.f32 %v4225, 0.35355338
    %v4255 = vmul.f32 %v4228, 0.35355338
    %v4256 = vmul.f32 %v4233, 0.35355338
    %v4257 = vmul.f32 %v4236, 0.35355338
    %v4258 = vmul.f32 %v4241, 0.35355338
    %v4259 = vadd.f32 %v4246, %v73
    %v4260 = vadd.f32 %v4247, %v74
    %v4261 = vadd.f32 %v4248, %v75
    %v4262 = vadd.f32 %v4249, %v76
    %v4263 = vadd.f32 %v4250, %v77
    %v4264 = vadd.f32 %v4251, %v78
    %v4265 = vadd.f32 %v4252, %v79
    %v4266 = vadd.f32 %v4253, %v80
    %v4267 = vadd.f32 %v4254, %v81
    %v4268 = vadd.f32 %v4255, %v82
    %v4269 = vadd.f32 %v4256, %v83
    %v4270 = vadd.f32 %v4257, %v84
    %v4271 = vadd.f32 %v4258, %v85
    %v4272 = vsel %vm2625, %v4259, -inf
    %4273 = vmax.xlane.f32.xlu0 %v4272
    %v4274 = vpop.xlane.xlu0 %4273
    %v4275 = vsel %vm2625, %v4260, -inf
    %4276 = vmax.xlane.f32.xlu0 %v4275
    %v4277 = vpop.xlane.xlu0 %4276
    %v4278 = vsel %vm2625, %v4261, -inf
    %4279 = vmax.xlane.f32.xlu0 %v4278
    %v4280 = vpop.xlane.xlu0 %4279
    %v4281 = vsel %vm2625, %v4262, -inf
    %4282 = vmax.xlane.f32.xlu0 %v4281
    %v4283 = vpop.xlane.xlu0 %4282
    %v4284 = vsel %vm2625, %v4263, -inf
    %4285 = vmax.xlane.f32.xlu0 %v4284
    %v4286 = vpop.xlane.xlu0 %4285
    %v4287 = vsel %vm2625, %v4264, -inf
    %4288 = vmax.xlane.f32.xlu0 %v4287
    %v4289 = vpop.xlane.xlu0 %4288
    %v4290 = vsel %vm2625, %v4265, -inf
    %4291 = vmax.xlane.f32.xlu0 %v4290
    %v4292 = vpop.xlane.xlu0 %4291
    %v4293 = vsel %vm2625, %v4266, -inf
    %4294 = vmax.xlane.f32.xlu0 %v4293
    %v4295 = vpop.xlane.xlu0 %4294
    %v4296 = vsel %vm2625, %v4267, -inf
    %4297 = vmax.xlane.f32.xlu0 %v4296
    %v4298 = vpop.xlane.xlu0 %4297
    %v4299 = vsel %vm2625, %v4268, -inf
    %4300 = vmax.xlane.f32.xlu0 %v4299
    %v4301 = vpop.xlane.xlu0 %4300
    %v4302 = vsel %vm2625, %v4269, -inf
    %4303 = vmax.xlane.f32.xlu0 %v4302
    %v4304 = vpop.xlane.xlu0 %4303
    %v4305 = vsel %vm2625, %v4270, -inf
    %4306 = vmax.xlane.f32.xlu0 %v4305
    %v4307 = vpop.xlane.xlu0 %4306
    %vm4308 = vcmask 123904
    %v4309 = vsel %vm4308, %v4271, -inf
    %4310 = vmax.xlane.f32.xlu0 %v4309
    %v4311 = vpop.xlane.xlu0 %4310
    %v4312 = vsub.f32 %v4259, %v4274
    %v4313 = vsub.f32 %v4260, %v4277
    %v4314 = vsub.f32 %v4261, %v4280
    %v4315 = vsub.f32 %v4262, %v4283
    %v4316 = vsub.f32 %v4263, %v4286
    %v4317 = vsub.f32 %v4264, %v4289
    %v4318 = vsub.f32 %v4265, %v4292
    %v4319 = vsub.f32 %v4266, %v4295
    %v4320 = vsub.f32 %v4267, %v4298
    %v4321 = vsub.f32 %v4268, %v4301
    %v4322 = vsub.f32 %v4269, %v4304
    %v4323 = vsub.f32 %v4270, %v4307
    %v4324 = vsub.f32 %v4271, %v4311
    %v4325 = vmul.f32 %v4312, 1.442695
    %v4326 = vpow.pop %v4325
    %v4327 = vmul.f32 %v4313, 1.442695
    %v4328 = vpow.pop %v4327
    %v4329 = vmul.f32 %v4314, 1.442695
    %v4330 = vpow.pop %v4329
    %v4331 = vmul.f32 %v4315, 1.442695
    %v4332 = vpow.pop %v4331
    %v4333 = vmul.f32 %v4316, 1.442695
    %v4334 = vpow.pop %v4333
    %v4335 = vmul.f32 %v4317, 1.442695
    %v4336 = vpow.pop %v4335
    %v4337 = vmul.f32 %v4318, 1.442695
    %v4338 = vpow.pop %v4337
    %v4339 = vmul.f32 %v4319, 1.442695
    %v4340 = vpow.pop %v4339
    %v4341 = vmul.f32 %v4320, 1.442695
    %v4342 = vpow.pop %v4341
    %v4343 = vmul.f32 %v4321, 1.442695
    %v4344 = vpow.pop %v4343
    %v4345 = vmul.f32 %v4322, 1.442695
    %v4346 = vpow.pop %v4345
    %v4347 = vmul.f32 %v4323, 1.442695
    %v4348 = vpow.pop %v4347
    %v4349 = vmul.f32 %v4324, 1.442695
    %v4350 = vpow.pop %v4349
    %v4351 = vsel %vm2625, %v4326, 0.0
    %4352 = vadd.xlane.f32.xlu0 %v4351
    %v4353 = vpop.xlane.xlu0 %4352
    %v4354 = vsel %vm2625, %v4328, 0.0
    %4355 = vadd.xlane.f32.xlu0 %v4354
    %v4356 = vpop.xlane.xlu0 %4355
    %v4357 = vsel %vm2625, %v4330, 0.0
    %4358 = vadd.xlane.f32.xlu0 %v4357
    %v4359 = vpop.xlane.xlu0 %4358
    %v4360 = vsel %vm2625, %v4332, 0.0
    %4361 = vadd.xlane.f32.xlu0 %v4360
    %v4362 = vpop.xlane.xlu0 %4361
    %v4363 = vsel %vm2625, %v4334, 0.0
    %4364 = vadd.xlane.f32.xlu0 %v4363
    %v4365 = vpop.xlane.xlu0 %4364
    %v4366 = vsel %vm2625, %v4336, 0.0
    %4367 = vadd.xlane.f32.xlu0 %v4366
    %v4368 = vpop.xlane.xlu0 %4367
    %v4369 = vsel %vm2625, %v4338, 0.0
    %4370 = vadd.xlane.f32.xlu0 %v4369
    %v4371 = vpop.xlane.xlu0 %4370
    %v4372 = vsel %vm2625, %v4340, 0.0
    %4373 = vadd.xlane.f32.xlu0 %v4372
    %v4374 = vpop.xlane.xlu0 %4373
    %v4375 = vsel %vm2625, %v4342, 0.0
    %4376 = vadd.xlane.f32.xlu0 %v4375
    %v4377 = vpop.xlane.xlu0 %4376
    %v4378 = vsel %vm2625, %v4344, 0.0
    %4379 = vadd.xlane.f32.xlu0 %v4378
    %v4380 = vpop.xlane.xlu0 %4379
    %v4381 = vsel %vm2625, %v4346, 0.0
    %4382 = vadd.xlane.f32.xlu0 %v4381
    %v4383 = vpop.xlane.xlu0 %4382
    %v4384 = vsel %vm2625, %v4348, 0.0
    %4385 = vadd.xlane.f32.xlu0 %v4384
    %v4386 = vpop.xlane.xlu0 %4385
    %v4387 = vsel %vm4308, %v4350, 0.0
    %4388 = vadd.xlane.f32.xlu0 %v4387
    %v4389 = vpop.xlane.xlu0 %4388
    %v4390 = vrcp.pop %v4353
    %v4391 = vmul.f32 %v4326, %v4390
    %v4392 = vrcp.pop %v4356
    %v4393 = vmul.f32 %v4328, %v4392
    %v4394 = vrcp.pop %v4359
    %v4395 = vmul.f32 %v4330, %v4394
    %v4396 = vrcp.pop %v4362
    %v4397 = vmul.f32 %v4332, %v4396
    %v4398 = vrcp.pop %v4365
    %v4399 = vmul.f32 %v4334, %v4398
    %v4400 = vrcp.pop %v4368
    %v4401 = vmul.f32 %v4336, %v4400
    %v4402 = vrcp.pop %v4371
    %v4403 = vmul.f32 %v4338, %v4402
    %v4404 = vrcp.pop %v4374
    %v4405 = vmul.f32 %v4340, %v4404
    %v4406 = vrcp.pop %v4377
    %v4407 = vmul.f32 %v4342, %v4406
    %v4408 = vrcp.pop %v4380
    %v4409 = vmul.f32 %v4344, %v4408
    %v4410 = vrcp.pop %v4383
    %v4411 = vmul.f32 %v4346, %v4410
    %v4412 = vrcp.pop %v4386
    %v4413 = vmul.f32 %v4348, %v4412
    %v4414 = vrcp.pop %v4389
    %v4415 = vmul.f32 %v4350, %v4414
    %v4416 = vpack.c.bf16 %v4393, %v4391
    %v4417 = vpack.c.bf16 %v4397, %v4395
    %v4418 = vpack.c.bf16 %v4401, %v4399
    %v4419 = vpack.c.bf16 %v4405, %v4403
    %v4420 = vpack.c.bf16 %v4409, %v4407
    %v4421 = vpack.c.bf16 %v4413, %v4411
    %v4422 = vpack.c.bf16 %v4415, %v4415
    %4424 = vrot.lane.b32.xlu0 %v4133, 96
    %v4425 = vpop.permute.xlu0 %4424
    %v4428 = vsel %vm2625, %v4416, 0
    %v4431 = vsel %vm2625, %v4417, 0
    %v4434 = vsel %vm2625, %v4418, 0
    %v4437 = vsel %vm2625, %v4419, 0
    %v4440 = vsel %vm2625, %v4420, 0
    %v4443 = vsel %vm2625, %v4421, 0
    %v4446 = vsel %vm2625, %v4422, 0
    %4448 = vmatprep.subr.bf16.mxu0 0
    %4449 = vmatpush1.bf16.msra.mxu0 %v4425
    %4450 = vmatprep.subr.bf16.mxu0 0
    %4451 = vmatpush1.bf16.msra.mxu0 0
    %4452 = vmatprep.subr.bf16.mxu0 0
    %4453 = vmatpush1.bf16.msra.mxu0 0
    %4454 = vmatprep.subr.bf16.mxu0 0
    %4455 = vmatpush1.bf16.msra.mxu0 0
    %4456 = vmatprep.subr.bf16.mxu0 0
    %4457 = vmatpush1.bf16.msra.mxu0 0
    %4458 = vmatprep.subr.bf16.mxu0 0
    %4459 = vmatpush1.bf16.msra.mxu0 0
    %4460 = vmatprep.subr.bf16.mxu0 0
    %4461 = vmatpush1.bf16.msra.mxu0 0
    %4462 = vmatprep.subr.bf16.mxu0 0
    %4463 = vmatpush1.bf16.msra.mxu0 0
    %4464 = vmatprep.subr.bf16.mxu0 0
    %4465 = vmatpush1.bf16.msra.mxu0 0
    %4466 = vmatprep.subr.bf16.mxu0 0
    %4467 = vmatpush1.bf16.msra.mxu0 0
    %4468 = vmatprep.subr.bf16.mxu0 0
    %4469 = vmatpush1.bf16.msra.mxu0 0
    %4470 = vmatprep.subr.bf16.mxu0 0
    %4471 = vmatpush1.bf16.msra.mxu0 0
    %4472 = vmatprep.subr.bf16.mxu0 0
    %4473 = vmatpush1.bf16.msra.mxu0 0
    %4474 = vmatprep.subr.bf16.mxu0 0
    %4475 = vmatpush1.bf16.msra.mxu0 0
    %4476 = vmatprep.subr.bf16.mxu0 0
    %4477 = vmatpush1.bf16.msra.mxu0 0
    %4478 = vmatprep.subr.bf16.mxu0 0
    %4479 = vmatpush1.bf16.msra.mxu0 0
    %4480 = vmatprep.mubr.bf16.mxu0 0
    %4481 = vmatmul.mubr.bf16.gmra.mrb[0].mxu0 %v4428
    %v4482 = vpop.f32.mrb[0].mxu0
    %v4483 = vadd.f32 0.0, %v4482
    %v4484 = vpop.f32.mrb[0].mxu0
    %v4485 = vpop.f32.mrb[0].mxu0
    %v4486 = vadd.f32 0.0, %v4485
    %v4487 = vpop.f32.mrb[0].mxu0
    %4488 = vmatprep.mubr.bf16.mxu0 0
    %4489 = vmatmul.mubr.bf16.gmra.mrb[0].mxu0 %v4431
    %v4490 = vpop.f32.mrb[0].mxu0
    %v4491 = vadd.f32 0.0, %v4490
    %v4492 = vpop.f32.mrb[0].mxu0
    %v4493 = vpop.f32.mrb[0].mxu0
    %v4494 = vadd.f32 0.0, %v4493
    %v4495 = vpop.f32.mrb[0].mxu0
    %4496 = vmatprep.mubr.bf16.mxu0 0
    %4497 = vmatmul.mubr.bf16.gmra.mrb[0].mxu0 %v4434
    %v4498 = vpop.f32.mrb[0].mxu0
    %v4499 = vadd.f32 0.0, %v4498
    %v4500 = vpop.f32.mrb[0].mxu0
    %v4501 = vpop.f32.mrb[0].mxu0
    %v4502 = vadd.f32 0.0, %v4501
    %v4503 = vpop.f32.mrb[0].mxu0
    %4504 = vmatprep.mubr.bf16.mxu0 0
    %4505 = vmatmul.mubr.bf16.gmra.mrb[0].mxu0 %v4437
    %v4506 = vpop.f32.mrb[0].mxu0
    %v4507 = vadd.f32 0.0, %v4506
    %v4508 = vpop.f32.mrb[0].mxu0
    %v4509 = vpop.f32.mrb[0].mxu0
    %v4510 = vadd.f32 0.0, %v4509
    %v4511 = vpop.f32.mrb[0].mxu0
    %4512 = vmatprep.mubr.bf16.mxu0 0
    %4513 = vmatmul.mubr.bf16.gmra.mrb[0].mxu0 %v4440
    %v4514 = vpop.f32.mrb[0].mxu0
    %v4515 = vadd.f32 0.0, %v4514
    %v4516 = vpop.f32.mrb[0].mxu0
    %v4517 = vpop.f32.mrb[0].mxu0
    %v4518 = vadd.f32 0.0, %v4517
    %v4519 = vpop.f32.mrb[0].mxu0
    %4520 = vmatprep.mubr.bf16.mxu0 0
    %4521 = vmatmul.mubr.bf16.gmra.mrb[0].mxu0 %v4443
    %v4522 = vpop.f32.mrb[0].mxu0
    %v4523 = vadd.f32 0.0, %v4522
    %v4524 = vpop.f32.mrb[0].mxu0
    %v4525 = vpop.f32.mrb[0].mxu0
    %v4526 = vadd.f32 0.0, %v4525
    %v4527 = vpop.f32.mrb[0].mxu0
    %4528 = vmatprep.mubr.bf16.mxu0 0
    %4529 = vmatmul.mubr.bf16.gmra.mrb[0].mxu0 %v4446
    %v4530 = vpop.f32.mrb[0].mxu0
    %v4531 = vadd.f32 0.0, %v4530
    %v4532 = vpop.f32.mrb[0].mxu0
    %v4533 = vpop.f32.mrb[0].mxu0
    %v4534 = vpop.f32.mrb[0].mxu0
    %4535 = vdwg.mxu0
    %4543 = vrot.lane.b32.xlu0 %v4126, 120
    %v4544 = vpop.permute.xlu0 %4543
    %4545 = vrot.lane.b32.xlu0 %v4127, 120
    %v4546 = vpop.permute.xlu0 %4545
    %4547 = vrot.lane.b32.xlu0 %v4128, 120
    %v4548 = vpop.permute.xlu0 %4547
    %4549 = vrot.lane.b32.xlu0 %v4129, 120
    %v4550 = vpop.permute.xlu0 %4549
    %4551 = vrot.lane.b32.xlu0 %v4130, 120
    %v4552 = vpop.permute.xlu0 %4551
    %4553 = vrot.lane.b32.xlu0 %v4131, 120
    %v4554 = vpop.permute.xlu0 %4553
    %4555 = vrot.lane.b32.xlu0 %v4132, 120
    %v4556 = vpop.permute.xlu0 %4555
    %4557 = vrot.lane.b32.xlu0 %v4133, 120
    %v4558 = vpop.permute.xlu0 %4557
    %v4560 = vsel %vm2573, %v4544, 0
    %v4563 = vsel %vm2573, %v4546, 0
    %v4566 = vsel %vm2573, %v4548, 0
    %v4569 = vsel %vm2573, %v4550, 0
    %v4572 = vsel %vm2573, %v4552, 0
    %v4575 = vsel %vm2573, %v4554, 0
    %v4578 = vsel %vm2573, %v4556, 0
    %v4581 = vsel %vm2573, %v4558, 0
    %4583 = vmatprep.subr.bf16.mxu0 0
    %4584 = vmatpush1.bf16.xpose.msra.mxu0 %v4581
    %4585 = vmatprep.subr.bf16.mxu0 0
    %4586 = vmatpush1.bf16.xpose.msra.mxu0 0
    %4587 = vmatprep.subr.bf16.mxu0 0
    %4588 = vmatpush1.bf16.xpose.msra.mxu0 0
    %4589 = vmatprep.subr.bf16.mxu0 0
    %4590 = vmatpush1.bf16.xpose.msra.mxu0 0
    %4591 = vmatprep.subr.bf16.mxu0 0
    %4592 = vmatpush1.bf16.xpose.msra.mxu0 0
    %4593 = vmatprep.subr.bf16.mxu0 0
    %4594 = vmatpush1.bf16.xpose.msra.mxu0 0
    %4595 = vmatprep.subr.bf16.mxu0 0
    %4596 = vmatpush1.bf16.xpose.msra.mxu0 0
    %4597 = vmatprep.subr.bf16.mxu0 0
    %4598 = vmatpush1.bf16.xpose.msra.mxu0 0
    %4599 = vmatprep.subr.bf16.mxu0 0
    %4600 = vmatpush1.bf16.xpose.msra.mxu0 0
    %4601 = vmatprep.subr.bf16.mxu0 0
    %4602 = vmatpush1.bf16.xpose.msra.mxu0 0
    %4603 = vmatprep.subr.bf16.mxu0 0
    %4604 = vmatpush1.bf16.xpose.msra.mxu0 0
    %4605 = vmatprep.subr.bf16.mxu0 0
    %4606 = vmatpush1.bf16.xpose.msra.mxu0 0
    %4607 = vmatprep.subr.bf16.mxu0 0
    %4608 = vmatpush1.bf16.xpose.msra.mxu0 0
    %4609 = vmatprep.subr.bf16.mxu0 0
    %4610 = vmatpush1.bf16.xpose.msra.mxu0 0
    %4611 = vmatprep.subr.bf16.mxu0 0
    %4612 = vmatpush1.bf16.xpose.msra.mxu0 0
    %4613 = vmatprep.subr.bf16.mxu0 0
    %4614 = vmatpush1.bf16.xpose.msra.mxu0 0
    %4615 = vmatprep.mubr.bf16.mxu0 0
    %4616 = vmatmul.mubr.bf16.gmra.mrb[0].mxu0 %v4560
    %v4617 = vpop.f32.mrb[0].mxu0
    %v4618 = vadd.f32 0.0, %v4617
    %v4619 = vpop.f32.mrb[0].mxu0
    %v4620 = vpop.f32.mrb[0].mxu0
    %v4621 = vadd.f32 0.0, %v4620
    %v4622 = vpop.f32.mrb[0].mxu0
    %4623 = vmatprep.mubr.bf16.mxu0 0
    %4624 = vmatmul.mubr.bf16.gmra.mrb[0].mxu0 %v4563
    %v4625 = vpop.f32.mrb[0].mxu0
    %v4626 = vadd.f32 0.0, %v4625
    %v4627 = vpop.f32.mrb[0].mxu0
    %v4628 = vpop.f32.mrb[0].mxu0
    %v4629 = vadd.f32 0.0, %v4628
    %v4630 = vpop.f32.mrb[0].mxu0
    %4631 = vmatprep.mubr.bf16.mxu0 0
    %4632 = vmatmul.mubr.bf16.gmra.mrb[0].mxu0 %v4566
    %v4633 = vpop.f32.mrb[0].mxu0
    %v4634 = vadd.f32 0.0, %v4633
    %v4635 = vpop.f32.mrb[0].mxu0
    %v4636 = vpop.f32.mrb[0].mxu0
    %v4637 = vadd.f32 0.0, %v4636
    %v4638 = vpop.f32.mrb[0].mxu0
    %4639 = vmatprep.mubr.bf16.mxu0 0
    %4640 = vmatmul.mubr.bf16.gmra.mrb[0].mxu0 %v4569
    %v4641 = vpop.f32.mrb[0].mxu0
    %v4642 = vadd.f32 0.0, %v4641
    %v4643 = vpop.f32.mrb[0].mxu0
    %v4644 = vpop.f32.mrb[0].mxu0
    %v4645 = vadd.f32 0.0, %v4644
    %v4646 = vpop.f32.mrb[0].mxu0
    %4647 = vmatprep.mubr.bf16.mxu0 0
    %4648 = vmatmul.mubr.bf16.gmra.mrb[0].mxu0 %v4572
    %v4649 = vpop.f32.mrb[0].mxu0
    %v4650 = vadd.f32 0.0, %v4649
    %v4651 = vpop.f32.mrb[0].mxu0
    %v4652 = vpop.f32.mrb[0].mxu0
    %v4653 = vadd.f32 0.0, %v4652
    %v4654 = vpop.f32.mrb[0].mxu0
    %4655 = vmatprep.mubr.bf16.mxu0 0
    %4656 = vmatmul.mubr.bf16.gmra.mrb[0].mxu0 %v4575
    %v4657 = vpop.f32.mrb[0].mxu0
    %v4658 = vadd.f32 0.0, %v4657
    %v4659 = vpop.f32.mrb[0].mxu0
    %v4660 = vpop.f32.mrb[0].mxu0
    %v4661 = vadd.f32 0.0, %v4660
    %v4662 = vpop.f32.mrb[0].mxu0
    %4663 = vmatprep.mubr.bf16.mxu0 0
    %4664 = vmatmul.mubr.bf16.gmra.mrb[0].mxu0 %v4578
    %v4665 = vpop.f32.mrb[0].mxu0
    %v4666 = vadd.f32 0.0, %v4665
    %v4667 = vpop.f32.mrb[0].mxu0
    %v4668 = vpop.f32.mrb[0].mxu0
    %v4669 = vpop.f32.mrb[0].mxu0
    %4670 = vdwg.mxu0
    %v4671 = vmul.f32 %v4618, 0.35355338
    %v4672 = vmul.f32 %v4621, 0.35355338
    %v4673 = vmul.f32 %v4626, 0.35355338
    %v4674 = vmul.f32 %v4629, 0.35355338
    %v4675 = vmul.f32 %v4634, 0.35355338
    %v4676 = vmul.f32 %v4637, 0.35355338
    %v4677 = vmul.f32 %v4642, 0.35355338
    %v4678 = vmul.f32 %v4645, 0.35355338
    %v4679 = vmul.f32 %v4650, 0.35355338
    %v4680 = vmul.f32 %v4653, 0.35355338
    %v4681 = vmul.f32 %v4658, 0.35355338
    %v4682 = vmul.f32 %v4661, 0.35355338
    %v4683 = vmul.f32 %v4666, 0.35355338
    %v4684 = vadd.f32 %v4671, %v73
    %v4685 = vadd.f32 %v4672, %v74
    %v4686 = vadd.f32 %v4673, %v75
    %v4687 = vadd.f32 %v4674, %v76
    %v4688 = vadd.f32 %v4675, %v77
    %v4689 = vadd.f32 %v4676, %v78
    %v4690 = vadd.f32 %v4677, %v79
    %v4691 = vadd.f32 %v4678, %v80
    %v4692 = vadd.f32 %v4679, %v81
    %v4693 = vadd.f32 %v4680, %v82
    %v4694 = vadd.f32 %v4681, %v83
    %v4695 = vadd.f32 %v4682, %v84
    %v4696 = vadd.f32 %v4683, %v85
    %v4697 = vsel %vm2625, %v4684, -inf
    %4698 = vmax.xlane.f32.xlu0 %v4697
    %v4699 = vpop.xlane.xlu0 %4698
    %v4700 = vsel %vm2625, %v4685, -inf
    %4701 = vmax.xlane.f32.xlu0 %v4700
    %v4702 = vpop.xlane.xlu0 %4701
    %v4703 = vsel %vm2625, %v4686, -inf
    %4704 = vmax.xlane.f32.xlu0 %v4703
    %v4705 = vpop.xlane.xlu0 %4704
    %v4706 = vsel %vm2625, %v4687, -inf
    %4707 = vmax.xlane.f32.xlu0 %v4706
    %v4708 = vpop.xlane.xlu0 %4707
    %v4709 = vsel %vm2625, %v4688, -inf
    %4710 = vmax.xlane.f32.xlu0 %v4709
    %v4711 = vpop.xlane.xlu0 %4710
    %v4712 = vsel %vm2625, %v4689, -inf
    %4713 = vmax.xlane.f32.xlu0 %v4712
    %v4714 = vpop.xlane.xlu0 %4713
    %v4715 = vsel %vm2625, %v4690, -inf
    %4716 = vmax.xlane.f32.xlu0 %v4715
    %v4717 = vpop.xlane.xlu0 %4716
    %v4718 = vsel %vm2625, %v4691, -inf
    %4719 = vmax.xlane.f32.xlu0 %v4718
    %v4720 = vpop.xlane.xlu0 %4719
    %v4721 = vsel %vm2625, %v4692, -inf
    %4722 = vmax.xlane.f32.xlu0 %v4721
    %v4723 = vpop.xlane.xlu0 %4722
    %v4724 = vsel %vm2625, %v4693, -inf
    %4725 = vmax.xlane.f32.xlu0 %v4724
    %v4726 = vpop.xlane.xlu0 %4725
    %v4727 = vsel %vm2625, %v4694, -inf
    %4728 = vmax.xlane.f32.xlu0 %v4727
    %v4729 = vpop.xlane.xlu0 %4728
    %v4730 = vsel %vm2625, %v4695, -inf
    %4731 = vmax.xlane.f32.xlu0 %v4730
    %v4732 = vpop.xlane.xlu0 %4731
    %v4733 = vsel %vm4308, %v4696, -inf
    %4734 = vmax.xlane.f32.xlu0 %v4733
    %v4735 = vpop.xlane.xlu0 %4734
    %v4736 = vsub.f32 %v4684, %v4699
    %v4737 = vsub.f32 %v4685, %v4702
    %v4738 = vsub.f32 %v4686, %v4705
    %v4739 = vsub.f32 %v4687, %v4708
    %v4740 = vsub.f32 %v4688, %v4711
    %v4741 = vsub.f32 %v4689, %v4714
    %v4742 = vsub.f32 %v4690, %v4717
    %v4743 = vsub.f32 %v4691, %v4720
    %v4744 = vsub.f32 %v4692, %v4723
    %v4745 = vsub.f32 %v4693, %v4726
    %v4746 = vsub.f32 %v4694, %v4729
    %v4747 = vsub.f32 %v4695, %v4732
    %v4748 = vsub.f32 %v4696, %v4735
    %v4749 = vmul.f32 %v4736, 1.442695
    %v4750 = vpow.pop %v4749
    %v4751 = vmul.f32 %v4737, 1.442695
    %v4752 = vpow.pop %v4751
    %v4753 = vmul.f32 %v4738, 1.442695
    %v4754 = vpow.pop %v4753
    %v4755 = vmul.f32 %v4739, 1.442695
    %v4756 = vpow.pop %v4755
    %v4757 = vmul.f32 %v4740, 1.442695
    %v4758 = vpow.pop %v4757
    %v4759 = vmul.f32 %v4741, 1.442695
    %v4760 = vpow.pop %v4759
    %v4761 = vmul.f32 %v4742, 1.442695
    %v4762 = vpow.pop %v4761
    %v4763 = vmul.f32 %v4743, 1.442695
    %v4764 = vpow.pop %v4763
    %v4765 = vmul.f32 %v4744, 1.442695
    %v4766 = vpow.pop %v4765
    %v4767 = vmul.f32 %v4745, 1.442695
    %v4768 = vpow.pop %v4767
    %v4769 = vmul.f32 %v4746, 1.442695
    %v4770 = vpow.pop %v4769
    %v4771 = vmul.f32 %v4747, 1.442695
    %v4772 = vpow.pop %v4771
    %v4773 = vmul.f32 %v4748, 1.442695
    %v4774 = vpow.pop %v4773
    %v4775 = vsel %vm2625, %v4750, 0.0
    %4776 = vadd.xlane.f32.xlu0 %v4775
    %v4777 = vpop.xlane.xlu0 %4776
    %v4778 = vsel %vm2625, %v4752, 0.0
    %4779 = vadd.xlane.f32.xlu0 %v4778
    %v4780 = vpop.xlane.xlu0 %4779
    %v4781 = vsel %vm2625, %v4754, 0.0
    %4782 = vadd.xlane.f32.xlu0 %v4781
    %v4783 = vpop.xlane.xlu0 %4782
    %v4784 = vsel %vm2625, %v4756, 0.0
    %4785 = vadd.xlane.f32.xlu0 %v4784
    %v4786 = vpop.xlane.xlu0 %4785
    %v4787 = vsel %vm2625, %v4758, 0.0
    %4788 = vadd.xlane.f32.xlu0 %v4787
    %v4789 = vpop.xlane.xlu0 %4788
    %v4790 = vsel %vm2625, %v4760, 0.0
    %4791 = vadd.xlane.f32.xlu0 %v4790
    %v4792 = vpop.xlane.xlu0 %4791
    %v4793 = vsel %vm2625, %v4762, 0.0
    %4794 = vadd.xlane.f32.xlu0 %v4793
    %v4795 = vpop.xlane.xlu0 %4794
    %v4796 = vsel %vm2625, %v4764, 0.0
    %4797 = vadd.xlane.f32.xlu0 %v4796
    %v4798 = vpop.xlane.xlu0 %4797
    %v4799 = vsel %vm2625, %v4766, 0.0
    %4800 = vadd.xlane.f32.xlu0 %v4799
    %v4801 = vpop.xlane.xlu0 %4800
    %v4802 = vsel %vm2625, %v4768, 0.0
    %4803 = vadd.xlane.f32.xlu0 %v4802
    %v4804 = vpop.xlane.xlu0 %4803
    %v4805 = vsel %vm2625, %v4770, 0.0
    %4806 = vadd.xlane.f32.xlu0 %v4805
    %v4807 = vpop.xlane.xlu0 %4806
    %v4808 = vsel %vm2625, %v4772, 0.0
    %4809 = vadd.xlane.f32.xlu0 %v4808
    %v4810 = vpop.xlane.xlu0 %4809
    %v4811 = vsel %vm4308, %v4774, 0.0
    %4812 = vadd.xlane.f32.xlu0 %v4811
    %v4813 = vpop.xlane.xlu0 %4812
    %v4814 = vrcp.pop %v4777
    %v4815 = vmul.f32 %v4750, %v4814
    %v4816 = vrcp.pop %v4780
    %v4817 = vmul.f32 %v4752, %v4816
    %v4818 = vrcp.pop %v4783
    %v4819 = vmul.f32 %v4754, %v4818
    %v4820 = vrcp.pop %v4786
    %v4821 = vmul.f32 %v4756, %v4820
    %v4822 = vrcp.pop %v4789
    %v4823 = vmul.f32 %v4758, %v4822
    %v4824 = vrcp.pop %v4792
    %v4825 = vmul.f32 %v4760, %v4824
    %v4826 = vrcp.pop %v4795
    %v4827 = vmul.f32 %v4762, %v4826
    %v4828 = vrcp.pop %v4798
    %v4829 = vmul.f32 %v4764, %v4828
    %v4830 = vrcp.pop %v4801
    %v4831 = vmul.f32 %v4766, %v4830
    %v4832 = vrcp.pop %v4804
    %v4833 = vmul.f32 %v4768, %v4832
    %v4834 = vrcp.pop %v4807
    %v4835 = vmul.f32 %v4770, %v4834
    %v4836 = vrcp.pop %v4810
    %v4837 = vmul.f32 %v4772, %v4836
    %v4838 = vrcp.pop %v4813
    %v4839 = vmul.f32 %v4774, %v4838
    %v4840 = vpack.c.bf16 %v4817, %v4815
    %v4841 = vpack.c.bf16 %v4821, %v4819
    %v4842 = vpack.c.bf16 %v4825, %v4823
    %v4843 = vpack.c.bf16 %v4829, %v4827
    %v4844 = vpack.c.bf16 %v4833, %v4831
    %v4845 = vpack.c.bf16 %v4837, %v4835
    %v4846 = vpack.c.bf16 %v4839, %v4839
    %4847 = vrot.lane.b32.xlu0 %v4133, 88
    %v4848 = vpop.permute.xlu0 %4847
    %v4851 = vsel %vm2625, %v4840, 0
    %v4854 = vsel %vm2625, %v4841, 0
    %v4857 = vsel %vm2625, %v4842, 0
    %v4860 = vsel %vm2625, %v4843, 0
    %v4863 = vsel %vm2625, %v4844, 0
    %v4866 = vsel %vm2625, %v4845, 0
    %v4869 = vsel %vm2625, %v4846, 0
    %4871 = vmatprep.subr.bf16.mxu0 0
    %4872 = vmatpush1.bf16.msra.mxu0 %v4848
    %4873 = vmatprep.subr.bf16.mxu0 0
    %4874 = vmatpush1.bf16.msra.mxu0 0
    %4875 = vmatprep.subr.bf16.mxu0 0
    %4876 = vmatpush1.bf16.msra.mxu0 0
    %4877 = vmatprep.subr.bf16.mxu0 0
    %4878 = vmatpush1.bf16.msra.mxu0 0
    %4879 = vmatprep.subr.bf16.mxu0 0
    %4880 = vmatpush1.bf16.msra.mxu0 0
    %4881 = vmatprep.subr.bf16.mxu0 0
    %4882 = vmatpush1.bf16.msra.mxu0 0
    %4883 = vmatprep.subr.bf16.mxu0 0
    %4884 = vmatpush1.bf16.msra.mxu0 0
    %4885 = vmatprep.subr.bf16.mxu0 0
    %4886 = vmatpush1.bf16.msra.mxu0 0
    %4887 = vmatprep.subr.bf16.mxu0 0
    %4888 = vmatpush1.bf16.msra.mxu0 0
    %4889 = vmatprep.subr.bf16.mxu0 0
    %4890 = vmatpush1.bf16.msra.mxu0 0
    %4891 = vmatprep.subr.bf16.mxu0 0
    %4892 = vmatpush1.bf16.msra.mxu0 0
    %4893 = vmatprep.subr.bf16.mxu0 0
    %4894 = vmatpush1.bf16.msra.mxu0 0
    %4895 = vmatprep.subr.bf16.mxu0 0
    %4896 = vmatpush1.bf16.msra.mxu0 0
    %4897 = vmatprep.subr.bf16.mxu0 0
    %4898 = vmatpush1.bf16.msra.mxu0 0
    %4899 = vmatprep.subr.bf16.mxu0 0
    %4900 = vmatpush1.bf16.msra.mxu0 0
    %4901 = vmatprep.subr.bf16.mxu0 0
    %4902 = vmatpush1.bf16.msra.mxu0 0
    %4903 = vmatprep.mubr.bf16.mxu0 0
    %4904 = vmatmul.mubr.bf16.gmra.mrb[0].mxu0 %v4851
    %v4905 = vpop.f32.mrb[0].mxu0
    %v4906 = vadd.f32 0.0, %v4905
    %v4907 = vpop.f32.mrb[0].mxu0
    %v4908 = vpop.f32.mrb[0].mxu0
    %v4909 = vadd.f32 0.0, %v4908
    %v4910 = vpop.f32.mrb[0].mxu0
    %4911 = vmatprep.mubr.bf16.mxu0 0
    %4912 = vmatmul.mubr.bf16.gmra.mrb[0].mxu0 %v4854
    %v4913 = vpop.f32.mrb[0].mxu0
    %v4914 = vadd.f32 0.0, %v4913
    %v4915 = vpop.f32.mrb[0].mxu0
    %v4916 = vpop.f32.mrb[0].mxu0
    %v4917 = vadd.f32 0.0, %v4916
    %v4918 = vpop.f32.mrb[0].mxu0
    %4919 = vmatprep.mubr.bf16.mxu0 0
    %4920 = vmatmul.mubr.bf16.gmra.mrb[0].mxu0 %v4857
    %v4921 = vpop.f32.mrb[0].mxu0
    %v4922 = vadd.f32 0.0, %v4921
    %v4923 = vpop.f32.mrb[0].mxu0
    %v4924 = vpop.f32.mrb[0].mxu0
    %v4925 = vadd.f32 0.0, %v4924
    %v4926 = vpop.f32.mrb[0].mxu0
    %4927 = vmatprep.mubr.bf16.mxu0 0
    %4928 = vmatmul.mubr.bf16.gmra.mrb[0].mxu0 %v4860
    %v4929 = vpop.f32.mrb[0].mxu0
    %v4930 = vadd.f32 0.0, %v4929
    %v4931 = vpop.f32.mrb[0].mxu0
    %v4932 = vpop.f32.mrb[0].mxu0
    %v4933 = vadd.f32 0.0, %v4932
    %v4934 = vpop.f32.mrb[0].mxu0
    %4935 = vmatprep.mubr.bf16.mxu0 0
    %4936 = vmatmul.mubr.bf16.gmra.mrb[0].mxu0 %v4863
    %v4937 = vpop.f32.mrb[0].mxu0
    %v4938 = vadd.f32 0.0, %v4937
    %v4939 = vpop.f32.mrb[0].mxu0
    %v4940 = vpop.f32.mrb[0].mxu0
    %v4941 = vadd.f32 0.0, %v4940
    %v4942 = vpop.f32.mrb[0].mxu0
    %4943 = vmatprep.mubr.bf16.mxu0 0
    %4944 = vmatmul.mubr.bf16.gmra.mrb[0].mxu0 %v4866
    %v4945 = vpop.f32.mrb[0].mxu0
    %v4946 = vadd.f32 0.0, %v4945
    %v4947 = vpop.f32.mrb[0].mxu0
    %v4948 = vpop.f32.mrb[0].mxu0
    %v4949 = vadd.f32 0.0, %v4948
    %v4950 = vpop.f32.mrb[0].mxu0
    %4951 = vmatprep.mubr.bf16.mxu0 0
    %4952 = vmatmul.mubr.bf16.gmra.mrb[0].mxu0 %v4869
    %v4953 = vpop.f32.mrb[0].mxu0
    %v4954 = vadd.f32 0.0, %v4953
    %v4955 = vpop.f32.mrb[0].mxu0
    %v4956 = vpop.f32.mrb[0].mxu0
    %v4957 = vpop.f32.mrb[0].mxu0
    %4958 = vdwg.mxu0
    %4959 = vrot.lane.b32.xlu0 %v4126, 112
    %v4960 = vpop.permute.xlu0 %4959
    %4961 = vrot.lane.b32.xlu0 %v4127, 112
    %v4962 = vpop.permute.xlu0 %4961
    %4963 = vrot.lane.b32.xlu0 %v4128, 112
    %v4964 = vpop.permute.xlu0 %4963
    %4965 = vrot.lane.b32.xlu0 %v4129, 112
    %v4966 = vpop.permute.xlu0 %4965
    %4967 = vrot.lane.b32.xlu0 %v4130, 112
    %v4968 = vpop.permute.xlu0 %4967
    %4969 = vrot.lane.b32.xlu0 %v4131, 112
    %v4970 = vpop.permute.xlu0 %4969
    %4971 = vrot.lane.b32.xlu0 %v4132, 112
    %v4972 = vpop.permute.xlu0 %4971
    %4973 = vrot.lane.b32.xlu0 %v4133, 112
    %v4974 = vpop.permute.xlu0 %4973
    %v4976 = vsel %vm2573, %v4960, 0
    %v4979 = vsel %vm2573, %v4962, 0
    %v4982 = vsel %vm2573, %v4964, 0
    %v4985 = vsel %vm2573, %v4966, 0
    %v4988 = vsel %vm2573, %v4968, 0
    %v4991 = vsel %vm2573, %v4970, 0
    %v4994 = vsel %vm2573, %v4972, 0
    %v4997 = vsel %vm2573, %v4974, 0
    %4999 = vmatprep.subr.bf16.mxu0 0
    %5000 = vmatpush1.bf16.xpose.msra.mxu0 %v4997
    %5001 = vmatprep.subr.bf16.mxu0 0
    %5002 = vmatpush1.bf16.xpose.msra.mxu0 0
    %5003 = vmatprep.subr.bf16.mxu0 0
    %5004 = vmatpush1.bf16.xpose.msra.mxu0 0
    %5005 = vmatprep.subr.bf16.mxu0 0
    %5006 = vmatpush1.bf16.xpose.msra.mxu0 0
    %5007 = vmatprep.subr.bf16.mxu0 0
    %5008 = vmatpush1.bf16.xpose.msra.mxu0 0
    %5009 = vmatprep.subr.bf16.mxu0 0
    %5010 = vmatpush1.bf16.xpose.msra.mxu0 0
    %5011 = vmatprep.subr.bf16.mxu0 0
    %5012 = vmatpush1.bf16.xpose.msra.mxu0 0
    %5013 = vmatprep.subr.bf16.mxu0 0
    %5014 = vmatpush1.bf16.xpose.msra.mxu0 0
    %5015 = vmatprep.subr.bf16.mxu0 0
    %5016 = vmatpush1.bf16.xpose.msra.mxu0 0
    %5017 = vmatprep.subr.bf16.mxu0 0
    %5018 = vmatpush1.bf16.xpose.msra.mxu0 0
    %5019 = vmatprep.subr.bf16.mxu0 0
    %5020 = vmatpush1.bf16.xpose.msra.mxu0 0
    %5021 = vmatprep.subr.bf16.mxu0 0
    %5022 = vmatpush1.bf16.xpose.msra.mxu0 0
    %5023 = vmatprep.subr.bf16.mxu0 0
    %5024 = vmatpush1.bf16.xpose.msra.mxu0 0
    %5025 = vmatprep.subr.bf16.mxu0 0
    %5026 = vmatpush1.bf16.xpose.msra.mxu0 0
    %5027 = vmatprep.subr.bf16.mxu0 0
    %5028 = vmatpush1.bf16.xpose.msra.mxu0 0
    %5029 = vmatprep.subr.bf16.mxu0 0
    %5030 = vmatpush1.bf16.xpose.msra.mxu0 0
    %5031 = vmatprep.mubr.bf16.mxu0 0
    %5032 = vmatmul.mubr.bf16.gmra.mrb[0].mxu0 %v4976
    %v5033 = vpop.f32.mrb[0].mxu0
    %v5034 = vadd.f32 0.0, %v5033
    %v5035 = vpop.f32.mrb[0].mxu0
    %v5036 = vpop.f32.mrb[0].mxu0
    %v5037 = vadd.f32 0.0, %v5036
    %v5038 = vpop.f32.mrb[0].mxu0
    %5039 = vmatprep.mubr.bf16.mxu0 0
    %5040 = vmatmul.mubr.bf16.gmra.mrb[0].mxu0 %v4979
    %v5041 = vpop.f32.mrb[0].mxu0
    %v5042 = vadd.f32 0.0, %v5041
    %v5043 = vpop.f32.mrb[0].mxu0
    %v5044 = vpop.f32.mrb[0].mxu0
    %v5045 = vadd.f32 0.0, %v5044
    %v5046 = vpop.f32.mrb[0].mxu0
    %5047 = vmatprep.mubr.bf16.mxu0 0
    %5048 = vmatmul.mubr.bf16.gmra.mrb[0].mxu0 %v4982
    %v5049 = vpop.f32.mrb[0].mxu0
    %v5050 = vadd.f32 0.0, %v5049
    %v5051 = vpop.f32.mrb[0].mxu0
    %v5052 = vpop.f32.mrb[0].mxu0
    %v5053 = vadd.f32 0.0, %v5052
    %v5054 = vpop.f32.mrb[0].mxu0
    %5055 = vmatprep.mubr.bf16.mxu0 0
    %5056 = vmatmul.mubr.bf16.gmra.mrb[0].mxu0 %v4985
    %v5057 = vpop.f32.mrb[0].mxu0
    %v5058 = vadd.f32 0.0, %v5057
    %v5059 = vpop.f32.mrb[0].mxu0
    %v5060 = vpop.f32.mrb[0].mxu0
    %v5061 = vadd.f32 0.0, %v5060
    %v5062 = vpop.f32.mrb[0].mxu0
    %5063 = vmatprep.mubr.bf16.mxu0 0
    %5064 = vmatmul.mubr.bf16.gmra.mrb[0].mxu0 %v4988
    %v5065 = vpop.f32.mrb[0].mxu0
    %v5066 = vadd.f32 0.0, %v5065
    %v5067 = vpop.f32.mrb[0].mxu0
    %v5068 = vpop.f32.mrb[0].mxu0
    %v5069 = vadd.f32 0.0, %v5068
    %v5070 = vpop.f32.mrb[0].mxu0
    %5071 = vmatprep.mubr.bf16.mxu0 0
    %5072 = vmatmul.mubr.bf16.gmra.mrb[0].mxu0 %v4991
    %v5073 = vpop.f32.mrb[0].mxu0
    %v5074 = vadd.f32 0.0, %v5073
    %v5075 = vpop.f32.mrb[0].mxu0
    %v5076 = vpop.f32.mrb[0].mxu0
    %v5077 = vadd.f32 0.0, %v5076
    %v5078 = vpop.f32.mrb[0].mxu0
    %5079 = vmatprep.mubr.bf16.mxu0 0
    %5080 = vmatmul.mubr.bf16.gmra.mrb[0].mxu0 %v4994
    %v5081 = vpop.f32.mrb[0].mxu0
    %v5082 = vadd.f32 0.0, %v5081
    %v5083 = vpop.f32.mrb[0].mxu0
    %v5084 = vpop.f32.mrb[0].mxu0
    %v5085 = vpop.f32.mrb[0].mxu0
    %5086 = vdwg.mxu0
    %v5087 = vmul.f32 %v5034, 0.35355338
    %v5088 = vmul.f32 %v5037, 0.35355338
    %v5089 = vmul.f32 %v5042, 0.35355338
    %v5090 = vmul.f32 %v5045, 0.35355338
    %v5091 = vmul.f32 %v5050, 0.35355338
    %v5092 = vmul.f32 %v5053, 0.35355338
    %v5093 = vmul.f32 %v5058, 0.35355338
    %v5094 = vmul.f32 %v5061, 0.35355338
    %v5095 = vmul.f32 %v5066, 0.35355338
    %v5096 = vmul.f32 %v5069, 0.35355338
    %v5097 = vmul.f32 %v5074, 0.35355338
    %v5098 = vmul.f32 %v5077, 0.35355338
    %v5099 = vmul.f32 %v5082, 0.35355338
    %v5100 = vadd.f32 %v5087, %v73
    %v5101 = vadd.f32 %v5088, %v74
    %v5102 = vadd.f32 %v5089, %v75
    %v5103 = vadd.f32 %v5090, %v76
    %v5104 = vadd.f32 %v5091, %v77
    %v5105 = vadd.f32 %v5092, %v78
    %v5106 = vadd.f32 %v5093, %v79
    %v5107 = vadd.f32 %v5094, %v80
    %v5108 = vadd.f32 %v5095, %v81
    %v5109 = vadd.f32 %v5096, %v82
    %v5110 = vadd.f32 %v5097, %v83
    %v5111 = vadd.f32 %v5098, %v84
    %v5112 = vadd.f32 %v5099, %v85
    %v5113 = vsel %vm2625, %v5100, -inf
    %5114 = vmax.xlane.f32.xlu0 %v5113
    %v5115 = vpop.xlane.xlu0 %5114
    %v5116 = vsel %vm2625, %v5101, -inf
    %5117 = vmax.xlane.f32.xlu0 %v5116
    %v5118 = vpop.xlane.xlu0 %5117
    %v5119 = vsel %vm2625, %v5102, -inf
    %5120 = vmax.xlane.f32.xlu0 %v5119
    %v5121 = vpop.xlane.xlu0 %5120
    %v5122 = vsel %vm2625, %v5103, -inf
    %5123 = vmax.xlane.f32.xlu0 %v5122
    %v5124 = vpop.xlane.xlu0 %5123
    %v5125 = vsel %vm2625, %v5104, -inf
    %5126 = vmax.xlane.f32.xlu0 %v5125
    %v5127 = vpop.xlane.xlu0 %5126
    %v5128 = vsel %vm2625, %v5105, -inf
    %5129 = vmax.xlane.f32.xlu0 %v5128
    %v5130 = vpop.xlane.xlu0 %5129
    %v5131 = vsel %vm2625, %v5106, -inf
    %5132 = vmax.xlane.f32.xlu0 %v5131
    %v5133 = vpop.xlane.xlu0 %5132
    %v5134 = vsel %vm2625, %v5107, -inf
    %5135 = vmax.xlane.f32.xlu0 %v5134
    %v5136 = vpop.xlane.xlu0 %5135
    %v5137 = vsel %vm2625, %v5108, -inf
    %5138 = vmax.xlane.f32.xlu0 %v5137
    %v5139 = vpop.xlane.xlu0 %5138
    %v5140 = vsel %vm2625, %v5109, -inf
    %5141 = vmax.xlane.f32.xlu0 %v5140
    %v5142 = vpop.xlane.xlu0 %5141
    %v5143 = vsel %vm2625, %v5110, -inf
    %5144 = vmax.xlane.f32.xlu0 %v5143
    %v5145 = vpop.xlane.xlu0 %5144
    %v5146 = vsel %vm2625, %v5111, -inf
    %5147 = vmax.xlane.f32.xlu0 %v5146
    %v5148 = vpop.xlane.xlu0 %5147
    %v5149 = vsel %vm4308, %v5112, -inf
    %5150 = vmax.xlane.f32.xlu0 %v5149
    %v5151 = vpop.xlane.xlu0 %5150
    %v5152 = vsub.f32 %v5100, %v5115
    %v5153 = vsub.f32 %v5101, %v5118
    %v5154 = vsub.f32 %v5102, %v5121
    %v5155 = vsub.f32 %v5103, %v5124
    %v5156 = vsub.f32 %v5104, %v5127
    %v5157 = vsub.f32 %v5105, %v5130
    %v5158 = vsub.f32 %v5106, %v5133
    %v5159 = vsub.f32 %v5107, %v5136
    %v5160 = vsub.f32 %v5108, %v5139
    %v5161 = vsub.f32 %v5109, %v5142
    %v5162 = vsub.f32 %v5110, %v5145
    %v5163 = vsub.f32 %v5111, %v5148
    %v5164 = vsub.f32 %v5112, %v5151
    %v5165 = vmul.f32 %v5152, 1.442695
    %v5166 = vpow.pop %v5165
    %v5167 = vmul.f32 %v5153, 1.442695
    %v5168 = vpow.pop %v5167
    %v5169 = vmul.f32 %v5154, 1.442695
    %v5170 = vpow.pop %v5169
    %v5171 = vmul.f32 %v5155, 1.442695
    %v5172 = vpow.pop %v5171
    %v5173 = vmul.f32 %v5156, 1.442695
    %v5174 = vpow.pop %v5173
    %v5175 = vmul.f32 %v5157, 1.442695
    %v5176 = vpow.pop %v5175
    %v5177 = vmul.f32 %v5158, 1.442695
    %v5178 = vpow.pop %v5177
    %v5179 = vmul.f32 %v5159, 1.442695
    %v5180 = vpow.pop %v5179
    %v5181 = vmul.f32 %v5160, 1.442695
    %v5182 = vpow.pop %v5181
    %v5183 = vmul.f32 %v5161, 1.442695
    %v5184 = vpow.pop %v5183
    %v5185 = vmul.f32 %v5162, 1.442695
    %v5186 = vpow.pop %v5185
    %v5187 = vmul.f32 %v5163, 1.442695
    %v5188 = vpow.pop %v5187
    %v5189 = vmul.f32 %v5164, 1.442695
    %v5190 = vpow.pop %v5189
    %v5191 = vsel %vm2625, %v5166, 0.0
    %5192 = vadd.xlane.f32.xlu0 %v5191
    %v5193 = vpop.xlane.xlu0 %5192
    %v5194 = vsel %vm2625, %v5168, 0.0
    %5195 = vadd.xlane.f32.xlu0 %v5194
    %v5196 = vpop.xlane.xlu0 %5195
    %v5197 = vsel %vm2625, %v5170, 0.0
    %5198 = vadd.xlane.f32.xlu0 %v5197
    %v5199 = vpop.xlane.xlu0 %5198
    %v5200 = vsel %vm2625, %v5172, 0.0
    %5201 = vadd.xlane.f32.xlu0 %v5200
    %v5202 = vpop.xlane.xlu0 %5201
    %v5203 = vsel %vm2625, %v5174, 0.0
    %5204 = vadd.xlane.f32.xlu0 %v5203
    %v5205 = vpop.xlane.xlu0 %5204
    %v5206 = vsel %vm2625, %v5176, 0.0
    %5207 = vadd.xlane.f32.xlu0 %v5206
    %v5208 = vpop.xlane.xlu0 %5207
    %v5209 = vsel %vm2625, %v5178, 0.0
    %5210 = vadd.xlane.f32.xlu0 %v5209
    %v5211 = vpop.xlane.xlu0 %5210
    %v5212 = vsel %vm2625, %v5180, 0.0
    %5213 = vadd.xlane.f32.xlu0 %v5212
    %v5214 = vpop.xlane.xlu0 %5213
    %v5215 = vsel %vm2625, %v5182, 0.0
    %5216 = vadd.xlane.f32.xlu0 %v5215
    %v5217 = vpop.xlane.xlu0 %5216
    %v5218 = vsel %vm2625, %v5184, 0.0
    %5219 = vadd.xlane.f32.xlu0 %v5218
    %v5220 = vpop.xlane.xlu0 %5219
    %v5221 = vsel %vm2625, %v5186, 0.0
    %5222 = vadd.xlane.f32.xlu0 %v5221
    %v5223 = vpop.xlane.xlu0 %5222
    %v5224 = vsel %vm2625, %v5188, 0.0
    %5225 = vadd.xlane.f32.xlu0 %v5224
    %v5226 = vpop.xlane.xlu0 %5225
    %v5227 = vsel %vm4308, %v5190, 0.0
    %5228 = vadd.xlane.f32.xlu0 %v5227
    %v5229 = vpop.xlane.xlu0 %5228
    %v5230 = vrcp.pop %v5193
    %v5231 = vmul.f32 %v5166, %v5230
    %v5232 = vrcp.pop %v5196
    %v5233 = vmul.f32 %v5168, %v5232
    %v5234 = vrcp.pop %v5199
    %v5235 = vmul.f32 %v5170, %v5234
    %v5236 = vrcp.pop %v5202
    %v5237 = vmul.f32 %v5172, %v5236
    %v5238 = vrcp.pop %v5205
    %v5239 = vmul.f32 %v5174, %v5238
    %v5240 = vrcp.pop %v5208
    %v5241 = vmul.f32 %v5176, %v5240
    %v5242 = vrcp.pop %v5211
    %v5243 = vmul.f32 %v5178, %v5242
    %v5244 = vrcp.pop %v5214
    %v5245 = vmul.f32 %v5180, %v5244
    %v5246 = vrcp.pop %v5217
    %v5247 = vmul.f32 %v5182, %v5246
    %v5248 = vrcp.pop %v5220
    %v5249 = vmul.f32 %v5184, %v5248
    %v5250 = vrcp.pop %v5223
    %v5251 = vmul.f32 %v5186, %v5250
    %v5252 = vrcp.pop %v5226
    %v5253 = vmul.f32 %v5188, %v5252
    %v5254 = vrcp.pop %v5229
    %v5255 = vmul.f32 %v5190, %v5254
    %v5256 = vpack.c.bf16 %v5233, %v5231
    %v5257 = vpack.c.bf16 %v5237, %v5235
    %v5258 = vpack.c.bf16 %v5241, %v5239
    %v5259 = vpack.c.bf16 %v5245, %v5243
    %v5260 = vpack.c.bf16 %v5249, %v5247
    %v5261 = vpack.c.bf16 %v5253, %v5251
    %v5262 = vpack.c.bf16 %v5255, %v5255
    %5263 = vrot.lane.b32.xlu0 %v4133, 80
    %v5264 = vpop.permute.xlu0 %5263
    %v5267 = vsel %vm2625, %v5256, 0
    %v5270 = vsel %vm2625, %v5257, 0
    %v5273 = vsel %vm2625, %v5258, 0
    %v5276 = vsel %vm2625, %v5259, 0
    %v5279 = vsel %vm2625, %v5260, 0
    %v5282 = vsel %vm2625, %v5261, 0
    %v5285 = vsel %vm2625, %v5262, 0
    %5287 = vmatprep.subr.bf16.mxu0 0
    %5288 = vmatpush1.bf16.msra.mxu0 %v5264
    %5289 = vmatprep.subr.bf16.mxu0 0
    %5290 = vmatpush1.bf16.msra.mxu0 0
    %5291 = vmatprep.subr.bf16.mxu0 0
    %5292 = vmatpush1.bf16.msra.mxu0 0
    %5293 = vmatprep.subr.bf16.mxu0 0
    %5294 = vmatpush1.bf16.msra.mxu0 0
    %5295 = vmatprep.subr.bf16.mxu0 0
    %5296 = vmatpush1.bf16.msra.mxu0 0
    %5297 = vmatprep.subr.bf16.mxu0 0
    %5298 = vmatpush1.bf16.msra.mxu0 0
    %5299 = vmatprep.subr.bf16.mxu0 0
    %5300 = vmatpush1.bf16.msra.mxu0 0
    %5301 = vmatprep.subr.bf16.mxu0 0
    %5302 = vmatpush1.bf16.msra.mxu0 0
    %5303 = vmatprep.subr.bf16.mxu0 0
    %5304 = vmatpush1.bf16.msra.mxu0 0
    %5305 = vmatprep.subr.bf16.mxu0 0
    %5306 = vmatpush1.bf16.msra.mxu0 0
    %5307 = vmatprep.subr.bf16.mxu0 0
    %5308 = vmatpush1.bf16.msra.mxu0 0
    %5309 = vmatprep.subr.bf16.mxu0 0
    %5310 = vmatpush1.bf16.msra.mxu0 0
    %5311 = vmatprep.subr.bf16.mxu0 0
    %5312 = vmatpush1.bf16.msra.mxu0 0
    %5313 = vmatprep.subr.bf16.mxu0 0
    %5314 = vmatpush1.bf16.msra.mxu0 0
    %5315 = vmatprep.subr.bf16.mxu0 0
    %5316 = vmatpush1.bf16.msra.mxu0 0
    %5317 = vmatprep.subr.bf16.mxu0 0
    %5318 = vmatpush1.bf16.msra.mxu0 0
    %5319 = vmatprep.mubr.bf16.mxu0 0
    %5320 = vmatmul.mubr.bf16.gmra.mrb[0].mxu0 %v5267
    %v5321 = vpop.f32.mrb[0].mxu0
    %v5322 = vadd.f32 0.0, %v5321
    %v5323 = vpop.f32.mrb[0].mxu0
    %v5324 = vpop.f32.mrb[0].mxu0
    %v5325 = vadd.f32 0.0, %v5324
    %v5326 = vpop.f32.mrb[0].mxu0
    %5327 = vmatprep.mubr.bf16.mxu0 0
    %5328 = vmatmul.mubr.bf16.gmra.mrb[0].mxu0 %v5270
    %v5329 = vpop.f32.mrb[0].mxu0
    %v5330 = vadd.f32 0.0, %v5329
    %v5331 = vpop.f32.mrb[0].mxu0
    %v5332 = vpop.f32.mrb[0].mxu0
    %v5333 = vadd.f32 0.0, %v5332
    %v5334 = vpop.f32.mrb[0].mxu0
    %5335 = vmatprep.mubr.bf16.mxu0 0
    %5336 = vmatmul.mubr.bf16.gmra.mrb[0].mxu0 %v5273
    %v5337 = vpop.f32.mrb[0].mxu0
    %v5338 = vadd.f32 0.0, %v5337
    %v5339 = vpop.f32.mrb[0].mxu0
    %v5340 = vpop.f32.mrb[0].mxu0
    %v5341 = vadd.f32 0.0, %v5340
    %v5342 = vpop.f32.mrb[0].mxu0
    %5343 = vmatprep.mubr.bf16.mxu0 0
    %5344 = vmatmul.mubr.bf16.gmra.mrb[0].mxu0 %v5276
    %v5345 = vpop.f32.mrb[0].mxu0
    %v5346 = vadd.f32 0.0, %v5345
    %v5347 = vpop.f32.mrb[0].mxu0
    %v5348 = vpop.f32.mrb[0].mxu0
    %v5349 = vadd.f32 0.0, %v5348
    %v5350 = vpop.f32.mrb[0].mxu0
    %5351 = vmatprep.mubr.bf16.mxu0 0
    %5352 = vmatmul.mubr.bf16.gmra.mrb[0].mxu0 %v5279
    %v5353 = vpop.f32.mrb[0].mxu0
    %v5354 = vadd.f32 0.0, %v5353
    %v5355 = vpop.f32.mrb[0].mxu0
    %v5356 = vpop.f32.mrb[0].mxu0
    %v5357 = vadd.f32 0.0, %v5356
    %v5358 = vpop.f32.mrb[0].mxu0
    %5359 = vmatprep.mubr.bf16.mxu0 0
    %5360 = vmatmul.mubr.bf16.gmra.mrb[0].mxu0 %v5282
    %v5361 = vpop.f32.mrb[0].mxu0
    %v5362 = vadd.f32 0.0, %v5361
    %v5363 = vpop.f32.mrb[0].mxu0
    %v5364 = vpop.f32.mrb[0].mxu0
    %v5365 = vadd.f32 0.0, %v5364
    %v5366 = vpop.f32.mrb[0].mxu0
    %5367 = vmatprep.mubr.bf16.mxu0 0
    %5368 = vmatmul.mubr.bf16.gmra.mrb[0].mxu0 %v5285
    %v5369 = vpop.f32.mrb[0].mxu0
    %v5370 = vadd.f32 0.0, %v5369
    %v5371 = vpop.f32.mrb[0].mxu0
    %v5372 = vpop.f32.mrb[0].mxu0
    %v5373 = vpop.f32.mrb[0].mxu0
    %5374 = vdwg.mxu0
    %5375 = vrot.lane.b32.xlu0 %v4126, 104
    %v5376 = vpop.permute.xlu0 %5375
    %5377 = vrot.lane.b32.xlu0 %v4127, 104
    %v5378 = vpop.permute.xlu0 %5377
    %5379 = vrot.lane.b32.xlu0 %v4128, 104
    %v5380 = vpop.permute.xlu0 %5379
    %5381 = vrot.lane.b32.xlu0 %v4129, 104
    %v5382 = vpop.permute.xlu0 %5381
    %5383 = vrot.lane.b32.xlu0 %v4130, 104
    %v5384 = vpop.permute.xlu0 %5383
    %5385 = vrot.lane.b32.xlu0 %v4131, 104
    %v5386 = vpop.permute.xlu0 %5385
    %5387 = vrot.lane.b32.xlu0 %v4132, 104
    %v5388 = vpop.permute.xlu0 %5387
    %5389 = vrot.lane.b32.xlu0 %v4133, 104
    %v5390 = vpop.permute.xlu0 %5389
    %v5392 = vsel %vm2573, %v5376, 0
    %v5395 = vsel %vm2573, %v5378, 0
    %v5398 = vsel %vm2573, %v5380, 0
    %v5401 = vsel %vm2573, %v5382, 0
    %v5404 = vsel %vm2573, %v5384, 0
    %v5407 = vsel %vm2573, %v5386, 0
    %v5410 = vsel %vm2573, %v5388, 0
    %v5413 = vsel %vm2573, %v5390, 0
    %5415 = vmatprep.subr.bf16.mxu0 0
    %5416 = vmatpush1.bf16.xpose.msra.mxu0 %v5413
    %5417 = vmatprep.subr.bf16.mxu0 0
    %5418 = vmatpush1.bf16.xpose.msra.mxu0 0
    %5419 = vmatprep.subr.bf16.mxu0 0
    %5420 = vmatpush1.bf16.xpose.msra.mxu0 0
    %5421 = vmatprep.subr.bf16.mxu0 0
    %5422 = vmatpush1.bf16.xpose.msra.mxu0 0
    %5423 = vmatprep.subr.bf16.mxu0 0
    %5424 = vmatpush1.bf16.xpose.msra.mxu0 0
    %5425 = vmatprep.subr.bf16.mxu0 0
    %5426 = vmatpush1.bf16.xpose.msra.mxu0 0
    %5427 = vmatprep.subr.bf16.mxu0 0
    %5428 = vmatpush1.bf16.xpose.msra.mxu0 0
    %5429 = vmatprep.subr.bf16.mxu0 0
    %5430 = vmatpush1.bf16.xpose.msra.mxu0 0
    %5431 = vmatprep.subr.bf16.mxu0 0
    %5432 = vmatpush1.bf16.xpose.msra.mxu0 0
    %5433 = vmatprep.subr.bf16.mxu0 0
    %5434 = vmatpush1.bf16.xpose.msra.mxu0 0
    %5435 = vmatprep.subr.bf16.mxu0 0
    %5436 = vmatpush1.bf16.xpose.msra.mxu0 0
    %5437 = vmatprep.subr.bf16.mxu0 0
    %5438 = vmatpush1.bf16.xpose.msra.mxu0 0
    %5439 = vmatprep.subr.bf16.mxu0 0
    %5440 = vmatpush1.bf16.xpose.msra.mxu0 0
    %5441 = vmatprep.subr.bf16.mxu0 0
    %5442 = vmatpush1.bf16.xpose.msra.mxu0 0
    %5443 = vmatprep.subr.bf16.mxu0 0
    %5444 = vmatpush1.bf16.xpose.msra.mxu0 0
    %5445 = vmatprep.subr.bf16.mxu0 0
    %5446 = vmatpush1.bf16.xpose.msra.mxu0 0
    %5447 = vmatprep.mubr.bf16.mxu0 0
    %5448 = vmatmul.mubr.bf16.gmra.mrb[0].mxu0 %v5392
    %v5449 = vpop.f32.mrb[0].mxu0
    %v5450 = vadd.f32 0.0, %v5449
    %v5451 = vpop.f32.mrb[0].mxu0
    %v5452 = vpop.f32.mrb[0].mxu0
    %v5453 = vadd.f32 0.0, %v5452
    %v5454 = vpop.f32.mrb[0].mxu0
    %5455 = vmatprep.mubr.bf16.mxu0 0
    %5456 = vmatmul.mubr.bf16.gmra.mrb[0].mxu0 %v5395
    %v5457 = vpop.f32.mrb[0].mxu0
    %v5458 = vadd.f32 0.0, %v5457
    %v5459 = vpop.f32.mrb[0].mxu0
    %v5460 = vpop.f32.mrb[0].mxu0
    %v5461 = vadd.f32 0.0, %v5460
    %v5462 = vpop.f32.mrb[0].mxu0
    %5463 = vmatprep.mubr.bf16.mxu0 0
    %5464 = vmatmul.mubr.bf16.gmra.mrb[0].mxu0 %v5398
    %v5465 = vpop.f32.mrb[0].mxu0
    %v5466 = vadd.f32 0.0, %v5465
    %v5467 = vpop.f32.mrb[0].mxu0
    %v5468 = vpop.f32.mrb[0].mxu0
    %v5469 = vadd.f32 0.0, %v5468
    %v5470 = vpop.f32.mrb[0].mxu0
    %5471 = vmatprep.mubr.bf16.mxu0 0
    %5472 = vmatmul.mubr.bf16.gmra.mrb[0].mxu0 %v5401
    %v5473 = vpop.f32.mrb[0].mxu0
    %v5474 = vadd.f32 0.0, %v5473
    %v5475 = vpop.f32.mrb[0].mxu0
    %v5476 = vpop.f32.mrb[0].mxu0
    %v5477 = vadd.f32 0.0, %v5476
    %v5478 = vpop.f32.mrb[0].mxu0
    %5479 = vmatprep.mubr.bf16.mxu0 0
    %5480 = vmatmul.mubr.bf16.gmra.mrb[0].mxu0 %v5404
    %v5481 = vpop.f32.mrb[0].mxu0
    %v5482 = vadd.f32 0.0, %v5481
    %v5483 = vpop.f32.mrb[0].mxu0
    %v5484 = vpop.f32.mrb[0].mxu0
    %v5485 = vadd.f32 0.0, %v5484
    %v5486 = vpop.f32.mrb[0].mxu0
    %5487 = vmatprep.mubr.bf16.mxu0 0
    %5488 = vmatmul.mubr.bf16.gmra.mrb[0].mxu0 %v5407
    %v5489 = vpop.f32.mrb[0].mxu0
    %v5490 = vadd.f32 0.0, %v5489
    %v5491 = vpop.f32.mrb[0].mxu0
    %v5492 = vpop.f32.mrb[0].mxu0
    %v5493 = vadd.f32 0.0, %v5492
    %v5494 = vpop.f32.mrb[0].mxu0
    %5495 = vmatprep.mubr.bf16.mxu0 0
    %5496 = vmatmul.mubr.bf16.gmra.mrb[0].mxu0 %v5410
    %v5497 = vpop.f32.mrb[0].mxu0
    %v5498 = vadd.f32 0.0, %v5497
    %v5499 = vpop.f32.mrb[0].mxu0
    %v5500 = vpop.f32.mrb[0].mxu0
    %v5501 = vpop.f32.mrb[0].mxu0
    %5502 = vdwg.mxu0
    %v5503 = vmul.f32 %v5450, 0.35355338
    %v5504 = vmul.f32 %v5453, 0.35355338
    %v5505 = vmul.f32 %v5458, 0.35355338
    %v5506 = vmul.f32 %v5461, 0.35355338
    %v5507 = vmul.f32 %v5466, 0.35355338
    %v5508 = vmul.f32 %v5469, 0.35355338
    %v5509 = vmul.f32 %v5474, 0.35355338
    %v5510 = vmul.f32 %v5477, 0.35355338
    %v5511 = vmul.f32 %v5482, 0.35355338
    %v5512 = vmul.f32 %v5485, 0.35355338
    %v5513 = vmul.f32 %v5490, 0.35355338
    %v5514 = vmul.f32 %v5493, 0.35355338
    %v5515 = vmul.f32 %v5498, 0.35355338
    %v5516 = vadd.f32 %v5503, %v73
    %v5517 = vadd.f32 %v5504, %v74
    %v5518 = vadd.f32 %v5505, %v75
    %v5519 = vadd.f32 %v5506, %v76
    %v5520 = vadd.f32 %v5507, %v77
    %v5521 = vadd.f32 %v5508, %v78
    %v5522 = vadd.f32 %v5509, %v79
    %v5523 = vadd.f32 %v5510, %v80
    %v5524 = vadd.f32 %v5511, %v81
    %v5525 = vadd.f32 %v5512, %v82
    %v5526 = vadd.f32 %v5513, %v83
    %v5527 = vadd.f32 %v5514, %v84
    %v5528 = vadd.f32 %v5515, %v85
    %v5529 = vsel %vm2625, %v5516, -inf
    %5530 = vmax.xlane.f32.xlu0 %v5529
    %v5531 = vpop.xlane.xlu0 %5530
    %v5532 = vsel %vm2625, %v5517, -inf
    %5533 = vmax.xlane.f32.xlu0 %v5532
    %v5534 = vpop.xlane.xlu0 %5533
    %v5535 = vsel %vm2625, %v5518, -inf
    %5536 = vmax.xlane.f32.xlu0 %v5535
    %v5537 = vpop.xlane.xlu0 %5536
    %v5538 = vsel %vm2625, %v5519, -inf
    %5539 = vmax.xlane.f32.xlu0 %v5538
    %v5540 = vpop.xlane.xlu0 %5539
    %v5541 = vsel %vm2625, %v5520, -inf
    %5542 = vmax.xlane.f32.xlu0 %v5541
    %v5543 = vpop.xlane.xlu0 %5542
    %v5544 = vsel %vm2625, %v5521, -inf
    %5545 = vmax.xlane.f32.xlu0 %v5544
    %v5546 = vpop.xlane.xlu0 %5545
    %v5547 = vsel %vm2625, %v5522, -inf
    %5548 = vmax.xlane.f32.xlu0 %v5547
    %v5549 = vpop.xlane.xlu0 %5548
    %v5550 = vsel %vm2625, %v5523, -inf
    %5551 = vmax.xlane.f32.xlu0 %v5550
    %v5552 = vpop.xlane.xlu0 %5551
    %v5553 = vsel %vm2625, %v5524, -inf
    %5554 = vmax.xlane.f32.xlu0 %v5553
    %v5555 = vpop.xlane.xlu0 %5554
    %v5556 = vsel %vm2625, %v5525, -inf
    %5557 = vmax.xlane.f32.xlu0 %v5556
    %v5558 = vpop.xlane.xlu0 %5557
    %v5559 = vsel %vm2625, %v5526, -inf
    %5560 = vmax.xlane.f32.xlu0 %v5559
    %v5561 = vpop.xlane.xlu0 %5560
    %v5562 = vsel %vm2625, %v5527, -inf
    %5563 = vmax.xlane.f32.xlu0 %v5562
    %v5564 = vpop.xlane.xlu0 %5563
    %v5565 = vsel %vm4308, %v5528, -inf
    %5566 = vmax.xlane.f32.xlu0 %v5565
    %v5567 = vpop.xlane.xlu0 %5566
    %v5568 = vsub.f32 %v5516, %v5531
    %v5569 = vsub.f32 %v5517, %v5534
    %v5570 = vsub.f32 %v5518, %v5537
    %v5571 = vsub.f32 %v5519, %v5540
    %v5572 = vsub.f32 %v5520, %v5543
    %v5573 = vsub.f32 %v5521, %v5546
    %v5574 = vsub.f32 %v5522, %v5549
    %v5575 = vsub.f32 %v5523, %v5552
    %v5576 = vsub.f32 %v5524, %v5555
    %v5577 = vsub.f32 %v5525, %v5558
    %v5578 = vsub.f32 %v5526, %v5561
    %v5579 = vsub.f32 %v5527, %v5564
    %v5580 = vsub.f32 %v5528, %v5567
    %v5581 = vmul.f32 %v5568, 1.442695
    %v5582 = vpow.pop %v5581
    %v5583 = vmul.f32 %v5569, 1.442695
    %v5584 = vpow.pop %v5583
    %v5585 = vmul.f32 %v5570, 1.442695
    %v5586 = vpow.pop %v5585
    %v5587 = vmul.f32 %v5571, 1.442695
    %v5588 = vpow.pop %v5587
    %v5589 = vmul.f32 %v5572, 1.442695
    %v5590 = vpow.pop %v5589
    %v5591 = vmul.f32 %v5573, 1.442695
    %v5592 = vpow.pop %v5591
    %v5593 = vmul.f32 %v5574, 1.442695
    %v5594 = vpow.pop %v5593
    %v5595 = vmul.f32 %v5575, 1.442695
    %v5596 = vpow.pop %v5595
    %v5597 = vmul.f32 %v5576, 1.442695
    %v5598 = vpow.pop %v5597
    %v5599 = vmul.f32 %v5577, 1.442695
    %v5600 = vpow.pop %v5599
    %v5601 = vmul.f32 %v5578, 1.442695
    %v5602 = vpow.pop %v5601
    %v5603 = vmul.f32 %v5579, 1.442695
    %v5604 = vpow.pop %v5603
    %v5605 = vmul.f32 %v5580, 1.442695
    %v5606 = vpow.pop %v5605
    %v5607 = vsel %vm2625, %v5582, 0.0
    %5608 = vadd.xlane.f32.xlu0 %v5607
    %v5609 = vpop.xlane.xlu0 %5608
    %v5610 = vsel %vm2625, %v5584, 0.0
    %5611 = vadd.xlane.f32.xlu0 %v5610
    %v5612 = vpop.xlane.xlu0 %5611
    %v5613 = vsel %vm2625, %v5586, 0.0
    %5614 = vadd.xlane.f32.xlu0 %v5613
    %v5615 = vpop.xlane.xlu0 %5614
    %v5616 = vsel %vm2625, %v5588, 0.0
    %5617 = vadd.xlane.f32.xlu0 %v5616
    %v5618 = vpop.xlane.xlu0 %5617
    %v5619 = vsel %vm2625, %v5590, 0.0
    %5620 = vadd.xlane.f32.xlu0 %v5619
    %v5621 = vpop.xlane.xlu0 %5620
    %v5622 = vsel %vm2625, %v5592, 0.0
    %5623 = vadd.xlane.f32.xlu0 %v5622
    %v5624 = vpop.xlane.xlu0 %5623
    %v5625 = vsel %vm2625, %v5594, 0.0
    %5626 = vadd.xlane.f32.xlu0 %v5625
    %v5627 = vpop.xlane.xlu0 %5626
    %v5628 = vsel %vm2625, %v5596, 0.0
    %5629 = vadd.xlane.f32.xlu0 %v5628
    %v5630 = vpop.xlane.xlu0 %5629
    %v5631 = vsel %vm2625, %v5598, 0.0
    %5632 = vadd.xlane.f32.xlu0 %v5631
    %v5633 = vpop.xlane.xlu0 %5632
    %v5634 = vsel %vm2625, %v5600, 0.0
    %5635 = vadd.xlane.f32.xlu0 %v5634
    %v5636 = vpop.xlane.xlu0 %5635
    %v5637 = vsel %vm2625, %v5602, 0.0
    %5638 = vadd.xlane.f32.xlu0 %v5637
    %v5639 = vpop.xlane.xlu0 %5638
    %v5640 = vsel %vm2625, %v5604, 0.0
    %5641 = vadd.xlane.f32.xlu0 %v5640
    %v5642 = vpop.xlane.xlu0 %5641
    %v5643 = vsel %vm4308, %v5606, 0.0
    %5644 = vadd.xlane.f32.xlu0 %v5643
    %v5645 = vpop.xlane.xlu0 %5644
    %v5646 = vrcp.pop %v5609
    %v5647 = vmul.f32 %v5582, %v5646
    %v5648 = vrcp.pop %v5612
    %v5649 = vmul.f32 %v5584, %v5648
    %v5650 = vrcp.pop %v5615
    %v5651 = vmul.f32 %v5586, %v5650
    %v5652 = vrcp.pop %v5618
    %v5653 = vmul.f32 %v5588, %v5652
    %v5654 = vrcp.pop %v5621
    %v5655 = vmul.f32 %v5590, %v5654
    %v5656 = vrcp.pop %v5624
    %v5657 = vmul.f32 %v5592, %v5656
    %v5658 = vrcp.pop %v5627
    %v5659 = vmul.f32 %v5594, %v5658
    %v5660 = vrcp.pop %v5630
    %v5661 = vmul.f32 %v5596, %v5660
    %v5662 = vrcp.pop %v5633
    %v5663 = vmul.f32 %v5598, %v5662
    %v5664 = vrcp.pop %v5636
    %v5665 = vmul.f32 %v5600, %v5664
    %v5666 = vrcp.pop %v5639
    %v5667 = vmul.f32 %v5602, %v5666
    %v5668 = vrcp.pop %v5642
    %v5669 = vmul.f32 %v5604, %v5668
    %v5670 = vrcp.pop %v5645
    %v5671 = vmul.f32 %v5606, %v5670
    %v5672 = vpack.c.bf16 %v5649, %v5647
    %v5673 = vpack.c.bf16 %v5653, %v5651
    %v5674 = vpack.c.bf16 %v5657, %v5655
    %v5675 = vpack.c.bf16 %v5661, %v5659
    %v5676 = vpack.c.bf16 %v5665, %v5663
    %v5677 = vpack.c.bf16 %v5669, %v5667
    %v5678 = vpack.c.bf16 %v5671, %v5671
    %5679 = vrot.lane.b32.xlu0 %v4133, 72
    %v5680 = vpop.permute.xlu0 %5679
    %v5683 = vsel %vm2625, %v5672, 0
    %v5686 = vsel %vm2625, %v5673, 0
    %v5689 = vsel %vm2625, %v5674, 0
    %v5692 = vsel %vm2625, %v5675, 0
    %v5695 = vsel %vm2625, %v5676, 0
    %v5698 = vsel %vm2625, %v5677, 0
    %v5701 = vsel %vm2625, %v5678, 0
    %5703 = vmatprep.subr.bf16.mxu0 0
    %5704 = vmatpush1.bf16.msra.mxu0 %v5680
    %5705 = vmatprep.subr.bf16.mxu0 0
    %5706 = vmatpush1.bf16.msra.mxu0 0
    %5707 = vmatprep.subr.bf16.mxu0 0
    %5708 = vmatpush1.bf16.msra.mxu0 0
    %5709 = vmatprep.subr.bf16.mxu0 0
    %5710 = vmatpush1.bf16.msra.mxu0 0
    %5711 = vmatprep.subr.bf16.mxu0 0
    %5712 = vmatpush1.bf16.msra.mxu0 0
    %5713 = vmatprep.subr.bf16.mxu0 0
    %5714 = vmatpush1.bf16.msra.mxu0 0
    %5715 = vmatprep.subr.bf16.mxu0 0
    %5716 = vmatpush1.bf16.msra.mxu0 0
    %5717 = vmatprep.subr.bf16.mxu0 0
    %5718 = vmatpush1.bf16.msra.mxu0 0
    %5719 = vmatprep.subr.bf16.mxu0 0
    %5720 = vmatpush1.bf16.msra.mxu0 0
    %5721 = vmatprep.subr.bf16.mxu0 0
    %5722 = vmatpush1.bf16.msra.mxu0 0
    %5723 = vmatprep.subr.bf16.mxu0 0
    %5724 = vmatpush1.bf16.msra.mxu0 0
    %5725 = vmatprep.subr.bf16.mxu0 0
    %5726 = vmatpush1.bf16.msra.mxu0 0
    %5727 = vmatprep.subr.bf16.mxu0 0
    %5728 = vmatpush1.bf16.msra.mxu0 0
    %5729 = vmatprep.subr.bf16.mxu0 0
    %5730 = vmatpush1.bf16.msra.mxu0 0
    %5731 = vmatprep.subr.bf16.mxu0 0
    %5732 = vmatpush1.bf16.msra.mxu0 0
    %5733 = vmatprep.subr.bf16.mxu0 0
    %5734 = vmatpush1.bf16.msra.mxu0 0
    %5735 = vmatprep.mubr.bf16.mxu0 0
    %5736 = vmatmul.mubr.bf16.gmra.mrb[0].mxu0 %v5683
    %v5737 = vpop.f32.mrb[0].mxu0
    %v5738 = vadd.f32 0.0, %v5737
    %v5739 = vpop.f32.mrb[0].mxu0
    %v5740 = vpop.f32.mrb[0].mxu0
    %v5741 = vadd.f32 0.0, %v5740
    %v5742 = vpop.f32.mrb[0].mxu0
    %5743 = vmatprep.mubr.bf16.mxu0 0
    %5744 = vmatmul.mubr.bf16.gmra.mrb[0].mxu0 %v5686
    %v5745 = vpop.f32.mrb[0].mxu0
    %v5746 = vadd.f32 0.0, %v5745
    %v5747 = vpop.f32.mrb[0].mxu0
    %v5748 = vpop.f32.mrb[0].mxu0
    %v5749 = vadd.f32 0.0, %v5748
    %v5750 = vpop.f32.mrb[0].mxu0
    %5751 = vmatprep.mubr.bf16.mxu0 0
    %5752 = vmatmul.mubr.bf16.gmra.mrb[0].mxu0 %v5689
    %v5753 = vpop.f32.mrb[0].mxu0
    %v5754 = vadd.f32 0.0, %v5753
    %v5755 = vpop.f32.mrb[0].mxu0
    %v5756 = vpop.f32.mrb[0].mxu0
    %v5757 = vadd.f32 0.0, %v5756
    %v5758 = vpop.f32.mrb[0].mxu0
    %5759 = vmatprep.mubr.bf16.mxu0 0
    %5760 = vmatmul.mubr.bf16.gmra.mrb[0].mxu0 %v5692
    %v5761 = vpop.f32.mrb[0].mxu0
    %v5762 = vadd.f32 0.0, %v5761
    %v5763 = vpop.f32.mrb[0].mxu0
    %v5764 = vpop.f32.mrb[0].mxu0
    %v5765 = vadd.f32 0.0, %v5764
    %v5766 = vpop.f32.mrb[0].mxu0
    %5767 = vmatprep.mubr.bf16.mxu0 0
    %5768 = vmatmul.mubr.bf16.gmra.mrb[0].mxu0 %v5695
    %v5769 = vpop.f32.mrb[0].mxu0
    %v5770 = vadd.f32 0.0, %v5769
    %v5771 = vpop.f32.mrb[0].mxu0
    %v5772 = vpop.f32.mrb[0].mxu0
    %v5773 = vadd.f32 0.0, %v5772
    %v5774 = vpop.f32.mrb[0].mxu0
    %5775 = vmatprep.mubr.bf16.mxu0 0
    %5776 = vmatmul.mubr.bf16.gmra.mrb[0].mxu0 %v5698
    %v5777 = vpop.f32.mrb[0].mxu0
    %v5778 = vadd.f32 0.0, %v5777
    %v5779 = vpop.f32.mrb[0].mxu0
    %v5780 = vpop.f32.mrb[0].mxu0
    %v5781 = vadd.f32 0.0, %v5780
    %v5782 = vpop.f32.mrb[0].mxu0
    %5783 = vmatprep.mubr.bf16.mxu0 0
    %5784 = vmatmul.mubr.bf16.gmra.mrb[0].mxu0 %v5701
    %v5785 = vpop.f32.mrb[0].mxu0
    %v5786 = vadd.f32 0.0, %v5785
    %v5787 = vpop.f32.mrb[0].mxu0
    %v5788 = vpop.f32.mrb[0].mxu0
    %v5789 = vpop.f32.mrb[0].mxu0
    %5790 = vdwg.mxu0
    %5804 = vrot.lane.b32.xlu0 %v4906, 8
    %v5805 = vpop.permute.xlu0 %5804
    %5806 = vrot.lane.b32.xlu0 %v4909, 8
    %v5807 = vpop.permute.xlu0 %5806
    %5808 = vrot.lane.b32.xlu0 %v4914, 8
    %v5809 = vpop.permute.xlu0 %5808
    %5810 = vrot.lane.b32.xlu0 %v4917, 8
    %v5811 = vpop.permute.xlu0 %5810
    %5812 = vrot.lane.b32.xlu0 %v4922, 8
    %v5813 = vpop.permute.xlu0 %5812
    %5814 = vrot.lane.b32.xlu0 %v4925, 8
    %v5815 = vpop.permute.xlu0 %5814
    %5816 = vrot.lane.b32.xlu0 %v4930, 8
    %v5817 = vpop.permute.xlu0 %5816
    %5818 = vrot.lane.b32.xlu0 %v4933, 8
    %v5819 = vpop.permute.xlu0 %5818
    %5820 = vrot.lane.b32.xlu0 %v4938, 8
    %v5821 = vpop.permute.xlu0 %5820
    %5822 = vrot.lane.b32.xlu0 %v4941, 8
    %v5823 = vpop.permute.xlu0 %5822
    %5824 = vrot.lane.b32.xlu0 %v4946, 8
    %v5825 = vpop.permute.xlu0 %5824
    %5826 = vrot.lane.b32.xlu0 %v4949, 8
    %v5827 = vpop.permute.xlu0 %5826
    %5828 = vrot.lane.b32.xlu0 %v4954, 8
    %v5829 = vpop.permute.xlu0 %5828
    %5856 = vrot.lane.b32.xlu0 %v5322, 16
    %v5857 = vpop.permute.xlu0 %5856
    %5858 = vrot.lane.b32.xlu0 %v5325, 16
    %v5859 = vpop.permute.xlu0 %5858
    %5860 = vrot.lane.b32.xlu0 %v5330, 16
    %v5861 = vpop.permute.xlu0 %5860
    %5862 = vrot.lane.b32.xlu0 %v5333, 16
    %v5863 = vpop.permute.xlu0 %5862
    %5864 = vrot.lane.b32.xlu0 %v5338, 16
    %v5865 = vpop.permute.xlu0 %5864
    %5866 = vrot.lane.b32.xlu0 %v5341, 16
    %v5867 = vpop.permute.xlu0 %5866
    %5868 = vrot.lane.b32.xlu0 %v5346, 16
    %v5869 = vpop.permute.xlu0 %5868
    %5870 = vrot.lane.b32.xlu0 %v5349, 16
    %v5871 = vpop.permute.xlu0 %5870
    %5872 = vrot.lane.b32.xlu0 %v5354, 16
    %v5873 = vpop.permute.xlu0 %5872
    %5874 = vrot.lane.b32.xlu0 %v5357, 16
    %v5875 = vpop.permute.xlu0 %5874
    %5876 = vrot.lane.b32.xlu0 %v5362, 16
    %v5877 = vpop.permute.xlu0 %5876
    %5878 = vrot.lane.b32.xlu0 %v5365, 16
    %v5879 = vpop.permute.xlu0 %5878
    %5880 = vrot.lane.b32.xlu0 %v5370, 16
    %v5881 = vpop.permute.xlu0 %5880
    %5908 = vrot.lane.b32.xlu0 %v5738, 24
    %v5909 = vpop.permute.xlu0 %5908
    %5910 = vrot.lane.b32.xlu0 %v5741, 24
    %v5911 = vpop.permute.xlu0 %5910
    %5912 = vrot.lane.b32.xlu0 %v5746, 24
    %v5913 = vpop.permute.xlu0 %5912
    %5914 = vrot.lane.b32.xlu0 %v5749, 24
    %v5915 = vpop.permute.xlu0 %5914
    %5916 = vrot.lane.b32.xlu0 %v5754, 24
    %v5917 = vpop.permute.xlu0 %5916
    %5918 = vrot.lane.b32.xlu0 %v5757, 24
    %v5919 = vpop.permute.xlu0 %5918
    %5920 = vrot.lane.b32.xlu0 %v5762, 24
    %v5921 = vpop.permute.xlu0 %5920
    %5922 = vrot.lane.b32.xlu0 %v5765, 24
    %v5923 = vpop.permute.xlu0 %5922
    %5924 = vrot.lane.b32.xlu0 %v5770, 24
    %v5925 = vpop.permute.xlu0 %5924
    %5926 = vrot.lane.b32.xlu0 %v5773, 24
    %v5927 = vpop.permute.xlu0 %5926
    %5928 = vrot.lane.b32.xlu0 %v5778, 24
    %v5929 = vpop.permute.xlu0 %5928
    %5930 = vrot.lane.b32.xlu0 %v5781, 24
    %v5931 = vpop.permute.xlu0 %5930
    %5932 = vrot.lane.b32.xlu0 %v5786, 24
    %v5933 = vpop.permute.xlu0 %5932
    %v5947 = vsel %vm2573, %v4483, %v5805
    %v5948 = vsel %vm2573, %v4486, %v5807
    %v5949 = vsel %vm2573, %v4491, %v5809
    %v5950 = vsel %vm2573, %v4494, %v5811
    %v5951 = vsel %vm2573, %v4499, %v5813
    %v5952 = vsel %vm2573, %v4502, %v5815
    %v5953 = vsel %vm2573, %v4507, %v5817
    %v5954 = vsel %vm2573, %v4510, %v5819
    %v5955 = vsel %vm2573, %v4515, %v5821
    %v5956 = vsel %vm2573, %v4518, %v5823
    %v5957 = vsel %vm2573, %v4523, %v5825
    %v5958 = vsel %vm2573, %v4526, %v5827
    %v5959 = vsel %vm2573, %v4531, %v5829
    %v5960 = vsel %vm2625, %v5947, %v5857
    %v5961 = vsel %vm2625, %v5948, %v5859
    %v5962 = vsel %vm2625, %v5949, %v5861
    %v5963 = vsel %vm2625, %v5950, %v5863
    %v5964 = vsel %vm2625, %v5951, %v5865
    %v5965 = vsel %vm2625, %v5952, %v5867
    %v5966 = vsel %vm2625, %v5953, %v5869
    %v5967 = vsel %vm2625, %v5954, %v5871
    %v5968 = vsel %vm2625, %v5955, %v5873
    %v5969 = vsel %vm2625, %v5956, %v5875
    %v5970 = vsel %vm2625, %v5957, %v5877
    %v5971 = vsel %vm2625, %v5958, %v5879
    %v5972 = vsel %vm2625, %v5959, %v5881
    %v5973 = vsel %vm3101, %v5960, %v5909
    %v5974 = vsel %vm3101, %v5961, %v5911
    %v5975 = vsel %vm3101, %v5962, %v5913
    %v5976 = vsel %vm3101, %v5963, %v5915
    %v5977 = vsel %vm3101, %v5964, %v5917
    %v5978 = vsel %vm3101, %v5965, %v5919
    %v5979 = vsel %vm3101, %v5966, %v5921
    %v5980 = vsel %vm3101, %v5967, %v5923
    %v5981 = vsel %vm3101, %v5968, %v5925
    %v5982 = vsel %vm3101, %v5969, %v5927
    %v5983 = vsel %vm3101, %v5970, %v5929
    %v5984 = vsel %vm3101, %v5971, %v5931
    %v5985 = vsel %vm3101, %v5972, %v5933
    %v5986 = vpack.c.bf16 %v5974, %v5973
    %v5987 = vpack.c.bf16 %v5976, %v5975
    %v5988 = vpack.c.bf16 %v5978, %v5977
    %v5989 = vpack.c.bf16 %v5980, %v5979
    %v5990 = vpack.c.bf16 %v5982, %v5981
    %v5991 = vpack.c.bf16 %v5984, %v5983
    %v5992 = vpack.c.bf16 %v5985, %v5985
    %v5994 = vsel %vm2475, %v5986, 0
    %v5997 = vsel %vm2475, %v5987, 0
    %v6000 = vsel %vm2475, %v5988, 0
    %v6003 = vsel %vm2475, %v5989, 0
    %v6006 = vsel %vm2475, %v5990, 0
    %v6009 = vsel %vm2475, %v5991, 0
    %v6012 = vsel %vm2475, %v5992, 0
    %6014 = vmatprep.subr.bf16.mxu0 0
    %6015 = vmatpush1.bf16.msra.mxu0 %v2521
    %6016 = vmatprep.subr.bf16.mxu0 0
    %6017 = vmatpush1.bf16.msra.mxu0 %v2523
    %6018 = vmatprep.subr.bf16.mxu0 0
    %6019 = vmatpush1.bf16.msra.mxu0 0
    %6020 = vmatprep.subr.bf16.mxu0 0
    %6021 = vmatpush1.bf16.msra.mxu0 0
    %6022 = vmatprep.subr.bf16.mxu0 0
    %6023 = vmatpush1.bf16.msra.mxu0 0
    %6024 = vmatprep.subr.bf16.mxu0 0
    %6025 = vmatpush1.bf16.msra.mxu0 0
    %6026 = vmatprep.subr.bf16.mxu0 0
    %6027 = vmatpush1.bf16.msra.mxu0 0
    %6028 = vmatprep.subr.bf16.mxu0 0
    %6029 = vmatpush1.bf16.msra.mxu0 0
    %6030 = vmatprep.subr.bf16.mxu0 0
    %6031 = vmatpush1.bf16.msra.mxu0 0
    %6032 = vmatprep.subr.bf16.mxu0 0
    %6033 = vmatpush1.bf16.msra.mxu0 0
    %6034 = vmatprep.subr.bf16.mxu0 0
    %6035 = vmatpush1.bf16.msra.mxu0 0
    %6036 = vmatprep.subr.bf16.mxu0 0
    %6037 = vmatpush1.bf16.msra.mxu0 0
    %6038 = vmatprep.subr.bf16.mxu0 0
    %6039 = vmatpush1.bf16.msra.mxu0 0
    %6040 = vmatprep.subr.bf16.mxu0 0
    %6041 = vmatpush1.bf16.msra.mxu0 0
    %6042 = vmatprep.subr.bf16.mxu0 0
    %6043 = vmatpush1.bf16.msra.mxu0 0
    %6044 = vmatprep.subr.bf16.mxu0 0
    %6045 = vmatpush1.bf16.msra.mxu0 0
    %6046 = vmatprep.mubr.bf16.mxu0 0
    %6047 = vmatmul.mubr.bf16.gmra.mrb[0].mxu0 %v5994
    %v6048 = vpop.f32.mrb[0].mxu0
    %v6049 = vadd.f32 %v2528, %v6048
    %v6050 = vpop.f32.mrb[0].mxu0
    %v6051 = vpop.f32.mrb[0].mxu0
    %v6052 = vadd.f32 %v2528, %v6051
    %v6053 = vpop.f32.mrb[0].mxu0
    %6054 = vmatprep.mubr.bf16.mxu0 0
    %6055 = vmatmul.mubr.bf16.gmra.mrb[0].mxu0 %v5997
    %v6056 = vpop.f32.mrb[0].mxu0
    %v6057 = vadd.f32 %v2528, %v6056
    %v6058 = vpop.f32.mrb[0].mxu0
    %v6059 = vpop.f32.mrb[0].mxu0
    %v6060 = vadd.f32 %v2528, %v6059
    %v6061 = vpop.f32.mrb[0].mxu0
    %6062 = vmatprep.mubr.bf16.mxu0 0
    %6063 = vmatmul.mubr.bf16.gmra.mrb[0].mxu0 %v6000
    %v6064 = vpop.f32.mrb[0].mxu0
    %v6065 = vadd.f32 %v2528, %v6064
    %v6066 = vpop.f32.mrb[0].mxu0
    %v6067 = vpop.f32.mrb[0].mxu0
    %v6068 = vadd.f32 %v2528, %v6067
    %v6069 = vpop.f32.mrb[0].mxu0
    %6070 = vmatprep.mubr.bf16.mxu0 0
    %6071 = vmatmul.mubr.bf16.gmra.mrb[0].mxu0 %v6003
    %v6072 = vpop.f32.mrb[0].mxu0
    %v6073 = vadd.f32 %v2528, %v6072
    %v6074 = vpop.f32.mrb[0].mxu0
    %v6075 = vpop.f32.mrb[0].mxu0
    %v6076 = vadd.f32 %v2528, %v6075
    %v6077 = vpop.f32.mrb[0].mxu0
    %6078 = vmatprep.mubr.bf16.mxu0 0
    %6079 = vmatmul.mubr.bf16.gmra.mrb[0].mxu0 %v6006
    %v6080 = vpop.f32.mrb[0].mxu0
    %v6081 = vadd.f32 %v2528, %v6080
    %v6082 = vpop.f32.mrb[0].mxu0
    %v6083 = vpop.f32.mrb[0].mxu0
    %v6084 = vadd.f32 %v2528, %v6083
    %v6085 = vpop.f32.mrb[0].mxu0
    %6086 = vmatprep.mubr.bf16.mxu0 0
    %6087 = vmatmul.mubr.bf16.gmra.mrb[0].mxu0 %v6009
    %v6088 = vpop.f32.mrb[0].mxu0
    %v6089 = vadd.f32 %v2528, %v6088
    %v6090 = vpop.f32.mrb[0].mxu0
    %v6091 = vpop.f32.mrb[0].mxu0
    %v6092 = vadd.f32 %v2528, %v6091
    %v6093 = vpop.f32.mrb[0].mxu0
    %6094 = vmatprep.mubr.bf16.mxu0 0
    %6095 = vmatmul.mubr.bf16.gmra.mrb[0].mxu0 %v6012
    %v6096 = vpop.f32.mrb[0].mxu0
    %v6097 = vadd.f32 %v2528, %v6096
    %v6098 = vpop.f32.mrb[0].mxu0
    %v6099 = vpop.f32.mrb[0].mxu0
    %v6100 = vpop.f32.mrb[0].mxu0
    %6101 = vdwg.mxu0
    %v6102 = vpack.c.bf16 %v6052, %v6049
    %v6103 = vpack.c.bf16 %v6060, %v6057
    %v6104 = vpack.c.bf16 %v6068, %v6065
    %v6105 = vpack.c.bf16 %v6076, %v6073
    %v6106 = vpack.c.bf16 %v6084, %v6081
    %v6107 = vpack.c.bf16 %v6092, %v6089
    %v6108 = vpack.c.bf16 %v6097, %v6097
    %v6110 = vsel %vm2573, %v6102, 0
    %v6113 = vsel %vm2573, %v6103, 0
    %v6116 = vsel %vm2573, %v6104, 0
    %v6119 = vsel %vm2573, %v6105, 0
    %v6122 = vsel %vm2573, %v6106, 0
    %v6125 = vsel %vm2573, %v6107, 0
    %v6128 = vsel %vm2573, %v6108, 0
    %6130 = vmatprep.subr.bf16.mxu0 0
    %6131 = vmatpush1.bf16.xpose.msra.mxu0 %v6110
    %6132 = vmatprep.subr.bf16.mxu0 0
    %6133 = vmatpush1.bf16.xpose.msra.mxu0 %v6113
    %6134 = vmatprep.subr.bf16.mxu0 0
    %6135 = vmatpush1.bf16.xpose.msra.mxu0 %v6116
    %6136 = vmatprep.subr.bf16.mxu0 0
    %6137 = vmatpush1.bf16.xpose.msra.mxu0 %v6119
    %6138 = vmatprep.subr.bf16.mxu0 0
    %6139 = vmatpush1.bf16.xpose.msra.mxu0 %v6122
    %6140 = vmatprep.subr.bf16.mxu0 0
    %6141 = vmatpush1.bf16.xpose.msra.mxu0 %v6125
    %6142 = vmatprep.subr.bf16.mxu0 0
    %6143 = vmatpush1.bf16.xpose.msra.mxu0 %v6128
    %6144 = vmatprep.subr.bf16.mxu0 0
    %6145 = vmatpush1.bf16.xpose.msra.mxu0 0
    %6146 = vmatprep.subr.bf16.mxu0 0
    %6147 = vmatpush1.bf16.xpose.msra.mxu0 0
    %6148 = vmatprep.subr.bf16.mxu0 0
    %6149 = vmatpush1.bf16.xpose.msra.mxu0 0
    %6150 = vmatprep.subr.bf16.mxu0 0
    %6151 = vmatpush1.bf16.xpose.msra.mxu0 0
    %6152 = vmatprep.subr.bf16.mxu0 0
    %6153 = vmatpush1.bf16.xpose.msra.mxu0 0
    %6154 = vmatprep.subr.bf16.mxu0 0
    %6155 = vmatpush1.bf16.xpose.msra.mxu0 0
    %6156 = vmatprep.subr.bf16.mxu0 0
    %6157 = vmatpush1.bf16.xpose.msra.mxu0 0
    %6158 = vmatprep.subr.bf16.mxu0 0
    %6159 = vmatpush1.bf16.xpose.msra.mxu0 0
    %6160 = vmatprep.subr.bf16.mxu0 0
    %6161 = vmatpush1.bf16.xpose.msra.mxu0 0
    %6162 = vmatprep.mubr.bf16.mxu0 0
    %6163 = vmatmul.mubr.bf16.gmra.mrb[0].mxu0 %v3274
    %v6164 = vpop.f32.mrb[0].mxu0
    %v6165 = vadd.f32 0.0, %v6164
    %v6166 = vpop.f32.mrb[0].mxu0
    %v6167 = vpop.f32.mrb[0].mxu0
    %v6168 = vadd.f32 0.0, %v6167
    %v6169 = vpop.f32.mrb[0].mxu0
    %6170 = vdwg.mxu0
    %v6171 = vmul.f32 %v6165, 0.35355338
    %v6172 = vmul.f32 %v6168, 0.35355338
    %v6173 = vadd.f32 %v6171, %v71
    %v6174 = vadd.f32 %v6172, %v72
    %v6175 = vsel %vm3342, %v6173, -inf
    %6176 = vmax.xlane.f32.xlu0 %v6175
    %v6177 = vpop.xlane.xlu0 %6176
    %v6178 = vsel %vm3342, %v6174, -inf
    %6179 = vmax.xlane.f32.xlu0 %v6178
    %v6180 = vpop.xlane.xlu0 %6179
    %v6181 = vsub.f32 %v6173, %v6177
    %v6182 = vsub.f32 %v6174, %v6180
    %v6183 = vmul.f32 %v6181, 1.442695
    %v6184 = vpow.pop %v6183
    %v6185 = vmul.f32 %v6182, 1.442695
    %v6186 = vpow.pop %v6185
    %v6187 = vsel %vm3342, %v6184, 0.0
    %6188 = vadd.xlane.f32.xlu0 %v6187
    %v6189 = vpop.xlane.xlu0 %6188
    %v6190 = vsel %vm3342, %v6186, 0.0
    %6191 = vadd.xlane.f32.xlu0 %v6190
    %v6192 = vpop.xlane.xlu0 %6191
    %v6193 = vrcp.pop %v6189
    %v6194 = vmul.f32 %v6184, %v6193
    %v6195 = vrcp.pop %v6192
    %v6196 = vmul.f32 %v6186, %v6195
    %v6197 = vpack.c.bf16 %v6196, %v6194
    %6205 = vrot.lane.b32.xlu0 %v6102, 96
    %v6206 = vpop.permute.xlu0 %6205
    %6207 = vrot.lane.b32.xlu0 %v6103, 96
    %v6208 = vpop.permute.xlu0 %6207
    %6209 = vrot.lane.b32.xlu0 %v6104, 96
    %v6210 = vpop.permute.xlu0 %6209
    %6211 = vrot.lane.b32.xlu0 %v6105, 96
    %v6212 = vpop.permute.xlu0 %6211
    %6213 = vrot.lane.b32.xlu0 %v6106, 96
    %v6214 = vpop.permute.xlu0 %6213
    %6215 = vrot.lane.b32.xlu0 %v6107, 96
    %v6216 = vpop.permute.xlu0 %6215
    %6217 = vrot.lane.b32.xlu0 %v6108, 96
    %v6218 = vpop.permute.xlu0 %6217
    %v6226 = vsel %vm3342, %v6197, 0
    %v6229 = vsel %vm3396, %v6218, 0
    %6231 = vmatprep.subr.bf16.mxu0 0
    %6232 = vmatpush1.bf16.msra.mxu0 %v6206
    %6233 = vmatprep.subr.bf16.mxu0 0
    %6234 = vmatpush1.bf16.msra.mxu0 %v6208
    %6235 = vmatprep.subr.bf16.mxu0 0
    %6236 = vmatpush1.bf16.msra.mxu0 %v6210
    %6237 = vmatprep.subr.bf16.mxu0 0
    %6238 = vmatpush1.bf16.msra.mxu0 %v6212
    %6239 = vmatprep.subr.bf16.mxu0 0
    %6240 = vmatpush1.bf16.msra.mxu0 %v6214
    %6241 = vmatprep.subr.bf16.mxu0 0
    %6242 = vmatpush1.bf16.msra.mxu0 %v6216
    %6243 = vmatprep.subr.bf16.mxu0 0
    %6244 = vmatpush1.bf16.msra.mxu0 %v6229
    %6245 = vmatprep.subr.bf16.mxu0 0
    %6246 = vmatpush1.bf16.msra.mxu0 0
    %6247 = vmatprep.subr.bf16.mxu0 0
    %6248 = vmatpush1.bf16.msra.mxu0 0
    %6249 = vmatprep.subr.bf16.mxu0 0
    %6250 = vmatpush1.bf16.msra.mxu0 0
    %6251 = vmatprep.subr.bf16.mxu0 0
    %6252 = vmatpush1.bf16.msra.mxu0 0
    %6253 = vmatprep.subr.bf16.mxu0 0
    %6254 = vmatpush1.bf16.msra.mxu0 0
    %6255 = vmatprep.subr.bf16.mxu0 0
    %6256 = vmatpush1.bf16.msra.mxu0 0
    %6257 = vmatprep.subr.bf16.mxu0 0
    %6258 = vmatpush1.bf16.msra.mxu0 0
    %6259 = vmatprep.subr.bf16.mxu0 0
    %6260 = vmatpush1.bf16.msra.mxu0 0
    %6261 = vmatprep.subr.bf16.mxu0 0
    %6262 = vmatpush1.bf16.msra.mxu0 0
    %6263 = vmatprep.mubr.bf16.mxu0 0
    %6264 = vmatmul.mubr.bf16.gmra.mrb[0].mxu0 %v6226
    %v6265 = vpop.f32.mrb[0].mxu0
    %v6266 = vadd.f32 0.0, %v6265
    %v6267 = vpop.f32.mrb[0].mxu0
    %v6268 = vpop.f32.mrb[0].mxu0
    %v6269 = vadd.f32 0.0, %v6268
    %v6270 = vpop.f32.mrb[0].mxu0
    %6271 = vdwg.mxu0
    %6272 = vrot.lane.b32.xlu0 %v6102, 120
    %v6273 = vpop.permute.xlu0 %6272
    %6274 = vrot.lane.b32.xlu0 %v6103, 120
    %v6275 = vpop.permute.xlu0 %6274
    %6276 = vrot.lane.b32.xlu0 %v6104, 120
    %v6277 = vpop.permute.xlu0 %6276
    %6278 = vrot.lane.b32.xlu0 %v6105, 120
    %v6279 = vpop.permute.xlu0 %6278
    %6280 = vrot.lane.b32.xlu0 %v6106, 120
    %v6281 = vpop.permute.xlu0 %6280
    %6282 = vrot.lane.b32.xlu0 %v6107, 120
    %v6283 = vpop.permute.xlu0 %6282
    %6284 = vrot.lane.b32.xlu0 %v6108, 120
    %v6285 = vpop.permute.xlu0 %6284
    %v6287 = vsel %vm2573, %v6273, 0
    %v6290 = vsel %vm2573, %v6275, 0
    %v6293 = vsel %vm2573, %v6277, 0
    %v6296 = vsel %vm2573, %v6279, 0
    %v6299 = vsel %vm2573, %v6281, 0
    %v6302 = vsel %vm2573, %v6283, 0
    %v6305 = vsel %vm2573, %v6285, 0
    %6307 = vmatprep.subr.bf16.mxu0 0
    %6308 = vmatpush1.bf16.xpose.msra.mxu0 %v6287
    %6309 = vmatprep.subr.bf16.mxu0 0
    %6310 = vmatpush1.bf16.xpose.msra.mxu0 %v6290
    %6311 = vmatprep.subr.bf16.mxu0 0
    %6312 = vmatpush1.bf16.xpose.msra.mxu0 %v6293
    %6313 = vmatprep.subr.bf16.mxu0 0
    %6314 = vmatpush1.bf16.xpose.msra.mxu0 %v6296
    %6315 = vmatprep.subr.bf16.mxu0 0
    %6316 = vmatpush1.bf16.xpose.msra.mxu0 %v6299
    %6317 = vmatprep.subr.bf16.mxu0 0
    %6318 = vmatpush1.bf16.xpose.msra.mxu0 %v6302
    %6319 = vmatprep.subr.bf16.mxu0 0
    %6320 = vmatpush1.bf16.xpose.msra.mxu0 %v6305
    %6321 = vmatprep.subr.bf16.mxu0 0
    %6322 = vmatpush1.bf16.xpose.msra.mxu0 0
    %6323 = vmatprep.subr.bf16.mxu0 0
    %6324 = vmatpush1.bf16.xpose.msra.mxu0 0
    %6325 = vmatprep.subr.bf16.mxu0 0
    %6326 = vmatpush1.bf16.xpose.msra.mxu0 0
    %6327 = vmatprep.subr.bf16.mxu0 0
    %6328 = vmatpush1.bf16.xpose.msra.mxu0 0
    %6329 = vmatprep.subr.bf16.mxu0 0
    %6330 = vmatpush1.bf16.xpose.msra.mxu0 0
    %6331 = vmatprep.subr.bf16.mxu0 0
    %6332 = vmatpush1.bf16.xpose.msra.mxu0 0
    %6333 = vmatprep.subr.bf16.mxu0 0
    %6334 = vmatpush1.bf16.xpose.msra.mxu0 0
    %6335 = vmatprep.subr.bf16.mxu0 0
    %6336 = vmatpush1.bf16.xpose.msra.mxu0 0
    %6337 = vmatprep.subr.bf16.mxu0 0
    %6338 = vmatpush1.bf16.xpose.msra.mxu0 0
    %6339 = vmatprep.mubr.bf16.mxu0 0
    %6340 = vmatmul.mubr.bf16.gmra.mrb[0].mxu0 %v3459
    %v6341 = vpop.f32.mrb[0].mxu0
    %v6342 = vadd.f32 0.0, %v6341
    %v6343 = vpop.f32.mrb[0].mxu0
    %v6344 = vpop.f32.mrb[0].mxu0
    %v6345 = vadd.f32 0.0, %v6344
    %v6346 = vpop.f32.mrb[0].mxu0
    %6347 = vdwg.mxu0
    %v6348 = vmul.f32 %v6342, 0.35355338
    %v6349 = vmul.f32 %v6345, 0.35355338
    %v6350 = vadd.f32 %v6348, %v71
    %v6351 = vadd.f32 %v6349, %v72
    %v6352 = vsel %vm3342, %v6350, -inf
    %6353 = vmax.xlane.f32.xlu0 %v6352
    %v6354 = vpop.xlane.xlu0 %6353
    %v6355 = vsel %vm3342, %v6351, -inf
    %6356 = vmax.xlane.f32.xlu0 %v6355
    %v6357 = vpop.xlane.xlu0 %6356
    %v6358 = vsub.f32 %v6350, %v6354
    %v6359 = vsub.f32 %v6351, %v6357
    %v6360 = vmul.f32 %v6358, 1.442695
    %v6361 = vpow.pop %v6360
    %v6362 = vmul.f32 %v6359, 1.442695
    %v6363 = vpow.pop %v6362
    %v6364 = vsel %vm3342, %v6361, 0.0
    %6365 = vadd.xlane.f32.xlu0 %v6364
    %v6366 = vpop.xlane.xlu0 %6365
    %v6367 = vsel %vm3342, %v6363, 0.0
    %6368 = vadd.xlane.f32.xlu0 %v6367
    %v6369 = vpop.xlane.xlu0 %6368
    %v6370 = vrcp.pop %v6366
    %v6371 = vmul.f32 %v6361, %v6370
    %v6372 = vrcp.pop %v6369
    %v6373 = vmul.f32 %v6363, %v6372
    %v6374 = vpack.c.bf16 %v6373, %v6371
    %6375 = vrot.lane.b32.xlu0 %v6102, 88
    %v6376 = vpop.permute.xlu0 %6375
    %6377 = vrot.lane.b32.xlu0 %v6103, 88
    %v6378 = vpop.permute.xlu0 %6377
    %6379 = vrot.lane.b32.xlu0 %v6104, 88
    %v6380 = vpop.permute.xlu0 %6379
    %6381 = vrot.lane.b32.xlu0 %v6105, 88
    %v6382 = vpop.permute.xlu0 %6381
    %6383 = vrot.lane.b32.xlu0 %v6106, 88
    %v6384 = vpop.permute.xlu0 %6383
    %6385 = vrot.lane.b32.xlu0 %v6107, 88
    %v6386 = vpop.permute.xlu0 %6385
    %6387 = vrot.lane.b32.xlu0 %v6108, 88
    %v6388 = vpop.permute.xlu0 %6387
    %v6396 = vsel %vm3342, %v6374, 0
    %v6399 = vsel %vm3396, %v6388, 0
    %6401 = vmatprep.subr.bf16.mxu0 0
    %6402 = vmatpush1.bf16.msra.mxu0 %v6376
    %6403 = vmatprep.subr.bf16.mxu0 0
    %6404 = vmatpush1.bf16.msra.mxu0 %v6378
    %6405 = vmatprep.subr.bf16.mxu0 0
    %6406 = vmatpush1.bf16.msra.mxu0 %v6380
    %6407 = vmatprep.subr.bf16.mxu0 0
    %6408 = vmatpush1.bf16.msra.mxu0 %v6382
    %6409 = vmatprep.subr.bf16.mxu0 0
    %6410 = vmatpush1.bf16.msra.mxu0 %v6384
    %6411 = vmatprep.subr.bf16.mxu0 0
    %6412 = vmatpush1.bf16.msra.mxu0 %v6386
    %6413 = vmatprep.subr.bf16.mxu0 0
    %6414 = vmatpush1.bf16.msra.mxu0 %v6399
    %6415 = vmatprep.subr.bf16.mxu0 0
    %6416 = vmatpush1.bf16.msra.mxu0 0
    %6417 = vmatprep.subr.bf16.mxu0 0
    %6418 = vmatpush1.bf16.msra.mxu0 0
    %6419 = vmatprep.subr.bf16.mxu0 0
    %6420 = vmatpush1.bf16.msra.mxu0 0
    %6421 = vmatprep.subr.bf16.mxu0 0
    %6422 = vmatpush1.bf16.msra.mxu0 0
    %6423 = vmatprep.subr.bf16.mxu0 0
    %6424 = vmatpush1.bf16.msra.mxu0 0
    %6425 = vmatprep.subr.bf16.mxu0 0
    %6426 = vmatpush1.bf16.msra.mxu0 0
    %6427 = vmatprep.subr.bf16.mxu0 0
    %6428 = vmatpush1.bf16.msra.mxu0 0
    %6429 = vmatprep.subr.bf16.mxu0 0
    %6430 = vmatpush1.bf16.msra.mxu0 0
    %6431 = vmatprep.subr.bf16.mxu0 0
    %6432 = vmatpush1.bf16.msra.mxu0 0
    %6433 = vmatprep.mubr.bf16.mxu0 0
    %6434 = vmatmul.mubr.bf16.gmra.mrb[0].mxu0 %v6396
    %v6435 = vpop.f32.mrb[0].mxu0
    %v6436 = vadd.f32 0.0, %v6435
    %v6437 = vpop.f32.mrb[0].mxu0
    %v6438 = vpop.f32.mrb[0].mxu0
    %v6439 = vadd.f32 0.0, %v6438
    %v6440 = vpop.f32.mrb[0].mxu0
    %6441 = vdwg.mxu0
    %6442 = vrot.lane.b32.xlu0 %v6102, 112
    %v6443 = vpop.permute.xlu0 %6442
    %6444 = vrot.lane.b32.xlu0 %v6103, 112
    %v6445 = vpop.permute.xlu0 %6444
    %6446 = vrot.lane.b32.xlu0 %v6104, 112
    %v6447 = vpop.permute.xlu0 %6446
    %6448 = vrot.lane.b32.xlu0 %v6105, 112
    %v6449 = vpop.permute.xlu0 %6448
    %6450 = vrot.lane.b32.xlu0 %v6106, 112
    %v6451 = vpop.permute.xlu0 %6450
    %6452 = vrot.lane.b32.xlu0 %v6107, 112
    %v6453 = vpop.permute.xlu0 %6452
    %6454 = vrot.lane.b32.xlu0 %v6108, 112
    %v6455 = vpop.permute.xlu0 %6454
    %v6457 = vsel %vm2573, %v6443, 0
    %v6460 = vsel %vm2573, %v6445, 0
    %v6463 = vsel %vm2573, %v6447, 0
    %v6466 = vsel %vm2573, %v6449, 0
    %v6469 = vsel %vm2573, %v6451, 0
    %v6472 = vsel %vm2573, %v6453, 0
    %v6475 = vsel %vm2573, %v6455, 0
    %6477 = vmatprep.subr.bf16.mxu0 0
    %6478 = vmatpush1.bf16.xpose.msra.mxu0 %v6457
    %6479 = vmatprep.subr.bf16.mxu0 0
    %6480 = vmatpush1.bf16.xpose.msra.mxu0 %v6460
    %6481 = vmatprep.subr.bf16.mxu0 0
    %6482 = vmatpush1.bf16.xpose.msra.mxu0 %v6463
    %6483 = vmatprep.subr.bf16.mxu0 0
    %6484 = vmatpush1.bf16.xpose.msra.mxu0 %v6466
    %6485 = vmatprep.subr.bf16.mxu0 0
    %6486 = vmatpush1.bf16.xpose.msra.mxu0 %v6469
    %6487 = vmatprep.subr.bf16.mxu0 0
    %6488 = vmatpush1.bf16.xpose.msra.mxu0 %v6472
    %6489 = vmatprep.subr.bf16.mxu0 0
    %6490 = vmatpush1.bf16.xpose.msra.mxu0 %v6475
    %6491 = vmatprep.subr.bf16.mxu0 0
    %6492 = vmatpush1.bf16.xpose.msra.mxu0 0
    %6493 = vmatprep.subr.bf16.mxu0 0
    %6494 = vmatpush1.bf16.xpose.msra.mxu0 0
    %6495 = vmatprep.subr.bf16.mxu0 0
    %6496 = vmatpush1.bf16.xpose.msra.mxu0 0
    %6497 = vmatprep.subr.bf16.mxu0 0
    %6498 = vmatpush1.bf16.xpose.msra.mxu0 0
    %6499 = vmatprep.subr.bf16.mxu0 0
    %6500 = vmatpush1.bf16.xpose.msra.mxu0 0
    %6501 = vmatprep.subr.bf16.mxu0 0
    %6502 = vmatpush1.bf16.xpose.msra.mxu0 0
    %6503 = vmatprep.subr.bf16.mxu0 0
    %6504 = vmatpush1.bf16.xpose.msra.mxu0 0
    %6505 = vmatprep.subr.bf16.mxu0 0
    %6506 = vmatpush1.bf16.xpose.msra.mxu0 0
    %6507 = vmatprep.subr.bf16.mxu0 0
    %6508 = vmatpush1.bf16.xpose.msra.mxu0 0
    %6509 = vmatprep.mubr.bf16.mxu0 0
    %6510 = vmatmul.mubr.bf16.gmra.mrb[0].mxu0 %v3634
    %v6511 = vpop.f32.mrb[0].mxu0
    %v6512 = vadd.f32 0.0, %v6511
    %v6513 = vpop.f32.mrb[0].mxu0
    %v6514 = vpop.f32.mrb[0].mxu0
    %v6515 = vadd.f32 0.0, %v6514
    %v6516 = vpop.f32.mrb[0].mxu0
    %6517 = vdwg.mxu0
    %v6518 = vmul.f32 %v6512, 0.35355338
    %v6519 = vmul.f32 %v6515, 0.35355338
    %v6520 = vadd.f32 %v6518, %v71
    %v6521 = vadd.f32 %v6519, %v72
    %v6522 = vsel %vm3342, %v6520, -inf
    %6523 = vmax.xlane.f32.xlu0 %v6522
    %v6524 = vpop.xlane.xlu0 %6523
    %v6525 = vsel %vm3342, %v6521, -inf
    %6526 = vmax.xlane.f32.xlu0 %v6525
    %v6527 = vpop.xlane.xlu0 %6526
    %v6528 = vsub.f32 %v6520, %v6524
    %v6529 = vsub.f32 %v6521, %v6527
    %v6530 = vmul.f32 %v6528, 1.442695
    %v6531 = vpow.pop %v6530
    %v6532 = vmul.f32 %v6529, 1.442695
    %v6533 = vpow.pop %v6532
    %v6534 = vsel %vm3342, %v6531, 0.0
    %6535 = vadd.xlane.f32.xlu0 %v6534
    %v6536 = vpop.xlane.xlu0 %6535
    %v6537 = vsel %vm3342, %v6533, 0.0
    %6538 = vadd.xlane.f32.xlu0 %v6537
    %v6539 = vpop.xlane.xlu0 %6538
    %v6540 = vrcp.pop %v6536
    %v6541 = vmul.f32 %v6531, %v6540
    %v6542 = vrcp.pop %v6539
    %v6543 = vmul.f32 %v6533, %v6542
    %v6544 = vpack.c.bf16 %v6543, %v6541
    %6545 = vrot.lane.b32.xlu0 %v6102, 80
    %v6546 = vpop.permute.xlu0 %6545
    %6547 = vrot.lane.b32.xlu0 %v6103, 80
    %v6548 = vpop.permute.xlu0 %6547
    %6549 = vrot.lane.b32.xlu0 %v6104, 80
    %v6550 = vpop.permute.xlu0 %6549
    %6551 = vrot.lane.b32.xlu0 %v6105, 80
    %v6552 = vpop.permute.xlu0 %6551
    %6553 = vrot.lane.b32.xlu0 %v6106, 80
    %v6554 = vpop.permute.xlu0 %6553
    %6555 = vrot.lane.b32.xlu0 %v6107, 80
    %v6556 = vpop.permute.xlu0 %6555
    %6557 = vrot.lane.b32.xlu0 %v6108, 80
    %v6558 = vpop.permute.xlu0 %6557
    %v6566 = vsel %vm3342, %v6544, 0
    %v6569 = vsel %vm3396, %v6558, 0
    %6571 = vmatprep.subr.bf16.mxu0 0
    %6572 = vmatpush1.bf16.msra.mxu0 %v6546
    %6573 = vmatprep.subr.bf16.mxu0 0
    %6574 = vmatpush1.bf16.msra.mxu0 %v6548
    %6575 = vmatprep.subr.bf16.mxu0 0
    %6576 = vmatpush1.bf16.msra.mxu0 %v6550
    %6577 = vmatprep.subr.bf16.mxu0 0
    %6578 = vmatpush1.bf16.msra.mxu0 %v6552
    %6579 = vmatprep.subr.bf16.mxu0 0
    %6580 = vmatpush1.bf16.msra.mxu0 %v6554
    %6581 = vmatprep.subr.bf16.mxu0 0
    %6582 = vmatpush1.bf16.msra.mxu0 %v6556
    %6583 = vmatprep.subr.bf16.mxu0 0
    %6584 = vmatpush1.bf16.msra.mxu0 %v6569
    %6585 = vmatprep.subr.bf16.mxu0 0
    %6586 = vmatpush1.bf16.msra.mxu0 0
    %6587 = vmatprep.subr.bf16.mxu0 0
    %6588 = vmatpush1.bf16.msra.mxu0 0
    %6589 = vmatprep.subr.bf16.mxu0 0
    %6590 = vmatpush1.bf16.msra.mxu0 0
    %6591 = vmatprep.subr.bf16.mxu0 0
    %6592 = vmatpush1.bf16.msra.mxu0 0
    %6593 = vmatprep.subr.bf16.mxu0 0
    %6594 = vmatpush1.bf16.msra.mxu0 0
    %6595 = vmatprep.subr.bf16.mxu0 0
    %6596 = vmatpush1.bf16.msra.mxu0 0
    %6597 = vmatprep.subr.bf16.mxu0 0
    %6598 = vmatpush1.bf16.msra.mxu0 0
    %6599 = vmatprep.subr.bf16.mxu0 0
    %6600 = vmatpush1.bf16.msra.mxu0 0
    %6601 = vmatprep.subr.bf16.mxu0 0
    %6602 = vmatpush1.bf16.msra.mxu0 0
    %6603 = vmatprep.mubr.bf16.mxu0 0
    %6604 = vmatmul.mubr.bf16.gmra.mrb[0].mxu0 %v6566
    %v6605 = vpop.f32.mrb[0].mxu0
    %v6606 = vadd.f32 0.0, %v6605
    %v6607 = vpop.f32.mrb[0].mxu0
    %v6608 = vpop.f32.mrb[0].mxu0
    %v6609 = vadd.f32 0.0, %v6608
    %v6610 = vpop.f32.mrb[0].mxu0
    %6611 = vdwg.mxu0
    %6612 = vrot.lane.b32.xlu0 %v6102, 104
    %v6613 = vpop.permute.xlu0 %6612
    %6614 = vrot.lane.b32.xlu0 %v6103, 104
    %v6615 = vpop.permute.xlu0 %6614
    %6616 = vrot.lane.b32.xlu0 %v6104, 104
    %v6617 = vpop.permute.xlu0 %6616
    %6618 = vrot.lane.b32.xlu0 %v6105, 104
    %v6619 = vpop.permute.xlu0 %6618
    %6620 = vrot.lane.b32.xlu0 %v6106, 104
    %v6621 = vpop.permute.xlu0 %6620
    %6622 = vrot.lane.b32.xlu0 %v6107, 104
    %v6623 = vpop.permute.xlu0 %6622
    %6624 = vrot.lane.b32.xlu0 %v6108, 104
    %v6625 = vpop.permute.xlu0 %6624
    %v6627 = vsel %vm2573, %v6613, 0
    %v6630 = vsel %vm2573, %v6615, 0
    %v6633 = vsel %vm2573, %v6617, 0
    %v6636 = vsel %vm2573, %v6619, 0
    %v6639 = vsel %vm2573, %v6621, 0
    %v6642 = vsel %vm2573, %v6623, 0
    %v6645 = vsel %vm2573, %v6625, 0
    %6647 = vmatprep.subr.bf16.mxu0 0
    %6648 = vmatpush1.bf16.xpose.msra.mxu0 %v6627
    %6649 = vmatprep.subr.bf16.mxu0 0
    %6650 = vmatpush1.bf16.xpose.msra.mxu0 %v6630
    %6651 = vmatprep.subr.bf16.mxu0 0
    %6652 = vmatpush1.bf16.xpose.msra.mxu0 %v6633
    %6653 = vmatprep.subr.bf16.mxu0 0
    %6654 = vmatpush1.bf16.xpose.msra.mxu0 %v6636
    %6655 = vmatprep.subr.bf16.mxu0 0
    %6656 = vmatpush1.bf16.xpose.msra.mxu0 %v6639
    %6657 = vmatprep.subr.bf16.mxu0 0
    %6658 = vmatpush1.bf16.xpose.msra.mxu0 %v6642
    %6659 = vmatprep.subr.bf16.mxu0 0
    %6660 = vmatpush1.bf16.xpose.msra.mxu0 %v6645
    %6661 = vmatprep.subr.bf16.mxu0 0
    %6662 = vmatpush1.bf16.xpose.msra.mxu0 0
    %6663 = vmatprep.subr.bf16.mxu0 0
    %6664 = vmatpush1.bf16.xpose.msra.mxu0 0
    %6665 = vmatprep.subr.bf16.mxu0 0
    %6666 = vmatpush1.bf16.xpose.msra.mxu0 0
    %6667 = vmatprep.subr.bf16.mxu0 0
    %6668 = vmatpush1.bf16.xpose.msra.mxu0 0
    %6669 = vmatprep.subr.bf16.mxu0 0
    %6670 = vmatpush1.bf16.xpose.msra.mxu0 0
    %6671 = vmatprep.subr.bf16.mxu0 0
    %6672 = vmatpush1.bf16.xpose.msra.mxu0 0
    %6673 = vmatprep.subr.bf16.mxu0 0
    %6674 = vmatpush1.bf16.xpose.msra.mxu0 0
    %6675 = vmatprep.subr.bf16.mxu0 0
    %6676 = vmatpush1.bf16.xpose.msra.mxu0 0
    %6677 = vmatprep.subr.bf16.mxu0 0
    %6678 = vmatpush1.bf16.xpose.msra.mxu0 0
    %6679 = vmatprep.mubr.bf16.mxu0 0
    %6680 = vmatmul.mubr.bf16.gmra.mrb[0].mxu0 %v3809
    %v6681 = vpop.f32.mrb[0].mxu0
    %v6682 = vadd.f32 0.0, %v6681
    %v6683 = vpop.f32.mrb[0].mxu0
    %v6684 = vpop.f32.mrb[0].mxu0
    %v6685 = vadd.f32 0.0, %v6684
    %v6686 = vpop.f32.mrb[0].mxu0
    %6687 = vdwg.mxu0
    %v6688 = vmul.f32 %v6682, 0.35355338
    %v6689 = vmul.f32 %v6685, 0.35355338
    %v6690 = vadd.f32 %v6688, %v71
    %v6691 = vadd.f32 %v6689, %v72
    %v6692 = vsel %vm3342, %v6690, -inf
    %6693 = vmax.xlane.f32.xlu0 %v6692
    %v6694 = vpop.xlane.xlu0 %6693
    %v6695 = vsel %vm3342, %v6691, -inf
    %6696 = vmax.xlane.f32.xlu0 %v6695
    %v6697 = vpop.xlane.xlu0 %6696
    %v6698 = vsub.f32 %v6690, %v6694
    %v6699 = vsub.f32 %v6691, %v6697
    %v6700 = vmul.f32 %v6698, 1.442695
    %v6701 = vpow.pop %v6700
    %v6702 = vmul.f32 %v6699, 1.442695
    %v6703 = vpow.pop %v6702
    %v6704 = vsel %vm3342, %v6701, 0.0
    %6705 = vadd.xlane.f32.xlu0 %v6704
    %v6706 = vpop.xlane.xlu0 %6705
    %v6707 = vsel %vm3342, %v6703, 0.0
    %6708 = vadd.xlane.f32.xlu0 %v6707
    %v6709 = vpop.xlane.xlu0 %6708
    %v6710 = vrcp.pop %v6706
    %v6711 = vmul.f32 %v6701, %v6710
    %v6712 = vrcp.pop %v6709
    %v6713 = vmul.f32 %v6703, %v6712
    %v6714 = vpack.c.bf16 %v6713, %v6711
    %6715 = vrot.lane.b32.xlu0 %v6102, 72
    %v6716 = vpop.permute.xlu0 %6715
    %6717 = vrot.lane.b32.xlu0 %v6103, 72
    %v6718 = vpop.permute.xlu0 %6717
    %6719 = vrot.lane.b32.xlu0 %v6104, 72
    %v6720 = vpop.permute.xlu0 %6719
    %6721 = vrot.lane.b32.xlu0 %v6105, 72
    %v6722 = vpop.permute.xlu0 %6721
    %6723 = vrot.lane.b32.xlu0 %v6106, 72
    %v6724 = vpop.permute.xlu0 %6723
    %6725 = vrot.lane.b32.xlu0 %v6107, 72
    %v6726 = vpop.permute.xlu0 %6725
    %6727 = vrot.lane.b32.xlu0 %v6108, 72
    %v6728 = vpop.permute.xlu0 %6727
    %v6736 = vsel %vm3342, %v6714, 0
    %v6739 = vsel %vm3396, %v6728, 0
    %6741 = vmatprep.subr.bf16.mxu0 0
    %6742 = vmatpush1.bf16.msra.mxu0 %v6716
    %6743 = vmatprep.subr.bf16.mxu0 0
    %6744 = vmatpush1.bf16.msra.mxu0 %v6718
    %6745 = vmatprep.subr.bf16.mxu0 0
    %6746 = vmatpush1.bf16.msra.mxu0 %v6720
    %6747 = vmatprep.subr.bf16.mxu0 0
    %6748 = vmatpush1.bf16.msra.mxu0 %v6722
    %6749 = vmatprep.subr.bf16.mxu0 0
    %6750 = vmatpush1.bf16.msra.mxu0 %v6724
    %6751 = vmatprep.subr.bf16.mxu0 0
    %6752 = vmatpush1.bf16.msra.mxu0 %v6726
    %6753 = vmatprep.subr.bf16.mxu0 0
    %6754 = vmatpush1.bf16.msra.mxu0 %v6739
    %6755 = vmatprep.subr.bf16.mxu0 0
    %6756 = vmatpush1.bf16.msra.mxu0 0
    %6757 = vmatprep.subr.bf16.mxu0 0
    %6758 = vmatpush1.bf16.msra.mxu0 0
    %6759 = vmatprep.subr.bf16.mxu0 0
    %6760 = vmatpush1.bf16.msra.mxu0 0
    %6761 = vmatprep.subr.bf16.mxu0 0
    %6762 = vmatpush1.bf16.msra.mxu0 0
    %6763 = vmatprep.subr.bf16.mxu0 0
    %6764 = vmatpush1.bf16.msra.mxu0 0
    %6765 = vmatprep.subr.bf16.mxu0 0
    %6766 = vmatpush1.bf16.msra.mxu0 0
    %6767 = vmatprep.subr.bf16.mxu0 0
    %6768 = vmatpush1.bf16.msra.mxu0 0
    %6769 = vmatprep.subr.bf16.mxu0 0
    %6770 = vmatpush1.bf16.msra.mxu0 0
    %6771 = vmatprep.subr.bf16.mxu0 0
    %6772 = vmatpush1.bf16.msra.mxu0 0
    %6773 = vmatprep.mubr.bf16.mxu0 0
    %6774 = vmatmul.mubr.bf16.gmra.mrb[0].mxu0 %v6736
    %v6775 = vpop.f32.mrb[0].mxu0
    %v6776 = vadd.f32 0.0, %v6775
    %v6777 = vpop.f32.mrb[0].mxu0
    %v6778 = vpop.f32.mrb[0].mxu0
    %v6779 = vadd.f32 0.0, %v6778
    %v6780 = vpop.f32.mrb[0].mxu0
    %6781 = vdwg.mxu0
    %6784 = vrot.lane.b32.xlu0 %v6436, 8
    %v6785 = vpop.permute.xlu0 %6784
    %6786 = vrot.lane.b32.xlu0 %v6439, 8
    %v6787 = vpop.permute.xlu0 %6786
    %6792 = vrot.lane.b32.xlu0 %v6606, 16
    %v6793 = vpop.permute.xlu0 %6792
    %6794 = vrot.lane.b32.xlu0 %v6609, 16
    %v6795 = vpop.permute.xlu0 %6794
    %6800 = vrot.lane.b32.xlu0 %v6776, 24
    %v6801 = vpop.permute.xlu0 %6800
    %6802 = vrot.lane.b32.xlu0 %v6779, 24
    %v6803 = vpop.permute.xlu0 %6802
    %v6806 = vsel %vm2573, %v6266, %v6785
    %v6807 = vsel %vm2573, %v6269, %v6787
    %v6808 = vsel %vm2625, %v6806, %v6793
    %v6809 = vsel %vm2625, %v6807, %v6795
    %v6810 = vsel %vm3101, %v6808, %v6801
    %v6811 = vsel %vm3101, %v6809, %v6803
    %v6812 = vpack.c.bf16 %v3996, %v3995
    %v6813 = vpack.c.bf16 %v6811, %v6810
    %v6818 = vunpack.c.l.b16 %v55
    %v6819 = vunpack.c.l.b16 %v56
    %v6820 = vunpack.c.l.b16 %v57
    %v6821 = vunpack.c.l.b16 %v58
    %v6822 = vpack.c.b16 %v6819, %v6818
    %v6823 = vpack.c.b16 %v6821, %v6820
    %v6827 = vsel %vm2475, %v6813, 0
    %6829 = vmatprep.subr.bf16.mxu0 0
    %6830 = vmatpush1.bf16.msra.mxu0 %v6822
    %6831 = vmatprep.subr.bf16.mxu0 0
    %6832 = vmatpush1.bf16.msra.mxu0 %v6823
    %6833 = vmatprep.subr.bf16.mxu0 0
    %6834 = vmatpush1.bf16.msra.mxu0 0
    %6835 = vmatprep.subr.bf16.mxu0 0
    %6836 = vmatpush1.bf16.msra.mxu0 0
    %6837 = vmatprep.subr.bf16.mxu0 0
    %6838 = vmatpush1.bf16.msra.mxu0 0
    %6839 = vmatprep.subr.bf16.mxu0 0
    %6840 = vmatpush1.bf16.msra.mxu0 0
    %6841 = vmatprep.subr.bf16.mxu0 0
    %6842 = vmatpush1.bf16.msra.mxu0 0
    %6843 = vmatprep.subr.bf16.mxu0 0
    %6844 = vmatpush1.bf16.msra.mxu0 0
    %6845 = vmatprep.subr.bf16.mxu0 0
    %6846 = vmatpush1.bf16.msra.mxu0 0
    %6847 = vmatprep.subr.bf16.mxu0 0
    %6848 = vmatpush1.bf16.msra.mxu0 0
    %6849 = vmatprep.subr.bf16.mxu0 0
    %6850 = vmatpush1.bf16.msra.mxu0 0
    %6851 = vmatprep.subr.bf16.mxu0 0
    %6852 = vmatpush1.bf16.msra.mxu0 0
    %6853 = vmatprep.subr.bf16.mxu0 0
    %6854 = vmatpush1.bf16.msra.mxu0 0
    %6855 = vmatprep.subr.bf16.mxu0 0
    %6856 = vmatpush1.bf16.msra.mxu0 0
    %6857 = vmatprep.subr.bf16.mxu0 0
    %6858 = vmatpush1.bf16.msra.mxu0 0
    %6859 = vmatprep.subr.bf16.mxu0 0
    %6860 = vmatpush1.bf16.msra.mxu0 0
    %6861 = vmatprep.mubr.bf16.mxu0 0
    %6862 = vmatmul.mubr.bf16.gmra.mrb[0].mxu0 %v6827
    %v6863 = vpop.f32.mrb[0].mxu0
    %v6864 = vadd.f32 0.0, %v6863
    %v6865 = vpop.f32.mrb[0].mxu0
    %v6866 = vpop.f32.mrb[0].mxu0
    %v6867 = vadd.f32 0.0, %v6866
    %v6868 = vpop.f32.mrb[0].mxu0
    %6869 = vdwg.mxu0
    %v6874 = vunpack.c.l.b16 %v51
    %v6875 = vunpack.c.l.b16 %v52
    %v6876 = vunpack.c.l.b16 %v53
    %v6877 = vunpack.c.l.b16 %v54
    %v6878 = vpack.c.b16 %v6875, %v6874
    %v6879 = vpack.c.b16 %v6877, %v6876
    %v6883 = vsel %vm2475, %v6812, 0
    %6885 = vmatprep.subr.bf16.mxu0 0
    %6886 = vmatpush1.bf16.msra.mxu0 %v6878
    %6887 = vmatprep.subr.bf16.mxu0 0
    %6888 = vmatpush1.bf16.msra.mxu0 %v6879
    %6889 = vmatprep.subr.bf16.mxu0 0
    %6890 = vmatpush1.bf16.msra.mxu0 0
    %6891 = vmatprep.subr.bf16.mxu0 0
    %6892 = vmatpush1.bf16.msra.mxu0 0
    %6893 = vmatprep.subr.bf16.mxu0 0
    %6894 = vmatpush1.bf16.msra.mxu0 0
    %6895 = vmatprep.subr.bf16.mxu0 0
    %6896 = vmatpush1.bf16.msra.mxu0 0
    %6897 = vmatprep.subr.bf16.mxu0 0
    %6898 = vmatpush1.bf16.msra.mxu0 0
    %6899 = vmatprep.subr.bf16.mxu0 0
    %6900 = vmatpush1.bf16.msra.mxu0 0
    %6901 = vmatprep.subr.bf16.mxu0 0
    %6902 = vmatpush1.bf16.msra.mxu0 0
    %6903 = vmatprep.subr.bf16.mxu0 0
    %6904 = vmatpush1.bf16.msra.mxu0 0
    %6905 = vmatprep.subr.bf16.mxu0 0
    %6906 = vmatpush1.bf16.msra.mxu0 0
    %6907 = vmatprep.subr.bf16.mxu0 0
    %6908 = vmatpush1.bf16.msra.mxu0 0
    %6909 = vmatprep.subr.bf16.mxu0 0
    %6910 = vmatpush1.bf16.msra.mxu0 0
    %6911 = vmatprep.subr.bf16.mxu0 0
    %6912 = vmatpush1.bf16.msra.mxu0 0
    %6913 = vmatprep.subr.bf16.mxu0 0
    %6914 = vmatpush1.bf16.msra.mxu0 0
    %6915 = vmatprep.subr.bf16.mxu0 0
    %6916 = vmatpush1.bf16.msra.mxu0 0
    %6917 = vmatprep.mubr.bf16.mxu0 0
    %6918 = vmatmul.mubr.bf16.gmra.mrb[0].mxu0 %v6883
    %v6919 = vpop.f32.mrb[0].mxu0
    %v6920 = vadd.f32 %v6864, %v6919
    %v6921 = vpop.f32.mrb[0].mxu0
    %v6922 = vpop.f32.mrb[0].mxu0
    %v6923 = vadd.f32 %v6867, %v6922
    %v6924 = vpop.f32.mrb[0].mxu0
    %6925 = vdwg.mxu0
    %v6926 = vlaneseq
    %v6927 = vshrl.u32 %v6926, 7
    %v6928 = vsub.s32 2, %v6927
    %v6929 = vrot.slane %v50, %v6928
    %v6930 = vadd.f32 %v6920, %v6929
    %v6931 = vadd.f32 %v6923, %v6929
    %v6932 = vxor.u32 %v6930, 2147483648
    %v6933 = vxor.u32 %v6931, 2147483648
    %v6934 = vmul.f32 %v6932, 1.442695
    %v6935 = vpow.pop %v6934
    %v6936 = vmul.f32 %v6933, 1.442695
    %v6937 = vpow.pop %v6936
    %v6938 = vadd.f32 %v6935, 1.0
    %v6939 = vadd.f32 %v6937, 1.0
    %v6940 = vrcp.pop %v6938
    %v6941 = vmul.f32 1.0, %v6940
    %v6942 = vrcp.pop %v6939
    %v6943 = vmul.f32 1.0, %v6942
    %v6944 = vmul.f32 %v6941, %v3995
    %v6945 = vmul.f32 %v6943, %v3996
    %v6946 = vpack.c.bf16 %v6945, %v6944
    %v6951 = vunpack.c.l.b16 %v63
    %v6952 = vunpack.c.l.b16 %v64
    %v6953 = vunpack.c.l.b16 %v65
    %v6954 = vunpack.c.l.b16 %v66
    %v6955 = vpack.c.b16 %v6952, %v6951
    %v6956 = vpack.c.b16 %v6954, %v6953
    %v6960 = vsel %vm2475, %v6946, 0
    %6962 = vmatprep.subr.bf16.mxu0 0
    %6963 = vmatpush1.bf16.msra.mxu0 %v6955
    %6964 = vmatprep.subr.bf16.mxu0 0
    %6965 = vmatpush1.bf16.msra.mxu0 %v6956
    %6966 = vmatprep.subr.bf16.mxu0 0
    %6967 = vmatpush1.bf16.msra.mxu0 0
    %6968 = vmatprep.subr.bf16.mxu0 0
    %6969 = vmatpush1.bf16.msra.mxu0 0
    %6970 = vmatprep.subr.bf16.mxu0 0
    %6971 = vmatpush1.bf16.msra.mxu0 0
    %6972 = vmatprep.subr.bf16.mxu0 0
    %6973 = vmatpush1.bf16.msra.mxu0 0
    %6974 = vmatprep.subr.bf16.mxu0 0
    %6975 = vmatpush1.bf16.msra.mxu0 0
    %6976 = vmatprep.subr.bf16.mxu0 0
    %6977 = vmatpush1.bf16.msra.mxu0 0
    %6978 = vmatprep.subr.bf16.mxu0 0
    %6979 = vmatpush1.bf16.msra.mxu0 0
    %6980 = vmatprep.subr.bf16.mxu0 0
    %6981 = vmatpush1.bf16.msra.mxu0 0
    %6982 = vmatprep.subr.bf16.mxu0 0
    %6983 = vmatpush1.bf16.msra.mxu0 0
    %6984 = vmatprep.subr.bf16.mxu0 0
    %6985 = vmatpush1.bf16.msra.mxu0 0
    %6986 = vmatprep.subr.bf16.mxu0 0
    %6987 = vmatpush1.bf16.msra.mxu0 0
    %6988 = vmatprep.subr.bf16.mxu0 0
    %6989 = vmatpush1.bf16.msra.mxu0 0
    %6990 = vmatprep.subr.bf16.mxu0 0
    %6991 = vmatpush1.bf16.msra.mxu0 0
    %6992 = vmatprep.subr.bf16.mxu0 0
    %6993 = vmatpush1.bf16.msra.mxu0 0
    %6994 = vmatprep.mubr.bf16.mxu0 0
    %6995 = vmatmul.mubr.bf16.gmra.mrb[0].mxu0 %v6960
    %v6996 = vpop.f32.mrb[0].mxu0
    %v6997 = vadd.f32 0.0, %v6996
    %v6998 = vpop.f32.mrb[0].mxu0
    %v6999 = vpop.f32.mrb[0].mxu0
    %v7000 = vadd.f32 0.0, %v6999
    %v7001 = vpop.f32.mrb[0].mxu0
    %7002 = vdwg.mxu0
    %v7007 = vunpack.c.l.b16 %v59
    %v7008 = vunpack.c.l.b16 %v60
    %v7009 = vunpack.c.l.b16 %v61
    %v7010 = vunpack.c.l.b16 %v62
    %v7011 = vpack.c.b16 %v7008, %v7007
    %v7012 = vpack.c.b16 %v7010, %v7009
    %7015 = vmatprep.subr.bf16.mxu0 0
    %7016 = vmatpush1.bf16.msra.mxu0 %v7011
    %7017 = vmatprep.subr.bf16.mxu0 0
    %7018 = vmatpush1.bf16.msra.mxu0 %v7012
    %7019 = vmatprep.subr.bf16.mxu0 0
    %7020 = vmatpush1.bf16.msra.mxu0 0
    %7021 = vmatprep.subr.bf16.mxu0 0
    %7022 = vmatpush1.bf16.msra.mxu0 0
    %7023 = vmatprep.subr.bf16.mxu0 0
    %7024 = vmatpush1.bf16.msra.mxu0 0
    %7025 = vmatprep.subr.bf16.mxu0 0
    %7026 = vmatpush1.bf16.msra.mxu0 0
    %7027 = vmatprep.subr.bf16.mxu0 0
    %7028 = vmatpush1.bf16.msra.mxu0 0
    %7029 = vmatprep.subr.bf16.mxu0 0
    %7030 = vmatpush1.bf16.msra.mxu0 0
    %7031 = vmatprep.subr.bf16.mxu0 0
    %7032 = vmatpush1.bf16.msra.mxu0 0
    %7033 = vmatprep.subr.bf16.mxu0 0
    %7034 = vmatpush1.bf16.msra.mxu0 0
    %7035 = vmatprep.subr.bf16.mxu0 0
    %7036 = vmatpush1.bf16.msra.mxu0 0
    %7037 = vmatprep.subr.bf16.mxu0 0
    %7038 = vmatpush1.bf16.msra.mxu0 0
    %7039 = vmatprep.subr.bf16.mxu0 0
    %7040 = vmatpush1.bf16.msra.mxu0 0
    %7041 = vmatprep.subr.bf16.mxu0 0
    %7042 = vmatpush1.bf16.msra.mxu0 0
    %7043 = vmatprep.subr.bf16.mxu0 0
    %7044 = vmatpush1.bf16.msra.mxu0 0
    %7045 = vmatprep.subr.bf16.mxu0 0
    %7046 = vmatpush1.bf16.msra.mxu0 0
    %7047 = vmatprep.mubr.bf16.mxu0 0
    %7048 = vmatmul.mubr.bf16.gmra.mrb[0].mxu0 %v6827
    %v7049 = vpop.f32.mrb[0].mxu0
    %v7050 = vadd.f32 %v6997, %v7049
    %v7051 = vpop.f32.mrb[0].mxu0
    %v7052 = vpop.f32.mrb[0].mxu0
    %v7053 = vadd.f32 %v7000, %v7052
    %v7054 = vpop.f32.mrb[0].mxu0
    %7055 = vdwg.mxu0
    %v7056 = vlaneseq
    %v7057 = vshrl.u32 %v7056, 7
    %v7058 = vsub.s32 3, %v7057
    %v7059 = vrot.slane %v50, %v7058
    %v7060 = vadd.f32 %v7050, %v7059
    %v7061 = vadd.f32 %v7053, %v7059
    %v7062 = vld [vmem:[%s12] sm:$0x7f]
    %v7063 = vmul.f32 %v7062, 1.442695
    %v7064 = vpow.pop %v7063
    %v7065 = vld [vmem:[%s6] sm:$0xf]
    %v7066 = vld [vmem:[%s2] sm:$0xff]
    %v7067 = vld [vmem:[%s2 + $0x8] sm:$0xff]
    %v7068 = vmul.f32 %v7060, %v7066
    %vm7069 = vcmask 39936
    %v7070 = vsel %vm7069, %v7068, 0.0
    %7071 = vadd.xlane.f32.xlu0 %v7070
    %v7072 = vpop.xlane.xlu0 %7071
    %v7074 = vrot.slane %v7062, 2
    %v7076 = vsel %vm7069, %v7066, 0
    %vm7078 = vcmask 1044480
    %v7079 = vsel %vm7078, %v7074, 0
    %7081 = vmatprep.subr.mxu0 0.0
    %7082 = vmatpush1.msra.mxu0 %v7079
    %7083 = vmatprep.subr.mxu0 0.0
    %7084 = vmatpush1.msra.mxu0 0.0
    %7085 = vmatprep.subr.mxu0 0.0
    %7086 = vmatpush1.msra.mxu0 0.0
    %7087 = vmatprep.subr.mxu0 0.0
    %7088 = vmatpush1.msra.mxu0 0.0
    %7089 = vmatprep.subr.mxu0 0.0
    %7090 = vmatpush1.msra.mxu0 0.0
    %7091 = vmatprep.subr.mxu0 0.0
    %7092 = vmatpush1.msra.mxu0 0.0
    %7093 = vmatprep.subr.mxu0 0.0
    %7094 = vmatpush1.msra.mxu0 0.0
    %7095 = vmatprep.subr.mxu0 0.0
    %7096 = vmatpush1.msra.mxu0 0.0
    %7097 = vmatprep.subr.mxu0 0.0
    %7098 = vmatpush1.msra.mxu0 0.0
    %7099 = vmatprep.subr.mxu0 0.0
    %7100 = vmatpush1.msra.mxu0 0.0
    %7101 = vmatprep.subr.mxu0 0.0
    %7102 = vmatpush1.msra.mxu0 0.0
    %7103 = vmatprep.subr.mxu0 0.0
    %7104 = vmatpush1.msra.mxu0 0.0
    %7105 = vmatprep.subr.mxu0 0.0
    %7106 = vmatpush1.msra.mxu0 0.0
    %7107 = vmatprep.subr.mxu0 0.0
    %7108 = vmatpush1.msra.mxu0 0.0
    %7109 = vmatprep.subr.mxu0 0.0
    %7110 = vmatpush1.msra.mxu0 0.0
    %7111 = vmatprep.subr.mxu0 0.0
    %7112 = vmatpush1.msra.mxu0 0.0
    %7113 = vmatprep.subr.mxu0 0.0
    %7114 = vmatpush1.msra.mxu0 0.0
    %7115 = vmatprep.subr.mxu0 0.0
    %7116 = vmatpush1.msra.mxu0 0.0
    %7117 = vmatprep.subr.mxu0 0.0
    %7118 = vmatpush1.msra.mxu0 0.0
    %7119 = vmatprep.subr.mxu0 0.0
    %7120 = vmatpush1.msra.mxu0 0.0
    %7121 = vmatprep.subr.mxu0 0.0
    %7122 = vmatpush1.msra.mxu0 0.0
    %7123 = vmatprep.subr.mxu0 0.0
    %7124 = vmatpush1.msra.mxu0 0.0
    %7125 = vmatprep.subr.mxu0 0.0
    %7126 = vmatpush1.msra.mxu0 0.0
    %7127 = vmatprep.subr.mxu0 0.0
    %7128 = vmatpush1.msra.mxu0 0.0
    %7129 = vmatprep.subr.mxu0 0.0
    %7130 = vmatpush1.msra.mxu0 0.0
    %7131 = vmatprep.subr.mxu0 0.0
    %7132 = vmatpush1.msra.mxu0 0.0
    %7133 = vmatprep.subr.mxu0 0.0
    %7134 = vmatpush1.msra.mxu0 0.0
    %7135 = vmatprep.subr.mxu0 0.0
    %7136 = vmatpush1.msra.mxu0 0.0
    %7137 = vmatprep.subr.mxu0 0.0
    %7138 = vmatpush1.msra.mxu0 0.0
    %7139 = vmatprep.subr.mxu0 0.0
    %7140 = vmatpush1.msra.mxu0 0.0
    %7141 = vmatprep.subr.mxu0 0.0
    %7142 = vmatpush1.msra.mxu0 0.0
    %7143 = vmatprep.subr.mxu0 0.0
    %7144 = vmatpush1.msra.mxu0 0.0
    %7145 = vmatprep.mubr.f32.mxu0 0.0
    %7146 = vmatmul.mubr.f32.gmra.mrb[0].mxu0 %v7076
    %v7147 = vpop.f32.mrb[0].mxu0
    %v7148 = vadd.f32 0.0, %v7147
    %v7149 = vpop.f32.mrb[0].mxu0
    %7150 = vdwg.mxu0
    %v7151 = vrot.slane %v7066, 1
    %v7153 = vmul.f32 %v7148, %v7151
    %vm7154 = vcmask 38912
    %v7155 = vsel %vm7154, %v7153, 0.0
    %7156 = vadd.xlane.f32.xlu0 %v7155
    %v7157 = vpop.xlane.xlu0 %7156
    %v7159 = vrot.slane %v7065, 2
    %v7160 = vsel %vm2573, %v7159, 0
    %7162 = vmatprep.subr.mxu0 0.0
    %7163 = vmatpush1.msra.mxu0 %v7066
    %7164 = vmatprep.subr.mxu0 0.0
    %7165 = vmatpush1.msra.mxu0 0.0
    %7166 = vmatprep.subr.mxu0 0.0
    %7167 = vmatpush1.msra.mxu0 0.0
    %7168 = vmatprep.subr.mxu0 0.0
    %7169 = vmatpush1.msra.mxu0 0.0
    %7170 = vmatprep.subr.mxu0 0.0
    %7171 = vmatpush1.msra.mxu0 0.0
    %7172 = vmatprep.subr.mxu0 0.0
    %7173 = vmatpush1.msra.mxu0 0.0
    %7174 = vmatprep.subr.mxu0 0.0
    %7175 = vmatpush1.msra.mxu0 0.0
    %7176 = vmatprep.subr.mxu0 0.0
    %7177 = vmatpush1.msra.mxu0 0.0
    %7178 = vmatprep.subr.mxu0 0.0
    %7179 = vmatpush1.msra.mxu0 0.0
    %7180 = vmatprep.subr.mxu0 0.0
    %7181 = vmatpush1.msra.mxu0 0.0
    %7182 = vmatprep.subr.mxu0 0.0
    %7183 = vmatpush1.msra.mxu0 0.0
    %7184 = vmatprep.subr.mxu0 0.0
    %7185 = vmatpush1.msra.mxu0 0.0
    %7186 = vmatprep.subr.mxu0 0.0
    %7187 = vmatpush1.msra.mxu0 0.0
    %7188 = vmatprep.subr.mxu0 0.0
    %7189 = vmatpush1.msra.mxu0 0.0
    %7190 = vmatprep.subr.mxu0 0.0
    %7191 = vmatpush1.msra.mxu0 0.0
    %7192 = vmatprep.subr.mxu0 0.0
    %7193 = vmatpush1.msra.mxu0 0.0
    %7194 = vmatprep.subr.mxu0 0.0
    %7195 = vmatpush1.msra.mxu0 0.0
    %7196 = vmatprep.subr.mxu0 0.0
    %7197 = vmatpush1.msra.mxu0 0.0
    %7198 = vmatprep.subr.mxu0 0.0
    %7199 = vmatpush1.msra.mxu0 0.0
    %7200 = vmatprep.subr.mxu0 0.0
    %7201 = vmatpush1.msra.mxu0 0.0
    %7202 = vmatprep.subr.mxu0 0.0
    %7203 = vmatpush1.msra.mxu0 0.0
    %7204 = vmatprep.subr.mxu0 0.0
    %7205 = vmatpush1.msra.mxu0 0.0
    %7206 = vmatprep.subr.mxu0 0.0
    %7207 = vmatpush1.msra.mxu0 0.0
    %7208 = vmatprep.subr.mxu0 0.0
    %7209 = vmatpush1.msra.mxu0 0.0
    %7210 = vmatprep.subr.mxu0 0.0
    %7211 = vmatpush1.msra.mxu0 0.0
    %7212 = vmatprep.subr.mxu0 0.0
    %7213 = vmatpush1.msra.mxu0 0.0
    %7214 = vmatprep.subr.mxu0 0.0
    %7215 = vmatpush1.msra.mxu0 0.0
    %7216 = vmatprep.subr.mxu0 0.0
    %7217 = vmatpush1.msra.mxu0 0.0
    %7218 = vmatprep.subr.mxu0 0.0
    %7219 = vmatpush1.msra.mxu0 0.0
    %7220 = vmatprep.subr.mxu0 0.0
    %7221 = vmatpush1.msra.mxu0 0.0
    %7222 = vmatprep.subr.mxu0 0.0
    %7223 = vmatpush1.msra.mxu0 0.0
    %7224 = vmatprep.subr.mxu0 0.0
    %7225 = vmatpush1.msra.mxu0 0.0
    %7226 = vmatprep.mubr.f32.mxu0 0.0
    %7227 = vmatmul.mubr.f32.gmra.mrb[0].mxu0 %v7160
    %v7228 = vpop.f32.mrb[0].mxu0
    %v7229 = vadd.f32 0.0, %v7228
    %v7230 = vpop.f32.mrb[0].mxu0
    %7231 = vdwg.mxu0
    %v7232 = vmul.f32 %v7062, %v7066
    %vm7233 = vcmask 32768
    %v7234 = vsel %vm7233, %v7232, 0.0
    %7235 = vadd.xlane.f32.xlu0 %v7234
    %v7236 = vpop.xlane.xlu0 %7235
    %v7237 = vsel %vm2573, %v7065, 0
    %7239 = vmatprep.subr.mxu0 0.0
    %7240 = vmatpush1.msra.mxu0 %v7072
    %7241 = vmatprep.subr.mxu0 0.0
    %7242 = vmatpush1.msra.mxu0 0.0
    %7243 = vmatprep.subr.mxu0 0.0
    %7244 = vmatpush1.msra.mxu0 0.0
    %7245 = vmatprep.subr.mxu0 0.0
    %7246 = vmatpush1.msra.mxu0 0.0
    %7247 = vmatprep.subr.mxu0 0.0
    %7248 = vmatpush1.msra.mxu0 0.0
    %7249 = vmatprep.subr.mxu0 0.0
    %7250 = vmatpush1.msra.mxu0 0.0
    %7251 = vmatprep.subr.mxu0 0.0
    %7252 = vmatpush1.msra.mxu0 0.0
    %7253 = vmatprep.subr.mxu0 0.0
    %7254 = vmatpush1.msra.mxu0 0.0
    %7255 = vmatprep.subr.mxu0 0.0
    %7256 = vmatpush1.msra.mxu0 0.0
    %7257 = vmatprep.subr.mxu0 0.0
    %7258 = vmatpush1.msra.mxu0 0.0
    %7259 = vmatprep.subr.mxu0 0.0
    %7260 = vmatpush1.msra.mxu0 0.0
    %7261 = vmatprep.subr.mxu0 0.0
    %7262 = vmatpush1.msra.mxu0 0.0
    %7263 = vmatprep.subr.mxu0 0.0
    %7264 = vmatpush1.msra.mxu0 0.0
    %7265 = vmatprep.subr.mxu0 0.0
    %7266 = vmatpush1.msra.mxu0 0.0
    %7267 = vmatprep.subr.mxu0 0.0
    %7268 = vmatpush1.msra.mxu0 0.0
    %7269 = vmatprep.subr.mxu0 0.0
    %7270 = vmatpush1.msra.mxu0 0.0
    %7271 = vmatprep.subr.mxu0 0.0
    %7272 = vmatpush1.msra.mxu0 0.0
    %7273 = vmatprep.subr.mxu0 0.0
    %7274 = vmatpush1.msra.mxu0 0.0
    %7275 = vmatprep.subr.mxu0 0.0
    %7276 = vmatpush1.msra.mxu0 0.0
    %7277 = vmatprep.subr.mxu0 0.0
    %7278 = vmatpush1.msra.mxu0 0.0
    %7279 = vmatprep.subr.mxu0 0.0
    %7280 = vmatpush1.msra.mxu0 0.0
    %7281 = vmatprep.subr.mxu0 0.0
    %7282 = vmatpush1.msra.mxu0 0.0
    %7283 = vmatprep.subr.mxu0 0.0
    %7284 = vmatpush1.msra.mxu0 0.0
    %7285 = vmatprep.subr.mxu0 0.0
    %7286 = vmatpush1.msra.mxu0 0.0
    %7287 = vmatprep.subr.mxu0 0.0
    %7288 = vmatpush1.msra.mxu0 0.0
    %7289 = vmatprep.subr.mxu0 0.0
    %7290 = vmatpush1.msra.mxu0 0.0
    %7291 = vmatprep.subr.mxu0 0.0
    %7292 = vmatpush1.msra.mxu0 0.0
    %7293 = vmatprep.subr.mxu0 0.0
    %7294 = vmatpush1.msra.mxu0 0.0
    %7295 = vmatprep.subr.mxu0 0.0
    %7296 = vmatpush1.msra.mxu0 0.0
    %7297 = vmatprep.subr.mxu0 0.0
    %7298 = vmatpush1.msra.mxu0 0.0
    %7299 = vmatprep.subr.mxu0 0.0
    %7300 = vmatpush1.msra.mxu0 0.0
    %7301 = vmatprep.subr.mxu0 0.0
    %7302 = vmatpush1.msra.mxu0 0.0
    %7303 = vmatprep.mubr.f32.mxu0 0.0
    %7304 = vmatmul.mubr.f32.gmra.mrb[0].mxu0 %v7237
    %v7305 = vpop.f32.mrb[0].mxu0
    %v7306 = vadd.f32 0.0, %v7305
    %v7307 = vpop.f32.mrb[0].mxu0
    %7308 = vdwg.mxu0
    %v7309 = vadd.f32 %v7236, %v7306
    %7310 = vrot.lane.b32.xlu0 %v7065, 127
    %v7311 = vpop.permute.xlu0 %7310
    %vm7312 = vcmask 56320
    %v7313 = vsel %vm7312, %v7311, 0
    %vm7315 = vcmask 1046528
    %v7317 = vsel %vm7315, %v7157, 0
    %7319 = vmatprep.subr.mxu0 0.0
    %7320 = vmatpush1.msra.mxu0 %v7317
    %7321 = vmatprep.subr.mxu0 0.0
    %7322 = vmatpush1.msra.mxu0 0.0
    %7323 = vmatprep.subr.mxu0 0.0
    %7324 = vmatpush1.msra.mxu0 0.0
    %7325 = vmatprep.subr.mxu0 0.0
    %7326 = vmatpush1.msra.mxu0 0.0
    %7327 = vmatprep.subr.mxu0 0.0
    %7328 = vmatpush1.msra.mxu0 0.0
    %7329 = vmatprep.subr.mxu0 0.0
    %7330 = vmatpush1.msra.mxu0 0.0
    %7331 = vmatprep.subr.mxu0 0.0
    %7332 = vmatpush1.msra.mxu0 0.0
    %7333 = vmatprep.subr.mxu0 0.0
    %7334 = vmatpush1.msra.mxu0 0.0
    %7335 = vmatprep.subr.mxu0 0.0
    %7336 = vmatpush1.msra.mxu0 0.0
    %7337 = vmatprep.subr.mxu0 0.0
    %7338 = vmatpush1.msra.mxu0 0.0
    %7339 = vmatprep.subr.mxu0 0.0
    %7340 = vmatpush1.msra.mxu0 0.0
    %7341 = vmatprep.subr.mxu0 0.0
    %7342 = vmatpush1.msra.mxu0 0.0
    %7343 = vmatprep.subr.mxu0 0.0
    %7344 = vmatpush1.msra.mxu0 0.0
    %7345 = vmatprep.subr.mxu0 0.0
    %7346 = vmatpush1.msra.mxu0 0.0
    %7347 = vmatprep.subr.mxu0 0.0
    %7348 = vmatpush1.msra.mxu0 0.0
    %7349 = vmatprep.subr.mxu0 0.0
    %7350 = vmatpush1.msra.mxu0 0.0
    %7351 = vmatprep.subr.mxu0 0.0
    %7352 = vmatpush1.msra.mxu0 0.0
    %7353 = vmatprep.subr.mxu0 0.0
    %7354 = vmatpush1.msra.mxu0 0.0
    %7355 = vmatprep.subr.mxu0 0.0
    %7356 = vmatpush1.msra.mxu0 0.0
    %7357 = vmatprep.subr.mxu0 0.0
    %7358 = vmatpush1.msra.mxu0 0.0
    %7359 = vmatprep.subr.mxu0 0.0
    %7360 = vmatpush1.msra.mxu0 0.0
    %7361 = vmatprep.subr.mxu0 0.0
    %7362 = vmatpush1.msra.mxu0 0.0
    %7363 = vmatprep.subr.mxu0 0.0
    %7364 = vmatpush1.msra.mxu0 0.0
    %7365 = vmatprep.subr.mxu0 0.0
    %7366 = vmatpush1.msra.mxu0 0.0
    %7367 = vmatprep.subr.mxu0 0.0
    %7368 = vmatpush1.msra.mxu0 0.0
    %7369 = vmatprep.subr.mxu0 0.0
    %7370 = vmatpush1.msra.mxu0 0.0
    %7371 = vmatprep.subr.mxu0 0.0
    %7372 = vmatpush1.msra.mxu0 0.0
    %7373 = vmatprep.subr.mxu0 0.0
    %7374 = vmatpush1.msra.mxu0 0.0
    %7375 = vmatprep.subr.mxu0 0.0
    %7376 = vmatpush1.msra.mxu0 0.0
    %7377 = vmatprep.subr.mxu0 0.0
    %7378 = vmatpush1.msra.mxu0 0.0
    %7379 = vmatprep.subr.mxu0 0.0
    %7380 = vmatpush1.msra.mxu0 0.0
    %7381 = vmatprep.subr.mxu0 0.0
    %7382 = vmatpush1.msra.mxu0 0.0
    %7383 = vmatprep.mubr.f32.mxu0 0.0
    %7384 = vmatmul.mubr.f32.gmra.mrb[0].mxu0 %v7313
    %v7385 = vpop.f32.mrb[0].mxu0
    %v7386 = vadd.f32 0.0, %v7385
    %v7387 = vpop.f32.mrb[0].mxu0
    %7388 = vdwg.mxu0
    %v7389 = vadd.f32 %v7309, %v7386
    %v7390 = vrot.slane %v7062, 1
    %v7392 = vmul.f32 %v7229, %v7390
    %v7393 = vsel %vm7233, %v7392, 0.0
    %7394 = vadd.xlane.f32.xlu0 %v7393
    %v7395 = vpop.xlane.xlu0 %7394
    %v7396 = vadd.f32 %v7389, %v7395
    %v7397 = vadd.f32 %v7062, %v7060
    %v7398 = vsel %vm7233, %v7397, -inf
    %7399 = vmax.xlane.f32.xlu0 %v7398
    %v7400 = vpop.xlane.xlu0 %7399
    %v7401 = vsub.f32 %v7397, %v7400
    %v7402 = vmul.f32 %v7401, 1.442695
    %v7403 = vpow.pop %v7402
    %v7405 = vrot.slane %v7064, 2
    %v7407 = vsel %vm7069, %v7403, 0
    %v7409 = vsel %vm7078, %v7405, 0
    %7411 = vmatprep.subr.mxu0 0.0
    %7412 = vmatpush1.msra.mxu0 %v7409
    %7413 = vmatprep.subr.mxu0 0.0
    %7414 = vmatpush1.msra.mxu0 0.0
    %7415 = vmatprep.subr.mxu0 0.0
    %7416 = vmatpush1.msra.mxu0 0.0
    %7417 = vmatprep.subr.mxu0 0.0
    %7418 = vmatpush1.msra.mxu0 0.0
    %7419 = vmatprep.subr.mxu0 0.0
    %7420 = vmatpush1.msra.mxu0 0.0
    %7421 = vmatprep.subr.mxu0 0.0
    %7422 = vmatpush1.msra.mxu0 0.0
    %7423 = vmatprep.subr.mxu0 0.0
    %7424 = vmatpush1.msra.mxu0 0.0
    %7425 = vmatprep.subr.mxu0 0.0
    %7426 = vmatpush1.msra.mxu0 0.0
    %7427 = vmatprep.subr.mxu0 0.0
    %7428 = vmatpush1.msra.mxu0 0.0
    %7429 = vmatprep.subr.mxu0 0.0
    %7430 = vmatpush1.msra.mxu0 0.0
    %7431 = vmatprep.subr.mxu0 0.0
    %7432 = vmatpush1.msra.mxu0 0.0
    %7433 = vmatprep.subr.mxu0 0.0
    %7434 = vmatpush1.msra.mxu0 0.0
    %7435 = vmatprep.subr.mxu0 0.0
    %7436 = vmatpush1.msra.mxu0 0.0
    %7437 = vmatprep.subr.mxu0 0.0
    %7438 = vmatpush1.msra.mxu0 0.0
    %7439 = vmatprep.subr.mxu0 0.0
    %7440 = vmatpush1.msra.mxu0 0.0
    %7441 = vmatprep.subr.mxu0 0.0
    %7442 = vmatpush1.msra.mxu0 0.0
    %7443 = vmatprep.subr.mxu0 0.0
    %7444 = vmatpush1.msra.mxu0 0.0
    %7445 = vmatprep.subr.mxu0 0.0
    %7446 = vmatpush1.msra.mxu0 0.0
    %7447 = vmatprep.subr.mxu0 0.0
    %7448 = vmatpush1.msra.mxu0 0.0
    %7449 = vmatprep.subr.mxu0 0.0
    %7450 = vmatpush1.msra.mxu0 0.0
    %7451 = vmatprep.subr.mxu0 0.0
    %7452 = vmatpush1.msra.mxu0 0.0
    %7453 = vmatprep.subr.mxu0 0.0
    %7454 = vmatpush1.msra.mxu0 0.0
    %7455 = vmatprep.subr.mxu0 0.0
    %7456 = vmatpush1.msra.mxu0 0.0
    %7457 = vmatprep.subr.mxu0 0.0
    %7458 = vmatpush1.msra.mxu0 0.0
    %7459 = vmatprep.subr.mxu0 0.0
    %7460 = vmatpush1.msra.mxu0 0.0
    %7461 = vmatprep.subr.mxu0 0.0
    %7462 = vmatpush1.msra.mxu0 0.0
    %7463 = vmatprep.subr.mxu0 0.0
    %7464 = vmatpush1.msra.mxu0 0.0
    %7465 = vmatprep.subr.mxu0 0.0
    %7466 = vmatpush1.msra.mxu0 0.0
    %7467 = vmatprep.subr.mxu0 0.0
    %7468 = vmatpush1.msra.mxu0 0.0
    %7469 = vmatprep.subr.mxu0 0.0
    %7470 = vmatpush1.msra.mxu0 0.0
    %7471 = vmatprep.subr.mxu0 0.0
    %7472 = vmatpush1.msra.mxu0 0.0
    %7473 = vmatprep.subr.mxu0 0.0
    %7474 = vmatpush1.msra.mxu0 0.0
    %7475 = vmatprep.mubr.f32.mxu0 0.0
    %7476 = vmatmul.mubr.f32.gmra.mrb[0].mxu0 %v7407
    %v7477 = vpop.f32.mrb[0].mxu0
    %v7478 = vadd.f32 0.0, %v7477
    %v7479 = vpop.f32.mrb[0].mxu0
    %7480 = vdwg.mxu0
    %v7481 = vlog2.pop %v7478
    %v7482 = vmul.f32 %v7481, 0.6931472
    %v7483 = vadd.f32 %v7400, %v7482
    %v7485 = vrot.slane %v7060, 1
    %v7487 = vadd.f32 %v7483, %v7485
    %7488 = vset.pattern.permute.xlu0 1
    %7489 = vperm.xlu0 %7488, %v7065
    %v7490 = vpop.permute.xlu0 %7489
    %v7492 = vmul.f32 %v7490, %v7487
    %v7493 = vsub.f32 1.0, %v7065
    %7495 = vset.pattern.permute.xlu0 1
    %7496 = vperm.xlu0 %7495, %v7493
    %v7497 = vpop.permute.xlu0 %7496
    %v7499 = vmul.f32 %v7497, %v7397
    %v7500 = vadd.f32 %v7492, %v7499
    %v7501 = vsel %vm7233, %v7500, -inf
    %7502 = vmax.xlane.f32.xlu0 %v7501
    %v7503 = vpop.xlane.xlu0 %7502
    %v7504 = vsub.f32 %v7500, %v7503
    %v7505 = vmul.f32 %v7504, 1.442695
    %v7506 = vpow.pop %v7505
    %v7508 = vsel %vm7069, %v7506, 0
    %7510 = vmatprep.subr.mxu0 0.0
    %7511 = vmatpush1.msra.mxu0 %v7409
    %7512 = vmatprep.subr.mxu0 0.0
    %7513 = vmatpush1.msra.mxu0 0.0
    %7514 = vmatprep.subr.mxu0 0.0
    %7515 = vmatpush1.msra.mxu0 0.0
    %7516 = vmatprep.subr.mxu0 0.0
    %7517 = vmatpush1.msra.mxu0 0.0
    %7518 = vmatprep.subr.mxu0 0.0
    %7519 = vmatpush1.msra.mxu0 0.0
    %7520 = vmatprep.subr.mxu0 0.0
    %7521 = vmatpush1.msra.mxu0 0.0
    %7522 = vmatprep.subr.mxu0 0.0
    %7523 = vmatpush1.msra.mxu0 0.0
    %7524 = vmatprep.subr.mxu0 0.0
    %7525 = vmatpush1.msra.mxu0 0.0
    %7526 = vmatprep.subr.mxu0 0.0
    %7527 = vmatpush1.msra.mxu0 0.0
    %7528 = vmatprep.subr.mxu0 0.0
    %7529 = vmatpush1.msra.mxu0 0.0
    %7530 = vmatprep.subr.mxu0 0.0
    %7531 = vmatpush1.msra.mxu0 0.0
    %7532 = vmatprep.subr.mxu0 0.0
    %7533 = vmatpush1.msra.mxu0 0.0
    %7534 = vmatprep.subr.mxu0 0.0
    %7535 = vmatpush1.msra.mxu0 0.0
    %7536 = vmatprep.subr.mxu0 0.0
    %7537 = vmatpush1.msra.mxu0 0.0
    %7538 = vmatprep.subr.mxu0 0.0
    %7539 = vmatpush1.msra.mxu0 0.0
    %7540 = vmatprep.subr.mxu0 0.0
    %7541 = vmatpush1.msra.mxu0 0.0
    %7542 = vmatprep.subr.mxu0 0.0
    %7543 = vmatpush1.msra.mxu0 0.0
    %7544 = vmatprep.subr.mxu0 0.0
    %7545 = vmatpush1.msra.mxu0 0.0
    %7546 = vmatprep.subr.mxu0 0.0
    %7547 = vmatpush1.msra.mxu0 0.0
    %7548 = vmatprep.subr.mxu0 0.0
    %7549 = vmatpush1.msra.mxu0 0.0
    %7550 = vmatprep.subr.mxu0 0.0
    %7551 = vmatpush1.msra.mxu0 0.0
    %7552 = vmatprep.subr.mxu0 0.0
    %7553 = vmatpush1.msra.mxu0 0.0
    %7554 = vmatprep.subr.mxu0 0.0
    %7555 = vmatpush1.msra.mxu0 0.0
    %7556 = vmatprep.subr.mxu0 0.0
    %7557 = vmatpush1.msra.mxu0 0.0
    %7558 = vmatprep.subr.mxu0 0.0
    %7559 = vmatpush1.msra.mxu0 0.0
    %7560 = vmatprep.subr.mxu0 0.0
    %7561 = vmatpush1.msra.mxu0 0.0
    %7562 = vmatprep.subr.mxu0 0.0
    %7563 = vmatpush1.msra.mxu0 0.0
    %7564 = vmatprep.subr.mxu0 0.0
    %7565 = vmatpush1.msra.mxu0 0.0
    %7566 = vmatprep.subr.mxu0 0.0
    %7567 = vmatpush1.msra.mxu0 0.0
    %7568 = vmatprep.subr.mxu0 0.0
    %7569 = vmatpush1.msra.mxu0 0.0
    %7570 = vmatprep.subr.mxu0 0.0
    %7571 = vmatpush1.msra.mxu0 0.0
    %7572 = vmatprep.subr.mxu0 0.0
    %7573 = vmatpush1.msra.mxu0 0.0
    %7574 = vmatprep.mubr.f32.mxu0 0.0
    %7575 = vmatmul.mubr.f32.gmra.mrb[0].mxu0 %v7508
    %v7576 = vpop.f32.mrb[0].mxu0
    %v7577 = vadd.f32 0.0, %v7576
    %v7578 = vpop.f32.mrb[0].mxu0
    %7579 = vdwg.mxu0
    %v7580 = vlog2.pop %v7577
    %v7581 = vmul.f32 %v7580, 0.6931472
    %v7582 = vadd.f32 %v7503, %v7581
    %v7583 = vrot.slane %v7060, 2
    %v7585 = vadd.f32 %v7582, %v7583
    %7586 = vset.pattern.permute.xlu0 2
    %7587 = vperm.xlu0 %7586, %v7065
    %v7588 = vpop.permute.xlu0 %7587
    %v7590 = vmul.f32 %v7588, %v7585
    %7591 = vset.pattern.permute.xlu0 2
    %7592 = vperm.xlu0 %7591, %v7493
    %v7593 = vpop.permute.xlu0 %7592
    %v7595 = vmul.f32 %v7593, %v7500
    %v7596 = vadd.f32 %v7590, %v7595
    %v7597 = vsel %vm7233, %v7596, -inf
    %7598 = vmax.xlane.f32.xlu0 %v7597
    %v7599 = vpop.xlane.xlu0 %7598
    %v7600 = vsub.f32 %v7596, %v7599
    %v7601 = vmul.f32 %v7600, 1.442695
    %v7602 = vpow.pop %v7601
    %v7604 = vsel %vm7069, %v7602, 0
    %7606 = vmatprep.subr.mxu0 0.0
    %7607 = vmatpush1.msra.mxu0 %v7409
    %7608 = vmatprep.subr.mxu0 0.0
    %7609 = vmatpush1.msra.mxu0 0.0
    %7610 = vmatprep.subr.mxu0 0.0
    %7611 = vmatpush1.msra.mxu0 0.0
    %7612 = vmatprep.subr.mxu0 0.0
    %7613 = vmatpush1.msra.mxu0 0.0
    %7614 = vmatprep.subr.mxu0 0.0
    %7615 = vmatpush1.msra.mxu0 0.0
    %7616 = vmatprep.subr.mxu0 0.0
    %7617 = vmatpush1.msra.mxu0 0.0
    %7618 = vmatprep.subr.mxu0 0.0
    %7619 = vmatpush1.msra.mxu0 0.0
    %7620 = vmatprep.subr.mxu0 0.0
    %7621 = vmatpush1.msra.mxu0 0.0
    %7622 = vmatprep.subr.mxu0 0.0
    %7623 = vmatpush1.msra.mxu0 0.0
    %7624 = vmatprep.subr.mxu0 0.0
    %7625 = vmatpush1.msra.mxu0 0.0
    %7626 = vmatprep.subr.mxu0 0.0
    %7627 = vmatpush1.msra.mxu0 0.0
    %7628 = vmatprep.subr.mxu0 0.0
    %7629 = vmatpush1.msra.mxu0 0.0
    %7630 = vmatprep.subr.mxu0 0.0
    %7631 = vmatpush1.msra.mxu0 0.0
    %7632 = vmatprep.subr.mxu0 0.0
    %7633 = vmatpush1.msra.mxu0 0.0
    %7634 = vmatprep.subr.mxu0 0.0
    %7635 = vmatpush1.msra.mxu0 0.0
    %7636 = vmatprep.subr.mxu0 0.0
    %7637 = vmatpush1.msra.mxu0 0.0
    %7638 = vmatprep.subr.mxu0 0.0
    %7639 = vmatpush1.msra.mxu0 0.0
    %7640 = vmatprep.subr.mxu0 0.0
    %7641 = vmatpush1.msra.mxu0 0.0
    %7642 = vmatprep.subr.mxu0 0.0
    %7643 = vmatpush1.msra.mxu0 0.0
    %7644 = vmatprep.subr.mxu0 0.0
    %7645 = vmatpush1.msra.mxu0 0.0
    %7646 = vmatprep.subr.mxu0 0.0
    %7647 = vmatpush1.msra.mxu0 0.0
    %7648 = vmatprep.subr.mxu0 0.0
    %7649 = vmatpush1.msra.mxu0 0.0
    %7650 = vmatprep.subr.mxu0 0.0
    %7651 = vmatpush1.msra.mxu0 0.0
    %7652 = vmatprep.subr.mxu0 0.0
    %7653 = vmatpush1.msra.mxu0 0.0
    %7654 = vmatprep.subr.mxu0 0.0
    %7655 = vmatpush1.msra.mxu0 0.0
    %7656 = vmatprep.subr.mxu0 0.0
    %7657 = vmatpush1.msra.mxu0 0.0
    %7658 = vmatprep.subr.mxu0 0.0
    %7659 = vmatpush1.msra.mxu0 0.0
    %7660 = vmatprep.subr.mxu0 0.0
    %7661 = vmatpush1.msra.mxu0 0.0
    %7662 = vmatprep.subr.mxu0 0.0
    %7663 = vmatpush1.msra.mxu0 0.0
    %7664 = vmatprep.subr.mxu0 0.0
    %7665 = vmatpush1.msra.mxu0 0.0
    %7666 = vmatprep.subr.mxu0 0.0
    %7667 = vmatpush1.msra.mxu0 0.0
    %7668 = vmatprep.subr.mxu0 0.0
    %7669 = vmatpush1.msra.mxu0 0.0
    %7670 = vmatprep.mubr.f32.mxu0 0.0
    %7671 = vmatmul.mubr.f32.gmra.mrb[0].mxu0 %v7604
    %v7672 = vpop.f32.mrb[0].mxu0
    %v7673 = vadd.f32 0.0, %v7672
    %v7674 = vpop.f32.mrb[0].mxu0
    %7675 = vdwg.mxu0
    %v7676 = vlog2.pop %v7673
    %v7677 = vmul.f32 %v7676, 0.6931472
    %v7678 = vadd.f32 %v7599, %v7677
    %v7679 = vrot.slane %v7060, 3
    %v7681 = vadd.f32 %v7678, %v7679
    %7682 = vset.pattern.permute.xlu0 3
    %7683 = vperm.xlu0 %7682, %v7065
    %v7684 = vpop.permute.xlu0 %7683
    %v7686 = vmul.f32 %v7684, %v7681
    %7687 = vset.pattern.permute.xlu0 3
    %7688 = vperm.xlu0 %7687, %v7493
    %v7689 = vpop.permute.xlu0 %7688
    %v7691 = vmul.f32 %v7689, %v7596
    %v7692 = vadd.f32 %v7686, %v7691
    %v7693 = vsel %vm7233, %v7692, -inf
    %7694 = vmax.xlane.f32.xlu0 %v7693
    %v7695 = vpop.xlane.xlu0 %7694
    %v7696 = vsub.f32 %v7692, %v7695
    %v7697 = vmul.f32 %v7696, 1.442695
    %v7698 = vpow.pop %v7697
    %v7700 = vsel %vm7069, %v7698, 0
    %7702 = vmatprep.subr.mxu0 0.0
    %7703 = vmatpush1.msra.mxu0 %v7409
    %7704 = vmatprep.subr.mxu0 0.0
    %7705 = vmatpush1.msra.mxu0 0.0
    %7706 = vmatprep.subr.mxu0 0.0
    %7707 = vmatpush1.msra.mxu0 0.0
    %7708 = vmatprep.subr.mxu0 0.0
    %7709 = vmatpush1.msra.mxu0 0.0
    %7710 = vmatprep.subr.mxu0 0.0
    %7711 = vmatpush1.msra.mxu0 0.0
    %7712 = vmatprep.subr.mxu0 0.0
    %7713 = vmatpush1.msra.mxu0 0.0
    %7714 = vmatprep.subr.mxu0 0.0
    %7715 = vmatpush1.msra.mxu0 0.0
    %7716 = vmatprep.subr.mxu0 0.0
    %7717 = vmatpush1.msra.mxu0 0.0
    %7718 = vmatprep.subr.mxu0 0.0
    %7719 = vmatpush1.msra.mxu0 0.0
    %7720 = vmatprep.subr.mxu0 0.0
    %7721 = vmatpush1.msra.mxu0 0.0
    %7722 = vmatprep.subr.mxu0 0.0
    %7723 = vmatpush1.msra.mxu0 0.0
    %7724 = vmatprep.subr.mxu0 0.0
    %7725 = vmatpush1.msra.mxu0 0.0
    %7726 = vmatprep.subr.mxu0 0.0
    %7727 = vmatpush1.msra.mxu0 0.0
    %7728 = vmatprep.subr.mxu0 0.0
    %7729 = vmatpush1.msra.mxu0 0.0
    %7730 = vmatprep.subr.mxu0 0.0
    %7731 = vmatpush1.msra.mxu0 0.0
    %7732 = vmatprep.subr.mxu0 0.0
    %7733 = vmatpush1.msra.mxu0 0.0
    %7734 = vmatprep.subr.mxu0 0.0
    %7735 = vmatpush1.msra.mxu0 0.0
    %7736 = vmatprep.subr.mxu0 0.0
    %7737 = vmatpush1.msra.mxu0 0.0
    %7738 = vmatprep.subr.mxu0 0.0
    %7739 = vmatpush1.msra.mxu0 0.0
    %7740 = vmatprep.subr.mxu0 0.0
    %7741 = vmatpush1.msra.mxu0 0.0
    %7742 = vmatprep.subr.mxu0 0.0
    %7743 = vmatpush1.msra.mxu0 0.0
    %7744 = vmatprep.subr.mxu0 0.0
    %7745 = vmatpush1.msra.mxu0 0.0
    %7746 = vmatprep.subr.mxu0 0.0
    %7747 = vmatpush1.msra.mxu0 0.0
    %7748 = vmatprep.subr.mxu0 0.0
    %7749 = vmatpush1.msra.mxu0 0.0
    %7750 = vmatprep.subr.mxu0 0.0
    %7751 = vmatpush1.msra.mxu0 0.0
    %7752 = vmatprep.subr.mxu0 0.0
    %7753 = vmatpush1.msra.mxu0 0.0
    %7754 = vmatprep.subr.mxu0 0.0
    %7755 = vmatpush1.msra.mxu0 0.0
    %7756 = vmatprep.subr.mxu0 0.0
    %7757 = vmatpush1.msra.mxu0 0.0
    %7758 = vmatprep.subr.mxu0 0.0
    %7759 = vmatpush1.msra.mxu0 0.0
    %7760 = vmatprep.subr.mxu0 0.0
    %7761 = vmatpush1.msra.mxu0 0.0
    %7762 = vmatprep.subr.mxu0 0.0
    %7763 = vmatpush1.msra.mxu0 0.0
    %7764 = vmatprep.subr.mxu0 0.0
    %7765 = vmatpush1.msra.mxu0 0.0
    %7766 = vmatprep.mubr.f32.mxu0 0.0
    %7767 = vmatmul.mubr.f32.gmra.mrb[0].mxu0 %v7700
    %v7768 = vpop.f32.mrb[0].mxu0
    %v7769 = vadd.f32 0.0, %v7768
    %v7770 = vpop.f32.mrb[0].mxu0
    %7771 = vdwg.mxu0
    %v7772 = vlog2.pop %v7769
    %v7773 = vmul.f32 %v7772, 0.6931472
    %v7774 = vadd.f32 %v7695, %v7773
    %v7775 = vrot.slane %v7060, 4
    %v7777 = vadd.f32 %v7774, %v7775
    %7778 = vset.pattern.permute.xlu0 4
    %7779 = vperm.xlu0 %7778, %v7065
    %v7780 = vpop.permute.xlu0 %7779
    %v7782 = vmul.f32 %v7780, %v7777
    %7783 = vset.pattern.permute.xlu0 4
    %7784 = vperm.xlu0 %7783, %v7493
    %v7785 = vpop.permute.xlu0 %7784
    %v7787 = vmul.f32 %v7785, %v7692
    %v7788 = vadd.f32 %v7782, %v7787
    %v7789 = vsel %vm7233, %v7788, -inf
    %7790 = vmax.xlane.f32.xlu0 %v7789
    %v7791 = vpop.xlane.xlu0 %7790
    %v7792 = vsub.f32 %v7788, %v7791
    %v7793 = vmul.f32 %v7792, 1.442695
    %v7794 = vpow.pop %v7793
    %v7796 = vsel %vm7069, %v7794, 0
    %7798 = vmatprep.subr.mxu0 0.0
    %7799 = vmatpush1.msra.mxu0 %v7409
    %7800 = vmatprep.subr.mxu0 0.0
    %7801 = vmatpush1.msra.mxu0 0.0
    %7802 = vmatprep.subr.mxu0 0.0
    %7803 = vmatpush1.msra.mxu0 0.0
    %7804 = vmatprep.subr.mxu0 0.0
    %7805 = vmatpush1.msra.mxu0 0.0
    %7806 = vmatprep.subr.mxu0 0.0
    %7807 = vmatpush1.msra.mxu0 0.0
    %7808 = vmatprep.subr.mxu0 0.0
    %7809 = vmatpush1.msra.mxu0 0.0
    %7810 = vmatprep.subr.mxu0 0.0
    %7811 = vmatpush1.msra.mxu0 0.0
    %7812 = vmatprep.subr.mxu0 0.0
    %7813 = vmatpush1.msra.mxu0 0.0
    %7814 = vmatprep.subr.mxu0 0.0
    %7815 = vmatpush1.msra.mxu0 0.0
    %7816 = vmatprep.subr.mxu0 0.0
    %7817 = vmatpush1.msra.mxu0 0.0
    %7818 = vmatprep.subr.mxu0 0.0
    %7819 = vmatpush1.msra.mxu0 0.0
    %7820 = vmatprep.subr.mxu0 0.0
    %7821 = vmatpush1.msra.mxu0 0.0
    %7822 = vmatprep.subr.mxu0 0.0
    %7823 = vmatpush1.msra.mxu0 0.0
    %7824 = vmatprep.subr.mxu0 0.0
    %7825 = vmatpush1.msra.mxu0 0.0
    %7826 = vmatprep.subr.mxu0 0.0
    %7827 = vmatpush1.msra.mxu0 0.0
    %7828 = vmatprep.subr.mxu0 0.0
    %7829 = vmatpush1.msra.mxu0 0.0
    %7830 = vmatprep.subr.mxu0 0.0
    %7831 = vmatpush1.msra.mxu0 0.0
    %7832 = vmatprep.subr.mxu0 0.0
    %7833 = vmatpush1.msra.mxu0 0.0
    %7834 = vmatprep.subr.mxu0 0.0
    %7835 = vmatpush1.msra.mxu0 0.0
    %7836 = vmatprep.subr.mxu0 0.0
    %7837 = vmatpush1.msra.mxu0 0.0
    %7838 = vmatprep.subr.mxu0 0.0
    %7839 = vmatpush1.msra.mxu0 0.0
    %7840 = vmatprep.subr.mxu0 0.0
    %7841 = vmatpush1.msra.mxu0 0.0
    %7842 = vmatprep.subr.mxu0 0.0
    %7843 = vmatpush1.msra.mxu0 0.0
    %7844 = vmatprep.subr.mxu0 0.0
    %7845 = vmatpush1.msra.mxu0 0.0
    %7846 = vmatprep.subr.mxu0 0.0
    %7847 = vmatpush1.msra.mxu0 0.0
    %7848 = vmatprep.subr.mxu0 0.0
    %7849 = vmatpush1.msra.mxu0 0.0
    %7850 = vmatprep.subr.mxu0 0.0
    %7851 = vmatpush1.msra.mxu0 0.0
    %7852 = vmatprep.subr.mxu0 0.0
    %7853 = vmatpush1.msra.mxu0 0.0
    %7854 = vmatprep.subr.mxu0 0.0
    %7855 = vmatpush1.msra.mxu0 0.0
    %7856 = vmatprep.subr.mxu0 0.0
    %7857 = vmatpush1.msra.mxu0 0.0
    %7858 = vmatprep.subr.mxu0 0.0
    %7859 = vmatpush1.msra.mxu0 0.0
    %7860 = vmatprep.subr.mxu0 0.0
    %7861 = vmatpush1.msra.mxu0 0.0
    %7862 = vmatprep.mubr.f32.mxu0 0.0
    %7863 = vmatmul.mubr.f32.gmra.mrb[0].mxu0 %v7796
    %v7864 = vpop.f32.mrb[0].mxu0
    %v7865 = vadd.f32 0.0, %v7864
    %v7866 = vpop.f32.mrb[0].mxu0
    %7867 = vdwg.mxu0
    %v7868 = vlog2.pop %v7865
    %v7869 = vmul.f32 %v7868, 0.6931472
    %v7870 = vadd.f32 %v7791, %v7869
    %v7871 = vrot.slane %v7060, 5
    %v7873 = vadd.f32 %v7870, %v7871
    %7874 = vset.pattern.permute.xlu0 5
    %7875 = vperm.xlu0 %7874, %v7065
    %v7876 = vpop.permute.xlu0 %7875
    %v7878 = vmul.f32 %v7876, %v7873
    %7879 = vset.pattern.permute.xlu0 5
    %7880 = vperm.xlu0 %7879, %v7493
    %v7881 = vpop.permute.xlu0 %7880
    %v7883 = vmul.f32 %v7881, %v7788
    %v7884 = vadd.f32 %v7878, %v7883
    %v7885 = vsel %vm7233, %v7884, -inf
    %7886 = vmax.xlane.f32.xlu0 %v7885
    %v7887 = vpop.xlane.xlu0 %7886
    %v7888 = vsub.f32 %v7884, %v7887
    %v7889 = vmul.f32 %v7888, 1.442695
    %v7890 = vpow.pop %v7889
    %v7892 = vsel %vm7069, %v7890, 0
    %7894 = vmatprep.subr.mxu0 0.0
    %7895 = vmatpush1.msra.mxu0 %v7409
    %7896 = vmatprep.subr.mxu0 0.0
    %7897 = vmatpush1.msra.mxu0 0.0
    %7898 = vmatprep.subr.mxu0 0.0
    %7899 = vmatpush1.msra.mxu0 0.0
    %7900 = vmatprep.subr.mxu0 0.0
    %7901 = vmatpush1.msra.mxu0 0.0
    %7902 = vmatprep.subr.mxu0 0.0
    %7903 = vmatpush1.msra.mxu0 0.0
    %7904 = vmatprep.subr.mxu0 0.0
    %7905 = vmatpush1.msra.mxu0 0.0
    %7906 = vmatprep.subr.mxu0 0.0
    %7907 = vmatpush1.msra.mxu0 0.0
    %7908 = vmatprep.subr.mxu0 0.0
    %7909 = vmatpush1.msra.mxu0 0.0
    %7910 = vmatprep.subr.mxu0 0.0
    %7911 = vmatpush1.msra.mxu0 0.0
    %7912 = vmatprep.subr.mxu0 0.0
    %7913 = vmatpush1.msra.mxu0 0.0
    %7914 = vmatprep.subr.mxu0 0.0
    %7915 = vmatpush1.msra.mxu0 0.0
    %7916 = vmatprep.subr.mxu0 0.0
    %7917 = vmatpush1.msra.mxu0 0.0
    %7918 = vmatprep.subr.mxu0 0.0
    %7919 = vmatpush1.msra.mxu0 0.0
    %7920 = vmatprep.subr.mxu0 0.0
    %7921 = vmatpush1.msra.mxu0 0.0
    %7922 = vmatprep.subr.mxu0 0.0
    %7923 = vmatpush1.msra.mxu0 0.0
    %7924 = vmatprep.subr.mxu0 0.0
    %7925 = vmatpush1.msra.mxu0 0.0
    %7926 = vmatprep.subr.mxu0 0.0
    %7927 = vmatpush1.msra.mxu0 0.0
    %7928 = vmatprep.subr.mxu0 0.0
    %7929 = vmatpush1.msra.mxu0 0.0
    %7930 = vmatprep.subr.mxu0 0.0
    %7931 = vmatpush1.msra.mxu0 0.0
    %7932 = vmatprep.subr.mxu0 0.0
    %7933 = vmatpush1.msra.mxu0 0.0
    %7934 = vmatprep.subr.mxu0 0.0
    %7935 = vmatpush1.msra.mxu0 0.0
    %7936 = vmatprep.subr.mxu0 0.0
    %7937 = vmatpush1.msra.mxu0 0.0
    %7938 = vmatprep.subr.mxu0 0.0
    %7939 = vmatpush1.msra.mxu0 0.0
    %7940 = vmatprep.subr.mxu0 0.0
    %7941 = vmatpush1.msra.mxu0 0.0
    %7942 = vmatprep.subr.mxu0 0.0
    %7943 = vmatpush1.msra.mxu0 0.0
    %7944 = vmatprep.subr.mxu0 0.0
    %7945 = vmatpush1.msra.mxu0 0.0
    %7946 = vmatprep.subr.mxu0 0.0
    %7947 = vmatpush1.msra.mxu0 0.0
    %7948 = vmatprep.subr.mxu0 0.0
    %7949 = vmatpush1.msra.mxu0 0.0
    %7950 = vmatprep.subr.mxu0 0.0
    %7951 = vmatpush1.msra.mxu0 0.0
    %7952 = vmatprep.subr.mxu0 0.0
    %7953 = vmatpush1.msra.mxu0 0.0
    %7954 = vmatprep.subr.mxu0 0.0
    %7955 = vmatpush1.msra.mxu0 0.0
    %7956 = vmatprep.subr.mxu0 0.0
    %7957 = vmatpush1.msra.mxu0 0.0
    %7958 = vmatprep.mubr.f32.mxu0 0.0
    %7959 = vmatmul.mubr.f32.gmra.mrb[0].mxu0 %v7892
    %v7960 = vpop.f32.mrb[0].mxu0
    %v7961 = vadd.f32 0.0, %v7960
    %v7962 = vpop.f32.mrb[0].mxu0
    %7963 = vdwg.mxu0
    %v7964 = vlog2.pop %v7961
    %v7965 = vmul.f32 %v7964, 0.6931472
    %v7966 = vadd.f32 %v7887, %v7965
    %v7967 = vrot.slane %v7060, 6
    %v7969 = vadd.f32 %v7966, %v7967
    %7970 = vset.pattern.permute.xlu0 6
    %7971 = vperm.xlu0 %7970, %v7065
    %v7972 = vpop.permute.xlu0 %7971
    %v7974 = vmul.f32 %v7972, %v7969
    %7975 = vset.pattern.permute.xlu0 6
    %7976 = vperm.xlu0 %7975, %v7493
    %v7977 = vpop.permute.xlu0 %7976
    %v7979 = vmul.f32 %v7977, %v7884
    %v7980 = vadd.f32 %v7974, %v7979
    %v7981 = vsel %vm7233, %v7980, -inf
    %7982 = vmax.xlane.f32.xlu0 %v7981
    %v7983 = vpop.xlane.xlu0 %7982
    %v7984 = vsub.f32 %v7980, %v7983
    %v7985 = vmul.f32 %v7984, 1.442695
    %v7986 = vpow.pop %v7985
    %v7988 = vsel %vm7069, %v7986, 0
    %7990 = vmatprep.subr.mxu0 0.0
    %7991 = vmatpush1.msra.mxu0 %v7409
    %7992 = vmatprep.subr.mxu0 0.0
    %7993 = vmatpush1.msra.mxu0 0.0
    %7994 = vmatprep.subr.mxu0 0.0
    %7995 = vmatpush1.msra.mxu0 0.0
    %7996 = vmatprep.subr.mxu0 0.0
    %7997 = vmatpush1.msra.mxu0 0.0
    %7998 = vmatprep.subr.mxu0 0.0
    %7999 = vmatpush1.msra.mxu0 0.0
    %8000 = vmatprep.subr.mxu0 0.0
    %8001 = vmatpush1.msra.mxu0 0.0
    %8002 = vmatprep.subr.mxu0 0.0
    %8003 = vmatpush1.msra.mxu0 0.0
    %8004 = vmatprep.subr.mxu0 0.0
    %8005 = vmatpush1.msra.mxu0 0.0
    %8006 = vmatprep.subr.mxu0 0.0
    %8007 = vmatpush1.msra.mxu0 0.0
    %8008 = vmatprep.subr.mxu0 0.0
    %8009 = vmatpush1.msra.mxu0 0.0
    %8010 = vmatprep.subr.mxu0 0.0
    %8011 = vmatpush1.msra.mxu0 0.0
    %8012 = vmatprep.subr.mxu0 0.0
    %8013 = vmatpush1.msra.mxu0 0.0
    %8014 = vmatprep.subr.mxu0 0.0
    %8015 = vmatpush1.msra.mxu0 0.0
    %8016 = vmatprep.subr.mxu0 0.0
    %8017 = vmatpush1.msra.mxu0 0.0
    %8018 = vmatprep.subr.mxu0 0.0
    %8019 = vmatpush1.msra.mxu0 0.0
    %8020 = vmatprep.subr.mxu0 0.0
    %8021 = vmatpush1.msra.mxu0 0.0
    %8022 = vmatprep.subr.mxu0 0.0
    %8023 = vmatpush1.msra.mxu0 0.0
    %8024 = vmatprep.subr.mxu0 0.0
    %8025 = vmatpush1.msra.mxu0 0.0
    %8026 = vmatprep.subr.mxu0 0.0
    %8027 = vmatpush1.msra.mxu0 0.0
    %8028 = vmatprep.subr.mxu0 0.0
    %8029 = vmatpush1.msra.mxu0 0.0
    %8030 = vmatprep.subr.mxu0 0.0
    %8031 = vmatpush1.msra.mxu0 0.0
    %8032 = vmatprep.subr.mxu0 0.0
    %8033 = vmatpush1.msra.mxu0 0.0
    %8034 = vmatprep.subr.mxu0 0.0
    %8035 = vmatpush1.msra.mxu0 0.0
    %8036 = vmatprep.subr.mxu0 0.0
    %8037 = vmatpush1.msra.mxu0 0.0
    %8038 = vmatprep.subr.mxu0 0.0
    %8039 = vmatpush1.msra.mxu0 0.0
    %8040 = vmatprep.subr.mxu0 0.0
    %8041 = vmatpush1.msra.mxu0 0.0
    %8042 = vmatprep.subr.mxu0 0.0
    %8043 = vmatpush1.msra.mxu0 0.0
    %8044 = vmatprep.subr.mxu0 0.0
    %8045 = vmatpush1.msra.mxu0 0.0
    %8046 = vmatprep.subr.mxu0 0.0
    %8047 = vmatpush1.msra.mxu0 0.0
    %8048 = vmatprep.subr.mxu0 0.0
    %8049 = vmatpush1.msra.mxu0 0.0
    %8050 = vmatprep.subr.mxu0 0.0
    %8051 = vmatpush1.msra.mxu0 0.0
    %8052 = vmatprep.subr.mxu0 0.0
    %8053 = vmatpush1.msra.mxu0 0.0
    %8054 = vmatprep.mubr.f32.mxu0 0.0
    %8055 = vmatmul.mubr.f32.gmra.mrb[0].mxu0 %v7988
    %v8056 = vpop.f32.mrb[0].mxu0
    %v8057 = vadd.f32 0.0, %v8056
    %v8058 = vpop.f32.mrb[0].mxu0
    %8059 = vdwg.mxu0
    %v8060 = vlog2.pop %v8057
    %v8061 = vmul.f32 %v8060, 0.6931472
    %v8062 = vadd.f32 %v7983, %v8061
    %v8063 = vrot.slane %v7060, 7
    %v8065 = vadd.f32 %v8062, %v8063
    %8066 = vset.pattern.permute.xlu0 7
    %8067 = vperm.xlu0 %8066, %v7065
    %v8068 = vpop.permute.xlu0 %8067
    %v8070 = vmul.f32 %v8068, %v8065
    %8071 = vset.pattern.permute.xlu0 7
    %8072 = vperm.xlu0 %8071, %v7493
    %v8073 = vpop.permute.xlu0 %8072
    %v8075 = vmul.f32 %v8073, %v7980
    %v8076 = vadd.f32 %v8070, %v8075
    %v8077 = vadd.f32 %v8076, %v7390
    %v8078 = vsel %vm7233, %v8077, -inf
    %8079 = vmax.xlane.f32.xlu0 %v8078
    %v8080 = vpop.xlane.xlu0 %8079
    %v8081 = vsub.f32 %v8077, %v8080
    %v8082 = vmul.f32 %v8081, 1.442695
    %v8083 = vpow.pop %v8082
    %v8084 = vsel %vm7233, %v8083, 0.0
    %8085 = vadd.xlane.f32.xlu0 %v8084
    %v8086 = vpop.xlane.xlu0 %8085
    %v8087 = vlog2.pop %v8086
    %v8088 = vmul.f32 %v8087, 0.6931472
    %v8089 = vadd.f32 %v8080, %v8088
    %v8090 = vsub.f32 %v7396, %v8089
    %v8091 = vadd.f32 %v8090, 0.0
    %v8092 = vmul.f32 %v7061, %v7067
    %v8093 = vsel %vm7069, %v8092, 0.0
    %8094 = vadd.xlane.f32.xlu0 %v8093
    %v8095 = vpop.xlane.xlu0 %8094
    %v8097 = vsel %vm7069, %v7067, 0
    %8099 = vmatprep.subr.mxu0 0.0
    %8100 = vmatpush1.msra.mxu0 %v7079
    %8101 = vmatprep.subr.mxu0 0.0
    %8102 = vmatpush1.msra.mxu0 0.0
    %8103 = vmatprep.subr.mxu0 0.0
    %8104 = vmatpush1.msra.mxu0 0.0
    %8105 = vmatprep.subr.mxu0 0.0
    %8106 = vmatpush1.msra.mxu0 0.0
    %8107 = vmatprep.subr.mxu0 0.0
    %8108 = vmatpush1.msra.mxu0 0.0
    %8109 = vmatprep.subr.mxu0 0.0
    %8110 = vmatpush1.msra.mxu0 0.0
    %8111 = vmatprep.subr.mxu0 0.0
    %8112 = vmatpush1.msra.mxu0 0.0
    %8113 = vmatprep.subr.mxu0 0.0
    %8114 = vmatpush1.msra.mxu0 0.0
    %8115 = vmatprep.subr.mxu0 0.0
    %8116 = vmatpush1.msra.mxu0 0.0
    %8117 = vmatprep.subr.mxu0 0.0
    %8118 = vmatpush1.msra.mxu0 0.0
    %8119 = vmatprep.subr.mxu0 0.0
    %8120 = vmatpush1.msra.mxu0 0.0
    %8121 = vmatprep.subr.mxu0 0.0
    %8122 = vmatpush1.msra.mxu0 0.0
    %8123 = vmatprep.subr.mxu0 0.0
    %8124 = vmatpush1.msra.mxu0 0.0
    %8125 = vmatprep.subr.mxu0 0.0
    %8126 = vmatpush1.msra.mxu0 0.0
    %8127 = vmatprep.subr.mxu0 0.0
    %8128 = vmatpush1.msra.mxu0 0.0
    %8129 = vmatprep.subr.mxu0 0.0
    %8130 = vmatpush1.msra.mxu0 0.0
    %8131 = vmatprep.subr.mxu0 0.0
    %8132 = vmatpush1.msra.mxu0 0.0
    %8133 = vmatprep.subr.mxu0 0.0
    %8134 = vmatpush1.msra.mxu0 0.0
    %8135 = vmatprep.subr.mxu0 0.0
    %8136 = vmatpush1.msra.mxu0 0.0
    %8137 = vmatprep.subr.mxu0 0.0
    %8138 = vmatpush1.msra.mxu0 0.0
    %8139 = vmatprep.subr.mxu0 0.0
    %8140 = vmatpush1.msra.mxu0 0.0
    %8141 = vmatprep.subr.mxu0 0.0
    %8142 = vmatpush1.msra.mxu0 0.0
    %8143 = vmatprep.subr.mxu0 0.0
    %8144 = vmatpush1.msra.mxu0 0.0
    %8145 = vmatprep.subr.mxu0 0.0
    %8146 = vmatpush1.msra.mxu0 0.0
    %8147 = vmatprep.subr.mxu0 0.0
    %8148 = vmatpush1.msra.mxu0 0.0
    %8149 = vmatprep.subr.mxu0 0.0
    %8150 = vmatpush1.msra.mxu0 0.0
    %8151 = vmatprep.subr.mxu0 0.0
    %8152 = vmatpush1.msra.mxu0 0.0
    %8153 = vmatprep.subr.mxu0 0.0
    %8154 = vmatpush1.msra.mxu0 0.0
    %8155 = vmatprep.subr.mxu0 0.0
    %8156 = vmatpush1.msra.mxu0 0.0
    %8157 = vmatprep.subr.mxu0 0.0
    %8158 = vmatpush1.msra.mxu0 0.0
    %8159 = vmatprep.subr.mxu0 0.0
    %8160 = vmatpush1.msra.mxu0 0.0
    %8161 = vmatprep.subr.mxu0 0.0
    %8162 = vmatpush1.msra.mxu0 0.0
    %8163 = vmatprep.mubr.f32.mxu0 0.0
    %8164 = vmatmul.mubr.f32.gmra.mrb[0].mxu0 %v8097
    %v8165 = vpop.f32.mrb[0].mxu0
    %v8166 = vadd.f32 0.0, %v8165
    %v8167 = vpop.f32.mrb[0].mxu0
    %8168 = vdwg.mxu0
    %v8169 = vrot.slane %v7067, 1
    %v8171 = vmul.f32 %v8166, %v8169
    %v8172 = vsel %vm7154, %v8171, 0.0
    %8173 = vadd.xlane.f32.xlu0 %v8172
    %v8174 = vpop.xlane.xlu0 %8173
    %v8175 = vrot.slane %v7065, 3
    %v8176 = vsel %vm2573, %v8175, 0
    %8178 = vmatprep.subr.mxu0 0.0
    %8179 = vmatpush1.msra.mxu0 %v7067
    %8180 = vmatprep.subr.mxu0 0.0
    %8181 = vmatpush1.msra.mxu0 0.0
    %8182 = vmatprep.subr.mxu0 0.0
    %8183 = vmatpush1.msra.mxu0 0.0
    %8184 = vmatprep.subr.mxu0 0.0
    %8185 = vmatpush1.msra.mxu0 0.0
    %8186 = vmatprep.subr.mxu0 0.0
    %8187 = vmatpush1.msra.mxu0 0.0
    %8188 = vmatprep.subr.mxu0 0.0
    %8189 = vmatpush1.msra.mxu0 0.0
    %8190 = vmatprep.subr.mxu0 0.0
    %8191 = vmatpush1.msra.mxu0 0.0
    %8192 = vmatprep.subr.mxu0 0.0
    %8193 = vmatpush1.msra.mxu0 0.0
    %8194 = vmatprep.subr.mxu0 0.0
    %8195 = vmatpush1.msra.mxu0 0.0
    %8196 = vmatprep.subr.mxu0 0.0
    %8197 = vmatpush1.msra.mxu0 0.0
    %8198 = vmatprep.subr.mxu0 0.0
    %8199 = vmatpush1.msra.mxu0 0.0
    %8200 = vmatprep.subr.mxu0 0.0
    %8201 = vmatpush1.msra.mxu0 0.0
    %8202 = vmatprep.subr.mxu0 0.0
    %8203 = vmatpush1.msra.mxu0 0.0
    %8204 = vmatprep.subr.mxu0 0.0
    %8205 = vmatpush1.msra.mxu0 0.0
    %8206 = vmatprep.subr.mxu0 0.0
    %8207 = vmatpush1.msra.mxu0 0.0
    %8208 = vmatprep.subr.mxu0 0.0
    %8209 = vmatpush1.msra.mxu0 0.0
    %8210 = vmatprep.subr.mxu0 0.0
    %8211 = vmatpush1.msra.mxu0 0.0
    %8212 = vmatprep.subr.mxu0 0.0
    %8213 = vmatpush1.msra.mxu0 0.0
    %8214 = vmatprep.subr.mxu0 0.0
    %8215 = vmatpush1.msra.mxu0 0.0
    %8216 = vmatprep.subr.mxu0 0.0
    %8217 = vmatpush1.msra.mxu0 0.0
    %8218 = vmatprep.subr.mxu0 0.0
    %8219 = vmatpush1.msra.mxu0 0.0
    %8220 = vmatprep.subr.mxu0 0.0
    %8221 = vmatpush1.msra.mxu0 0.0
    %8222 = vmatprep.subr.mxu0 0.0
    %8223 = vmatpush1.msra.mxu0 0.0
    %8224 = vmatprep.subr.mxu0 0.0
    %8225 = vmatpush1.msra.mxu0 0.0
    %8226 = vmatprep.subr.mxu0 0.0
    %8227 = vmatpush1.msra.mxu0 0.0
    %8228 = vmatprep.subr.mxu0 0.0
    %8229 = vmatpush1.msra.mxu0 0.0
    %8230 = vmatprep.subr.mxu0 0.0
    %8231 = vmatpush1.msra.mxu0 0.0
    %8232 = vmatprep.subr.mxu0 0.0
    %8233 = vmatpush1.msra.mxu0 0.0
    %8234 = vmatprep.subr.mxu0 0.0
    %8235 = vmatpush1.msra.mxu0 0.0
    %8236 = vmatprep.subr.mxu0 0.0
    %8237 = vmatpush1.msra.mxu0 0.0
    %8238 = vmatprep.subr.mxu0 0.0
    %8239 = vmatpush1.msra.mxu0 0.0
    %8240 = vmatprep.subr.mxu0 0.0
    %8241 = vmatpush1.msra.mxu0 0.0
    %8242 = vmatprep.mubr.f32.mxu0 0.0
    %8243 = vmatmul.mubr.f32.gmra.mrb[0].mxu0 %v8176
    %v8244 = vpop.f32.mrb[0].mxu0
    %v8245 = vadd.f32 0.0, %v8244
    %v8246 = vpop.f32.mrb[0].mxu0
    %8247 = vdwg.mxu0
    %v8248 = vmul.f32 %v7062, %v7067
    %v8249 = vsel %vm7233, %v8248, 0.0
    %8250 = vadd.xlane.f32.xlu0 %v8249
    %v8251 = vpop.xlane.xlu0 %8250
    %v8252 = vrot.slane %v7065, 1
    %v8253 = vsel %vm2573, %v8252, 0
    %8255 = vmatprep.subr.mxu0 0.0
    %8256 = vmatpush1.msra.mxu0 %v8095
    %8257 = vmatprep.subr.mxu0 0.0
    %8258 = vmatpush1.msra.mxu0 0.0
    %8259 = vmatprep.subr.mxu0 0.0
    %8260 = vmatpush1.msra.mxu0 0.0
    %8261 = vmatprep.subr.mxu0 0.0
    %8262 = vmatpush1.msra.mxu0 0.0
    %8263 = vmatprep.subr.mxu0 0.0
    %8264 = vmatpush1.msra.mxu0 0.0
    %8265 = vmatprep.subr.mxu0 0.0
    %8266 = vmatpush1.msra.mxu0 0.0
    %8267 = vmatprep.subr.mxu0 0.0
    %8268 = vmatpush1.msra.mxu0 0.0
    %8269 = vmatprep.subr.mxu0 0.0
    %8270 = vmatpush1.msra.mxu0 0.0
    %8271 = vmatprep.subr.mxu0 0.0
    %8272 = vmatpush1.msra.mxu0 0.0
    %8273 = vmatprep.subr.mxu0 0.0
    %8274 = vmatpush1.msra.mxu0 0.0
    %8275 = vmatprep.subr.mxu0 0.0
    %8276 = vmatpush1.msra.mxu0 0.0
    %8277 = vmatprep.subr.mxu0 0.0
    %8278 = vmatpush1.msra.mxu0 0.0
    %8279 = vmatprep.subr.mxu0 0.0
    %8280 = vmatpush1.msra.mxu0 0.0
    %8281 = vmatprep.subr.mxu0 0.0
    %8282 = vmatpush1.msra.mxu0 0.0
    %8283 = vmatprep.subr.mxu0 0.0
    %8284 = vmatpush1.msra.mxu0 0.0
    %8285 = vmatprep.subr.mxu0 0.0
    %8286 = vmatpush1.msra.mxu0 0.0
    %8287 = vmatprep.subr.mxu0 0.0
    %8288 = vmatpush1.msra.mxu0 0.0
    %8289 = vmatprep.subr.mxu0 0.0
    %8290 = vmatpush1.msra.mxu0 0.0
    %8291 = vmatprep.subr.mxu0 0.0
    %8292 = vmatpush1.msra.mxu0 0.0
    %8293 = vmatprep.subr.mxu0 0.0
    %8294 = vmatpush1.msra.mxu0 0.0
    %8295 = vmatprep.subr.mxu0 0.0
    %8296 = vmatpush1.msra.mxu0 0.0
    %8297 = vmatprep.subr.mxu0 0.0
    %8298 = vmatpush1.msra.mxu0 0.0
    %8299 = vmatprep.subr.mxu0 0.0
    %8300 = vmatpush1.msra.mxu0 0.0
    %8301 = vmatprep.subr.mxu0 0.0
    %8302 = vmatpush1.msra.mxu0 0.0
    %8303 = vmatprep.subr.mxu0 0.0
    %8304 = vmatpush1.msra.mxu0 0.0
    %8305 = vmatprep.subr.mxu0 0.0
    %8306 = vmatpush1.msra.mxu0 0.0
    %8307 = vmatprep.subr.mxu0 0.0
    %8308 = vmatpush1.msra.mxu0 0.0
    %8309 = vmatprep.subr.mxu0 0.0
    %8310 = vmatpush1.msra.mxu0 0.0
    %8311 = vmatprep.subr.mxu0 0.0
    %8312 = vmatpush1.msra.mxu0 0.0
    %8313 = vmatprep.subr.mxu0 0.0
    %8314 = vmatpush1.msra.mxu0 0.0
    %8315 = vmatprep.subr.mxu0 0.0
    %8316 = vmatpush1.msra.mxu0 0.0
    %8317 = vmatprep.subr.mxu0 0.0
    %8318 = vmatpush1.msra.mxu0 0.0
    %8319 = vmatprep.mubr.f32.mxu0 0.0
    %8320 = vmatmul.mubr.f32.gmra.mrb[0].mxu0 %v8253
    %v8321 = vpop.f32.mrb[0].mxu0
    %v8322 = vadd.f32 0.0, %v8321
    %v8323 = vpop.f32.mrb[0].mxu0
    %8324 = vdwg.mxu0
    %v8325 = vadd.f32 %v8251, %v8322
    %8326 = vrot.lane.b32.xlu0 %v8252, 127
    %v8327 = vpop.permute.xlu0 %8326
    %v8328 = vsel %vm7312, %v8327, 0
    %v8331 = vsel %vm7315, %v8174, 0
    %8333 = vmatprep.subr.mxu0 0.0
    %8334 = vmatpush1.msra.mxu0 %v8331
    %8335 = vmatprep.subr.mxu0 0.0
    %8336 = vmatpush1.msra.mxu0 0.0
    %8337 = vmatprep.subr.mxu0 0.0
    %8338 = vmatpush1.msra.mxu0 0.0
    %8339 = vmatprep.subr.mxu0 0.0
    %8340 = vmatpush1.msra.mxu0 0.0
    %8341 = vmatprep.subr.mxu0 0.0
    %8342 = vmatpush1.msra.mxu0 0.0
    %8343 = vmatprep.subr.mxu0 0.0
    %8344 = vmatpush1.msra.mxu0 0.0
    %8345 = vmatprep.subr.mxu0 0.0
    %8346 = vmatpush1.msra.mxu0 0.0
    %8347 = vmatprep.subr.mxu0 0.0
    %8348 = vmatpush1.msra.mxu0 0.0
    %8349 = vmatprep.subr.mxu0 0.0
    %8350 = vmatpush1.msra.mxu0 0.0
    %8351 = vmatprep.subr.mxu0 0.0
    %8352 = vmatpush1.msra.mxu0 0.0
    %8353 = vmatprep.subr.mxu0 0.0
    %8354 = vmatpush1.msra.mxu0 0.0
    %8355 = vmatprep.subr.mxu0 0.0
    %8356 = vmatpush1.msra.mxu0 0.0
    %8357 = vmatprep.subr.mxu0 0.0
    %8358 = vmatpush1.msra.mxu0 0.0
    %8359 = vmatprep.subr.mxu0 0.0
    %8360 = vmatpush1.msra.mxu0 0.0
    %8361 = vmatprep.subr.mxu0 0.0
    %8362 = vmatpush1.msra.mxu0 0.0
    %8363 = vmatprep.subr.mxu0 0.0
    %8364 = vmatpush1.msra.mxu0 0.0
    %8365 = vmatprep.subr.mxu0 0.0
    %8366 = vmatpush1.msra.mxu0 0.0
    %8367 = vmatprep.subr.mxu0 0.0
    %8368 = vmatpush1.msra.mxu0 0.0
    %8369 = vmatprep.subr.mxu0 0.0
    %8370 = vmatpush1.msra.mxu0 0.0
    %8371 = vmatprep.subr.mxu0 0.0
    %8372 = vmatpush1.msra.mxu0 0.0
    %8373 = vmatprep.subr.mxu0 0.0
    %8374 = vmatpush1.msra.mxu0 0.0
    %8375 = vmatprep.subr.mxu0 0.0
    %8376 = vmatpush1.msra.mxu0 0.0
    %8377 = vmatprep.subr.mxu0 0.0
    %8378 = vmatpush1.msra.mxu0 0.0
    %8379 = vmatprep.subr.mxu0 0.0
    %8380 = vmatpush1.msra.mxu0 0.0
    %8381 = vmatprep.subr.mxu0 0.0
    %8382 = vmatpush1.msra.mxu0 0.0
    %8383 = vmatprep.subr.mxu0 0.0
    %8384 = vmatpush1.msra.mxu0 0.0
    %8385 = vmatprep.subr.mxu0 0.0
    %8386 = vmatpush1.msra.mxu0 0.0
    %8387 = vmatprep.subr.mxu0 0.0
    %8388 = vmatpush1.msra.mxu0 0.0
    %8389 = vmatprep.subr.mxu0 0.0
    %8390 = vmatpush1.msra.mxu0 0.0
    %8391 = vmatprep.subr.mxu0 0.0
    %8392 = vmatpush1.msra.mxu0 0.0
    %8393 = vmatprep.subr.mxu0 0.0
    %8394 = vmatpush1.msra.mxu0 0.0
    %8395 = vmatprep.subr.mxu0 0.0
    %8396 = vmatpush1.msra.mxu0 0.0
    %8397 = vmatprep.mubr.f32.mxu0 0.0
    %8398 = vmatmul.mubr.f32.gmra.mrb[0].mxu0 %v8328
    %v8399 = vpop.f32.mrb[0].mxu0
    %v8400 = vadd.f32 0.0, %v8399
    %v8401 = vpop.f32.mrb[0].mxu0
    %8402 = vdwg.mxu0
    %v8403 = vadd.f32 %v8325, %v8400
    %v8404 = vmul.f32 %v8245, %v7390
    %v8405 = vsel %vm7233, %v8404, 0.0
    %8406 = vadd.xlane.f32.xlu0 %v8405
    %v8407 = vpop.xlane.xlu0 %8406
    %v8408 = vadd.f32 %v8403, %v8407
    %v8409 = vadd.f32 %v7062, %v7061
    %v8410 = vsel %vm7233, %v8409, -inf
    %8411 = vmax.xlane.f32.xlu0 %v8410
    %v8412 = vpop.xlane.xlu0 %8411
    %v8413 = vsub.f32 %v8409, %v8412
    %v8414 = vmul.f32 %v8413, 1.442695
    %v8415 = vpow.pop %v8414
    %v8417 = vsel %vm7069, %v8415, 0
    %8419 = vmatprep.subr.mxu0 0.0
    %8420 = vmatpush1.msra.mxu0 %v7409
    %8421 = vmatprep.subr.mxu0 0.0
    %8422 = vmatpush1.msra.mxu0 0.0
    %8423 = vmatprep.subr.mxu0 0.0
    %8424 = vmatpush1.msra.mxu0 0.0
    %8425 = vmatprep.subr.mxu0 0.0
    %8426 = vmatpush1.msra.mxu0 0.0
    %8427 = vmatprep.subr.mxu0 0.0
    %8428 = vmatpush1.msra.mxu0 0.0
    %8429 = vmatprep.subr.mxu0 0.0
    %8430 = vmatpush1.msra.mxu0 0.0
    %8431 = vmatprep.subr.mxu0 0.0
    %8432 = vmatpush1.msra.mxu0 0.0
    %8433 = vmatprep.subr.mxu0 0.0
    %8434 = vmatpush1.msra.mxu0 0.0
    %8435 = vmatprep.subr.mxu0 0.0
    %8436 = vmatpush1.msra.mxu0 0.0
    %8437 = vmatprep.subr.mxu0 0.0
    %8438 = vmatpush1.msra.mxu0 0.0
    %8439 = vmatprep.subr.mxu0 0.0
    %8440 = vmatpush1.msra.mxu0 0.0
    %8441 = vmatprep.subr.mxu0 0.0
    %8442 = vmatpush1.msra.mxu0 0.0
    %8443 = vmatprep.subr.mxu0 0.0
    %8444 = vmatpush1.msra.mxu0 0.0
    %8445 = vmatprep.subr.mxu0 0.0
    %8446 = vmatpush1.msra.mxu0 0.0
    %8447 = vmatprep.subr.mxu0 0.0
    %8448 = vmatpush1.msra.mxu0 0.0
    %8449 = vmatprep.subr.mxu0 0.0
    %8450 = vmatpush1.msra.mxu0 0.0
    %8451 = vmatprep.subr.mxu0 0.0
    %8452 = vmatpush1.msra.mxu0 0.0
    %8453 = vmatprep.subr.mxu0 0.0
    %8454 = vmatpush1.msra.mxu0 0.0
    %8455 = vmatprep.subr.mxu0 0.0
    %8456 = vmatpush1.msra.mxu0 0.0
    %8457 = vmatprep.subr.mxu0 0.0
    %8458 = vmatpush1.msra.mxu0 0.0
    %8459 = vmatprep.subr.mxu0 0.0
    %8460 = vmatpush1.msra.mxu0 0.0
    %8461 = vmatprep.subr.mxu0 0.0
    %8462 = vmatpush1.msra.mxu0 0.0
    %8463 = vmatprep.subr.mxu0 0.0
    %8464 = vmatpush1.msra.mxu0 0.0
    %8465 = vmatprep.subr.mxu0 0.0
    %8466 = vmatpush1.msra.mxu0 0.0
    %8467 = vmatprep.subr.mxu0 0.0
    %8468 = vmatpush1.msra.mxu0 0.0
    %8469 = vmatprep.subr.mxu0 0.0
    %8470 = vmatpush1.msra.mxu0 0.0
    %8471 = vmatprep.subr.mxu0 0.0
    %8472 = vmatpush1.msra.mxu0 0.0
    %8473 = vmatprep.subr.mxu0 0.0
    %8474 = vmatpush1.msra.mxu0 0.0
    %8475 = vmatprep.subr.mxu0 0.0
    %8476 = vmatpush1.msra.mxu0 0.0
    %8477 = vmatprep.subr.mxu0 0.0
    %8478 = vmatpush1.msra.mxu0 0.0
    %8479 = vmatprep.subr.mxu0 0.0
    %8480 = vmatpush1.msra.mxu0 0.0
    %8481 = vmatprep.subr.mxu0 0.0
    %8482 = vmatpush1.msra.mxu0 0.0
    %8483 = vmatprep.mubr.f32.mxu0 0.0
    %8484 = vmatmul.mubr.f32.gmra.mrb[0].mxu0 %v8417
    %v8485 = vpop.f32.mrb[0].mxu0
    %v8486 = vadd.f32 0.0, %v8485
    %v8487 = vpop.f32.mrb[0].mxu0
    %8488 = vdwg.mxu0
    %v8489 = vlog2.pop %v8486
    %v8490 = vmul.f32 %v8489, 0.6931472
    %v8491 = vadd.f32 %v8412, %v8490
    %v8493 = vrot.slane %v7061, 1
    %v8495 = vadd.f32 %v8491, %v8493
    %v8497 = vrot.slane %v8495, 7
    %v8499 = vmul.f32 %v7490, %v8497
    %v8501 = vrot.slane %v8409, 7
    %v8503 = vmul.f32 %v7497, %v8501
    %v8504 = vadd.f32 %v8499, %v8503
    %vm8505 = vcmask 33793
    %v8506 = vsel %vm8505, %v8504, -inf
    %8507 = vmax.xlane.f32.xlu0 %v8506
    %v8508 = vpop.xlane.xlu0 %8507
    %v8509 = vsub.f32 %v8504, %v8508
    %v8510 = vmul.f32 %v8509, 1.442695
    %v8511 = vpow.pop %v8510
    %v8513 = vrot.slane %v8511, 1
    %v8514 = vsel %vm7069, %v8513, 0
    %8516 = vmatprep.subr.mxu0 0.0
    %8517 = vmatpush1.msra.mxu0 %v7409
    %8518 = vmatprep.subr.mxu0 0.0
    %8519 = vmatpush1.msra.mxu0 0.0
    %8520 = vmatprep.subr.mxu0 0.0
    %8521 = vmatpush1.msra.mxu0 0.0
    %8522 = vmatprep.subr.mxu0 0.0
    %8523 = vmatpush1.msra.mxu0 0.0
    %8524 = vmatprep.subr.mxu0 0.0
    %8525 = vmatpush1.msra.mxu0 0.0
    %8526 = vmatprep.subr.mxu0 0.0
    %8527 = vmatpush1.msra.mxu0 0.0
    %8528 = vmatprep.subr.mxu0 0.0
    %8529 = vmatpush1.msra.mxu0 0.0
    %8530 = vmatprep.subr.mxu0 0.0
    %8531 = vmatpush1.msra.mxu0 0.0
    %8532 = vmatprep.subr.mxu0 0.0
    %8533 = vmatpush1.msra.mxu0 0.0
    %8534 = vmatprep.subr.mxu0 0.0
    %8535 = vmatpush1.msra.mxu0 0.0
    %8536 = vmatprep.subr.mxu0 0.0
    %8537 = vmatpush1.msra.mxu0 0.0
    %8538 = vmatprep.subr.mxu0 0.0
    %8539 = vmatpush1.msra.mxu0 0.0
    %8540 = vmatprep.subr.mxu0 0.0
    %8541 = vmatpush1.msra.mxu0 0.0
    %8542 = vmatprep.subr.mxu0 0.0
    %8543 = vmatpush1.msra.mxu0 0.0
    %8544 = vmatprep.subr.mxu0 0.0
    %8545 = vmatpush1.msra.mxu0 0.0
    %8546 = vmatprep.subr.mxu0 0.0
    %8547 = vmatpush1.msra.mxu0 0.0
    %8548 = vmatprep.subr.mxu0 0.0
    %8549 = vmatpush1.msra.mxu0 0.0
    %8550 = vmatprep.subr.mxu0 0.0
    %8551 = vmatpush1.msra.mxu0 0.0
    %8552 = vmatprep.subr.mxu0 0.0
    %8553 = vmatpush1.msra.mxu0 0.0
    %8554 = vmatprep.subr.mxu0 0.0
    %8555 = vmatpush1.msra.mxu0 0.0
    %8556 = vmatprep.subr.mxu0 0.0
    %8557 = vmatpush1.msra.mxu0 0.0
    %8558 = vmatprep.subr.mxu0 0.0
    %8559 = vmatpush1.msra.mxu0 0.0
    %8560 = vmatprep.subr.mxu0 0.0
    %8561 = vmatpush1.msra.mxu0 0.0
    %8562 = vmatprep.subr.mxu0 0.0
    %8563 = vmatpush1.msra.mxu0 0.0
    %8564 = vmatprep.subr.mxu0 0.0
    %8565 = vmatpush1.msra.mxu0 0.0
    %8566 = vmatprep.subr.mxu0 0.0
    %8567 = vmatpush1.msra.mxu0 0.0
    %8568 = vmatprep.subr.mxu0 0.0
    %8569 = vmatpush1.msra.mxu0 0.0
    %8570 = vmatprep.subr.mxu0 0.0
    %8571 = vmatpush1.msra.mxu0 0.0
    %8572 = vmatprep.subr.mxu0 0.0
    %8573 = vmatpush1.msra.mxu0 0.0
    %8574 = vmatprep.subr.mxu0 0.0
    %8575 = vmatpush1.msra.mxu0 0.0
    %8576 = vmatprep.subr.mxu0 0.0
    %8577 = vmatpush1.msra.mxu0 0.0
    %8578 = vmatprep.subr.mxu0 0.0
    %8579 = vmatpush1.msra.mxu0 0.0
    %8580 = vmatprep.mubr.f32.mxu0 0.0
    %8581 = vmatmul.mubr.f32.gmra.mrb[0].mxu0 %v8514
    %v8582 = vpop.f32.mrb[0].mxu0
    %v8583 = vadd.f32 0.0, %v8582
    %v8584 = vpop.f32.mrb[0].mxu0
    %8585 = vdwg.mxu0
    %v8586 = vlog2.pop %v8583
    %v8587 = vmul.f32 %v8586, 0.6931472
    %v8589 = vrot.slane %v8587, 7
    %v8591 = vadd.f32 %v8508, %v8589
    %v8592 = vadd.f32 %v8591, %v8493
    %v8593 = vmul.f32 %v7588, %v8592
    %v8594 = vmul.f32 %v7593, %v8504
    %v8595 = vadd.f32 %v8593, %v8594
    %v8596 = vsel %vm8505, %v8595, -inf
    %8597 = vmax.xlane.f32.xlu0 %v8596
    %v8598 = vpop.xlane.xlu0 %8597
    %v8599 = vsub.f32 %v8595, %v8598
    %v8600 = vmul.f32 %v8599, 1.442695
    %v8601 = vpow.pop %v8600
    %v8603 = vrot.slane %v8601, 1
    %v8604 = vsel %vm7069, %v8603, 0
    %8606 = vmatprep.subr.mxu0 0.0
    %8607 = vmatpush1.msra.mxu0 %v7409
    %8608 = vmatprep.subr.mxu0 0.0
    %8609 = vmatpush1.msra.mxu0 0.0
    %8610 = vmatprep.subr.mxu0 0.0
    %8611 = vmatpush1.msra.mxu0 0.0
    %8612 = vmatprep.subr.mxu0 0.0
    %8613 = vmatpush1.msra.mxu0 0.0
    %8614 = vmatprep.subr.mxu0 0.0
    %8615 = vmatpush1.msra.mxu0 0.0
    %8616 = vmatprep.subr.mxu0 0.0
    %8617 = vmatpush1.msra.mxu0 0.0
    %8618 = vmatprep.subr.mxu0 0.0
    %8619 = vmatpush1.msra.mxu0 0.0
    %8620 = vmatprep.subr.mxu0 0.0
    %8621 = vmatpush1.msra.mxu0 0.0
    %8622 = vmatprep.subr.mxu0 0.0
    %8623 = vmatpush1.msra.mxu0 0.0
    %8624 = vmatprep.subr.mxu0 0.0
    %8625 = vmatpush1.msra.mxu0 0.0
    %8626 = vmatprep.subr.mxu0 0.0
    %8627 = vmatpush1.msra.mxu0 0.0
    %8628 = vmatprep.subr.mxu0 0.0
    %8629 = vmatpush1.msra.mxu0 0.0
    %8630 = vmatprep.subr.mxu0 0.0
    %8631 = vmatpush1.msra.mxu0 0.0
    %8632 = vmatprep.subr.mxu0 0.0
    %8633 = vmatpush1.msra.mxu0 0.0
    %8634 = vmatprep.subr.mxu0 0.0
    %8635 = vmatpush1.msra.mxu0 0.0
    %8636 = vmatprep.subr.mxu0 0.0
    %8637 = vmatpush1.msra.mxu0 0.0
    %8638 = vmatprep.subr.mxu0 0.0
    %8639 = vmatpush1.msra.mxu0 0.0
    %8640 = vmatprep.subr.mxu0 0.0
    %8641 = vmatpush1.msra.mxu0 0.0
    %8642 = vmatprep.subr.mxu0 0.0
    %8643 = vmatpush1.msra.mxu0 0.0
    %8644 = vmatprep.subr.mxu0 0.0
    %8645 = vmatpush1.msra.mxu0 0.0
    %8646 = vmatprep.subr.mxu0 0.0
    %8647 = vmatpush1.msra.mxu0 0.0
    %8648 = vmatprep.subr.mxu0 0.0
    %8649 = vmatpush1.msra.mxu0 0.0
    %8650 = vmatprep.subr.mxu0 0.0
    %8651 = vmatpush1.msra.mxu0 0.0
    %8652 = vmatprep.subr.mxu0 0.0
    %8653 = vmatpush1.msra.mxu0 0.0
    %8654 = vmatprep.subr.mxu0 0.0
    %8655 = vmatpush1.msra.mxu0 0.0
    %8656 = vmatprep.subr.mxu0 0.0
    %8657 = vmatpush1.msra.mxu0 0.0
    %8658 = vmatprep.subr.mxu0 0.0
    %8659 = vmatpush1.msra.mxu0 0.0
    %8660 = vmatprep.subr.mxu0 0.0
    %8661 = vmatpush1.msra.mxu0 0.0
    %8662 = vmatprep.subr.mxu0 0.0
    %8663 = vmatpush1.msra.mxu0 0.0
    %8664 = vmatprep.subr.mxu0 0.0
    %8665 = vmatpush1.msra.mxu0 0.0
    %8666 = vmatprep.subr.mxu0 0.0
    %8667 = vmatpush1.msra.mxu0 0.0
    %8668 = vmatprep.subr.mxu0 0.0
    %8669 = vmatpush1.msra.mxu0 0.0
    %8670 = vmatprep.mubr.f32.mxu0 0.0
    %8671 = vmatmul.mubr.f32.gmra.mrb[0].mxu0 %v8604
    %v8672 = vpop.f32.mrb[0].mxu0
    %v8673 = vadd.f32 0.0, %v8672
    %v8674 = vpop.f32.mrb[0].mxu0
    %8675 = vdwg.mxu0
    %v8676 = vlog2.pop %v8673
    %v8677 = vmul.f32 %v8676, 0.6931472
    %v8679 = vrot.slane %v8677, 7
    %v8681 = vadd.f32 %v8598, %v8679
    %v8682 = vrot.slane %v7061, 2
    %v8684 = vadd.f32 %v8681, %v8682
    %v8685 = vmul.f32 %v7684, %v8684
    %v8686 = vmul.f32 %v7689, %v8595
    %v8687 = vadd.f32 %v8685, %v8686
    %v8688 = vsel %vm8505, %v8687, -inf
    %8689 = vmax.xlane.f32.xlu0 %v8688
    %v8690 = vpop.xlane.xlu0 %8689
    %v8691 = vsub.f32 %v8687, %v8690
    %v8692 = vmul.f32 %v8691, 1.442695
    %v8693 = vpow.pop %v8692
    %v8695 = vrot.slane %v8693, 1
    %v8696 = vsel %vm7069, %v8695, 0
    %8698 = vmatprep.subr.mxu0 0.0
    %8699 = vmatpush1.msra.mxu0 %v7409
    %8700 = vmatprep.subr.mxu0 0.0
    %8701 = vmatpush1.msra.mxu0 0.0
    %8702 = vmatprep.subr.mxu0 0.0
    %8703 = vmatpush1.msra.mxu0 0.0
    %8704 = vmatprep.subr.mxu0 0.0
    %8705 = vmatpush1.msra.mxu0 0.0
    %8706 = vmatprep.subr.mxu0 0.0
    %8707 = vmatpush1.msra.mxu0 0.0
    %8708 = vmatprep.subr.mxu0 0.0
    %8709 = vmatpush1.msra.mxu0 0.0
    %8710 = vmatprep.subr.mxu0 0.0
    %8711 = vmatpush1.msra.mxu0 0.0
    %8712 = vmatprep.subr.mxu0 0.0
    %8713 = vmatpush1.msra.mxu0 0.0
    %8714 = vmatprep.subr.mxu0 0.0
    %8715 = vmatpush1.msra.mxu0 0.0
    %8716 = vmatprep.subr.mxu0 0.0
    %8717 = vmatpush1.msra.mxu0 0.0
    %8718 = vmatprep.subr.mxu0 0.0
    %8719 = vmatpush1.msra.mxu0 0.0
    %8720 = vmatprep.subr.mxu0 0.0
    %8721 = vmatpush1.msra.mxu0 0.0
    %8722 = vmatprep.subr.mxu0 0.0
    %8723 = vmatpush1.msra.mxu0 0.0
    %8724 = vmatprep.subr.mxu0 0.0
    %8725 = vmatpush1.msra.mxu0 0.0
    %8726 = vmatprep.subr.mxu0 0.0
    %8727 = vmatpush1.msra.mxu0 0.0
    %8728 = vmatprep.subr.mxu0 0.0
    %8729 = vmatpush1.msra.mxu0 0.0
    %8730 = vmatprep.subr.mxu0 0.0
    %8731 = vmatpush1.msra.mxu0 0.0
    %8732 = vmatprep.subr.mxu0 0.0
    %8733 = vmatpush1.msra.mxu0 0.0
    %8734 = vmatprep.subr.mxu0 0.0
    %8735 = vmatpush1.msra.mxu0 0.0
    %8736 = vmatprep.subr.mxu0 0.0
    %8737 = vmatpush1.msra.mxu0 0.0
    %8738 = vmatprep.subr.mxu0 0.0
    %8739 = vmatpush1.msra.mxu0 0.0
    %8740 = vmatprep.subr.mxu0 0.0
    %8741 = vmatpush1.msra.mxu0 0.0
    %8742 = vmatprep.subr.mxu0 0.0
    %8743 = vmatpush1.msra.mxu0 0.0
    %8744 = vmatprep.subr.mxu0 0.0
    %8745 = vmatpush1.msra.mxu0 0.0
    %8746 = vmatprep.subr.mxu0 0.0
    %8747 = vmatpush1.msra.mxu0 0.0
    %8748 = vmatprep.subr.mxu0 0.0
    %8749 = vmatpush1.msra.mxu0 0.0
    %8750 = vmatprep.subr.mxu0 0.0
    %8751 = vmatpush1.msra.mxu0 0.0
    %8752 = vmatprep.subr.mxu0 0.0
    %8753 = vmatpush1.msra.mxu0 0.0
    %8754 = vmatprep.subr.mxu0 0.0
    %8755 = vmatpush1.msra.mxu0 0.0
    %8756 = vmatprep.subr.mxu0 0.0
    %8757 = vmatpush1.msra.mxu0 0.0
    %8758 = vmatprep.subr.mxu0 0.0
    %8759 = vmatpush1.msra.mxu0 0.0
    %8760 = vmatprep.subr.mxu0 0.0
    %8761 = vmatpush1.msra.mxu0 0.0
    %8762 = vmatprep.mubr.f32.mxu0 0.0
    %8763 = vmatmul.mubr.f32.gmra.mrb[0].mxu0 %v8696
    %v8764 = vpop.f32.mrb[0].mxu0
    %v8765 = vadd.f32 0.0, %v8764
    %v8766 = vpop.f32.mrb[0].mxu0
    %8767 = vdwg.mxu0
    %v8768 = vlog2.pop %v8765
    %v8769 = vmul.f32 %v8768, 0.6931472
    %v8771 = vrot.slane %v8769, 7
    %v8773 = vadd.f32 %v8690, %v8771
    %v8774 = vrot.slane %v7061, 3
    %v8776 = vadd.f32 %v8773, %v8774
    %v8777 = vmul.f32 %v7780, %v8776
    %v8778 = vmul.f32 %v7785, %v8687
    %v8779 = vadd.f32 %v8777, %v8778
    %v8780 = vsel %vm8505, %v8779, -inf
    %8781 = vmax.xlane.f32.xlu0 %v8780
    %v8782 = vpop.xlane.xlu0 %8781
    %v8783 = vsub.f32 %v8779, %v8782
    %v8784 = vmul.f32 %v8783, 1.442695
    %v8785 = vpow.pop %v8784
    %v8787 = vrot.slane %v8785, 1
    %v8788 = vsel %vm7069, %v8787, 0
    %8790 = vmatprep.subr.mxu0 0.0
    %8791 = vmatpush1.msra.mxu0 %v7409
    %8792 = vmatprep.subr.mxu0 0.0
    %8793 = vmatpush1.msra.mxu0 0.0
    %8794 = vmatprep.subr.mxu0 0.0
    %8795 = vmatpush1.msra.mxu0 0.0
    %8796 = vmatprep.subr.mxu0 0.0
    %8797 = vmatpush1.msra.mxu0 0.0
    %8798 = vmatprep.subr.mxu0 0.0
    %8799 = vmatpush1.msra.mxu0 0.0
    %8800 = vmatprep.subr.mxu0 0.0
    %8801 = vmatpush1.msra.mxu0 0.0
    %8802 = vmatprep.subr.mxu0 0.0
    %8803 = vmatpush1.msra.mxu0 0.0
    %8804 = vmatprep.subr.mxu0 0.0
    %8805 = vmatpush1.msra.mxu0 0.0
    %8806 = vmatprep.subr.mxu0 0.0
    %8807 = vmatpush1.msra.mxu0 0.0
    %8808 = vmatprep.subr.mxu0 0.0
    %8809 = vmatpush1.msra.mxu0 0.0
    %8810 = vmatprep.subr.mxu0 0.0
    %8811 = vmatpush1.msra.mxu0 0.0
    %8812 = vmatprep.subr.mxu0 0.0
    %8813 = vmatpush1.msra.mxu0 0.0
    %8814 = vmatprep.subr.mxu0 0.0
    %8815 = vmatpush1.msra.mxu0 0.0
    %8816 = vmatprep.subr.mxu0 0.0
    %8817 = vmatpush1.msra.mxu0 0.0
    %8818 = vmatprep.subr.mxu0 0.0
    %8819 = vmatpush1.msra.mxu0 0.0
    %8820 = vmatprep.subr.mxu0 0.0
    %8821 = vmatpush1.msra.mxu0 0.0
    %8822 = vmatprep.subr.mxu0 0.0
    %8823 = vmatpush1.msra.mxu0 0.0
    %8824 = vmatprep.subr.mxu0 0.0
    %8825 = vmatpush1.msra.mxu0 0.0
    %8826 = vmatprep.subr.mxu0 0.0
    %8827 = vmatpush1.msra.mxu0 0.0
    %8828 = vmatprep.subr.mxu0 0.0
    %8829 = vmatpush1.msra.mxu0 0.0
    %8830 = vmatprep.subr.mxu0 0.0
    %8831 = vmatpush1.msra.mxu0 0.0
    %8832 = vmatprep.subr.mxu0 0.0
    %8833 = vmatpush1.msra.mxu0 0.0
    %8834 = vmatprep.subr.mxu0 0.0
    %8835 = vmatpush1.msra.mxu0 0.0
    %8836 = vmatprep.subr.mxu0 0.0
    %8837 = vmatpush1.msra.mxu0 0.0
    %8838 = vmatprep.subr.mxu0 0.0
    %8839 = vmatpush1.msra.mxu0 0.0
    %8840 = vmatprep.subr.mxu0 0.0
    %8841 = vmatpush1.msra.mxu0 0.0
    %8842 = vmatprep.subr.mxu0 0.0
    %8843 = vmatpush1.msra.mxu0 0.0
    %8844 = vmatprep.subr.mxu0 0.0
    %8845 = vmatpush1.msra.mxu0 0.0
    %8846 = vmatprep.subr.mxu0 0.0
    %8847 = vmatpush1.msra.mxu0 0.0
    %8848 = vmatprep.subr.mxu0 0.0
    %8849 = vmatpush1.msra.mxu0 0.0
    %8850 = vmatprep.subr.mxu0 0.0
    %8851 = vmatpush1.msra.mxu0 0.0
    %8852 = vmatprep.subr.mxu0 0.0
    %8853 = vmatpush1.msra.mxu0 0.0
    %8854 = vmatprep.mubr.f32.mxu0 0.0
    %8855 = vmatmul.mubr.f32.gmra.mrb[0].mxu0 %v8788
    %v8856 = vpop.f32.mrb[0].mxu0
    %v8857 = vadd.f32 0.0, %v8856
    %v8858 = vpop.f32.mrb[0].mxu0
    %8859 = vdwg.mxu0
    %v8860 = vlog2.pop %v8857
    %v8861 = vmul.f32 %v8860, 0.6931472
    %v8863 = vrot.slane %v8861, 7
    %v8865 = vadd.f32 %v8782, %v8863
    %v8866 = vrot.slane %v7061, 4
    %v8868 = vadd.f32 %v8865, %v8866
    %v8869 = vmul.f32 %v7876, %v8868
    %v8870 = vmul.f32 %v7881, %v8779
    %v8871 = vadd.f32 %v8869, %v8870
    %v8872 = vsel %vm8505, %v8871, -inf
    %8873 = vmax.xlane.f32.xlu0 %v8872
    %v8874 = vpop.xlane.xlu0 %8873
    %v8875 = vsub.f32 %v8871, %v8874
    %v8876 = vmul.f32 %v8875, 1.442695
    %v8877 = vpow.pop %v8876
    %v8879 = vrot.slane %v8877, 1
    %v8880 = vsel %vm7069, %v8879, 0
    %8882 = vmatprep.subr.mxu0 0.0
    %8883 = vmatpush1.msra.mxu0 %v7409
    %8884 = vmatprep.subr.mxu0 0.0
    %8885 = vmatpush1.msra.mxu0 0.0
    %8886 = vmatprep.subr.mxu0 0.0
    %8887 = vmatpush1.msra.mxu0 0.0
    %8888 = vmatprep.subr.mxu0 0.0
    %8889 = vmatpush1.msra.mxu0 0.0
    %8890 = vmatprep.subr.mxu0 0.0
    %8891 = vmatpush1.msra.mxu0 0.0
    %8892 = vmatprep.subr.mxu0 0.0
    %8893 = vmatpush1.msra.mxu0 0.0
    %8894 = vmatprep.subr.mxu0 0.0
    %8895 = vmatpush1.msra.mxu0 0.0
    %8896 = vmatprep.subr.mxu0 0.0
    %8897 = vmatpush1.msra.mxu0 0.0
    %8898 = vmatprep.subr.mxu0 0.0
    %8899 = vmatpush1.msra.mxu0 0.0
    %8900 = vmatprep.subr.mxu0 0.0
    %8901 = vmatpush1.msra.mxu0 0.0
    %8902 = vmatprep.subr.mxu0 0.0
    %8903 = vmatpush1.msra.mxu0 0.0
    %8904 = vmatprep.subr.mxu0 0.0
    %8905 = vmatpush1.msra.mxu0 0.0
    %8906 = vmatprep.subr.mxu0 0.0
    %8907 = vmatpush1.msra.mxu0 0.0
    %8908 = vmatprep.subr.mxu0 0.0
    %8909 = vmatpush1.msra.mxu0 0.0
    %8910 = vmatprep.subr.mxu0 0.0
    %8911 = vmatpush1.msra.mxu0 0.0
    %8912 = vmatprep.subr.mxu0 0.0
    %8913 = vmatpush1.msra.mxu0 0.0
    %8914 = vmatprep.subr.mxu0 0.0
    %8915 = vmatpush1.msra.mxu0 0.0
    %8916 = vmatprep.subr.mxu0 0.0
    %8917 = vmatpush1.msra.mxu0 0.0
    %8918 = vmatprep.subr.mxu0 0.0
    %8919 = vmatpush1.msra.mxu0 0.0
    %8920 = vmatprep.subr.mxu0 0.0
    %8921 = vmatpush1.msra.mxu0 0.0
    %8922 = vmatprep.subr.mxu0 0.0
    %8923 = vmatpush1.msra.mxu0 0.0
    %8924 = vmatprep.subr.mxu0 0.0
    %8925 = vmatpush1.msra.mxu0 0.0
    %8926 = vmatprep.subr.mxu0 0.0
    %8927 = vmatpush1.msra.mxu0 0.0
    %8928 = vmatprep.subr.mxu0 0.0
    %8929 = vmatpush1.msra.mxu0 0.0
    %8930 = vmatprep.subr.mxu0 0.0
    %8931 = vmatpush1.msra.mxu0 0.0
    %8932 = vmatprep.subr.mxu0 0.0
    %8933 = vmatpush1.msra.mxu0 0.0
    %8934 = vmatprep.subr.mxu0 0.0
    %8935 = vmatpush1.msra.mxu0 0.0
    %8936 = vmatprep.subr.mxu0 0.0
    %8937 = vmatpush1.msra.mxu0 0.0
    %8938 = vmatprep.subr.mxu0 0.0
    %8939 = vmatpush1.msra.mxu0 0.0
    %8940 = vmatprep.subr.mxu0 0.0
    %8941 = vmatpush1.msra.mxu0 0.0
    %8942 = vmatprep.subr.mxu0 0.0
    %8943 = vmatpush1.msra.mxu0 0.0
    %8944 = vmatprep.subr.mxu0 0.0
    %8945 = vmatpush1.msra.mxu0 0.0
    %8946 = vmatprep.mubr.f32.mxu0 0.0
    %8947 = vmatmul.mubr.f32.gmra.mrb[0].mxu0 %v8880
    %v8948 = vpop.f32.mrb[0].mxu0
    %v8949 = vadd.f32 0.0, %v8948
    %v8950 = vpop.f32.mrb[0].mxu0
    %8951 = vdwg.mxu0
    %v8952 = vlog2.pop %v8949
    %v8953 = vmul.f32 %v8952, 0.6931472
    %v8955 = vrot.slane %v8953, 7
    %v8957 = vadd.f32 %v8874, %v8955
    %v8958 = vrot.slane %v7061, 5
    %v8960 = vadd.f32 %v8957, %v8958
    %v8961 = vmul.f32 %v7972, %v8960
    %v8962 = vmul.f32 %v7977, %v8871
    %v8963 = vadd.f32 %v8961, %v8962
    %v8964 = vsel %vm8505, %v8963, -inf
    %8965 = vmax.xlane.f32.xlu0 %v8964
    %v8966 = vpop.xlane.xlu0 %8965
    %v8967 = vsub.f32 %v8963, %v8966
    %v8968 = vmul.f32 %v8967, 1.442695
    %v8969 = vpow.pop %v8968
    %v8971 = vrot.slane %v8969, 1
    %v8972 = vsel %vm7069, %v8971, 0
    %8974 = vmatprep.subr.mxu0 0.0
    %8975 = vmatpush1.msra.mxu0 %v7409
    %8976 = vmatprep.subr.mxu0 0.0
    %8977 = vmatpush1.msra.mxu0 0.0
    %8978 = vmatprep.subr.mxu0 0.0
    %8979 = vmatpush1.msra.mxu0 0.0
    %8980 = vmatprep.subr.mxu0 0.0
    %8981 = vmatpush1.msra.mxu0 0.0
    %8982 = vmatprep.subr.mxu0 0.0
    %8983 = vmatpush1.msra.mxu0 0.0
    %8984 = vmatprep.subr.mxu0 0.0
    %8985 = vmatpush1.msra.mxu0 0.0
    %8986 = vmatprep.subr.mxu0 0.0
    %8987 = vmatpush1.msra.mxu0 0.0
    %8988 = vmatprep.subr.mxu0 0.0
    %8989 = vmatpush1.msra.mxu0 0.0
    %8990 = vmatprep.subr.mxu0 0.0
    %8991 = vmatpush1.msra.mxu0 0.0
    %8992 = vmatprep.subr.mxu0 0.0
    %8993 = vmatpush1.msra.mxu0 0.0
    %8994 = vmatprep.subr.mxu0 0.0
    %8995 = vmatpush1.msra.mxu0 0.0
    %8996 = vmatprep.subr.mxu0 0.0
    %8997 = vmatpush1.msra.mxu0 0.0
    %8998 = vmatprep.subr.mxu0 0.0
    %8999 = vmatpush1.msra.mxu0 0.0
    %9000 = vmatprep.subr.mxu0 0.0
    %9001 = vmatpush1.msra.mxu0 0.0
    %9002 = vmatprep.subr.mxu0 0.0
    %9003 = vmatpush1.msra.mxu0 0.0
    %9004 = vmatprep.subr.mxu0 0.0
    %9005 = vmatpush1.msra.mxu0 0.0
    %9006 = vmatprep.subr.mxu0 0.0
    %9007 = vmatpush1.msra.mxu0 0.0
    %9008 = vmatprep.subr.mxu0 0.0
    %9009 = vmatpush1.msra.mxu0 0.0
    %9010 = vmatprep.subr.mxu0 0.0
    %9011 = vmatpush1.msra.mxu0 0.0
    %9012 = vmatprep.subr.mxu0 0.0
    %9013 = vmatpush1.msra.mxu0 0.0
    %9014 = vmatprep.subr.mxu0 0.0
    %9015 = vmatpush1.msra.mxu0 0.0
    %9016 = vmatprep.subr.mxu0 0.0
    %9017 = vmatpush1.msra.mxu0 0.0
    %9018 = vmatprep.subr.mxu0 0.0
    %9019 = vmatpush1.msra.mxu0 0.0
    %9020 = vmatprep.subr.mxu0 0.0
    %9021 = vmatpush1.msra.mxu0 0.0
    %9022 = vmatprep.subr.mxu0 0.0
    %9023 = vmatpush1.msra.mxu0 0.0
    %9024 = vmatprep.subr.mxu0 0.0
    %9025 = vmatpush1.msra.mxu0 0.0
    %9026 = vmatprep.subr.mxu0 0.0
    %9027 = vmatpush1.msra.mxu0 0.0
    %9028 = vmatprep.subr.mxu0 0.0
    %9029 = vmatpush1.msra.mxu0 0.0
    %9030 = vmatprep.subr.mxu0 0.0
    %9031 = vmatpush1.msra.mxu0 0.0
    %9032 = vmatprep.subr.mxu0 0.0
    %9033 = vmatpush1.msra.mxu0 0.0
    %9034 = vmatprep.subr.mxu0 0.0
    %9035 = vmatpush1.msra.mxu0 0.0
    %9036 = vmatprep.subr.mxu0 0.0
    %9037 = vmatpush1.msra.mxu0 0.0
    %9038 = vmatprep.mubr.f32.mxu0 0.0
    %9039 = vmatmul.mubr.f32.gmra.mrb[0].mxu0 %v8972
    %v9040 = vpop.f32.mrb[0].mxu0
    %v9041 = vadd.f32 0.0, %v9040
    %v9042 = vpop.f32.mrb[0].mxu0
    %9043 = vdwg.mxu0
    %v9044 = vlog2.pop %v9041
    %v9045 = vmul.f32 %v9044, 0.6931472
    %v9047 = vrot.slane %v9045, 7
    %v9049 = vadd.f32 %v8966, %v9047
    %v9050 = vrot.slane %v7061, 6
    %v9052 = vadd.f32 %v9049, %v9050
    %v9053 = vmul.f32 %v8068, %v9052
    %v9054 = vmul.f32 %v8073, %v8963
    %v9055 = vadd.f32 %v9053, %v9054
    %v9056 = vadd.f32 %v9055, %v7062
    %v9057 = vsel %vm8505, %v9056, -inf
    %9058 = vmax.xlane.f32.xlu0 %v9057
    %v9059 = vpop.xlane.xlu0 %9058
    %v9060 = vsub.f32 %v9056, %v9059
    %v9061 = vmul.f32 %v9060, 1.442695
    %v9062 = vpow.pop %v9061
    %v9063 = vsel %vm8505, %v9062, 0.0
    %9064 = vadd.xlane.f32.xlu0 %v9063
    %v9065 = vpop.xlane.xlu0 %9064
    %v9066 = vlog2.pop %v9065
    %v9067 = vmul.f32 %v9066, 0.6931472
    %v9068 = vadd.f32 %v9059, %v9067
    %v9070 = vrot.slane %v9068, 1
    %v9072 = vsub.f32 %v8408, %v9070
    %v9073 = vadd.f32 %v8091, %v9072
    %v9074 = vmul.f32 %v9073, -0.5
    %vm9075 = vcmask 0
    %9076 = vst.msk [vmem:[#allocation2] sm:$0x1] %vm9075, %v9074
    // Predicated region
    $region54: #{umt_mner_forward.1} parent=1 // pred_check
      _
    $region55: #{umt_mner_forward.1} parent=1 // pred_check_branch
      %9078 = sbr.rel (0) target = $region57
    $region56: #{umt_mner_forward.1} parent=1 // pred_region
      %s9080 = ssub.s32 16, 16
      %9081 = vsyncadd [#allocation3], %s9080
      %s9083 = sshll.u32 [#allocation2], 4
      %s9084 = int_to_ptr.vmem [resolvable:$true] %s9083
      %9086 = dma.vmem_to_hbm [thread:$0]  %s9084, 16, %s13, [#allocation3]
    $region57: #{umt_mner_forward.1} parent=1 // pred_fallthru
      _
    // Predicated region
    $region58: #{umt_mner_forward.1} parent=1 // pred_check
      _
    $region59: #{umt_mner_forward.1} parent=1 // pred_check_branch
      %9088 = sbr.rel (0) target = $region61
    $region60: #{umt_mner_forward.1} parent=1 // pred_region
      %9089 = dma.done [#allocation3], 16
    $region61: #{umt_mner_forward.1} parent=1 // pred_fallthru
      _
    %9090 = vsyncpa [#allocation3], 1

</llo_original>
